<compile_context>
chip_gen: v6e
topology: v6e:2x2x1
jax: 0.10.0
libtpu: 0.0.40
codegen_flags: <defaults>
</compile_context>

<pallas_src>
import functools

import numpy as np
import jax
import jax.numpy as jnp
from jax import lax
from jax.experimental import pallas as pl
from jax.experimental.pallas import tpu as pltpu


# ----------------------------------------------------------------------------
# Kernel
# ----------------------------------------------------------------------------
def _decoder_kernel(x_ref, m_ref, c1w_ref, c1b_ref, rw1_ref, rb1_ref,
                    rw2_ref, rb2_ref, u1w_ref, u1b_ref, u2w_ref, u2b_ref,
                    o_ref, *, H, W, nl):
    """Whole decoder for one batch element, fully VMEM/vreg resident.

    Activations are lane-dense (C, H*W) f32.  Every 3x3 conv (plain or
    upsample-folded) is 9 accumulating MXU matmuls (M, C) @ (C, H*W) on
    pltpu.roll-shifted inputs; image-border zero padding is a per-tap lane
    mask (precomputed host-side, m_ref[t] : (1, H*W))."""
    HW = H * W

    def conv9(x, get_w, b):
        # x: (C, HW); get_w(t) -> (M, C); b: (M, 1).  Returns (M, HW) f32.
        acc = None
        for t in range(9):
            dy, dx = t // 3 - 1, t % 3 - 1
            s = dy * W + dx                              # source lane offset
            # want xs[:, p] = x[:, p + s]  ==  roll by (-s) mod HW
            xs = x if s == 0 else pltpu.roll(x, (-s) % HW, axis=1)
            if s != 0:
                xs = xs * m_ref[t]                       # zero padded-border taps
            y = jnp.dot(get_w(t), xs, preferred_element_type=jnp.float32)
            acc = y if acc is None else acc + y
        return acc + b

    x = x_ref[0].astype(jnp.float32)                                  # (Cin, HW)

    # _conv_1
    h = conv9(x, lambda t: c1w_ref[t], c1b_ref[...])                  # (Ch, HW)

    # residual stack
    for l in range(nl):
        t1 = conv9(jnp.maximum(h, 0.0),
                   lambda t, l=l: rw1_ref[l, t], rb1_ref[l])          # (Crh, HW)
        t1 = jnp.maximum(t1, 0.0)
        h = h + jnp.dot(rw2_ref[l], t1,
                        preferred_element_type=jnp.float32) + rb2_ref[l]
    h = jnp.maximum(h, 0.0)                                           # stack ReLU

    # _conv_trans_1: nearest-2x-upsample + conv3x3 folded onto the HxW grid.
    # Output rows are (parity, channel): (2*py+px)*C1 + c  <->  pixel (2y+py, 2x+px).
    h = conv9(h, lambda t: u1w_ref[t], u1b_ref[...])                  # (4*C1, HW)
    h = jnp.maximum(h, 0.0)                                           # F.relu

    # _conv_trans_2: second upsample + conv3x3, folded directly onto the parity
    # representation above (the 2Hx2W map is never materialised).
    out = conv9(h, lambda t: u2w_ref[t], u2b_ref[...])                # (16*Cout, HW)
    o_ref[0] = out.astype(o_ref.dtype)


# ----------------------------------------------------------------------------
# Host-side weight folding / layout glue (tiny tensors, jit-safe)
# ----------------------------------------------------------------------------
def _fold_conv3x3(w):
    """Plain SAME conv3x3: (3,3,Cin,Cout) -> (9, Cout, Cin), tap 3*(dy+1)+(dx+1)."""
    return jnp.stack([w[t // 3, t % 3].T for t in range(9)], axis=0)


def _fold_upconv(w, g):
    """Exactly fold conv3x3-after-nearest-2x-upsample into 9 per-shift matrices
    acting on the low-res HxW grid.

    Input image is in "parity" form R_g: channel (ay*g+ax)*Cin + ci holds pixel
    (g*y+ay, g*x+ax, ci).  Output comes out in R_{2g} form: channel
    (by*2g+bx)*Cout + co holds pixel (2g*y+by, 2g*x+bx, co).

    w: (3,3,Cin,Cout) -> (9, (2g)^2*Cout, g^2*Cin), tap index 3*(dy+1)+(dx+1)."""
    cin, cout = w.shape[2], w.shape[3]
    G = 2 * g

    def dec(t):                       # floor(t/2) = g*d + a, a in [0, g)
        f = t // 2
        d = -1 if f < 0 else (1 if f >= g else 0)
        return d, f - d * g

    contrib = {}
    for by in range(G):
        for bx in range(G):
            ob = by * G + bx
            for ky in range(3):
                for kx in range(3):
                    dy, ay = dec(by + ky - 1)
                    dx, ax = dec(bx + kx - 1)
                    key = (3 * (dy + 1) + (dx + 1), ob, ay * g + ax)
                    contrib.setdefault(key, []).append((ky, kx))

    zero = jnp.zeros((cout, cin), w.dtype)
    taps = []
    for t in range(9):
        rows = []
        for ob in range(G * G):
            blks = []
            for ib in range(g * g):
                blk = zero
                for (ky, kx) in contrib.get((t, ob, ib), ()):
                    blk = blk + w[ky, kx].T
                blks.append(blk)
            rows.append(jnp.concatenate(blks, axis=1))    # (Cout, g*g*Cin)
        taps.append(jnp.concatenate(rows, axis=0))        # (G*G*Cout, g*g*Cin)
    return jnp.stack(taps, axis=0)                        # (9, G*G*Cout, g*g*Cin)


def _tap_masks(H, W):
    """Per-tap zero-padding masks on the flattened HxW lane axis: (9, 1, H*W)."""
    yy, xx = np.meshgrid(np.arange(H), np.arange(W), indexing="ij")
    m = np.zeros((9, 1, H * W), np.float32)
    for t in range(9):
        dy, dx = t // 3 - 1, t % 3 - 1
        valid = ((yy + dy >= 0) & (yy + dy < H) &
                 (xx + dx >= 0) & (xx + dx < W))
        m[t, 0] = valid.reshape(-1)
    return jnp.asarray(m)


def _full_spec(shape):
    zero = (0,) * len(shape)
    return pl.BlockSpec(shape, lambda n, _z=zero: _z)


# ----------------------------------------------------------------------------
# Decoder forward
# ----------------------------------------------------------------------------
def decoder_forward(x_nchw, params):
    N, Cin, H, W = x_nchw.shape
    HW = H * W
    Ch = params["conv1_w"].shape[-1]
    C1 = params["up1_w"].shape[-1]
    Cout = params["up2_w"].shape[-1]
    nl = len(params["res"])

    x = x_nchw.reshape(N, Cin, HW)             # NCHW -> lane-dense (N, C, H*W), free

    # ---- host-side static weight prep (tiny tensors) -------------------------
    c1w = _fold_conv3x3(params["conv1_w"])                        # (9, Ch, Cin)
    c1b = params["conv1_b"].T                                     # (Ch, 1)
    rw1 = jnp.stack([_fold_conv3x3(w1) for (w1, _, _, _) in params["res"]])
    rb1 = jnp.stack([b1.T for (_, b1, _, _) in params["res"]])    # (nl, Crh, 1)
    rw2 = jnp.stack([w2.T for (_, _, w2, _) in params["res"]])    # (nl, Ch, Crh)
    rb2 = jnp.stack([b2.T for (_, _, _, b2) in params["res"]])    # (nl, Ch, 1)
    u1w = _fold_upconv(params["up1_w"], 1)                        # (9, 4*C1, Ch)
    u1b = jnp.tile(params["up1_b"].T, (4, 1))                     # (4*C1, 1)
    u2w = _fold_upconv(params["up2_w"], 2)                        # (9, 16*Cout, 4*C1)
    u2b = jnp.tile(params["up2_b"].T, (16, 1))                    # (16*Cout, 1)
    masks = _tap_masks(H, W)                                      # (9, 1, HW)

    args = [x, masks, c1w, c1b, rw1, rb1, rw2, rb2, u1w, u1b, u2w, u2b]
    in_specs = ([pl.BlockSpec((1, Cin, HW), lambda n: (n, 0, 0))]
                + [_full_spec(a.shape) for a in args[1:]])

    p = pl.pallas_call(
        functools.partial(_decoder_kernel, H=H, W=W, nl=nl),
        out_shape=jax.ShapeDtypeStruct((N, 16 * Cout, HW), x_nchw.dtype),
        grid=(N,),
        in_specs=in_specs,
        out_specs=pl.BlockSpec((1, 16 * Cout, HW), lambda n: (n, 0, 0)),
        compiler_params=pltpu.CompilerParams(
            dimension_semantics=("parallel",)),
    )(*args)

    # (N, 16*Cout, H*W) parity layout -> (N, Cout, 4H, 4W).  Small final tensor;
    # pure layout pass done once by XLA (no intermediate ever hit HBM).
    p = p.reshape(N, 4, 4, Cout, H, W)
    p = jnp.transpose(p, (0, 3, 4, 1, 5, 2))
    return p.reshape(N, Cout, 4 * H, 4 * W)


# ----------------------------------------------------------------------------
# Pure-JAX reference (for correctness check) and deterministic params
# ----------------------------------------------------------------------------
def _ref_conv(x, w, b, pad="SAME"):
    y = lax.conv_general_dilated(x, w, (1, 1), pad,
                                 dimension_numbers=("NHWC", "HWIO", "NHWC"))
    return y + b[0]


def _upsample2x(x):
    return jnp.repeat(jnp.repeat(x, 2, axis=1), 2, axis=2)


def reference_forward(x_nchw, params):
    x = jnp.transpose(x_nchw, (0, 2, 3, 1))
    h = _ref_conv(x, params["conv1_w"], params["conv1_b"])
    for (w1, b1, w2, b2) in params["res"]:
        t = jax.nn.relu(h)
        t = jax.nn.relu(_ref_conv(t, w1, b1))
        t = _ref_conv(t, w2[None, None], b2, pad="VALID")
        h = h + t
    h = jax.nn.relu(h)
    h = _upsample2x(h)
    h = _ref_conv(h, params["up1_w"], params["up1_b"])
    h = jax.nn.relu(h)
    h = _upsample2x(h)
    h = _ref_conv(h, params["up2_w"], params["up2_b"])
    return jnp.transpose(h, (0, 3, 1, 2))


def init_params(key, in_channels, num_hiddens, num_residual_layers,
                num_residual_hiddens, output_channels):
    keys = jax.random.split(key, 4 + 2 * num_residual_layers)
    s = 0.05
    params = {
        "conv1_w": s * jax.random.normal(keys[0], (3, 3, in_channels, num_hiddens), jnp.float32),
        "conv1_b": s * jax.random.normal(keys[1], (1, num_hiddens), jnp.float32),
        "res": [],
        "up1_w": s * jax.random.normal(keys[2], (3, 3, num_hiddens, num_hiddens // 2), jnp.float32),
        "up1_b": s * jax.random.normal(keys[3], (1, num_hiddens // 2), jnp.float32),
    }
    for i in range(num_residual_layers):
        k1, k2 = keys[4 + 2 * i], keys[5 + 2 * i]
        ka, kb = jax.random.split(k1)
        kc, kd = jax.random.split(k2)
        params["res"].append((
            s * jax.random.normal(ka, (3, 3, num_hiddens, num_residual_hiddens), jnp.float32),
            s * jax.random.normal(kb, (1, num_residual_hiddens), jnp.float32),
            s * jax.random.normal(kc, (num_residual_hiddens, num_hiddens), jnp.float32),
            s * jax.random.normal(kd, (1, num_hiddens), jnp.float32),
        ))
    k_up2 = jax.random.fold_in(key, 1234)
    ke, kf = jax.random.split(k_up2)
    params["up2_w"] = s * jax.random.normal(ke, (3, 3, num_hiddens // 2, output_channels), jnp.float32)
    params["up2_b"] = s * jax.random.normal(kf, (1, output_channels), jnp.float32)
    return params


if __name__ == "__main__":
    # Small shapes consistent with the module: latent (N, Cin, H, W)
    N, Cin, H, W = 2, 4, 16, 16
    num_hiddens, num_res_layers, num_res_hiddens, out_ch = 32, 2, 16, 1

    key = jax.random.PRNGKey(0)
    kx, kp = jax.random.split(key)
    x = jax.random.normal(kx, (N, Cin, H, W), jnp.float32)
    params = init_params(kp, Cin, num_hiddens, num_res_layers,
                         num_res_hiddens, out_ch)

    out = jax.block_until_ready(jax.jit(decoder_forward)(x, params))
    ref = jax.block_until_ready(reference_forward(x, params))

    assert out.shape == (N, out_ch, 4 * H, 4 * W), out.shape
    err = float(jnp.max(jnp.abs(out - ref)))
    assert err < 2e-4, f"mismatch vs JAX reference: {err}"

    print("KERNEL_OK")
</pallas_src>

<mosaic_0001>
module attributes {stable_mosaic.version = 11 : i64} {
  func.func @_decoder_kernel(%arg0: i32, %arg1: memref<1x4x256xf32, #tpu.memory_space<vmem>>, %arg2: memref<9x1x256xf32, #tpu.memory_space<vmem>>, %arg3: memref<9x32x4xf32, #tpu.memory_space<vmem>>, %arg4: memref<32x1xf32, #tpu.memory_space<vmem>>, %arg5: memref<2x9x16x32xf32, #tpu.memory_space<vmem>>, %arg6: memref<2x16x1xf32, #tpu.memory_space<vmem>>, %arg7: memref<2x32x16xf32, #tpu.memory_space<vmem>>, %arg8: memref<2x32x1xf32, #tpu.memory_space<vmem>>, %arg9: memref<9x64x32xf32, #tpu.memory_space<vmem>>, %arg10: memref<64x1xf32, #tpu.memory_space<vmem>>, %arg11: memref<9x16x64xf32, #tpu.memory_space<vmem>>, %arg12: memref<16x1xf32, #tpu.memory_space<vmem>>, %arg13: memref<1x16x256xf32, #tpu.memory_space<vmem>>) attributes {dimension_semantics = [#tpu.dimension_semantics<parallel>], iteration_bounds = array<i64: 2>, scalar_prefetch = 0 : i64, scratch_operands = 0 : i64, tpu.core_type = #tpu.core_type<tc>, window_params = [{transform_indices = @transform_0, window_bounds = array<i64: 1, 4, 256>}, {pipeline_mode = #tpu.pipeline_mode<synchronous>, transform_indices = @transform_1, window_bounds = array<i64: 9, 1, 256>}, {pipeline_mode = #tpu.pipeline_mode<synchronous>, transform_indices = @transform_2, window_bounds = array<i64: 9, 32, 4>}, {pipeline_mode = #tpu.pipeline_mode<synchronous>, transform_indices = @transform_3, window_bounds = array<i64: 32, 1>}, {pipeline_mode = #tpu.pipeline_mode<synchronous>, transform_indices = @transform_4, window_bounds = array<i64: 2, 9, 16, 32>}, {pipeline_mode = #tpu.pipeline_mode<synchronous>, transform_indices = @transform_5, window_bounds = array<i64: 2, 16, 1>}, {pipeline_mode = #tpu.pipeline_mode<synchronous>, transform_indices = @transform_6, window_bounds = array<i64: 2, 32, 16>}, {pipeline_mode = #tpu.pipeline_mode<synchronous>, transform_indices = @transform_7, window_bounds = array<i64: 2, 32, 1>}, {pipeline_mode = #tpu.pipeline_mode<synchronous>, transform_indices = @transform_8, window_bounds = array<i64: 9, 64, 32>}, {pipeline_mode = #tpu.pipeline_mode<synchronous>, transform_indices = @transform_9, window_bounds = array<i64: 64, 1>}, {pipeline_mode = #tpu.pipeline_mode<synchronous>, transform_indices = @transform_10, window_bounds = array<i64: 9, 16, 64>}, {pipeline_mode = #tpu.pipeline_mode<synchronous>, transform_indices = @transform_11, window_bounds = array<i64: 16, 1>}, {transform_indices = @transform_12, window_bounds = array<i64: 1, 16, 256>}]} {
    %c0 = arith.constant 0 : index
    %c0_0 = arith.constant 0 : index
    %c0_1 = arith.constant 0 : index
    %0 = vector.load %arg1[%c0, %c0_0, %c0_1] : memref<1x4x256xf32, #tpu.memory_space<vmem>>, vector<1x4x256xf32>
    %1 = vector.shape_cast %0 : vector<1x4x256xf32> to vector<4x256xf32>
    %c0_2 = arith.constant 0 : index
    %c0_3 = arith.constant 0 : index
    %2 = vector.load %arg4[%c0_2, %c0_3] : memref<32x1xf32, #tpu.memory_space<vmem>>, vector<32x1xf32>
    %c17_i32 = arith.constant 17 : i32
    %3 = tpu.dynamic_rotate %1 by %c17_i32 dim 1 : vector<4x256xf32>, i32 -> vector<4x256xf32>
    %c0_4 = arith.constant 0 : index
    %c0_5 = arith.constant 0 : index
    %c0_6 = arith.constant 0 : index
    %4 = vector.load %arg2[%c0_4, %c0_5, %c0_6] : memref<9x1x256xf32, #tpu.memory_space<vmem>>, vector<1x1x256xf32>
    %5 = vector.shape_cast %4 : vector<1x1x256xf32> to vector<1x256xf32>
    %6 = vector.broadcast %5 : vector<1x256xf32> to vector<4x256xf32>
    %7 = arith.mulf %3, %6 : vector<4x256xf32>
    %c0_7 = arith.constant 0 : index
    %c0_8 = arith.constant 0 : index
    %c0_9 = arith.constant 0 : index
    %8 = vector.load %arg3[%c0_7, %c0_8, %c0_9] : memref<9x32x4xf32, #tpu.memory_space<vmem>>, vector<1x32x4xf32>
    %9 = vector.shape_cast %8 : vector<1x32x4xf32> to vector<32x4xf32>
    %cst = arith.constant dense<0.000000e+00> : vector<32x256xf32>
    %10 = tpu.matmul %9, %7, %cst {dimension_numbers = #tpu.dot_dimension_numbers<[1], [0], [0], [1], [0, 0, 1, 1], [], []>} : vector<32x4xf32>, vector<4x256xf32>, vector<32x256xf32> -> vector<32x256xf32>
    %c16_i32 = arith.constant 16 : i32
    %11 = tpu.dynamic_rotate %1 by %c16_i32 dim 1 : vector<4x256xf32>, i32 -> vector<4x256xf32>
    %c1 = arith.constant 1 : index
    %c0_10 = arith.constant 0 : index
    %c0_11 = arith.constant 0 : index
    %12 = vector.load %arg2[%c1, %c0_10, %c0_11] : memref<9x1x256xf32, #tpu.memory_space<vmem>>, vector<1x1x256xf32>
    %13 = vector.shape_cast %12 : vector<1x1x256xf32> to vector<1x256xf32>
    %14 = vector.broadcast %13 : vector<1x256xf32> to vector<4x256xf32>
    %15 = arith.mulf %11, %14 : vector<4x256xf32>
    %c1_12 = arith.constant 1 : index
    %c0_13 = arith.constant 0 : index
    %c0_14 = arith.constant 0 : index
    %16 = vector.load %arg3[%c1_12, %c0_13, %c0_14] : memref<9x32x4xf32, #tpu.memory_space<vmem>>, vector<1x32x4xf32>
    %17 = vector.shape_cast %16 : vector<1x32x4xf32> to vector<32x4xf32>
    %cst_15 = arith.constant dense<0.000000e+00> : vector<32x256xf32>
    %18 = tpu.matmul %17, %15, %cst_15 {dimension_numbers = #tpu.dot_dimension_numbers<[1], [0], [0], [1], [0, 0, 1, 1], [], []>} : vector<32x4xf32>, vector<4x256xf32>, vector<32x256xf32> -> vector<32x256xf32>
    %19 = arith.addf %10, %18 : vector<32x256xf32>
    %c15_i32 = arith.constant 15 : i32
    %20 = tpu.dynamic_rotate %1 by %c15_i32 dim 1 : vector<4x256xf32>, i32 -> vector<4x256xf32>
    %c2 = arith.constant 2 : index
    %c0_16 = arith.constant 0 : index
    %c0_17 = arith.constant 0 : index
    %21 = vector.load %arg2[%c2, %c0_16, %c0_17] : memref<9x1x256xf32, #tpu.memory_space<vmem>>, vector<1x1x256xf32>
    %22 = vector.shape_cast %21 : vector<1x1x256xf32> to vector<1x256xf32>
    %23 = vector.broadcast %22 : vector<1x256xf32> to vector<4x256xf32>
    %24 = arith.mulf %20, %23 : vector<4x256xf32>
    %c2_18 = arith.constant 2 : index
    %c0_19 = arith.constant 0 : index
    %c0_20 = arith.constant 0 : index
    %25 = vector.load %arg3[%c2_18, %c0_19, %c0_20] : memref<9x32x4xf32, #tpu.memory_space<vmem>>, vector<1x32x4xf32>
    %26 = vector.shape_cast %25 : vector<1x32x4xf32> to vector<32x4xf32>
    %cst_21 = arith.constant dense<0.000000e+00> : vector<32x256xf32>
    %27 = tpu.matmul %26, %24, %cst_21 {dimension_numbers = #tpu.dot_dimension_numbers<[1], [0], [0], [1], [0, 0, 1, 1], [], []>} : vector<32x4xf32>, vector<4x256xf32>, vector<32x256xf32> -> vector<32x256xf32>
    %28 = arith.addf %19, %27 : vector<32x256xf32>
    %c1_i32 = arith.constant 1 : i32
    %29 = tpu.dynamic_rotate %1 by %c1_i32 dim 1 : vector<4x256xf32>, i32 -> vector<4x256xf32>
    %c3 = arith.constant 3 : index
    %c0_22 = arith.constant 0 : index
    %c0_23 = arith.constant 0 : index
    %30 = vector.load %arg2[%c3, %c0_22, %c0_23] : memref<9x1x256xf32, #tpu.memory_space<vmem>>, vector<1x1x256xf32>
    %31 = vector.shape_cast %30 : vector<1x1x256xf32> to vector<1x256xf32>
    %32 = vector.broadcast %31 : vector<1x256xf32> to vector<4x256xf32>
    %33 = arith.mulf %29, %32 : vector<4x256xf32>
    %c3_24 = arith.constant 3 : index
    %c0_25 = arith.constant 0 : index
    %c0_26 = arith.constant 0 : index
    %34 = vector.load %arg3[%c3_24, %c0_25, %c0_26] : memref<9x32x4xf32, #tpu.memory_space<vmem>>, vector<1x32x4xf32>
    %35 = vector.shape_cast %34 : vector<1x32x4xf32> to vector<32x4xf32>
    %cst_27 = arith.constant dense<0.000000e+00> : vector<32x256xf32>
    %36 = tpu.matmul %35, %33, %cst_27 {dimension_numbers = #tpu.dot_dimension_numbers<[1], [0], [0], [1], [0, 0, 1, 1], [], []>} : vector<32x4xf32>, vector<4x256xf32>, vector<32x256xf32> -> vector<32x256xf32>
    %37 = arith.addf %28, %36 : vector<32x256xf32>
    %c4 = arith.constant 4 : index
    %c0_28 = arith.constant 0 : index
    %c0_29 = arith.constant 0 : index
    %38 = vector.load %arg3[%c4, %c0_28, %c0_29] : memref<9x32x4xf32, #tpu.memory_space<vmem>>, vector<1x32x4xf32>
    %39 = vector.shape_cast %38 : vector<1x32x4xf32> to vector<32x4xf32>
    %cst_30 = arith.constant dense<0.000000e+00> : vector<32x256xf32>
    %40 = tpu.matmul %39, %1, %cst_30 {dimension_numbers = #tpu.dot_dimension_numbers<[1], [0], [0], [1], [0, 0, 1, 1], [], []>} : vector<32x4xf32>, vector<4x256xf32>, vector<32x256xf32> -> vector<32x256xf32>
    %41 = arith.addf %37, %40 : vector<32x256xf32>
    %c255_i32 = arith.constant 255 : i32
    %42 = tpu.dynamic_rotate %1 by %c255_i32 dim 1 : vector<4x256xf32>, i32 -> vector<4x256xf32>
    %c5 = arith.constant 5 : index
    %c0_31 = arith.constant 0 : index
    %c0_32 = arith.constant 0 : index
    %43 = vector.load %arg2[%c5, %c0_31, %c0_32] : memref<9x1x256xf32, #tpu.memory_space<vmem>>, vector<1x1x256xf32>
    %44 = vector.shape_cast %43 : vector<1x1x256xf32> to vector<1x256xf32>
    %45 = vector.broadcast %44 : vector<1x256xf32> to vector<4x256xf32>
    %46 = arith.mulf %42, %45 : vector<4x256xf32>
    %c5_33 = arith.constant 5 : index
    %c0_34 = arith.constant 0 : index
    %c0_35 = arith.constant 0 : index
    %47 = vector.load %arg3[%c5_33, %c0_34, %c0_35] : memref<9x32x4xf32, #tpu.memory_space<vmem>>, vector<1x32x4xf32>
    %48 = vector.shape_cast %47 : vector<1x32x4xf32> to vector<32x4xf32>
    %cst_36 = arith.constant dense<0.000000e+00> : vector<32x256xf32>
    %49 = tpu.matmul %48, %46, %cst_36 {dimension_numbers = #tpu.dot_dimension_numbers<[1], [0], [0], [1], [0, 0, 1, 1], [], []>} : vector<32x4xf32>, vector<4x256xf32>, vector<32x256xf32> -> vector<32x256xf32>
    %50 = arith.addf %41, %49 : vector<32x256xf32>
    %c241_i32 = arith.constant 241 : i32
    %51 = tpu.dynamic_rotate %1 by %c241_i32 dim 1 : vector<4x256xf32>, i32 -> vector<4x256xf32>
    %c6 = arith.constant 6 : index
    %c0_37 = arith.constant 0 : index
    %c0_38 = arith.constant 0 : index
    %52 = vector.load %arg2[%c6, %c0_37, %c0_38] : memref<9x1x256xf32, #tpu.memory_space<vmem>>, vector<1x1x256xf32>
    %53 = vector.shape_cast %52 : vector<1x1x256xf32> to vector<1x256xf32>
    %54 = vector.broadcast %53 : vector<1x256xf32> to vector<4x256xf32>
    %55 = arith.mulf %51, %54 : vector<4x256xf32>
    %c6_39 = arith.constant 6 : index
    %c0_40 = arith.constant 0 : index
    %c0_41 = arith.constant 0 : index
    %56 = vector.load %arg3[%c6_39, %c0_40, %c0_41] : memref<9x32x4xf32, #tpu.memory_space<vmem>>, vector<1x32x4xf32>
    %57 = vector.shape_cast %56 : vector<1x32x4xf32> to vector<32x4xf32>
    %cst_42 = arith.constant dense<0.000000e+00> : vector<32x256xf32>
    %58 = tpu.matmul %57, %55, %cst_42 {dimension_numbers = #tpu.dot_dimension_numbers<[1], [0], [0], [1], [0, 0, 1, 1], [], []>} : vector<32x4xf32>, vector<4x256xf32>, vector<32x256xf32> -> vector<32x256xf32>
    %59 = arith.addf %50, %58 : vector<32x256xf32>
    %c240_i32 = arith.constant 240 : i32
    %60 = tpu.dynamic_rotate %1 by %c240_i32 dim 1 : vector<4x256xf32>, i32 -> vector<4x256xf32>
    %c7 = arith.constant 7 : index
    %c0_43 = arith.constant 0 : index
    %c0_44 = arith.constant 0 : index
    %61 = vector.load %arg2[%c7, %c0_43, %c0_44] : memref<9x1x256xf32, #tpu.memory_space<vmem>>, vector<1x1x256xf32>
    %62 = vector.shape_cast %61 : vector<1x1x256xf32> to vector<1x256xf32>
    %63 = vector.broadcast %62 : vector<1x256xf32> to vector<4x256xf32>
    %64 = arith.mulf %60, %63 : vector<4x256xf32>
    %c7_45 = arith.constant 7 : index
    %c0_46 = arith.constant 0 : index
    %c0_47 = arith.constant 0 : index
    %65 = vector.load %arg3[%c7_45, %c0_46, %c0_47] : memref<9x32x4xf32, #tpu.memory_space<vmem>>, vector<1x32x4xf32>
    %66 = vector.shape_cast %65 : vector<1x32x4xf32> to vector<32x4xf32>
    %cst_48 = arith.constant dense<0.000000e+00> : vector<32x256xf32>
    %67 = tpu.matmul %66, %64, %cst_48 {dimension_numbers = #tpu.dot_dimension_numbers<[1], [0], [0], [1], [0, 0, 1, 1], [], []>} : vector<32x4xf32>, vector<4x256xf32>, vector<32x256xf32> -> vector<32x256xf32>
    %68 = arith.addf %59, %67 : vector<32x256xf32>
    %c239_i32 = arith.constant 239 : i32
    %69 = tpu.dynamic_rotate %1 by %c239_i32 dim 1 : vector<4x256xf32>, i32 -> vector<4x256xf32>
    %c8 = arith.constant 8 : index
    %c0_49 = arith.constant 0 : index
    %c0_50 = arith.constant 0 : index
    %70 = vector.load %arg2[%c8, %c0_49, %c0_50] : memref<9x1x256xf32, #tpu.memory_space<vmem>>, vector<1x1x256xf32>
    %71 = vector.shape_cast %70 : vector<1x1x256xf32> to vector<1x256xf32>
    %72 = vector.broadcast %71 : vector<1x256xf32> to vector<4x256xf32>
    %73 = arith.mulf %69, %72 : vector<4x256xf32>
    %c8_51 = arith.constant 8 : index
    %c0_52 = arith.constant 0 : index
    %c0_53 = arith.constant 0 : index
    %74 = vector.load %arg3[%c8_51, %c0_52, %c0_53] : memref<9x32x4xf32, #tpu.memory_space<vmem>>, vector<1x32x4xf32>
    %75 = vector.shape_cast %74 : vector<1x32x4xf32> to vector<32x4xf32>
    %cst_54 = arith.constant dense<0.000000e+00> : vector<32x256xf32>
    %76 = tpu.matmul %75, %73, %cst_54 {dimension_numbers = #tpu.dot_dimension_numbers<[1], [0], [0], [1], [0, 0, 1, 1], [], []>} : vector<32x4xf32>, vector<4x256xf32>, vector<32x256xf32> -> vector<32x256xf32>
    %77 = arith.addf %68, %76 : vector<32x256xf32>
    %78 = vector.broadcast %2 : vector<32x1xf32> to vector<32x256xf32>
    %79 = arith.addf %77, %78 : vector<32x256xf32>
    %cst_55 = arith.constant 0.000000e+00 : f32
    %80 = vector.broadcast %cst_55 : f32 to vector<32x256xf32>
    %81 = arith.maximumf %79, %80 : vector<32x256xf32>
    %c0_56 = arith.constant 0 : index
    %c0_57 = arith.constant 0 : index
    %c0_58 = arith.constant 0 : index
    %82 = vector.load %arg6[%c0_56, %c0_57, %c0_58] : memref<2x16x1xf32, #tpu.memory_space<vmem>>, vector<1x16x1xf32>
    %83 = vector.shape_cast %82 : vector<1x16x1xf32> to vector<16x1xf32>
    %c17_i32_59 = arith.constant 17 : i32
    %84 = tpu.dynamic_rotate %81 by %c17_i32_59 dim 1 : vector<32x256xf32>, i32 -> vector<32x256xf32>
    %c0_60 = arith.constant 0 : index
    %c0_61 = arith.constant 0 : index
    %c0_62 = arith.constant 0 : index
    %85 = vector.load %arg2[%c0_60, %c0_61, %c0_62] : memref<9x1x256xf32, #tpu.memory_space<vmem>>, vector<1x1x256xf32>
    %86 = vector.shape_cast %85 : vector<1x1x256xf32> to vector<1x256xf32>
    %87 = vector.broadcast %86 : vector<1x256xf32> to vector<32x256xf32>
    %88 = arith.mulf %84, %87 : vector<32x256xf32>
    %c0_63 = arith.constant 0 : index
    %c0_64 = arith.constant 0 : index
    %c0_65 = arith.constant 0 : index
    %c0_66 = arith.constant 0 : index
    %89 = vector.load %arg5[%c0_63, %c0_64, %c0_65, %c0_66] : memref<2x9x16x32xf32, #tpu.memory_space<vmem>>, vector<1x1x16x32xf32>
    %90 = vector.shape_cast %89 : vector<1x1x16x32xf32> to vector<16x32xf32>
    %cst_67 = arith.constant dense<0.000000e+00> : vector<16x256xf32>
    %91 = tpu.matmul %90, %88, %cst_67 {dimension_numbers = #tpu.dot_dimension_numbers<[1], [0], [0], [1], [0, 0, 1, 1], [], []>} : vector<16x32xf32>, vector<32x256xf32>, vector<16x256xf32> -> vector<16x256xf32>
    %c16_i32_68 = arith.constant 16 : i32
    %92 = tpu.dynamic_rotate %81 by %c16_i32_68 dim 1 : vector<32x256xf32>, i32 -> vector<32x256xf32>
    %c1_69 = arith.constant 1 : index
    %c0_70 = arith.constant 0 : index
    %c0_71 = arith.constant 0 : index
    %93 = vector.load %arg2[%c1_69, %c0_70, %c0_71] : memref<9x1x256xf32, #tpu.memory_space<vmem>>, vector<1x1x256xf32>
    %94 = vector.shape_cast %93 : vector<1x1x256xf32> to vector<1x256xf32>
    %95 = vector.broadcast %94 : vector<1x256xf32> to vector<32x256xf32>
    %96 = arith.mulf %92, %95 : vector<32x256xf32>
    %c0_72 = arith.constant 0 : index
    %c1_73 = arith.constant 1 : index
    %c0_74 = arith.constant 0 : index
    %c0_75 = arith.constant 0 : index
    %97 = vector.load %arg5[%c0_72, %c1_73, %c0_74, %c0_75] : memref<2x9x16x32xf32, #tpu.memory_space<vmem>>, vector<1x1x16x32xf32>
    %98 = vector.shape_cast %97 : vector<1x1x16x32xf32> to vector<16x32xf32>
    %cst_76 = arith.constant dense<0.000000e+00> : vector<16x256xf32>
    %99 = tpu.matmul %98, %96, %cst_76 {dimension_numbers = #tpu.dot_dimension_numbers<[1], [0], [0], [1], [0, 0, 1, 1], [], []>} : vector<16x32xf32>, vector<32x256xf32>, vector<16x256xf32> -> vector<16x256xf32>
    %100 = arith.addf %91, %99 : vector<16x256xf32>
    %c15_i32_77 = arith.constant 15 : i32
    %101 = tpu.dynamic_rotate %81 by %c15_i32_77 dim 1 : vector<32x256xf32>, i32 -> vector<32x256xf32>
    %c2_78 = arith.constant 2 : index
    %c0_79 = arith.constant 0 : index
    %c0_80 = arith.constant 0 : index
    %102 = vector.load %arg2[%c2_78, %c0_79, %c0_80] : memref<9x1x256xf32, #tpu.memory_space<vmem>>, vector<1x1x256xf32>
    %103 = vector.shape_cast %102 : vector<1x1x256xf32> to vector<1x256xf32>
    %104 = vector.broadcast %103 : vector<1x256xf32> to vector<32x256xf32>
    %105 = arith.mulf %101, %104 : vector<32x256xf32>
    %c0_81 = arith.constant 0 : index
    %c2_82 = arith.constant 2 : index
    %c0_83 = arith.constant 0 : index
    %c0_84 = arith.constant 0 : index
    %106 = vector.load %arg5[%c0_81, %c2_82, %c0_83, %c0_84] : memref<2x9x16x32xf32, #tpu.memory_space<vmem>>, vector<1x1x16x32xf32>
    %107 = vector.shape_cast %106 : vector<1x1x16x32xf32> to vector<16x32xf32>
    %cst_85 = arith.constant dense<0.000000e+00> : vector<16x256xf32>
    %108 = tpu.matmul %107, %105, %cst_85 {dimension_numbers = #tpu.dot_dimension_numbers<[1], [0], [0], [1], [0, 0, 1, 1], [], []>} : vector<16x32xf32>, vector<32x256xf32>, vector<16x256xf32> -> vector<16x256xf32>
    %109 = arith.addf %100, %108 : vector<16x256xf32>
    %c1_i32_86 = arith.constant 1 : i32
    %110 = tpu.dynamic_rotate %81 by %c1_i32_86 dim 1 : vector<32x256xf32>, i32 -> vector<32x256xf32>
    %c3_87 = arith.constant 3 : index
    %c0_88 = arith.constant 0 : index
    %c0_89 = arith.constant 0 : index
    %111 = vector.load %arg2[%c3_87, %c0_88, %c0_89] : memref<9x1x256xf32, #tpu.memory_space<vmem>>, vector<1x1x256xf32>
    %112 = vector.shape_cast %111 : vector<1x1x256xf32> to vector<1x256xf32>
    %113 = vector.broadcast %112 : vector<1x256xf32> to vector<32x256xf32>
    %114 = arith.mulf %110, %113 : vector<32x256xf32>
    %c0_90 = arith.constant 0 : index
    %c3_91 = arith.constant 3 : index
    %c0_92 = arith.constant 0 : index
    %c0_93 = arith.constant 0 : index
    %115 = vector.load %arg5[%c0_90, %c3_91, %c0_92, %c0_93] : memref<2x9x16x32xf32, #tpu.memory_space<vmem>>, vector<1x1x16x32xf32>
    %116 = vector.shape_cast %115 : vector<1x1x16x32xf32> to vector<16x32xf32>
    %cst_94 = arith.constant dense<0.000000e+00> : vector<16x256xf32>
    %117 = tpu.matmul %116, %114, %cst_94 {dimension_numbers = #tpu.dot_dimension_numbers<[1], [0], [0], [1], [0, 0, 1, 1], [], []>} : vector<16x32xf32>, vector<32x256xf32>, vector<16x256xf32> -> vector<16x256xf32>
    %118 = arith.addf %109, %117 : vector<16x256xf32>
    %c0_95 = arith.constant 0 : index
    %c4_96 = arith.constant 4 : index
    %c0_97 = arith.constant 0 : index
    %c0_98 = arith.constant 0 : index
    %119 = vector.load %arg5[%c0_95, %c4_96, %c0_97, %c0_98] : memref<2x9x16x32xf32, #tpu.memory_space<vmem>>, vector<1x1x16x32xf32>
    %120 = vector.shape_cast %119 : vector<1x1x16x32xf32> to vector<16x32xf32>
    %cst_99 = arith.constant dense<0.000000e+00> : vector<16x256xf32>
    %121 = tpu.matmul %120, %81, %cst_99 {dimension_numbers = #tpu.dot_dimension_numbers<[1], [0], [0], [1], [0, 0, 1, 1], [], []>} : vector<16x32xf32>, vector<32x256xf32>, vector<16x256xf32> -> vector<16x256xf32>
    %122 = arith.addf %118, %121 : vector<16x256xf32>
    %c255_i32_100 = arith.constant 255 : i32
    %123 = tpu.dynamic_rotate %81 by %c255_i32_100 dim 1 : vector<32x256xf32>, i32 -> vector<32x256xf32>
    %c5_101 = arith.constant 5 : index
    %c0_102 = arith.constant 0 : index
    %c0_103 = arith.constant 0 : index
    %124 = vector.load %arg2[%c5_101, %c0_102, %c0_103] : memref<9x1x256xf32, #tpu.memory_space<vmem>>, vector<1x1x256xf32>
    %125 = vector.shape_cast %124 : vector<1x1x256xf32> to vector<1x256xf32>
    %126 = vector.broadcast %125 : vector<1x256xf32> to vector<32x256xf32>
    %127 = arith.mulf %123, %126 : vector<32x256xf32>
    %c0_104 = arith.constant 0 : index
    %c5_105 = arith.constant 5 : index
    %c0_106 = arith.constant 0 : index
    %c0_107 = arith.constant 0 : index
    %128 = vector.load %arg5[%c0_104, %c5_105, %c0_106, %c0_107] : memref<2x9x16x32xf32, #tpu.memory_space<vmem>>, vector<1x1x16x32xf32>
    %129 = vector.shape_cast %128 : vector<1x1x16x32xf32> to vector<16x32xf32>
    %cst_108 = arith.constant dense<0.000000e+00> : vector<16x256xf32>
    %130 = tpu.matmul %129, %127, %cst_108 {dimension_numbers = #tpu.dot_dimension_numbers<[1], [0], [0], [1], [0, 0, 1, 1], [], []>} : vector<16x32xf32>, vector<32x256xf32>, vector<16x256xf32> -> vector<16x256xf32>
    %131 = arith.addf %122, %130 : vector<16x256xf32>
    %c241_i32_109 = arith.constant 241 : i32
    %132 = tpu.dynamic_rotate %81 by %c241_i32_109 dim 1 : vector<32x256xf32>, i32 -> vector<32x256xf32>
    %c6_110 = arith.constant 6 : index
    %c0_111 = arith.constant 0 : index
    %c0_112 = arith.constant 0 : index
    %133 = vector.load %arg2[%c6_110, %c0_111, %c0_112] : memref<9x1x256xf32, #tpu.memory_space<vmem>>, vector<1x1x256xf32>
    %134 = vector.shape_cast %133 : vector<1x1x256xf32> to vector<1x256xf32>
    %135 = vector.broadcast %134 : vector<1x256xf32> to vector<32x256xf32>
    %136 = arith.mulf %132, %135 : vector<32x256xf32>
    %c0_113 = arith.constant 0 : index
    %c6_114 = arith.constant 6 : index
    %c0_115 = arith.constant 0 : index
    %c0_116 = arith.constant 0 : index
    %137 = vector.load %arg5[%c0_113, %c6_114, %c0_115, %c0_116] : memref<2x9x16x32xf32, #tpu.memory_space<vmem>>, vector<1x1x16x32xf32>
    %138 = vector.shape_cast %137 : vector<1x1x16x32xf32> to vector<16x32xf32>
    %cst_117 = arith.constant dense<0.000000e+00> : vector<16x256xf32>
    %139 = tpu.matmul %138, %136, %cst_117 {dimension_numbers = #tpu.dot_dimension_numbers<[1], [0], [0], [1], [0, 0, 1, 1], [], []>} : vector<16x32xf32>, vector<32x256xf32>, vector<16x256xf32> -> vector<16x256xf32>
    %140 = arith.addf %131, %139 : vector<16x256xf32>
    %c240_i32_118 = arith.constant 240 : i32
    %141 = tpu.dynamic_rotate %81 by %c240_i32_118 dim 1 : vector<32x256xf32>, i32 -> vector<32x256xf32>
    %c7_119 = arith.constant 7 : index
    %c0_120 = arith.constant 0 : index
    %c0_121 = arith.constant 0 : index
    %142 = vector.load %arg2[%c7_119, %c0_120, %c0_121] : memref<9x1x256xf32, #tpu.memory_space<vmem>>, vector<1x1x256xf32>
    %143 = vector.shape_cast %142 : vector<1x1x256xf32> to vector<1x256xf32>
    %144 = vector.broadcast %143 : vector<1x256xf32> to vector<32x256xf32>
    %145 = arith.mulf %141, %144 : vector<32x256xf32>
    %c0_122 = arith.constant 0 : index
    %c7_123 = arith.constant 7 : index
    %c0_124 = arith.constant 0 : index
    %c0_125 = arith.constant 0 : index
    %146 = vector.load %arg5[%c0_122, %c7_123, %c0_124, %c0_125] : memref<2x9x16x32xf32, #tpu.memory_space<vmem>>, vector<1x1x16x32xf32>
    %147 = vector.shape_cast %146 : vector<1x1x16x32xf32> to vector<16x32xf32>
    %cst_126 = arith.constant dense<0.000000e+00> : vector<16x256xf32>
    %148 = tpu.matmul %147, %145, %cst_126 {dimension_numbers = #tpu.dot_dimension_numbers<[1], [0], [0], [1], [0, 0, 1, 1], [], []>} : vector<16x32xf32>, vector<32x256xf32>, vector<16x256xf32> -> vector<16x256xf32>
    %149 = arith.addf %140, %148 : vector<16x256xf32>
    %c239_i32_127 = arith.constant 239 : i32
    %150 = tpu.dynamic_rotate %81 by %c239_i32_127 dim 1 : vector<32x256xf32>, i32 -> vector<32x256xf32>
    %c8_128 = arith.constant 8 : index
    %c0_129 = arith.constant 0 : index
    %c0_130 = arith.constant 0 : index
    %151 = vector.load %arg2[%c8_128, %c0_129, %c0_130] : memref<9x1x256xf32, #tpu.memory_space<vmem>>, vector<1x1x256xf32>
    %152 = vector.shape_cast %151 : vector<1x1x256xf32> to vector<1x256xf32>
    %153 = vector.broadcast %152 : vector<1x256xf32> to vector<32x256xf32>
    %154 = arith.mulf %150, %153 : vector<32x256xf32>
    %c0_131 = arith.constant 0 : index
    %c8_132 = arith.constant 8 : index
    %c0_133 = arith.constant 0 : index
    %c0_134 = arith.constant 0 : index
    %155 = vector.load %arg5[%c0_131, %c8_132, %c0_133, %c0_134] : memref<2x9x16x32xf32, #tpu.memory_space<vmem>>, vector<1x1x16x32xf32>
    %156 = vector.shape_cast %155 : vector<1x1x16x32xf32> to vector<16x32xf32>
    %cst_135 = arith.constant dense<0.000000e+00> : vector<16x256xf32>
    %157 = tpu.matmul %156, %154, %cst_135 {dimension_numbers = #tpu.dot_dimension_numbers<[1], [0], [0], [1], [0, 0, 1, 1], [], []>} : vector<16x32xf32>, vector<32x256xf32>, vector<16x256xf32> -> vector<16x256xf32>
    %158 = arith.addf %149, %157 : vector<16x256xf32>
    %159 = vector.broadcast %83 : vector<16x1xf32> to vector<16x256xf32>
    %160 = arith.addf %158, %159 : vector<16x256xf32>
    %cst_136 = arith.constant 0.000000e+00 : f32
    %161 = vector.broadcast %cst_136 : f32 to vector<16x256xf32>
    %162 = arith.maximumf %160, %161 : vector<16x256xf32>
    %c0_137 = arith.constant 0 : index
    %c0_138 = arith.constant 0 : index
    %c0_139 = arith.constant 0 : index
    %163 = vector.load %arg7[%c0_137, %c0_138, %c0_139] : memref<2x32x16xf32, #tpu.memory_space<vmem>>, vector<1x32x16xf32>
    %164 = vector.shape_cast %163 : vector<1x32x16xf32> to vector<32x16xf32>
    %cst_140 = arith.constant dense<0.000000e+00> : vector<32x256xf32>
    %165 = tpu.matmul %164, %162, %cst_140 {dimension_numbers = #tpu.dot_dimension_numbers<[1], [0], [0], [1], [0, 0, 1, 1], [], []>} : vector<32x16xf32>, vector<16x256xf32>, vector<32x256xf32> -> vector<32x256xf32>
    %166 = arith.addf %79, %165 : vector<32x256xf32>
    %c0_141 = arith.constant 0 : index
    %c0_142 = arith.constant 0 : index
    %c0_143 = arith.constant 0 : index
    %167 = vector.load %arg8[%c0_141, %c0_142, %c0_143] : memref<2x32x1xf32, #tpu.memory_space<vmem>>, vector<1x32x1xf32>
    %168 = vector.shape_cast %167 : vector<1x32x1xf32> to vector<32x1xf32>
    %169 = vector.broadcast %168 : vector<32x1xf32> to vector<32x256xf32>
    %170 = arith.addf %166, %169 : vector<32x256xf32>
    %cst_144 = arith.constant 0.000000e+00 : f32
    %171 = vector.broadcast %cst_144 : f32 to vector<32x256xf32>
    %172 = arith.maximumf %170, %171 : vector<32x256xf32>
    %c1_145 = arith.constant 1 : index
    %c0_146 = arith.constant 0 : index
    %c0_147 = arith.constant 0 : index
    %173 = vector.load %arg6[%c1_145, %c0_146, %c0_147] : memref<2x16x1xf32, #tpu.memory_space<vmem>>, vector<1x16x1xf32>
    %174 = vector.shape_cast %173 : vector<1x16x1xf32> to vector<16x1xf32>
    %c17_i32_148 = arith.constant 17 : i32
    %175 = tpu.dynamic_rotate %172 by %c17_i32_148 dim 1 : vector<32x256xf32>, i32 -> vector<32x256xf32>
    %c0_149 = arith.constant 0 : index
    %c0_150 = arith.constant 0 : index
    %c0_151 = arith.constant 0 : index
    %176 = vector.load %arg2[%c0_149, %c0_150, %c0_151] : memref<9x1x256xf32, #tpu.memory_space<vmem>>, vector<1x1x256xf32>
    %177 = vector.shape_cast %176 : vector<1x1x256xf32> to vector<1x256xf32>
    %178 = vector.broadcast %177 : vector<1x256xf32> to vector<32x256xf32>
    %179 = arith.mulf %175, %178 : vector<32x256xf32>
    %c1_152 = arith.constant 1 : index
    %c0_153 = arith.constant 0 : index
    %c0_154 = arith.constant 0 : index
    %c0_155 = arith.constant 0 : index
    %180 = vector.load %arg5[%c1_152, %c0_153, %c0_154, %c0_155] : memref<2x9x16x32xf32, #tpu.memory_space<vmem>>, vector<1x1x16x32xf32>
    %181 = vector.shape_cast %180 : vector<1x1x16x32xf32> to vector<16x32xf32>
    %cst_156 = arith.constant dense<0.000000e+00> : vector<16x256xf32>
    %182 = tpu.matmul %181, %179, %cst_156 {dimension_numbers = #tpu.dot_dimension_numbers<[1], [0], [0], [1], [0, 0, 1, 1], [], []>} : vector<16x32xf32>, vector<32x256xf32>, vector<16x256xf32> -> vector<16x256xf32>
    %c16_i32_157 = arith.constant 16 : i32
    %183 = tpu.dynamic_rotate %172 by %c16_i32_157 dim 1 : vector<32x256xf32>, i32 -> vector<32x256xf32>
    %c1_158 = arith.constant 1 : index
    %c0_159 = arith.constant 0 : index
    %c0_160 = arith.constant 0 : index
    %184 = vector.load %arg2[%c1_158, %c0_159, %c0_160] : memref<9x1x256xf32, #tpu.memory_space<vmem>>, vector<1x1x256xf32>
    %185 = vector.shape_cast %184 : vector<1x1x256xf32> to vector<1x256xf32>
    %186 = vector.broadcast %185 : vector<1x256xf32> to vector<32x256xf32>
    %187 = arith.mulf %183, %186 : vector<32x256xf32>
    %c1_161 = arith.constant 1 : index
    %c1_162 = arith.constant 1 : index
    %c0_163 = arith.constant 0 : index
    %c0_164 = arith.constant 0 : index
    %188 = vector.load %arg5[%c1_161, %c1_162, %c0_163, %c0_164] : memref<2x9x16x32xf32, #tpu.memory_space<vmem>>, vector<1x1x16x32xf32>
    %189 = vector.shape_cast %188 : vector<1x1x16x32xf32> to vector<16x32xf32>
    %cst_165 = arith.constant dense<0.000000e+00> : vector<16x256xf32>
    %190 = tpu.matmul %189, %187, %cst_165 {dimension_numbers = #tpu.dot_dimension_numbers<[1], [0], [0], [1], [0, 0, 1, 1], [], []>} : vector<16x32xf32>, vector<32x256xf32>, vector<16x256xf32> -> vector<16x256xf32>
    %191 = arith.addf %182, %190 : vector<16x256xf32>
    %c15_i32_166 = arith.constant 15 : i32
    %192 = tpu.dynamic_rotate %172 by %c15_i32_166 dim 1 : vector<32x256xf32>, i32 -> vector<32x256xf32>
    %c2_167 = arith.constant 2 : index
    %c0_168 = arith.constant 0 : index
    %c0_169 = arith.constant 0 : index
    %193 = vector.load %arg2[%c2_167, %c0_168, %c0_169] : memref<9x1x256xf32, #tpu.memory_space<vmem>>, vector<1x1x256xf32>
    %194 = vector.shape_cast %193 : vector<1x1x256xf32> to vector<1x256xf32>
    %195 = vector.broadcast %194 : vector<1x256xf32> to vector<32x256xf32>
    %196 = arith.mulf %192, %195 : vector<32x256xf32>
    %c1_170 = arith.constant 1 : index
    %c2_171 = arith.constant 2 : index
    %c0_172 = arith.constant 0 : index
    %c0_173 = arith.constant 0 : index
    %197 = vector.load %arg5[%c1_170, %c2_171, %c0_172, %c0_173] : memref<2x9x16x32xf32, #tpu.memory_space<vmem>>, vector<1x1x16x32xf32>
    %198 = vector.shape_cast %197 : vector<1x1x16x32xf32> to vector<16x32xf32>
    %cst_174 = arith.constant dense<0.000000e+00> : vector<16x256xf32>
    %199 = tpu.matmul %198, %196, %cst_174 {dimension_numbers = #tpu.dot_dimension_numbers<[1], [0], [0], [1], [0, 0, 1, 1], [], []>} : vector<16x32xf32>, vector<32x256xf32>, vector<16x256xf32> -> vector<16x256xf32>
    %200 = arith.addf %191, %199 : vector<16x256xf32>
    %c1_i32_175 = arith.constant 1 : i32
    %201 = tpu.dynamic_rotate %172 by %c1_i32_175 dim 1 : vector<32x256xf32>, i32 -> vector<32x256xf32>
    %c3_176 = arith.constant 3 : index
    %c0_177 = arith.constant 0 : index
    %c0_178 = arith.constant 0 : index
    %202 = vector.load %arg2[%c3_176, %c0_177, %c0_178] : memref<9x1x256xf32, #tpu.memory_space<vmem>>, vector<1x1x256xf32>
    %203 = vector.shape_cast %202 : vector<1x1x256xf32> to vector<1x256xf32>
    %204 = vector.broadcast %203 : vector<1x256xf32> to vector<32x256xf32>
    %205 = arith.mulf %201, %204 : vector<32x256xf32>
    %c1_179 = arith.constant 1 : index
    %c3_180 = arith.constant 3 : index
    %c0_181 = arith.constant 0 : index
    %c0_182 = arith.constant 0 : index
    %206 = vector.load %arg5[%c1_179, %c3_180, %c0_181, %c0_182] : memref<2x9x16x32xf32, #tpu.memory_space<vmem>>, vector<1x1x16x32xf32>
    %207 = vector.shape_cast %206 : vector<1x1x16x32xf32> to vector<16x32xf32>
    %cst_183 = arith.constant dense<0.000000e+00> : vector<16x256xf32>
    %208 = tpu.matmul %207, %205, %cst_183 {dimension_numbers = #tpu.dot_dimension_numbers<[1], [0], [0], [1], [0, 0, 1, 1], [], []>} : vector<16x32xf32>, vector<32x256xf32>, vector<16x256xf32> -> vector<16x256xf32>
    %209 = arith.addf %200, %208 : vector<16x256xf32>
    %c1_184 = arith.constant 1 : index
    %c4_185 = arith.constant 4 : index
    %c0_186 = arith.constant 0 : index
    %c0_187 = arith.constant 0 : index
    %210 = vector.load %arg5[%c1_184, %c4_185, %c0_186, %c0_187] : memref<2x9x16x32xf32, #tpu.memory_space<vmem>>, vector<1x1x16x32xf32>
    %211 = vector.shape_cast %210 : vector<1x1x16x32xf32> to vector<16x32xf32>
    %cst_188 = arith.constant dense<0.000000e+00> : vector<16x256xf32>
    %212 = tpu.matmul %211, %172, %cst_188 {dimension_numbers = #tpu.dot_dimension_numbers<[1], [0], [0], [1], [0, 0, 1, 1], [], []>} : vector<16x32xf32>, vector<32x256xf32>, vector<16x256xf32> -> vector<16x256xf32>
    %213 = arith.addf %209, %212 : vector<16x256xf32>
    %c255_i32_189 = arith.constant 255 : i32
    %214 = tpu.dynamic_rotate %172 by %c255_i32_189 dim 1 : vector<32x256xf32>, i32 -> vector<32x256xf32>
    %c5_190 = arith.constant 5 : index
    %c0_191 = arith.constant 0 : index
    %c0_192 = arith.constant 0 : index
    %215 = vector.load %arg2[%c5_190, %c0_191, %c0_192] : memref<9x1x256xf32, #tpu.memory_space<vmem>>, vector<1x1x256xf32>
    %216 = vector.shape_cast %215 : vector<1x1x256xf32> to vector<1x256xf32>
    %217 = vector.broadcast %216 : vector<1x256xf32> to vector<32x256xf32>
    %218 = arith.mulf %214, %217 : vector<32x256xf32>
    %c1_193 = arith.constant 1 : index
    %c5_194 = arith.constant 5 : index
    %c0_195 = arith.constant 0 : index
    %c0_196 = arith.constant 0 : index
    %219 = vector.load %arg5[%c1_193, %c5_194, %c0_195, %c0_196] : memref<2x9x16x32xf32, #tpu.memory_space<vmem>>, vector<1x1x16x32xf32>
    %220 = vector.shape_cast %219 : vector<1x1x16x32xf32> to vector<16x32xf32>
    %cst_197 = arith.constant dense<0.000000e+00> : vector<16x256xf32>
    %221 = tpu.matmul %220, %218, %cst_197 {dimension_numbers = #tpu.dot_dimension_numbers<[1], [0], [0], [1], [0, 0, 1, 1], [], []>} : vector<16x32xf32>, vector<32x256xf32>, vector<16x256xf32> -> vector<16x256xf32>
    %222 = arith.addf %213, %221 : vector<16x256xf32>
    %c241_i32_198 = arith.constant 241 : i32
    %223 = tpu.dynamic_rotate %172 by %c241_i32_198 dim 1 : vector<32x256xf32>, i32 -> vector<32x256xf32>
    %c6_199 = arith.constant 6 : index
    %c0_200 = arith.constant 0 : index
    %c0_201 = arith.constant 0 : index
    %224 = vector.load %arg2[%c6_199, %c0_200, %c0_201] : memref<9x1x256xf32, #tpu.memory_space<vmem>>, vector<1x1x256xf32>
    %225 = vector.shape_cast %224 : vector<1x1x256xf32> to vector<1x256xf32>
    %226 = vector.broadcast %225 : vector<1x256xf32> to vector<32x256xf32>
    %227 = arith.mulf %223, %226 : vector<32x256xf32>
    %c1_202 = arith.constant 1 : index
    %c6_203 = arith.constant 6 : index
    %c0_204 = arith.constant 0 : index
    %c0_205 = arith.constant 0 : index
    %228 = vector.load %arg5[%c1_202, %c6_203, %c0_204, %c0_205] : memref<2x9x16x32xf32, #tpu.memory_space<vmem>>, vector<1x1x16x32xf32>
    %229 = vector.shape_cast %228 : vector<1x1x16x32xf32> to vector<16x32xf32>
    %cst_206 = arith.constant dense<0.000000e+00> : vector<16x256xf32>
    %230 = tpu.matmul %229, %227, %cst_206 {dimension_numbers = #tpu.dot_dimension_numbers<[1], [0], [0], [1], [0, 0, 1, 1], [], []>} : vector<16x32xf32>, vector<32x256xf32>, vector<16x256xf32> -> vector<16x256xf32>
    %231 = arith.addf %222, %230 : vector<16x256xf32>
    %c240_i32_207 = arith.constant 240 : i32
    %232 = tpu.dynamic_rotate %172 by %c240_i32_207 dim 1 : vector<32x256xf32>, i32 -> vector<32x256xf32>
    %c7_208 = arith.constant 7 : index
    %c0_209 = arith.constant 0 : index
    %c0_210 = arith.constant 0 : index
    %233 = vector.load %arg2[%c7_208, %c0_209, %c0_210] : memref<9x1x256xf32, #tpu.memory_space<vmem>>, vector<1x1x256xf32>
    %234 = vector.shape_cast %233 : vector<1x1x256xf32> to vector<1x256xf32>
    %235 = vector.broadcast %234 : vector<1x256xf32> to vector<32x256xf32>
    %236 = arith.mulf %232, %235 : vector<32x256xf32>
    %c1_211 = arith.constant 1 : index
    %c7_212 = arith.constant 7 : index
    %c0_213 = arith.constant 0 : index
    %c0_214 = arith.constant 0 : index
    %237 = vector.load %arg5[%c1_211, %c7_212, %c0_213, %c0_214] : memref<2x9x16x32xf32, #tpu.memory_space<vmem>>, vector<1x1x16x32xf32>
    %238 = vector.shape_cast %237 : vector<1x1x16x32xf32> to vector<16x32xf32>
    %cst_215 = arith.constant dense<0.000000e+00> : vector<16x256xf32>
    %239 = tpu.matmul %238, %236, %cst_215 {dimension_numbers = #tpu.dot_dimension_numbers<[1], [0], [0], [1], [0, 0, 1, 1], [], []>} : vector<16x32xf32>, vector<32x256xf32>, vector<16x256xf32> -> vector<16x256xf32>
    %240 = arith.addf %231, %239 : vector<16x256xf32>
    %c239_i32_216 = arith.constant 239 : i32
    %241 = tpu.dynamic_rotate %172 by %c239_i32_216 dim 1 : vector<32x256xf32>, i32 -> vector<32x256xf32>
    %c8_217 = arith.constant 8 : index
    %c0_218 = arith.constant 0 : index
    %c0_219 = arith.constant 0 : index
    %242 = vector.load %arg2[%c8_217, %c0_218, %c0_219] : memref<9x1x256xf32, #tpu.memory_space<vmem>>, vector<1x1x256xf32>
    %243 = vector.shape_cast %242 : vector<1x1x256xf32> to vector<1x256xf32>
    %244 = vector.broadcast %243 : vector<1x256xf32> to vector<32x256xf32>
    %245 = arith.mulf %241, %244 : vector<32x256xf32>
    %c1_220 = arith.constant 1 : index
    %c8_221 = arith.constant 8 : index
    %c0_222 = arith.constant 0 : index
    %c0_223 = arith.constant 0 : index
    %246 = vector.load %arg5[%c1_220, %c8_221, %c0_222, %c0_223] : memref<2x9x16x32xf32, #tpu.memory_space<vmem>>, vector<1x1x16x32xf32>
    %247 = vector.shape_cast %246 : vector<1x1x16x32xf32> to vector<16x32xf32>
    %cst_224 = arith.constant dense<0.000000e+00> : vector<16x256xf32>
    %248 = tpu.matmul %247, %245, %cst_224 {dimension_numbers = #tpu.dot_dimension_numbers<[1], [0], [0], [1], [0, 0, 1, 1], [], []>} : vector<16x32xf32>, vector<32x256xf32>, vector<16x256xf32> -> vector<16x256xf32>
    %249 = arith.addf %240, %248 : vector<16x256xf32>
    %250 = vector.broadcast %174 : vector<16x1xf32> to vector<16x256xf32>
    %251 = arith.addf %249, %250 : vector<16x256xf32>
    %cst_225 = arith.constant 0.000000e+00 : f32
    %252 = vector.broadcast %cst_225 : f32 to vector<16x256xf32>
    %253 = arith.maximumf %251, %252 : vector<16x256xf32>
    %c1_226 = arith.constant 1 : index
    %c0_227 = arith.constant 0 : index
    %c0_228 = arith.constant 0 : index
    %254 = vector.load %arg7[%c1_226, %c0_227, %c0_228] : memref<2x32x16xf32, #tpu.memory_space<vmem>>, vector<1x32x16xf32>
    %255 = vector.shape_cast %254 : vector<1x32x16xf32> to vector<32x16xf32>
    %cst_229 = arith.constant dense<0.000000e+00> : vector<32x256xf32>
    %256 = tpu.matmul %255, %253, %cst_229 {dimension_numbers = #tpu.dot_dimension_numbers<[1], [0], [0], [1], [0, 0, 1, 1], [], []>} : vector<32x16xf32>, vector<16x256xf32>, vector<32x256xf32> -> vector<32x256xf32>
    %257 = arith.addf %170, %256 : vector<32x256xf32>
    %c1_230 = arith.constant 1 : index
    %c0_231 = arith.constant 0 : index
    %c0_232 = arith.constant 0 : index
    %258 = vector.load %arg8[%c1_230, %c0_231, %c0_232] : memref<2x32x1xf32, #tpu.memory_space<vmem>>, vector<1x32x1xf32>
    %259 = vector.shape_cast %258 : vector<1x32x1xf32> to vector<32x1xf32>
    %260 = vector.broadcast %259 : vector<32x1xf32> to vector<32x256xf32>
    %261 = arith.addf %257, %260 : vector<32x256xf32>
    %cst_233 = arith.constant 0.000000e+00 : f32
    %262 = vector.broadcast %cst_233 : f32 to vector<32x256xf32>
    %263 = arith.maximumf %261, %262 : vector<32x256xf32>
    %c0_234 = arith.constant 0 : index
    %c0_235 = arith.constant 0 : index
    %264 = vector.load %arg10[%c0_234, %c0_235] : memref<64x1xf32, #tpu.memory_space<vmem>>, vector<64x1xf32>
    %c17_i32_236 = arith.constant 17 : i32
    %265 = tpu.dynamic_rotate %263 by %c17_i32_236 dim 1 : vector<32x256xf32>, i32 -> vector<32x256xf32>
    %c0_237 = arith.constant 0 : index
    %c0_238 = arith.constant 0 : index
    %c0_239 = arith.constant 0 : index
    %266 = vector.load %arg2[%c0_237, %c0_238, %c0_239] : memref<9x1x256xf32, #tpu.memory_space<vmem>>, vector<1x1x256xf32>
    %267 = vector.shape_cast %266 : vector<1x1x256xf32> to vector<1x256xf32>
    %268 = vector.broadcast %267 : vector<1x256xf32> to vector<32x256xf32>
    %269 = arith.mulf %265, %268 : vector<32x256xf32>
    %c0_240 = arith.constant 0 : index
    %c0_241 = arith.constant 0 : index
    %c0_242 = arith.constant 0 : index
    %270 = vector.load %arg9[%c0_240, %c0_241, %c0_242] : memref<9x64x32xf32, #tpu.memory_space<vmem>>, vector<1x64x32xf32>
    %271 = vector.shape_cast %270 : vector<1x64x32xf32> to vector<64x32xf32>
    %cst_243 = arith.constant dense<0.000000e+00> : vector<64x256xf32>
    %272 = tpu.matmul %271, %269, %cst_243 {dimension_numbers = #tpu.dot_dimension_numbers<[1], [0], [0], [1], [0, 0, 1, 1], [], []>} : vector<64x32xf32>, vector<32x256xf32>, vector<64x256xf32> -> vector<64x256xf32>
    %c16_i32_244 = arith.constant 16 : i32
    %273 = tpu.dynamic_rotate %263 by %c16_i32_244 dim 1 : vector<32x256xf32>, i32 -> vector<32x256xf32>
    %c1_245 = arith.constant 1 : index
    %c0_246 = arith.constant 0 : index
    %c0_247 = arith.constant 0 : index
    %274 = vector.load %arg2[%c1_245, %c0_246, %c0_247] : memref<9x1x256xf32, #tpu.memory_space<vmem>>, vector<1x1x256xf32>
    %275 = vector.shape_cast %274 : vector<1x1x256xf32> to vector<1x256xf32>
    %276 = vector.broadcast %275 : vector<1x256xf32> to vector<32x256xf32>
    %277 = arith.mulf %273, %276 : vector<32x256xf32>
    %c1_248 = arith.constant 1 : index
    %c0_249 = arith.constant 0 : index
    %c0_250 = arith.constant 0 : index
    %278 = vector.load %arg9[%c1_248, %c0_249, %c0_250] : memref<9x64x32xf32, #tpu.memory_space<vmem>>, vector<1x64x32xf32>
    %279 = vector.shape_cast %278 : vector<1x64x32xf32> to vector<64x32xf32>
    %cst_251 = arith.constant dense<0.000000e+00> : vector<64x256xf32>
    %280 = tpu.matmul %279, %277, %cst_251 {dimension_numbers = #tpu.dot_dimension_numbers<[1], [0], [0], [1], [0, 0, 1, 1], [], []>} : vector<64x32xf32>, vector<32x256xf32>, vector<64x256xf32> -> vector<64x256xf32>
    %281 = arith.addf %272, %280 : vector<64x256xf32>
    %c15_i32_252 = arith.constant 15 : i32
    %282 = tpu.dynamic_rotate %263 by %c15_i32_252 dim 1 : vector<32x256xf32>, i32 -> vector<32x256xf32>
    %c2_253 = arith.constant 2 : index
    %c0_254 = arith.constant 0 : index
    %c0_255 = arith.constant 0 : index
    %283 = vector.load %arg2[%c2_253, %c0_254, %c0_255] : memref<9x1x256xf32, #tpu.memory_space<vmem>>, vector<1x1x256xf32>
    %284 = vector.shape_cast %283 : vector<1x1x256xf32> to vector<1x256xf32>
    %285 = vector.broadcast %284 : vector<1x256xf32> to vector<32x256xf32>
    %286 = arith.mulf %282, %285 : vector<32x256xf32>
    %c2_256 = arith.constant 2 : index
    %c0_257 = arith.constant 0 : index
    %c0_258 = arith.constant 0 : index
    %287 = vector.load %arg9[%c2_256, %c0_257, %c0_258] : memref<9x64x32xf32, #tpu.memory_space<vmem>>, vector<1x64x32xf32>
    %288 = vector.shape_cast %287 : vector<1x64x32xf32> to vector<64x32xf32>
    %cst_259 = arith.constant dense<0.000000e+00> : vector<64x256xf32>
    %289 = tpu.matmul %288, %286, %cst_259 {dimension_numbers = #tpu.dot_dimension_numbers<[1], [0], [0], [1], [0, 0, 1, 1], [], []>} : vector<64x32xf32>, vector<32x256xf32>, vector<64x256xf32> -> vector<64x256xf32>
    %290 = arith.addf %281, %289 : vector<64x256xf32>
    %c1_i32_260 = arith.constant 1 : i32
    %291 = tpu.dynamic_rotate %263 by %c1_i32_260 dim 1 : vector<32x256xf32>, i32 -> vector<32x256xf32>
    %c3_261 = arith.constant 3 : index
    %c0_262 = arith.constant 0 : index
    %c0_263 = arith.constant 0 : index
    %292 = vector.load %arg2[%c3_261, %c0_262, %c0_263] : memref<9x1x256xf32, #tpu.memory_space<vmem>>, vector<1x1x256xf32>
    %293 = vector.shape_cast %292 : vector<1x1x256xf32> to vector<1x256xf32>
    %294 = vector.broadcast %293 : vector<1x256xf32> to vector<32x256xf32>
    %295 = arith.mulf %291, %294 : vector<32x256xf32>
    %c3_264 = arith.constant 3 : index
    %c0_265 = arith.constant 0 : index
    %c0_266 = arith.constant 0 : index
    %296 = vector.load %arg9[%c3_264, %c0_265, %c0_266] : memref<9x64x32xf32, #tpu.memory_space<vmem>>, vector<1x64x32xf32>
    %297 = vector.shape_cast %296 : vector<1x64x32xf32> to vector<64x32xf32>
    %cst_267 = arith.constant dense<0.000000e+00> : vector<64x256xf32>
    %298 = tpu.matmul %297, %295, %cst_267 {dimension_numbers = #tpu.dot_dimension_numbers<[1], [0], [0], [1], [0, 0, 1, 1], [], []>} : vector<64x32xf32>, vector<32x256xf32>, vector<64x256xf32> -> vector<64x256xf32>
    %299 = arith.addf %290, %298 : vector<64x256xf32>
    %c4_268 = arith.constant 4 : index
    %c0_269 = arith.constant 0 : index
    %c0_270 = arith.constant 0 : index
    %300 = vector.load %arg9[%c4_268, %c0_269, %c0_270] : memref<9x64x32xf32, #tpu.memory_space<vmem>>, vector<1x64x32xf32>
    %301 = vector.shape_cast %300 : vector<1x64x32xf32> to vector<64x32xf32>
    %cst_271 = arith.constant dense<0.000000e+00> : vector<64x256xf32>
    %302 = tpu.matmul %301, %263, %cst_271 {dimension_numbers = #tpu.dot_dimension_numbers<[1], [0], [0], [1], [0, 0, 1, 1], [], []>} : vector<64x32xf32>, vector<32x256xf32>, vector<64x256xf32> -> vector<64x256xf32>
    %303 = arith.addf %299, %302 : vector<64x256xf32>
    %c255_i32_272 = arith.constant 255 : i32
    %304 = tpu.dynamic_rotate %263 by %c255_i32_272 dim 1 : vector<32x256xf32>, i32 -> vector<32x256xf32>
    %c5_273 = arith.constant 5 : index
    %c0_274 = arith.constant 0 : index
    %c0_275 = arith.constant 0 : index
    %305 = vector.load %arg2[%c5_273, %c0_274, %c0_275] : memref<9x1x256xf32, #tpu.memory_space<vmem>>, vector<1x1x256xf32>
    %306 = vector.shape_cast %305 : vector<1x1x256xf32> to vector<1x256xf32>
    %307 = vector.broadcast %306 : vector<1x256xf32> to vector<32x256xf32>
    %308 = arith.mulf %304, %307 : vector<32x256xf32>
    %c5_276 = arith.constant 5 : index
    %c0_277 = arith.constant 0 : index
    %c0_278 = arith.constant 0 : index
    %309 = vector.load %arg9[%c5_276, %c0_277, %c0_278] : memref<9x64x32xf32, #tpu.memory_space<vmem>>, vector<1x64x32xf32>
    %310 = vector.shape_cast %309 : vector<1x64x32xf32> to vector<64x32xf32>
    %cst_279 = arith.constant dense<0.000000e+00> : vector<64x256xf32>
    %311 = tpu.matmul %310, %308, %cst_279 {dimension_numbers = #tpu.dot_dimension_numbers<[1], [0], [0], [1], [0, 0, 1, 1], [], []>} : vector<64x32xf32>, vector<32x256xf32>, vector<64x256xf32> -> vector<64x256xf32>
    %312 = arith.addf %303, %311 : vector<64x256xf32>
    %c241_i32_280 = arith.constant 241 : i32
    %313 = tpu.dynamic_rotate %263 by %c241_i32_280 dim 1 : vector<32x256xf32>, i32 -> vector<32x256xf32>
    %c6_281 = arith.constant 6 : index
    %c0_282 = arith.constant 0 : index
    %c0_283 = arith.constant 0 : index
    %314 = vector.load %arg2[%c6_281, %c0_282, %c0_283] : memref<9x1x256xf32, #tpu.memory_space<vmem>>, vector<1x1x256xf32>
    %315 = vector.shape_cast %314 : vector<1x1x256xf32> to vector<1x256xf32>
    %316 = vector.broadcast %315 : vector<1x256xf32> to vector<32x256xf32>
    %317 = arith.mulf %313, %316 : vector<32x256xf32>
    %c6_284 = arith.constant 6 : index
    %c0_285 = arith.constant 0 : index
    %c0_286 = arith.constant 0 : index
    %318 = vector.load %arg9[%c6_284, %c0_285, %c0_286] : memref<9x64x32xf32, #tpu.memory_space<vmem>>, vector<1x64x32xf32>
    %319 = vector.shape_cast %318 : vector<1x64x32xf32> to vector<64x32xf32>
    %cst_287 = arith.constant dense<0.000000e+00> : vector<64x256xf32>
    %320 = tpu.matmul %319, %317, %cst_287 {dimension_numbers = #tpu.dot_dimension_numbers<[1], [0], [0], [1], [0, 0, 1, 1], [], []>} : vector<64x32xf32>, vector<32x256xf32>, vector<64x256xf32> -> vector<64x256xf32>
    %321 = arith.addf %312, %320 : vector<64x256xf32>
    %c240_i32_288 = arith.constant 240 : i32
    %322 = tpu.dynamic_rotate %263 by %c240_i32_288 dim 1 : vector<32x256xf32>, i32 -> vector<32x256xf32>
    %c7_289 = arith.constant 7 : index
    %c0_290 = arith.constant 0 : index
    %c0_291 = arith.constant 0 : index
    %323 = vector.load %arg2[%c7_289, %c0_290, %c0_291] : memref<9x1x256xf32, #tpu.memory_space<vmem>>, vector<1x1x256xf32>
    %324 = vector.shape_cast %323 : vector<1x1x256xf32> to vector<1x256xf32>
    %325 = vector.broadcast %324 : vector<1x256xf32> to vector<32x256xf32>
    %326 = arith.mulf %322, %325 : vector<32x256xf32>
    %c7_292 = arith.constant 7 : index
    %c0_293 = arith.constant 0 : index
    %c0_294 = arith.constant 0 : index
    %327 = vector.load %arg9[%c7_292, %c0_293, %c0_294] : memref<9x64x32xf32, #tpu.memory_space<vmem>>, vector<1x64x32xf32>
    %328 = vector.shape_cast %327 : vector<1x64x32xf32> to vector<64x32xf32>
    %cst_295 = arith.constant dense<0.000000e+00> : vector<64x256xf32>
    %329 = tpu.matmul %328, %326, %cst_295 {dimension_numbers = #tpu.dot_dimension_numbers<[1], [0], [0], [1], [0, 0, 1, 1], [], []>} : vector<64x32xf32>, vector<32x256xf32>, vector<64x256xf32> -> vector<64x256xf32>
    %330 = arith.addf %321, %329 : vector<64x256xf32>
    %c239_i32_296 = arith.constant 239 : i32
    %331 = tpu.dynamic_rotate %263 by %c239_i32_296 dim 1 : vector<32x256xf32>, i32 -> vector<32x256xf32>
    %c8_297 = arith.constant 8 : index
    %c0_298 = arith.constant 0 : index
    %c0_299 = arith.constant 0 : index
    %332 = vector.load %arg2[%c8_297, %c0_298, %c0_299] : memref<9x1x256xf32, #tpu.memory_space<vmem>>, vector<1x1x256xf32>
    %333 = vector.shape_cast %332 : vector<1x1x256xf32> to vector<1x256xf32>
    %334 = vector.broadcast %333 : vector<1x256xf32> to vector<32x256xf32>
    %335 = arith.mulf %331, %334 : vector<32x256xf32>
    %c8_300 = arith.constant 8 : index
    %c0_301 = arith.constant 0 : index
    %c0_302 = arith.constant 0 : index
    %336 = vector.load %arg9[%c8_300, %c0_301, %c0_302] : memref<9x64x32xf32, #tpu.memory_space<vmem>>, vector<1x64x32xf32>
    %337 = vector.shape_cast %336 : vector<1x64x32xf32> to vector<64x32xf32>
    %cst_303 = arith.constant dense<0.000000e+00> : vector<64x256xf32>
    %338 = tpu.matmul %337, %335, %cst_303 {dimension_numbers = #tpu.dot_dimension_numbers<[1], [0], [0], [1], [0, 0, 1, 1], [], []>} : vector<64x32xf32>, vector<32x256xf32>, vector<64x256xf32> -> vector<64x256xf32>
    %339 = arith.addf %330, %338 : vector<64x256xf32>
    %340 = vector.broadcast %264 : vector<64x1xf32> to vector<64x256xf32>
    %341 = arith.addf %339, %340 : vector<64x256xf32>
    %cst_304 = arith.constant 0.000000e+00 : f32
    %342 = vector.broadcast %cst_304 : f32 to vector<64x256xf32>
    %343 = arith.maximumf %341, %342 : vector<64x256xf32>
    %c0_305 = arith.constant 0 : index
    %c0_306 = arith.constant 0 : index
    %344 = vector.load %arg12[%c0_305, %c0_306] : memref<16x1xf32, #tpu.memory_space<vmem>>, vector<16x1xf32>
    %c17_i32_307 = arith.constant 17 : i32
    %345 = tpu.dynamic_rotate %343 by %c17_i32_307 dim 1 : vector<64x256xf32>, i32 -> vector<64x256xf32>
    %c0_308 = arith.constant 0 : index
    %c0_309 = arith.constant 0 : index
    %c0_310 = arith.constant 0 : index
    %346 = vector.load %arg2[%c0_308, %c0_309, %c0_310] : memref<9x1x256xf32, #tpu.memory_space<vmem>>, vector<1x1x256xf32>
    %347 = vector.shape_cast %346 : vector<1x1x256xf32> to vector<1x256xf32>
    %348 = vector.broadcast %347 : vector<1x256xf32> to vector<64x256xf32>
    %349 = arith.mulf %345, %348 : vector<64x256xf32>
    %c0_311 = arith.constant 0 : index
    %c0_312 = arith.constant 0 : index
    %c0_313 = arith.constant 0 : index
    %350 = vector.load %arg11[%c0_311, %c0_312, %c0_313] : memref<9x16x64xf32, #tpu.memory_space<vmem>>, vector<1x16x64xf32>
    %351 = vector.shape_cast %350 : vector<1x16x64xf32> to vector<16x64xf32>
    %cst_314 = arith.constant dense<0.000000e+00> : vector<16x256xf32>
    %352 = tpu.matmul %351, %349, %cst_314 {dimension_numbers = #tpu.dot_dimension_numbers<[1], [0], [0], [1], [0, 0, 1, 1], [], []>} : vector<16x64xf32>, vector<64x256xf32>, vector<16x256xf32> -> vector<16x256xf32>
    %c16_i32_315 = arith.constant 16 : i32
    %353 = tpu.dynamic_rotate %343 by %c16_i32_315 dim 1 : vector<64x256xf32>, i32 -> vector<64x256xf32>
    %c1_316 = arith.constant 1 : index
    %c0_317 = arith.constant 0 : index
    %c0_318 = arith.constant 0 : index
    %354 = vector.load %arg2[%c1_316, %c0_317, %c0_318] : memref<9x1x256xf32, #tpu.memory_space<vmem>>, vector<1x1x256xf32>
    %355 = vector.shape_cast %354 : vector<1x1x256xf32> to vector<1x256xf32>
    %356 = vector.broadcast %355 : vector<1x256xf32> to vector<64x256xf32>
    %357 = arith.mulf %353, %356 : vector<64x256xf32>
    %c1_319 = arith.constant 1 : index
    %c0_320 = arith.constant 0 : index
    %c0_321 = arith.constant 0 : index
    %358 = vector.load %arg11[%c1_319, %c0_320, %c0_321] : memref<9x16x64xf32, #tpu.memory_space<vmem>>, vector<1x16x64xf32>
    %359 = vector.shape_cast %358 : vector<1x16x64xf32> to vector<16x64xf32>
    %cst_322 = arith.constant dense<0.000000e+00> : vector<16x256xf32>
    %360 = tpu.matmul %359, %357, %cst_322 {dimension_numbers = #tpu.dot_dimension_numbers<[1], [0], [0], [1], [0, 0, 1, 1], [], []>} : vector<16x64xf32>, vector<64x256xf32>, vector<16x256xf32> -> vector<16x256xf32>
    %361 = arith.addf %352, %360 : vector<16x256xf32>
    %c15_i32_323 = arith.constant 15 : i32
    %362 = tpu.dynamic_rotate %343 by %c15_i32_323 dim 1 : vector<64x256xf32>, i32 -> vector<64x256xf32>
    %c2_324 = arith.constant 2 : index
    %c0_325 = arith.constant 0 : index
    %c0_326 = arith.constant 0 : index
    %363 = vector.load %arg2[%c2_324, %c0_325, %c0_326] : memref<9x1x256xf32, #tpu.memory_space<vmem>>, vector<1x1x256xf32>
    %364 = vector.shape_cast %363 : vector<1x1x256xf32> to vector<1x256xf32>
    %365 = vector.broadcast %364 : vector<1x256xf32> to vector<64x256xf32>
    %366 = arith.mulf %362, %365 : vector<64x256xf32>
    %c2_327 = arith.constant 2 : index
    %c0_328 = arith.constant 0 : index
    %c0_329 = arith.constant 0 : index
    %367 = vector.load %arg11[%c2_327, %c0_328, %c0_329] : memref<9x16x64xf32, #tpu.memory_space<vmem>>, vector<1x16x64xf32>
    %368 = vector.shape_cast %367 : vector<1x16x64xf32> to vector<16x64xf32>
    %cst_330 = arith.constant dense<0.000000e+00> : vector<16x256xf32>
    %369 = tpu.matmul %368, %366, %cst_330 {dimension_numbers = #tpu.dot_dimension_numbers<[1], [0], [0], [1], [0, 0, 1, 1], [], []>} : vector<16x64xf32>, vector<64x256xf32>, vector<16x256xf32> -> vector<16x256xf32>
    %370 = arith.addf %361, %369 : vector<16x256xf32>
    %c1_i32_331 = arith.constant 1 : i32
    %371 = tpu.dynamic_rotate %343 by %c1_i32_331 dim 1 : vector<64x256xf32>, i32 -> vector<64x256xf32>
    %c3_332 = arith.constant 3 : index
    %c0_333 = arith.constant 0 : index
    %c0_334 = arith.constant 0 : index
    %372 = vector.load %arg2[%c3_332, %c0_333, %c0_334] : memref<9x1x256xf32, #tpu.memory_space<vmem>>, vector<1x1x256xf32>
    %373 = vector.shape_cast %372 : vector<1x1x256xf32> to vector<1x256xf32>
    %374 = vector.broadcast %373 : vector<1x256xf32> to vector<64x256xf32>
    %375 = arith.mulf %371, %374 : vector<64x256xf32>
    %c3_335 = arith.constant 3 : index
    %c0_336 = arith.constant 0 : index
    %c0_337 = arith.constant 0 : index
    %376 = vector.load %arg11[%c3_335, %c0_336, %c0_337] : memref<9x16x64xf32, #tpu.memory_space<vmem>>, vector<1x16x64xf32>
    %377 = vector.shape_cast %376 : vector<1x16x64xf32> to vector<16x64xf32>
    %cst_338 = arith.constant dense<0.000000e+00> : vector<16x256xf32>
    %378 = tpu.matmul %377, %375, %cst_338 {dimension_numbers = #tpu.dot_dimension_numbers<[1], [0], [0], [1], [0, 0, 1, 1], [], []>} : vector<16x64xf32>, vector<64x256xf32>, vector<16x256xf32> -> vector<16x256xf32>
    %379 = arith.addf %370, %378 : vector<16x256xf32>
    %c4_339 = arith.constant 4 : index
    %c0_340 = arith.constant 0 : index
    %c0_341 = arith.constant 0 : index
    %380 = vector.load %arg11[%c4_339, %c0_340, %c0_341] : memref<9x16x64xf32, #tpu.memory_space<vmem>>, vector<1x16x64xf32>
    %381 = vector.shape_cast %380 : vector<1x16x64xf32> to vector<16x64xf32>
    %cst_342 = arith.constant dense<0.000000e+00> : vector<16x256xf32>
    %382 = tpu.matmul %381, %343, %cst_342 {dimension_numbers = #tpu.dot_dimension_numbers<[1], [0], [0], [1], [0, 0, 1, 1], [], []>} : vector<16x64xf32>, vector<64x256xf32>, vector<16x256xf32> -> vector<16x256xf32>
    %383 = arith.addf %379, %382 : vector<16x256xf32>
    %c255_i32_343 = arith.constant 255 : i32
    %384 = tpu.dynamic_rotate %343 by %c255_i32_343 dim 1 : vector<64x256xf32>, i32 -> vector<64x256xf32>
    %c5_344 = arith.constant 5 : index
    %c0_345 = arith.constant 0 : index
    %c0_346 = arith.constant 0 : index
    %385 = vector.load %arg2[%c5_344, %c0_345, %c0_346] : memref<9x1x256xf32, #tpu.memory_space<vmem>>, vector<1x1x256xf32>
    %386 = vector.shape_cast %385 : vector<1x1x256xf32> to vector<1x256xf32>
    %387 = vector.broadcast %386 : vector<1x256xf32> to vector<64x256xf32>
    %388 = arith.mulf %384, %387 : vector<64x256xf32>
    %c5_347 = arith.constant 5 : index
    %c0_348 = arith.constant 0 : index
    %c0_349 = arith.constant 0 : index
    %389 = vector.load %arg11[%c5_347, %c0_348, %c0_349] : memref<9x16x64xf32, #tpu.memory_space<vmem>>, vector<1x16x64xf32>
    %390 = vector.shape_cast %389 : vector<1x16x64xf32> to vector<16x64xf32>
    %cst_350 = arith.constant dense<0.000000e+00> : vector<16x256xf32>
    %391 = tpu.matmul %390, %388, %cst_350 {dimension_numbers = #tpu.dot_dimension_numbers<[1], [0], [0], [1], [0, 0, 1, 1], [], []>} : vector<16x64xf32>, vector<64x256xf32>, vector<16x256xf32> -> vector<16x256xf32>
    %392 = arith.addf %383, %391 : vector<16x256xf32>
    %c241_i32_351 = arith.constant 241 : i32
    %393 = tpu.dynamic_rotate %343 by %c241_i32_351 dim 1 : vector<64x256xf32>, i32 -> vector<64x256xf32>
    %c6_352 = arith.constant 6 : index
    %c0_353 = arith.constant 0 : index
    %c0_354 = arith.constant 0 : index
    %394 = vector.load %arg2[%c6_352, %c0_353, %c0_354] : memref<9x1x256xf32, #tpu.memory_space<vmem>>, vector<1x1x256xf32>
    %395 = vector.shape_cast %394 : vector<1x1x256xf32> to vector<1x256xf32>
    %396 = vector.broadcast %395 : vector<1x256xf32> to vector<64x256xf32>
    %397 = arith.mulf %393, %396 : vector<64x256xf32>
    %c6_355 = arith.constant 6 : index
    %c0_356 = arith.constant 0 : index
    %c0_357 = arith.constant 0 : index
    %398 = vector.load %arg11[%c6_355, %c0_356, %c0_357] : memref<9x16x64xf32, #tpu.memory_space<vmem>>, vector<1x16x64xf32>
    %399 = vector.shape_cast %398 : vector<1x16x64xf32> to vector<16x64xf32>
    %cst_358 = arith.constant dense<0.000000e+00> : vector<16x256xf32>
    %400 = tpu.matmul %399, %397, %cst_358 {dimension_numbers = #tpu.dot_dimension_numbers<[1], [0], [0], [1], [0, 0, 1, 1], [], []>} : vector<16x64xf32>, vector<64x256xf32>, vector<16x256xf32> -> vector<16x256xf32>
    %401 = arith.addf %392, %400 : vector<16x256xf32>
    %c240_i32_359 = arith.constant 240 : i32
    %402 = tpu.dynamic_rotate %343 by %c240_i32_359 dim 1 : vector<64x256xf32>, i32 -> vector<64x256xf32>
    %c7_360 = arith.constant 7 : index
    %c0_361 = arith.constant 0 : index
    %c0_362 = arith.constant 0 : index
    %403 = vector.load %arg2[%c7_360, %c0_361, %c0_362] : memref<9x1x256xf32, #tpu.memory_space<vmem>>, vector<1x1x256xf32>
    %404 = vector.shape_cast %403 : vector<1x1x256xf32> to vector<1x256xf32>
    %405 = vector.broadcast %404 : vector<1x256xf32> to vector<64x256xf32>
    %406 = arith.mulf %402, %405 : vector<64x256xf32>
    %c7_363 = arith.constant 7 : index
    %c0_364 = arith.constant 0 : index
    %c0_365 = arith.constant 0 : index
    %407 = vector.load %arg11[%c7_363, %c0_364, %c0_365] : memref<9x16x64xf32, #tpu.memory_space<vmem>>, vector<1x16x64xf32>
    %408 = vector.shape_cast %407 : vector<1x16x64xf32> to vector<16x64xf32>
    %cst_366 = arith.constant dense<0.000000e+00> : vector<16x256xf32>
    %409 = tpu.matmul %408, %406, %cst_366 {dimension_numbers = #tpu.dot_dimension_numbers<[1], [0], [0], [1], [0, 0, 1, 1], [], []>} : vector<16x64xf32>, vector<64x256xf32>, vector<16x256xf32> -> vector<16x256xf32>
    %410 = arith.addf %401, %409 : vector<16x256xf32>
    %c239_i32_367 = arith.constant 239 : i32
    %411 = tpu.dynamic_rotate %343 by %c239_i32_367 dim 1 : vector<64x256xf32>, i32 -> vector<64x256xf32>
    %c8_368 = arith.constant 8 : index
    %c0_369 = arith.constant 0 : index
    %c0_370 = arith.constant 0 : index
    %412 = vector.load %arg2[%c8_368, %c0_369, %c0_370] : memref<9x1x256xf32, #tpu.memory_space<vmem>>, vector<1x1x256xf32>
    %413 = vector.shape_cast %412 : vector<1x1x256xf32> to vector<1x256xf32>
    %414 = vector.broadcast %413 : vector<1x256xf32> to vector<64x256xf32>
    %415 = arith.mulf %411, %414 : vector<64x256xf32>
    %c8_371 = arith.constant 8 : index
    %c0_372 = arith.constant 0 : index
    %c0_373 = arith.constant 0 : index
    %416 = vector.load %arg11[%c8_371, %c0_372, %c0_373] : memref<9x16x64xf32, #tpu.memory_space<vmem>>, vector<1x16x64xf32>
    %417 = vector.shape_cast %416 : vector<1x16x64xf32> to vector<16x64xf32>
    %cst_374 = arith.constant dense<0.000000e+00> : vector<16x256xf32>
    %418 = tpu.matmul %417, %415, %cst_374 {dimension_numbers = #tpu.dot_dimension_numbers<[1], [0], [0], [1], [0, 0, 1, 1], [], []>} : vector<16x64xf32>, vector<64x256xf32>, vector<16x256xf32> -> vector<16x256xf32>
    %419 = arith.addf %410, %418 : vector<16x256xf32>
    %420 = vector.broadcast %344 : vector<16x1xf32> to vector<16x256xf32>
    %421 = arith.addf %419, %420 : vector<16x256xf32>
    %c0_375 = arith.constant 0 : index
    %c0_376 = arith.constant 0 : index
    %c0_377 = arith.constant 0 : index
    %422 = vector.load %arg13[%c0_375, %c0_376, %c0_377] : memref<1x16x256xf32, #tpu.memory_space<vmem>>, vector<1x16x256xf32>
    %423 = vector.shape_cast %422 : vector<1x16x256xf32> to vector<16x256xf32>
    %424 = vector.shape_cast %421 : vector<16x256xf32> to vector<1x16x256xf32>
    tpu.vector_store %arg13[%c0_375, %c0_376, %c0_377], %424 {strides = array<i32>} : memref<1x16x256xf32, #tpu.memory_space<vmem>>, vector<1x16x256xf32>,
    return
  }
  func.func @transform_0(%arg0: i32) -> (i32, i32, i32) {
    %c0_i32 = arith.constant 0 : i32
    %c0_i32_0 = arith.constant 0 : i32
    %c0_i32_1 = arith.constant 0 : i32
    return %arg0, %c0_i32, %c0_i32_0 : i32, i32, i32
  }
  func.func @transform_1(%arg0: i32) -> (i32, i32, i32) {
    %c0_i32 = arith.constant 0 : i32
    %c0_i32_0 = arith.constant 0 : i32
    %c0_i32_1 = arith.constant 0 : i32
    %c0_i32_2 = arith.constant 0 : i32
    return %c0_i32, %c0_i32_0, %c0_i32_1 : i32, i32, i32
  }
  func.func @transform_2(%arg0: i32) -> (i32, i32, i32) {
    %c0_i32 = arith.constant 0 : i32
    %c0_i32_0 = arith.constant 0 : i32
    %c0_i32_1 = arith.constant 0 : i32
    %c0_i32_2 = arith.constant 0 : i32
    return %c0_i32, %c0_i32_0, %c0_i32_1 : i32, i32, i32
  }
  func.func @transform_3(%arg0: i32) -> (i32, i32) {
    %c0_i32 = arith.constant 0 : i32
    %c0_i32_0 = arith.constant 0 : i32
    %c0_i32_1 = arith.constant 0 : i32
    return %c0_i32, %c0_i32_0 : i32, i32
  }
  func.func @transform_4(%arg0: i32) -> (i32, i32, i32, i32) {
    %c0_i32 = arith.constant 0 : i32
    %c0_i32_0 = arith.constant 0 : i32
    %c0_i32_1 = arith.constant 0 : i32
    %c0_i32_2 = arith.constant 0 : i32
    %c0_i32_3 = arith.constant 0 : i32
    return %c0_i32, %c0_i32_0, %c0_i32_1, %c0_i32_2 : i32, i32, i32, i32
  }
  func.func @transform_5(%arg0: i32) -> (i32, i32, i32) {
    %c0_i32 = arith.constant 0 : i32
    %c0_i32_0 = arith.constant 0 : i32
    %c0_i32_1 = arith.constant 0 : i32
    %c0_i32_2 = arith.constant 0 : i32
    return %c0_i32, %c0_i32_0, %c0_i32_1 : i32, i32, i32
  }
  func.func @transform_6(%arg0: i32) -> (i32, i32, i32) {
    %c0_i32 = arith.constant 0 : i32
    %c0_i32_0 = arith.constant 0 : i32
    %c0_i32_1 = arith.constant 0 : i32
    %c0_i32_2 = arith.constant 0 : i32
    return %c0_i32, %c0_i32_0, %c0_i32_1 : i32, i32, i32
  }
  func.func @transform_7(%arg0: i32) -> (i32, i32, i32) {
    %c0_i32 = arith.constant 0 : i32
    %c0_i32_0 = arith.constant 0 : i32
    %c0_i32_1 = arith.constant 0 : i32
    %c0_i32_2 = arith.constant 0 : i32
    return %c0_i32, %c0_i32_0, %c0_i32_1 : i32, i32, i32
  }
  func.func @transform_8(%arg0: i32) -> (i32, i32, i32) {
    %c0_i32 = arith.constant 0 : i32
    %c0_i32_0 = arith.constant 0 : i32
    %c0_i32_1 = arith.constant 0 : i32
    %c0_i32_2 = arith.constant 0 : i32
    return %c0_i32, %c0_i32_0, %c0_i32_1 : i32, i32, i32
  }
  func.func @transform_9(%arg0: i32) -> (i32, i32) {
    %c0_i32 = arith.constant 0 : i32
    %c0_i32_0 = arith.constant 0 : i32
    %c0_i32_1 = arith.constant 0 : i32
    return %c0_i32, %c0_i32_0 : i32, i32
  }
  func.func @transform_10(%arg0: i32) -> (i32, i32, i32) {
    %c0_i32 = arith.constant 0 : i32
    %c0_i32_0 = arith.constant 0 : i32
    %c0_i32_1 = arith.constant 0 : i32
    %c0_i32_2 = arith.constant 0 : i32
    return %c0_i32, %c0_i32_0, %c0_i32_1 : i32, i32, i32
  }
  func.func @transform_11(%arg0: i32) -> (i32, i32) {
    %c0_i32 = arith.constant 0 : i32
    %c0_i32_0 = arith.constant 0 : i32
    %c0_i32_1 = arith.constant 0 : i32
    return %c0_i32, %c0_i32_0 : i32, i32
  }
  func.func @transform_12(%arg0: i32) -> (i32, i32, i32) {
    %c0_i32 = arith.constant 0 : i32
    %c0_i32_0 = arith.constant 0 : i32
    %c0_i32_1 = arith.constant 0 : i32
    return %arg0, %c0_i32, %c0_i32_0 : i32, i32, i32
  }
}

</mosaic_0001>

<llo_original>
// kernel: decoder_forward.1
$region0: #{decoder_forward.1}
  #allocation0 [shape = 'u32[]', space=smem, size = 0x4, offset = 0x4, fixed_abs, tag = 'smem constant byte address 0x4 - core index']
  #allocation1 [shape = 'u32[144,128]{1,0:T(1,128)}', space=vmem, size = 0x12000, scoped, tag = 'internal scratch']
  %s0 = inlined_call_operand.vmem [shape: f32[2,4,256], index: 0, kind: input, shape index: {}]
  %s1 = inlined_call_operand.vmem [shape: f32[9,1,256], index: 1, kind: input, shape index: {}]
  %s2 = inlined_call_operand.vmem [shape: f32[9,32,4], index: 2, kind: input, shape index: {}]
  %s3 = inlined_call_operand.vmem [shape: f32[32,1], index: 3, kind: input, shape index: {}]
  %s4 = inlined_call_operand.vmem [shape: f32[2,9,16,32], index: 4, kind: input, shape index: {}]
  %s5 = inlined_call_operand.vmem [shape: f32[2,16,1], index: 5, kind: input, shape index: {}]
  %s6 = inlined_call_operand.vmem [shape: f32[2,32,16], index: 6, kind: input, shape index: {}]
  %s7 = inlined_call_operand.vmem [shape: f32[2,32,1], index: 7, kind: input, shape index: {}]
  %s8 = inlined_call_operand.vmem [shape: f32[9,64,32], index: 8, kind: input, shape index: {}]
  %s9 = inlined_call_operand.vmem [shape: f32[64,1], index: 9, kind: input, shape index: {}]
  %s10 = inlined_call_operand.vmem [shape: f32[9,16,64], index: 10, kind: input, shape index: {}]
  %s11 = inlined_call_operand.vmem [shape: f32[16,1], index: 11, kind: input, shape index: {}]
  %s12 = inlined_call_operand.vmem [shape: f32[2,16,256], index: 12, kind: output, shape index: {}]
  %s13 = sld [smem:[#allocation0]]
  $region81: #{decoder_forward.1} parent=0
    _
  %s15 = ssub.s32 1, %s13
  %s16 = scalar_select 0, %s15, %s13
  loop: start=0, step=1, limit=4
  $region2: #{decoder_forward.1} parent=0 // loop_pre_header
    _
  $region3: #{decoder_forward.1} parent=0 // loop_header
    %s18 = sphi 0, %s22
    %p19 = scmp.ge.s32.totalorder %s18, 4
    %s28 = sphi 0, %s30
    %s31 = sphi 0, %s28
    %s32 = sphi 0, %s31
    %s48 = sphi 0, %s32
    %s52 = sphi 0, %s52
    %s54 = sphi 0, %s52
    %s55 = sphi 0, %s54
    %s69 = sphi 0, %s55
    %s73 = sphi 0, %s73
    %s75 = sphi 0, %s73
    %s76 = sphi 0, %s75
    %s90 = sphi 0, %s76
    %s94 = sphi 0, %s94
    %s96 = sphi 0, %s94
    %s97 = sphi 0, %s96
    %s111 = sphi 0, %s97
    %s115 = sphi 0, %s115
    %s117 = sphi 0, %s115
    %s118 = sphi 0, %s117
    %s132 = sphi 0, %s118
    %s136 = sphi 0, %s136
    %s138 = sphi 0, %s136
    %s139 = sphi 0, %s138
    %s153 = sphi 0, %s139
    %s157 = sphi 0, %s157
    %s159 = sphi 0, %s157
    %s160 = sphi 0, %s159
    %s174 = sphi 0, %s160
    %s178 = sphi 0, %s178
    %s180 = sphi 0, %s178
    %s181 = sphi 0, %s180
    %s195 = sphi 0, %s181
    %s199 = sphi 0, %s199
    %s201 = sphi 0, %s199
    %s202 = sphi 0, %s201
    %s216 = sphi 0, %s202
    %s220 = sphi 0, %s220
    %s222 = sphi 0, %s220
    %s223 = sphi 0, %s222
    %s237 = sphi 0, %s223
    %s241 = sphi 0, %s241
    %s243 = sphi 0, %s241
    %s244 = sphi 0, %s243
    %s258 = sphi 0, %s244
    %s262 = sphi 0, %s262
    %s264 = sphi 0, %s262
    %s265 = sphi 0, %s264
    %s279 = sphi 0, %s265
    %s285 = sphi 0, %s287
    %s288 = sphi 0, %s285
    %s289 = sphi 0, %s288
    %s305 = sphi 0, %s289
  $region4: #{decoder_forward.1} parent=0 // loop_header_branch
    %21 = sbr.rel (%p19) target = $region8
  $region5: #{decoder_forward.1} parent=0 // loop_body
    %s23 = ssub.s32 %s18, 1
    %s24 = ssub.s32 %s18, 2
    %s25 = sadd.s32 %s18, 1
    %s26 = ssub.s32 %s18, %s25
    %p27 = scmp.eq.s32.totalorder %s26, 0
    %s29 = sadd.s32 %s28, 1
    %s30 = scalar_select %p27, %s28, %s29
    %p33 = pneg %p27
    %p34 = scmp.eq.s32.totalorder %s18, 1
    %p35 = por %p33, %p34
    %p36 = scmp.ne.s32.totalorder %s28, %s31
    %p37 = scmp.eq.s32.totalorder %s18, 0
    %p38 = por %p36, %p37
    %p39 = scmp.ne.s32.totalorder %s28, %s31
    %p40 = scmp.eq.s32.totalorder %s23, 1
    %p41 = por %p39, %p40
    %p42 = scmp.ne.s32.totalorder %s31, %s32
    %p43 = scmp.eq.s32.totalorder %s23, 0
    %p44 = por %p42, %p43
    %p45 = scmp.ne.s32.totalorder %s31, %s32
    %p46 = scmp.eq.s32.totalorder %s24, 1
    %p47 = por %p45, %p46
    %p49 = scmp.ne.s32.totalorder %s32, %s48
    %p50 = scmp.eq.s32.totalorder %s24, 0
    %p51 = por %p49, %p50
    %s53 = sadd.s32 %s52, 1
    %p56 = scmp.eq.s32.totalorder %s18, 1
    %p57 = scmp.ne.s32.totalorder %s52, %s54
    %p58 = scmp.eq.s32.totalorder %s18, 0
    %p59 = por %p57, %p58
    %p60 = scmp.ne.s32.totalorder %s52, %s54
    %p61 = scmp.eq.s32.totalorder %s23, 1
    %p62 = por %p60, %p61
    %p63 = scmp.ne.s32.totalorder %s54, %s55
    %p64 = scmp.eq.s32.totalorder %s23, 0
    %p65 = por %p63, %p64
    %p66 = scmp.ne.s32.totalorder %s54, %s55
    %p67 = scmp.eq.s32.totalorder %s24, 1
    %p68 = por %p66, %p67
    %p70 = scmp.ne.s32.totalorder %s55, %s69
    %p71 = scmp.eq.s32.totalorder %s24, 0
    %p72 = por %p70, %p71
    %s74 = sadd.s32 %s73, 1
    %p77 = scmp.eq.s32.totalorder %s18, 1
    %p78 = scmp.ne.s32.totalorder %s73, %s75
    %p79 = scmp.eq.s32.totalorder %s18, 0
    %p80 = por %p78, %p79
    %p81 = scmp.ne.s32.totalorder %s73, %s75
    %p82 = scmp.eq.s32.totalorder %s23, 1
    %p83 = por %p81, %p82
    %p84 = scmp.ne.s32.totalorder %s75, %s76
    %p85 = scmp.eq.s32.totalorder %s23, 0
    %p86 = por %p84, %p85
    %p87 = scmp.ne.s32.totalorder %s75, %s76
    %p88 = scmp.eq.s32.totalorder %s24, 1
    %p89 = por %p87, %p88
    %p91 = scmp.ne.s32.totalorder %s76, %s90
    %p92 = scmp.eq.s32.totalorder %s24, 0
    %p93 = por %p91, %p92
    %s95 = sadd.s32 %s94, 1
    %p98 = scmp.eq.s32.totalorder %s18, 1
    %p99 = scmp.ne.s32.totalorder %s94, %s96
    %p100 = scmp.eq.s32.totalorder %s18, 0
    %p101 = por %p99, %p100
    %p102 = scmp.ne.s32.totalorder %s94, %s96
    %p103 = scmp.eq.s32.totalorder %s23, 1
    %p104 = por %p102, %p103
    %p105 = scmp.ne.s32.totalorder %s96, %s97
    %p106 = scmp.eq.s32.totalorder %s23, 0
    %p107 = por %p105, %p106
    %p108 = scmp.ne.s32.totalorder %s96, %s97
    %p109 = scmp.eq.s32.totalorder %s24, 1
    %p110 = por %p108, %p109
    %p112 = scmp.ne.s32.totalorder %s97, %s111
    %p113 = scmp.eq.s32.totalorder %s24, 0
    %p114 = por %p112, %p113
    %s116 = sadd.s32 %s115, 1
    %p119 = scmp.eq.s32.totalorder %s18, 1
    %p120 = scmp.ne.s32.totalorder %s115, %s117
    %p121 = scmp.eq.s32.totalorder %s18, 0
    %p122 = por %p120, %p121
    %p123 = scmp.ne.s32.totalorder %s115, %s117
    %p124 = scmp.eq.s32.totalorder %s23, 1
    %p125 = por %p123, %p124
    %p126 = scmp.ne.s32.totalorder %s117, %s118
    %p127 = scmp.eq.s32.totalorder %s23, 0
    %p128 = por %p126, %p127
    %p129 = scmp.ne.s32.totalorder %s117, %s118
    %p130 = scmp.eq.s32.totalorder %s24, 1
    %p131 = por %p129, %p130
    %p133 = scmp.ne.s32.totalorder %s118, %s132
    %p134 = scmp.eq.s32.totalorder %s24, 0
    %p135 = por %p133, %p134
    %s137 = sadd.s32 %s136, 1
    %p140 = scmp.eq.s32.totalorder %s18, 1
    %p141 = scmp.ne.s32.totalorder %s136, %s138
    %p142 = scmp.eq.s32.totalorder %s18, 0
    %p143 = por %p141, %p142
    %p144 = scmp.ne.s32.totalorder %s136, %s138
    %p145 = scmp.eq.s32.totalorder %s23, 1
    %p146 = por %p144, %p145
    %p147 = scmp.ne.s32.totalorder %s138, %s139
    %p148 = scmp.eq.s32.totalorder %s23, 0
    %p149 = por %p147, %p148
    %p150 = scmp.ne.s32.totalorder %s138, %s139
    %p151 = scmp.eq.s32.totalorder %s24, 1
    %p152 = por %p150, %p151
    %p154 = scmp.ne.s32.totalorder %s139, %s153
    %p155 = scmp.eq.s32.totalorder %s24, 0
    %p156 = por %p154, %p155
    %s158 = sadd.s32 %s157, 1
    %p161 = scmp.eq.s32.totalorder %s18, 1
    %p162 = scmp.ne.s32.totalorder %s157, %s159
    %p163 = scmp.eq.s32.totalorder %s18, 0
    %p164 = por %p162, %p163
    %p165 = scmp.ne.s32.totalorder %s157, %s159
    %p166 = scmp.eq.s32.totalorder %s23, 1
    %p167 = por %p165, %p166
    %p168 = scmp.ne.s32.totalorder %s159, %s160
    %p169 = scmp.eq.s32.totalorder %s23, 0
    %p170 = por %p168, %p169
    %p171 = scmp.ne.s32.totalorder %s159, %s160
    %p172 = scmp.eq.s32.totalorder %s24, 1
    %p173 = por %p171, %p172
    %p175 = scmp.ne.s32.totalorder %s160, %s174
    %p176 = scmp.eq.s32.totalorder %s24, 0
    %p177 = por %p175, %p176
    %s179 = sadd.s32 %s178, 1
    %p182 = scmp.eq.s32.totalorder %s18, 1
    %p183 = scmp.ne.s32.totalorder %s178, %s180
    %p184 = scmp.eq.s32.totalorder %s18, 0
    %p185 = por %p183, %p184
    %p186 = scmp.ne.s32.totalorder %s178, %s180
    %p187 = scmp.eq.s32.totalorder %s23, 1
    %p188 = por %p186, %p187
    %p189 = scmp.ne.s32.totalorder %s180, %s181
    %p190 = scmp.eq.s32.totalorder %s23, 0
    %p191 = por %p189, %p190
    %p192 = scmp.ne.s32.totalorder %s180, %s181
    %p193 = scmp.eq.s32.totalorder %s24, 1
    %p194 = por %p192, %p193
    %p196 = scmp.ne.s32.totalorder %s181, %s195
    %p197 = scmp.eq.s32.totalorder %s24, 0
    %p198 = por %p196, %p197
    %s200 = sadd.s32 %s199, 1
    %p203 = scmp.eq.s32.totalorder %s18, 1
    %p204 = scmp.ne.s32.totalorder %s199, %s201
    %p205 = scmp.eq.s32.totalorder %s18, 0
    %p206 = por %p204, %p205
    %p207 = scmp.ne.s32.totalorder %s199, %s201
    %p208 = scmp.eq.s32.totalorder %s23, 1
    %p209 = por %p207, %p208
    %p210 = scmp.ne.s32.totalorder %s201, %s202
    %p211 = scmp.eq.s32.totalorder %s23, 0
    %p212 = por %p210, %p211
    %p213 = scmp.ne.s32.totalorder %s201, %s202
    %p214 = scmp.eq.s32.totalorder %s24, 1
    %p215 = por %p213, %p214
    %p217 = scmp.ne.s32.totalorder %s202, %s216
    %p218 = scmp.eq.s32.totalorder %s24, 0
    %p219 = por %p217, %p218
    %s221 = sadd.s32 %s220, 1
    %p224 = scmp.eq.s32.totalorder %s18, 1
    %p225 = scmp.ne.s32.totalorder %s220, %s222
    %p226 = scmp.eq.s32.totalorder %s18, 0
    %p227 = por %p225, %p226
    %p228 = scmp.ne.s32.totalorder %s220, %s222
    %p229 = scmp.eq.s32.totalorder %s23, 1
    %p230 = por %p228, %p229
    %p231 = scmp.ne.s32.totalorder %s222, %s223
    %p232 = scmp.eq.s32.totalorder %s23, 0
    %p233 = por %p231, %p232
    %p234 = scmp.ne.s32.totalorder %s222, %s223
    %p235 = scmp.eq.s32.totalorder %s24, 1
    %p236 = por %p234, %p235
    %p238 = scmp.ne.s32.totalorder %s223, %s237
    %p239 = scmp.eq.s32.totalorder %s24, 0
    %p240 = por %p238, %p239
    %s242 = sadd.s32 %s241, 1
    %p245 = scmp.eq.s32.totalorder %s18, 1
    %p246 = scmp.ne.s32.totalorder %s241, %s243
    %p247 = scmp.eq.s32.totalorder %s18, 0
    %p248 = por %p246, %p247
    %p249 = scmp.ne.s32.totalorder %s241, %s243
    %p250 = scmp.eq.s32.totalorder %s23, 1
    %p251 = por %p249, %p250
    %p252 = scmp.ne.s32.totalorder %s243, %s244
    %p253 = scmp.eq.s32.totalorder %s23, 0
    %p254 = por %p252, %p253
    %p255 = scmp.ne.s32.totalorder %s243, %s244
    %p256 = scmp.eq.s32.totalorder %s24, 1
    %p257 = por %p255, %p256
    %p259 = scmp.ne.s32.totalorder %s244, %s258
    %p260 = scmp.eq.s32.totalorder %s24, 0
    %p261 = por %p259, %p260
    %s263 = sadd.s32 %s262, 1
    %p266 = scmp.eq.s32.totalorder %s18, 1
    %p267 = scmp.ne.s32.totalorder %s262, %s264
    %p268 = scmp.eq.s32.totalorder %s18, 0
    %p269 = por %p267, %p268
    %p270 = scmp.ne.s32.totalorder %s262, %s264
    %p271 = scmp.eq.s32.totalorder %s23, 1
    %p272 = por %p270, %p271
    %p273 = scmp.ne.s32.totalorder %s264, %s265
    %p274 = scmp.eq.s32.totalorder %s23, 0
    %p275 = por %p273, %p274
    %p276 = scmp.ne.s32.totalorder %s264, %s265
    %p277 = scmp.eq.s32.totalorder %s24, 1
    %p278 = por %p276, %p277
    %p280 = scmp.ne.s32.totalorder %s265, %s279
    %p281 = scmp.eq.s32.totalorder %s24, 0
    %p282 = por %p280, %p281
    %s283 = ssub.s32 %s18, %s25
    %p284 = scmp.eq.s32.totalorder %s283, 0
    %s286 = sadd.s32 %s285, 1
    %s287 = scalar_select %p284, %s285, %s286
    %p290 = pneg %p284
    %p291 = scmp.eq.s32.totalorder %s18, 1
    %p292 = por %p290, %p291
    %p293 = scmp.ne.s32.totalorder %s285, %s288
    %p294 = scmp.eq.s32.totalorder %s18, 0
    %p295 = por %p293, %p294
    %p296 = scmp.ne.s32.totalorder %s285, %s288
    %p297 = scmp.eq.s32.totalorder %s23, 1
    %p298 = por %p296, %p297
    %p299 = scmp.ne.s32.totalorder %s288, %s289
    %p300 = scmp.eq.s32.totalorder %s23, 0
    %p301 = por %p299, %p300
    %p302 = scmp.ne.s32.totalorder %s288, %s289
    %p303 = scmp.eq.s32.totalorder %s24, 1
    %p304 = por %p302, %p303
    %p306 = scmp.ne.s32.totalorder %s289, %s305
    %p307 = scmp.eq.s32.totalorder %s24, 0
    %p308 = por %p306, %p307
    %p309 = scmp.le.s32.totalorder 1, %s18
    %p310 = scmp.lt.s32.totalorder %s18, 3
    %p311 = pnand %p309, %p310
    %p312 = pneg %p311
    // Predicated region
    $region9: #{decoder_forward.1} parent=5 // pred_check
      _
    $region10: #{decoder_forward.1} parent=5 // pred_check_branch
      %314 = sbr.rel (%p311) target = $region12
    $region11: #{decoder_forward.1} parent=5 // pred_region
      %s315 = ssub.s32 %s18, 1
      // Predicated region
      $region13: #{decoder_forward.1} parent=11 // pred_check
        %p316 = pneg %p65
      $region14: #{decoder_forward.1} parent=11 // pred_check_branch
        %318 = sbr.rel (%p316) target = $region16
      $region15: #{decoder_forward.1} parent=11 // pred_region
        _
      $region16: #{decoder_forward.1} parent=11 // pred_fallthru
        _
      // Predicated region
      $region17: #{decoder_forward.1} parent=11 // pred_check
        %p319 = pneg %p86
      $region18: #{decoder_forward.1} parent=11 // pred_check_branch
        %321 = sbr.rel (%p319) target = $region20
      $region19: #{decoder_forward.1} parent=11 // pred_region
        _
      $region20: #{decoder_forward.1} parent=11 // pred_fallthru
        _
      // Predicated region
      $region21: #{decoder_forward.1} parent=11 // pred_check
        %p322 = pneg %p107
      $region22: #{decoder_forward.1} parent=11 // pred_check_branch
        %324 = sbr.rel (%p322) target = $region24
      $region23: #{decoder_forward.1} parent=11 // pred_region
        _
      $region24: #{decoder_forward.1} parent=11 // pred_fallthru
        _
      // Predicated region
      $region25: #{decoder_forward.1} parent=11 // pred_check
        %p325 = pneg %p128
      $region26: #{decoder_forward.1} parent=11 // pred_check_branch
        %327 = sbr.rel (%p325) target = $region28
      $region27: #{decoder_forward.1} parent=11 // pred_region
        _
      $region28: #{decoder_forward.1} parent=11 // pred_fallthru
        _
      // Predicated region
      $region29: #{decoder_forward.1} parent=11 // pred_check
        %p328 = pneg %p149
      $region30: #{decoder_forward.1} parent=11 // pred_check_branch
        %330 = sbr.rel (%p328) target = $region32
      $region31: #{decoder_forward.1} parent=11 // pred_region
        _
      $region32: #{decoder_forward.1} parent=11 // pred_fallthru
        _
      // Predicated region
      $region33: #{decoder_forward.1} parent=11 // pred_check
        %p331 = pneg %p170
      $region34: #{decoder_forward.1} parent=11 // pred_check_branch
        %333 = sbr.rel (%p331) target = $region36
      $region35: #{decoder_forward.1} parent=11 // pred_region
        _
      $region36: #{decoder_forward.1} parent=11 // pred_fallthru
        _
      // Predicated region
      $region37: #{decoder_forward.1} parent=11 // pred_check
        %p334 = pneg %p191
      $region38: #{decoder_forward.1} parent=11 // pred_check_branch
        %336 = sbr.rel (%p334) target = $region40
      $region39: #{decoder_forward.1} parent=11 // pred_region
        _
      $region40: #{decoder_forward.1} parent=11 // pred_fallthru
        _
      // Predicated region
      $region41: #{decoder_forward.1} parent=11 // pred_check
        %p337 = pneg %p212
      $region42: #{decoder_forward.1} parent=11 // pred_check_branch
        %339 = sbr.rel (%p337) target = $region44
      $region43: #{decoder_forward.1} parent=11 // pred_region
        _
      $region44: #{decoder_forward.1} parent=11 // pred_fallthru
        _
      // Predicated region
      $region45: #{decoder_forward.1} parent=11 // pred_check
        %p340 = pneg %p233
      $region46: #{decoder_forward.1} parent=11 // pred_check_branch
        %342 = sbr.rel (%p340) target = $region48
      $region47: #{decoder_forward.1} parent=11 // pred_region
        _
      $region48: #{decoder_forward.1} parent=11 // pred_fallthru
        _
      // Predicated region
      $region49: #{decoder_forward.1} parent=11 // pred_check
        %p343 = pneg %p254
      $region50: #{decoder_forward.1} parent=11 // pred_check_branch
        %345 = sbr.rel (%p343) target = $region52
      $region51: #{decoder_forward.1} parent=11 // pred_region
        _
      $region52: #{decoder_forward.1} parent=11 // pred_fallthru
        _
      // Predicated region
      $region53: #{decoder_forward.1} parent=11 // pred_check
        %p346 = pneg %p275
      $region54: #{decoder_forward.1} parent=11 // pred_check_branch
        %348 = sbr.rel (%p346) target = $region56
      $region55: #{decoder_forward.1} parent=11 // pred_region
        _
      $region56: #{decoder_forward.1} parent=11 // pred_fallthru
        _
    $region12: #{decoder_forward.1} parent=5 // pred_fallthru
      _
    %p349 = scmp.lt.s32.totalorder %s18, 2
    // Predicated region
    $region57: #{decoder_forward.1} parent=5 // pred_check
      %p350 = pneg %p349
    $region58: #{decoder_forward.1} parent=5 // pred_check_branch
      %352 = sbr.rel (%p350) target = $region60
    $region59: #{decoder_forward.1} parent=5 // pred_region
      // Predicated region
      $region61: #{decoder_forward.1} parent=59 // pred_check
        %p353 = pneg %p38
      $region62: #{decoder_forward.1} parent=59 // pred_check_branch
        %355 = sbr.rel (%p353) target = $region64
      $region63: #{decoder_forward.1} parent=59 // pred_region
        %p356 = scmp.lt.s32.totalorder %s18, 1
        %s357 = scalar_select %p356, %s18, 1
        %s358 = smul.addr %s357, 2
        %s359 = smul.addr %s358, 4
        %s360 = scalar_lea.vmem %s0, %s359
      $region64: #{decoder_forward.1} parent=59 // pred_fallthru
        _
    $region60: #{decoder_forward.1} parent=5 // pred_fallthru
      _
    %p361 = scmp.le.s32.totalorder 1, %s18
    %p362 = scmp.lt.s32.totalorder %s18, 3
    %p363 = pnand %p361, %p362
    %p364 = pneg %p363
    // Predicated region
    $region65: #{decoder_forward.1} parent=5 // pred_check
      _
    $region66: #{decoder_forward.1} parent=5 // pred_check_branch
      %366 = sbr.rel (%p363) target = $region68
    $region67: #{decoder_forward.1} parent=5 // pred_region
      %s367 = ssub.s32 %s18, 1
      %p368 = scmp.lt.s32.totalorder %s23, 1
      %s369 = scalar_select %p368, %s23, 1
      %s370 = smul.addr %s369, 2
      %s371 = smul.addr %s370, 4
      %s372 = scalar_lea.vmem %s0, %s371
      %p373 = pneg %p44
      %p374 = pneg %p41
      %p375 = pneg %p65
      %p376 = pneg %p62
      %p377 = pneg %p86
      %p378 = pneg %p83
      %p379 = pneg %p107
      %p380 = pneg %p104
      %p381 = pneg %p128
      %p382 = pneg %p125
      %p383 = pneg %p149
      %p384 = pneg %p146
      %p385 = pneg %p170
      %p386 = pneg %p167
      %p387 = pneg %p191
      %p388 = pneg %p188
      %p389 = pneg %p212
      %p390 = pneg %p209
      %p391 = pneg %p233
      %p392 = pneg %p230
      %p393 = pneg %p254
      %p394 = pneg %p251
      %p395 = pneg %p275
      %p396 = pneg %p272
      %p397 = pneg %p301
      %p398 = pneg %p298
      %p399 = scmp.lt.s32.totalorder %s23, 1
      %s400 = scalar_select %p399, %s23, 1
      %s401 = smul.addr %s400, 4
      %s402 = smul.addr %s401, 8
      %s403 = scalar_lea.vmem %s12, %s402
      %p404 = scmp.lt.s32.totalorder %s23, 1
      %s405 = scalar_select %p404, %s23, 1
      %s406 = smul.addr %s405, 2
      %s407 = smul.addr %s406, 4
      %s408 = scalar_lea.vmem %s0, %s407
      %p409 = scmp.lt.s32.totalorder %s23, 1
      %s410 = scalar_select %p409, %s23, 1
      %s411 = smul.addr %s410, 4
      %s412 = smul.addr %s411, 8
      %s413 = scalar_lea.vmem %s12, %s412
      %v414 = vld [vmem:[%s408] sm:$0xff]
      %v415 = vld [vmem:[%s3] sm:$0xff]
      %v416 = vld [vmem:[%s3 + $0x8] sm:$0xff]
      %v417 = vld [vmem:[%s3 + $0x10] sm:$0xff]
      %v418 = vld [vmem:[%s3 + $0x18] sm:$0xff]
      %v420 = vcombine.high %v414, %v414
      %422 = vrot.lane.b32.xlu0 %v414, 17
      %v423 = vpop.permute.xlu0 %422
      %424 = vrot.lane.b32.xlu0 %v420, 17
      %v425 = vpop.permute.xlu0 %424
      %v426 = vlaneseq
      %v427 = vand.u32 %v426, 127
      %vm428 = vcmp.lt.s32.totalorder %v427, 17
      %v429 = vsel %vm428, %v423, %v425
      %v430 = vsel %vm428, %v425, %v423
      %v431 = vld [vmem:[%s1] sm:$0x3]
      %v433 = vlaneseq
      %v434 = vshrl.u32 %v433, 7
      %v435 = vsub.s32 0, %v434
      %v436 = vrot.slane %v431, %v435
      %v437 = vlaneseq
      %v438 = vshrl.u32 %v437, 7
      %v439 = vsub.s32 1, %v438
      %v440 = vrot.slane %v431, %v439
      %v443 = vmul.f32 %v430, %v436
      %v444 = vmul.f32 %v429, %v440
      %v445 = vld [vmem:[%s2] sm:$0xff]
      %v446 = vld [vmem:[%s2 + $0x8] sm:$0xff]
      %v447 = vld [vmem:[%s2 + $0x10] sm:$0xff]
      %v448 = vld [vmem:[%s2 + $0x18] sm:$0xff]
      %449 = vrot.lane.b32.xlu0 %v414, 16
      %v450 = vpop.permute.xlu0 %449
      %451 = vrot.lane.b32.xlu0 %v420, 16
      %v452 = vpop.permute.xlu0 %451
      %vm453 = vcmp.lt.s32.totalorder %v427, 16
      %v454 = vsel %vm453, %v450, %v452
      %v455 = vsel %vm453, %v452, %v450
      %s456 = scalar_lea.vmem %s1, 2
      %v457 = vld [vmem:[%s456] sm:$0x3]
      %v459 = vlaneseq
      %v460 = vshrl.u32 %v459, 7
      %v461 = vsub.s32 0, %v460
      %v462 = vrot.slane %v457, %v461
      %v463 = vlaneseq
      %v464 = vshrl.u32 %v463, 7
      %v465 = vsub.s32 1, %v464
      %v466 = vrot.slane %v457, %v465
      %v469 = vmul.f32 %v455, %v462
      %v470 = vmul.f32 %v454, %v466
      %s471 = scalar_lea.vmem %s2, 32
      %v472 = vld [vmem:[%s471] sm:$0xff]
      %v473 = vld [vmem:[%s471 + $0x8] sm:$0xff]
      %v474 = vld [vmem:[%s471 + $0x10] sm:$0xff]
      %v475 = vld [vmem:[%s471 + $0x18] sm:$0xff]
      %vm476 = vcmask 31744
      %v478 = vsel %vm476, %v472, 0
      %v481 = vsel %vm476, %v473, 0
      %v484 = vsel %vm476, %v474, 0
      %v487 = vsel %vm476, %v475, 0
      %vm489 = vcmask 1043456
      %v491 = vsel %vm489, %v469, 0
      %v494 = vsel %vm489, %v470, 0
      %496 = vmatprep.subr.mxu0 0.0
      %497 = vmatpush1.msra.mxu0 0.0
      %498 = vmatprep.subr.mxu0 0.0
      %499 = vmatpush1.msra.mxu0 0.0
      %500 = vmatprep.subr.mxu0 0.0
      %501 = vmatpush1.msra.mxu0 0.0
      %502 = vmatprep.subr.mxu0 0.0
      %503 = vmatpush1.msra.mxu0 0.0
      %504 = vmatprep.subr.mxu0 0.0
      %505 = vmatpush1.msra.mxu0 0.0
      %506 = vmatprep.subr.mxu0 0.0
      %507 = vmatpush1.msra.mxu0 0.0
      %508 = vmatprep.subr.mxu0 0.0
      %509 = vmatpush1.msra.mxu0 0.0
      %510 = vmatprep.subr.mxu0 0.0
      %511 = vmatpush1.msra.mxu0 0.0
      %512 = vmatprep.subr.mxu0 0.0
      %513 = vmatpush1.msra.mxu0 0.0
      %514 = vmatprep.subr.mxu0 0.0
      %515 = vmatpush1.msra.mxu0 0.0
      %516 = vmatprep.subr.mxu0 0.0
      %517 = vmatpush1.msra.mxu0 0.0
      %518 = vmatprep.subr.mxu0 0.0
      %519 = vmatpush1.msra.mxu0 0.0
      %520 = vmatprep.subr.mxu0 0.0
      %521 = vmatpush1.msra.mxu0 0.0
      %522 = vmatprep.subr.mxu0 0.0
      %523 = vmatpush1.msra.mxu0 0.0
      %524 = vmatprep.subr.mxu0 0.0
      %525 = vmatpush1.msra.mxu0 0.0
      %526 = vmatprep.subr.mxu0 %v494
      %527 = vmatpush1.msra.mxu0 %v491
      %528 = vmatprep.subr.mxu0 0.0
      %529 = vmatpush2.msra.mxu0 0.0
      %530 = vmatprep.subr.mxu0 0.0
      %531 = vmatpush2.msra.mxu0 0.0
      %532 = vmatprep.subr.mxu0 0.0
      %533 = vmatpush2.msra.mxu0 0.0
      %534 = vmatprep.subr.mxu0 0.0
      %535 = vmatpush2.msra.mxu0 0.0
      %536 = vmatprep.subr.mxu0 0.0
      %537 = vmatpush2.msra.mxu0 0.0
      %538 = vmatprep.subr.mxu0 0.0
      %539 = vmatpush2.msra.mxu0 0.0
      %540 = vmatprep.subr.mxu0 0.0
      %541 = vmatpush2.msra.mxu0 0.0
      %542 = vmatprep.subr.mxu0 0.0
      %543 = vmatpush2.msra.mxu0 0.0
      %544 = vmatprep.subr.mxu0 0.0
      %545 = vmatpush2.msra.mxu0 0.0
      %546 = vmatprep.subr.mxu0 0.0
      %547 = vmatpush2.msra.mxu0 0.0
      %548 = vmatprep.subr.mxu0 0.0
      %549 = vmatpush2.msra.mxu0 0.0
      %550 = vmatprep.subr.mxu0 0.0
      %551 = vmatpush2.msra.mxu0 0.0
      %552 = vmatprep.subr.mxu0 0.0
      %553 = vmatpush2.msra.mxu0 0.0
      %554 = vmatprep.subr.mxu0 0.0
      %555 = vmatpush2.msra.mxu0 0.0
      %556 = vmatprep.subr.mxu0 0.0
      %557 = vmatpush2.msra.mxu0 0.0
      %558 = vmatprep.subr.mxu0 0.0
      %559 = vmatpush2.msra.mxu0 0.0
      %560 = vmatprep.mubr.f32.mxu0 0.0
      %561 = vmatmul.mubr.f32.gmra.mxu0 %v478
      %v562 = vpop.f32.mrf.mxu0
      %v563 = vadd.f32 0.0, %v562
      %v564 = vpop.f32.mrf.mxu0
      %v565 = vadd.f32 0.0, %v564
      %566 = vmatprep.mubr.f32.mxu0 0.0
      %567 = vmatmul.mubr.f32.gmra.mxu0 %v481
      %v568 = vpop.f32.mrf.mxu0
      %v569 = vadd.f32 0.0, %v568
      %v570 = vpop.f32.mrf.mxu0
      %v571 = vadd.f32 0.0, %v570
      %572 = vmatprep.mubr.f32.mxu0 0.0
      %573 = vmatmul.mubr.f32.gmra.mxu0 %v484
      %v574 = vpop.f32.mrf.mxu0
      %v575 = vadd.f32 0.0, %v574
      %v576 = vpop.f32.mrf.mxu0
      %v577 = vadd.f32 0.0, %v576
      %578 = vmatprep.mubr.f32.mxu0 0.0
      %579 = vmatmul.mubr.f32.gmra.mxu0 %v487
      %v580 = vpop.f32.mrf.mxu0
      %v581 = vadd.f32 0.0, %v580
      %v582 = vpop.f32.mrf.mxu0
      %v583 = vadd.f32 0.0, %v582
      %584 = vdwg.mxu0
      %v586 = vsel %vm476, %v445, 0
      %v589 = vsel %vm476, %v446, 0
      %v592 = vsel %vm476, %v447, 0
      %v595 = vsel %vm476, %v448, 0
      %v598 = vsel %vm489, %v443, 0
      %v601 = vsel %vm489, %v444, 0
      %603 = vmatprep.subr.mxu0 0.0
      %604 = vmatpush1.msra.mxu0 0.0
      %605 = vmatprep.subr.mxu0 0.0
      %606 = vmatpush1.msra.mxu0 0.0
      %607 = vmatprep.subr.mxu0 0.0
      %608 = vmatpush1.msra.mxu0 0.0
      %609 = vmatprep.subr.mxu0 0.0
      %610 = vmatpush1.msra.mxu0 0.0
      %611 = vmatprep.subr.mxu0 0.0
      %612 = vmatpush1.msra.mxu0 0.0
      %613 = vmatprep.subr.mxu0 0.0
      %614 = vmatpush1.msra.mxu0 0.0
      %615 = vmatprep.subr.mxu0 0.0
      %616 = vmatpush1.msra.mxu0 0.0
      %617 = vmatprep.subr.mxu0 0.0
      %618 = vmatpush1.msra.mxu0 0.0
      %619 = vmatprep.subr.mxu0 0.0
      %620 = vmatpush1.msra.mxu0 0.0
      %621 = vmatprep.subr.mxu0 0.0
      %622 = vmatpush1.msra.mxu0 0.0
      %623 = vmatprep.subr.mxu0 0.0
      %624 = vmatpush1.msra.mxu0 0.0
      %625 = vmatprep.subr.mxu0 0.0
      %626 = vmatpush1.msra.mxu0 0.0
      %627 = vmatprep.subr.mxu0 0.0
      %628 = vmatpush1.msra.mxu0 0.0
      %629 = vmatprep.subr.mxu0 0.0
      %630 = vmatpush1.msra.mxu0 0.0
      %631 = vmatprep.subr.mxu0 0.0
      %632 = vmatpush1.msra.mxu0 0.0
      %633 = vmatprep.subr.mxu0 %v601
      %634 = vmatpush1.msra.mxu0 %v598
      %635 = vmatprep.subr.mxu0 0.0
      %636 = vmatpush2.msra.mxu0 0.0
      %637 = vmatprep.subr.mxu0 0.0
      %638 = vmatpush2.msra.mxu0 0.0
      %639 = vmatprep.subr.mxu0 0.0
      %640 = vmatpush2.msra.mxu0 0.0
      %641 = vmatprep.subr.mxu0 0.0
      %642 = vmatpush2.msra.mxu0 0.0
      %643 = vmatprep.subr.mxu0 0.0
      %644 = vmatpush2.msra.mxu0 0.0
      %645 = vmatprep.subr.mxu0 0.0
      %646 = vmatpush2.msra.mxu0 0.0
      %647 = vmatprep.subr.mxu0 0.0
      %648 = vmatpush2.msra.mxu0 0.0
      %649 = vmatprep.subr.mxu0 0.0
      %650 = vmatpush2.msra.mxu0 0.0
      %651 = vmatprep.subr.mxu0 0.0
      %652 = vmatpush2.msra.mxu0 0.0
      %653 = vmatprep.subr.mxu0 0.0
      %654 = vmatpush2.msra.mxu0 0.0
      %655 = vmatprep.subr.mxu0 0.0
      %656 = vmatpush2.msra.mxu0 0.0
      %657 = vmatprep.subr.mxu0 0.0
      %658 = vmatpush2.msra.mxu0 0.0
      %659 = vmatprep.subr.mxu0 0.0
      %660 = vmatpush2.msra.mxu0 0.0
      %661 = vmatprep.subr.mxu0 0.0
      %662 = vmatpush2.msra.mxu0 0.0
      %663 = vmatprep.subr.mxu0 0.0
      %664 = vmatpush2.msra.mxu0 0.0
      %665 = vmatprep.subr.mxu0 0.0
      %666 = vmatpush2.msra.mxu0 0.0
      %667 = vmatprep.mubr.f32.mxu0 0.0
      %668 = vmatmul.mubr.f32.gmra.mxu0 %v586
      %v669 = vpop.f32.mrf.mxu0
      %v670 = vadd.f32 %v563, %v669
      %v671 = vpop.f32.mrf.mxu0
      %v672 = vadd.f32 %v565, %v671
      %673 = vmatprep.mubr.f32.mxu0 0.0
      %674 = vmatmul.mubr.f32.gmra.mxu0 %v589
      %v675 = vpop.f32.mrf.mxu0
      %v676 = vadd.f32 %v569, %v675
      %v677 = vpop.f32.mrf.mxu0
      %v678 = vadd.f32 %v571, %v677
      %679 = vmatprep.mubr.f32.mxu0 0.0
      %680 = vmatmul.mubr.f32.gmra.mxu0 %v592
      %v681 = vpop.f32.mrf.mxu0
      %v682 = vadd.f32 %v575, %v681
      %v683 = vpop.f32.mrf.mxu0
      %v684 = vadd.f32 %v577, %v683
      %685 = vmatprep.mubr.f32.mxu0 0.0
      %686 = vmatmul.mubr.f32.gmra.mxu0 %v595
      %v687 = vpop.f32.mrf.mxu0
      %v688 = vadd.f32 %v581, %v687
      %v689 = vpop.f32.mrf.mxu0
      %v690 = vadd.f32 %v583, %v689
      %691 = vdwg.mxu0
      %692 = vrot.lane.b32.xlu0 %v414, 15
      %v693 = vpop.permute.xlu0 %692
      %694 = vrot.lane.b32.xlu0 %v420, 15
      %v695 = vpop.permute.xlu0 %694
      %vm696 = vcmp.lt.s32.totalorder %v427, 15
      %v697 = vsel %vm696, %v693, %v695
      %v698 = vsel %vm696, %v695, %v693
      %s699 = scalar_lea.vmem %s1, 4
      %v700 = vld [vmem:[%s699] sm:$0x3]
      %v702 = vlaneseq
      %v703 = vshrl.u32 %v702, 7
      %v704 = vsub.s32 0, %v703
      %v705 = vrot.slane %v700, %v704
      %v706 = vlaneseq
      %v707 = vshrl.u32 %v706, 7
      %v708 = vsub.s32 1, %v707
      %v709 = vrot.slane %v700, %v708
      %v712 = vmul.f32 %v698, %v705
      %v713 = vmul.f32 %v697, %v709
      %s714 = scalar_lea.vmem %s2, 64
      %v715 = vld [vmem:[%s714] sm:$0xff]
      %v716 = vld [vmem:[%s714 + $0x8] sm:$0xff]
      %v717 = vld [vmem:[%s714 + $0x10] sm:$0xff]
      %v718 = vld [vmem:[%s714 + $0x18] sm:$0xff]
      %v720 = vsel %vm476, %v715, 0
      %v723 = vsel %vm476, %v716, 0
      %v726 = vsel %vm476, %v717, 0
      %v729 = vsel %vm476, %v718, 0
      %v732 = vsel %vm489, %v712, 0
      %v735 = vsel %vm489, %v713, 0
      %737 = vmatprep.subr.mxu0 0.0
      %738 = vmatpush1.msra.mxu0 0.0
      %739 = vmatprep.subr.mxu0 0.0
      %740 = vmatpush1.msra.mxu0 0.0
      %741 = vmatprep.subr.mxu0 0.0
      %742 = vmatpush1.msra.mxu0 0.0
      %743 = vmatprep.subr.mxu0 0.0
      %744 = vmatpush1.msra.mxu0 0.0
      %745 = vmatprep.subr.mxu0 0.0
      %746 = vmatpush1.msra.mxu0 0.0
      %747 = vmatprep.subr.mxu0 0.0
      %748 = vmatpush1.msra.mxu0 0.0
      %749 = vmatprep.subr.mxu0 0.0
      %750 = vmatpush1.msra.mxu0 0.0
      %751 = vmatprep.subr.mxu0 0.0
      %752 = vmatpush1.msra.mxu0 0.0
      %753 = vmatprep.subr.mxu0 0.0
      %754 = vmatpush1.msra.mxu0 0.0
      %755 = vmatprep.subr.mxu0 0.0
      %756 = vmatpush1.msra.mxu0 0.0
      %757 = vmatprep.subr.mxu0 0.0
      %758 = vmatpush1.msra.mxu0 0.0
      %759 = vmatprep.subr.mxu0 0.0
      %760 = vmatpush1.msra.mxu0 0.0
      %761 = vmatprep.subr.mxu0 0.0
      %762 = vmatpush1.msra.mxu0 0.0
      %763 = vmatprep.subr.mxu0 0.0
      %764 = vmatpush1.msra.mxu0 0.0
      %765 = vmatprep.subr.mxu0 0.0
      %766 = vmatpush1.msra.mxu0 0.0
      %767 = vmatprep.subr.mxu0 %v735
      %768 = vmatpush1.msra.mxu0 %v732
      %769 = vmatprep.subr.mxu0 0.0
      %770 = vmatpush2.msra.mxu0 0.0
      %771 = vmatprep.subr.mxu0 0.0
      %772 = vmatpush2.msra.mxu0 0.0
      %773 = vmatprep.subr.mxu0 0.0
      %774 = vmatpush2.msra.mxu0 0.0
      %775 = vmatprep.subr.mxu0 0.0
      %776 = vmatpush2.msra.mxu0 0.0
      %777 = vmatprep.subr.mxu0 0.0
      %778 = vmatpush2.msra.mxu0 0.0
      %779 = vmatprep.subr.mxu0 0.0
      %780 = vmatpush2.msra.mxu0 0.0
      %781 = vmatprep.subr.mxu0 0.0
      %782 = vmatpush2.msra.mxu0 0.0
      %783 = vmatprep.subr.mxu0 0.0
      %784 = vmatpush2.msra.mxu0 0.0
      %785 = vmatprep.subr.mxu0 0.0
      %786 = vmatpush2.msra.mxu0 0.0
      %787 = vmatprep.subr.mxu0 0.0
      %788 = vmatpush2.msra.mxu0 0.0
      %789 = vmatprep.subr.mxu0 0.0
      %790 = vmatpush2.msra.mxu0 0.0
      %791 = vmatprep.subr.mxu0 0.0
      %792 = vmatpush2.msra.mxu0 0.0
      %793 = vmatprep.subr.mxu0 0.0
      %794 = vmatpush2.msra.mxu0 0.0
      %795 = vmatprep.subr.mxu0 0.0
      %796 = vmatpush2.msra.mxu0 0.0
      %797 = vmatprep.subr.mxu0 0.0
      %798 = vmatpush2.msra.mxu0 0.0
      %799 = vmatprep.subr.mxu0 0.0
      %800 = vmatpush2.msra.mxu0 0.0
      %801 = vmatprep.mubr.f32.mxu0 0.0
      %802 = vmatmul.mubr.f32.gmra.mxu0 %v720
      %v803 = vpop.f32.mrf.mxu0
      %v804 = vadd.f32 0.0, %v803
      %v805 = vpop.f32.mrf.mxu0
      %v806 = vadd.f32 0.0, %v805
      %807 = vmatprep.mubr.f32.mxu0 0.0
      %808 = vmatmul.mubr.f32.gmra.mxu0 %v723
      %v809 = vpop.f32.mrf.mxu0
      %v810 = vadd.f32 0.0, %v809
      %v811 = vpop.f32.mrf.mxu0
      %v812 = vadd.f32 0.0, %v811
      %813 = vmatprep.mubr.f32.mxu0 0.0
      %814 = vmatmul.mubr.f32.gmra.mxu0 %v726
      %v815 = vpop.f32.mrf.mxu0
      %v816 = vadd.f32 0.0, %v815
      %v817 = vpop.f32.mrf.mxu0
      %v818 = vadd.f32 0.0, %v817
      %819 = vmatprep.mubr.f32.mxu0 0.0
      %820 = vmatmul.mubr.f32.gmra.mxu0 %v729
      %v821 = vpop.f32.mrf.mxu0
      %v822 = vadd.f32 0.0, %v821
      %v823 = vpop.f32.mrf.mxu0
      %v824 = vadd.f32 0.0, %v823
      %825 = vdwg.mxu0
      %v826 = vadd.f32 %v670, %v804
      %v827 = vadd.f32 %v672, %v806
      %v828 = vadd.f32 %v676, %v810
      %v829 = vadd.f32 %v678, %v812
      %v830 = vadd.f32 %v682, %v816
      %v831 = vadd.f32 %v684, %v818
      %v832 = vadd.f32 %v688, %v822
      %v833 = vadd.f32 %v690, %v824
      %834 = vrot.lane.b32.xlu0 %v414, 1
      %v835 = vpop.permute.xlu0 %834
      %836 = vrot.lane.b32.xlu0 %v420, 1
      %v837 = vpop.permute.xlu0 %836
      %vm838 = vcmp.lt.s32.totalorder %v427, 1
      %v839 = vsel %vm838, %v835, %v837
      %v840 = vsel %vm838, %v837, %v835
      %s841 = scalar_lea.vmem %s1, 6
      %v842 = vld [vmem:[%s841] sm:$0x3]
      %v844 = vlaneseq
      %v845 = vshrl.u32 %v844, 7
      %v846 = vsub.s32 0, %v845
      %v847 = vrot.slane %v842, %v846
      %v848 = vlaneseq
      %v849 = vshrl.u32 %v848, 7
      %v850 = vsub.s32 1, %v849
      %v851 = vrot.slane %v842, %v850
      %v854 = vmul.f32 %v840, %v847
      %v855 = vmul.f32 %v839, %v851
      %s856 = scalar_lea.vmem %s2, 96
      %v857 = vld [vmem:[%s856] sm:$0xff]
      %v858 = vld [vmem:[%s856 + $0x8] sm:$0xff]
      %v859 = vld [vmem:[%s856 + $0x10] sm:$0xff]
      %v860 = vld [vmem:[%s856 + $0x18] sm:$0xff]
      %v862 = vsel %vm476, %v857, 0
      %v865 = vsel %vm476, %v858, 0
      %v868 = vsel %vm476, %v859, 0
      %v871 = vsel %vm476, %v860, 0
      %v874 = vsel %vm489, %v854, 0
      %v877 = vsel %vm489, %v855, 0
      %879 = vmatprep.subr.mxu0 0.0
      %880 = vmatpush1.msra.mxu0 0.0
      %881 = vmatprep.subr.mxu0 0.0
      %882 = vmatpush1.msra.mxu0 0.0
      %883 = vmatprep.subr.mxu0 0.0
      %884 = vmatpush1.msra.mxu0 0.0
      %885 = vmatprep.subr.mxu0 0.0
      %886 = vmatpush1.msra.mxu0 0.0
      %887 = vmatprep.subr.mxu0 0.0
      %888 = vmatpush1.msra.mxu0 0.0
      %889 = vmatprep.subr.mxu0 0.0
      %890 = vmatpush1.msra.mxu0 0.0
      %891 = vmatprep.subr.mxu0 0.0
      %892 = vmatpush1.msra.mxu0 0.0
      %893 = vmatprep.subr.mxu0 0.0
      %894 = vmatpush1.msra.mxu0 0.0
      %895 = vmatprep.subr.mxu0 0.0
      %896 = vmatpush1.msra.mxu0 0.0
      %897 = vmatprep.subr.mxu0 0.0
      %898 = vmatpush1.msra.mxu0 0.0
      %899 = vmatprep.subr.mxu0 0.0
      %900 = vmatpush1.msra.mxu0 0.0
      %901 = vmatprep.subr.mxu0 0.0
      %902 = vmatpush1.msra.mxu0 0.0
      %903 = vmatprep.subr.mxu0 0.0
      %904 = vmatpush1.msra.mxu0 0.0
      %905 = vmatprep.subr.mxu0 0.0
      %906 = vmatpush1.msra.mxu0 0.0
      %907 = vmatprep.subr.mxu0 0.0
      %908 = vmatpush1.msra.mxu0 0.0
      %909 = vmatprep.subr.mxu0 %v877
      %910 = vmatpush1.msra.mxu0 %v874
      %911 = vmatprep.subr.mxu0 0.0
      %912 = vmatpush2.msra.mxu0 0.0
      %913 = vmatprep.subr.mxu0 0.0
      %914 = vmatpush2.msra.mxu0 0.0
      %915 = vmatprep.subr.mxu0 0.0
      %916 = vmatpush2.msra.mxu0 0.0
      %917 = vmatprep.subr.mxu0 0.0
      %918 = vmatpush2.msra.mxu0 0.0
      %919 = vmatprep.subr.mxu0 0.0
      %920 = vmatpush2.msra.mxu0 0.0
      %921 = vmatprep.subr.mxu0 0.0
      %922 = vmatpush2.msra.mxu0 0.0
      %923 = vmatprep.subr.mxu0 0.0
      %924 = vmatpush2.msra.mxu0 0.0
      %925 = vmatprep.subr.mxu0 0.0
      %926 = vmatpush2.msra.mxu0 0.0
      %927 = vmatprep.subr.mxu0 0.0
      %928 = vmatpush2.msra.mxu0 0.0
      %929 = vmatprep.subr.mxu0 0.0
      %930 = vmatpush2.msra.mxu0 0.0
      %931 = vmatprep.subr.mxu0 0.0
      %932 = vmatpush2.msra.mxu0 0.0
      %933 = vmatprep.subr.mxu0 0.0
      %934 = vmatpush2.msra.mxu0 0.0
      %935 = vmatprep.subr.mxu0 0.0
      %936 = vmatpush2.msra.mxu0 0.0
      %937 = vmatprep.subr.mxu0 0.0
      %938 = vmatpush2.msra.mxu0 0.0
      %939 = vmatprep.subr.mxu0 0.0
      %940 = vmatpush2.msra.mxu0 0.0
      %941 = vmatprep.subr.mxu0 0.0
      %942 = vmatpush2.msra.mxu0 0.0
      %943 = vmatprep.mubr.f32.mxu0 0.0
      %944 = vmatmul.mubr.f32.gmra.mxu0 %v862
      %v945 = vpop.f32.mrf.mxu0
      %v946 = vadd.f32 0.0, %v945
      %v947 = vpop.f32.mrf.mxu0
      %v948 = vadd.f32 0.0, %v947
      %949 = vmatprep.mubr.f32.mxu0 0.0
      %950 = vmatmul.mubr.f32.gmra.mxu0 %v865
      %v951 = vpop.f32.mrf.mxu0
      %v952 = vadd.f32 0.0, %v951
      %v953 = vpop.f32.mrf.mxu0
      %v954 = vadd.f32 0.0, %v953
      %955 = vmatprep.mubr.f32.mxu0 0.0
      %956 = vmatmul.mubr.f32.gmra.mxu0 %v868
      %v957 = vpop.f32.mrf.mxu0
      %v958 = vadd.f32 0.0, %v957
      %v959 = vpop.f32.mrf.mxu0
      %v960 = vadd.f32 0.0, %v959
      %961 = vmatprep.mubr.f32.mxu0 0.0
      %962 = vmatmul.mubr.f32.gmra.mxu0 %v871
      %v963 = vpop.f32.mrf.mxu0
      %v964 = vadd.f32 0.0, %v963
      %v965 = vpop.f32.mrf.mxu0
      %v966 = vadd.f32 0.0, %v965
      %967 = vdwg.mxu0
      %v968 = vadd.f32 %v826, %v946
      %v969 = vadd.f32 %v827, %v948
      %v970 = vadd.f32 %v828, %v952
      %v971 = vadd.f32 %v829, %v954
      %v972 = vadd.f32 %v830, %v958
      %v973 = vadd.f32 %v831, %v960
      %v974 = vadd.f32 %v832, %v964
      %v975 = vadd.f32 %v833, %v966
      %s976 = scalar_lea.vmem %s2, 128
      %v977 = vld [vmem:[%s976] sm:$0xff]
      %v978 = vld [vmem:[%s976 + $0x8] sm:$0xff]
      %v979 = vld [vmem:[%s976 + $0x10] sm:$0xff]
      %v980 = vld [vmem:[%s976 + $0x18] sm:$0xff]
      %v982 = vsel %vm476, %v977, 0
      %v985 = vsel %vm476, %v978, 0
      %v988 = vsel %vm476, %v979, 0
      %v991 = vsel %vm476, %v980, 0
      %v993 = vsel %vm489, %v414, 0
      %v995 = vsel %vm489, %v420, 0
      %997 = vmatprep.subr.mxu0 0.0
      %998 = vmatpush1.msra.mxu0 0.0
      %999 = vmatprep.subr.mxu0 0.0
      %1000 = vmatpush1.msra.mxu0 0.0
      %1001 = vmatprep.subr.mxu0 0.0
      %1002 = vmatpush1.msra.mxu0 0.0
      %1003 = vmatprep.subr.mxu0 0.0
      %1004 = vmatpush1.msra.mxu0 0.0
      %1005 = vmatprep.subr.mxu0 0.0
      %1006 = vmatpush1.msra.mxu0 0.0
      %1007 = vmatprep.subr.mxu0 0.0
      %1008 = vmatpush1.msra.mxu0 0.0
      %1009 = vmatprep.subr.mxu0 0.0
      %1010 = vmatpush1.msra.mxu0 0.0
      %1011 = vmatprep.subr.mxu0 0.0
      %1012 = vmatpush1.msra.mxu0 0.0
      %1013 = vmatprep.subr.mxu0 0.0
      %1014 = vmatpush1.msra.mxu0 0.0
      %1015 = vmatprep.subr.mxu0 0.0
      %1016 = vmatpush1.msra.mxu0 0.0
      %1017 = vmatprep.subr.mxu0 0.0
      %1018 = vmatpush1.msra.mxu0 0.0
      %1019 = vmatprep.subr.mxu0 0.0
      %1020 = vmatpush1.msra.mxu0 0.0
      %1021 = vmatprep.subr.mxu0 0.0
      %1022 = vmatpush1.msra.mxu0 0.0
      %1023 = vmatprep.subr.mxu0 0.0
      %1024 = vmatpush1.msra.mxu0 0.0
      %1025 = vmatprep.subr.mxu0 0.0
      %1026 = vmatpush1.msra.mxu0 0.0
      %1027 = vmatprep.subr.mxu0 %v995
      %1028 = vmatpush1.msra.mxu0 %v993
      %1029 = vmatprep.subr.mxu0 0.0
      %1030 = vmatpush2.msra.mxu0 0.0
      %1031 = vmatprep.subr.mxu0 0.0
      %1032 = vmatpush2.msra.mxu0 0.0
      %1033 = vmatprep.subr.mxu0 0.0
      %1034 = vmatpush2.msra.mxu0 0.0
      %1035 = vmatprep.subr.mxu0 0.0
      %1036 = vmatpush2.msra.mxu0 0.0
      %1037 = vmatprep.subr.mxu0 0.0
      %1038 = vmatpush2.msra.mxu0 0.0
      %1039 = vmatprep.subr.mxu0 0.0
      %1040 = vmatpush2.msra.mxu0 0.0
      %1041 = vmatprep.subr.mxu0 0.0
      %1042 = vmatpush2.msra.mxu0 0.0
      %1043 = vmatprep.subr.mxu0 0.0
      %1044 = vmatpush2.msra.mxu0 0.0
      %1045 = vmatprep.subr.mxu0 0.0
      %1046 = vmatpush2.msra.mxu0 0.0
      %1047 = vmatprep.subr.mxu0 0.0
      %1048 = vmatpush2.msra.mxu0 0.0
      %1049 = vmatprep.subr.mxu0 0.0
      %1050 = vmatpush2.msra.mxu0 0.0
      %1051 = vmatprep.subr.mxu0 0.0
      %1052 = vmatpush2.msra.mxu0 0.0
      %1053 = vmatprep.subr.mxu0 0.0
      %1054 = vmatpush2.msra.mxu0 0.0
      %1055 = vmatprep.subr.mxu0 0.0
      %1056 = vmatpush2.msra.mxu0 0.0
      %1057 = vmatprep.subr.mxu0 0.0
      %1058 = vmatpush2.msra.mxu0 0.0
      %1059 = vmatprep.subr.mxu0 0.0
      %1060 = vmatpush2.msra.mxu0 0.0
      %1061 = vmatprep.mubr.f32.mxu0 0.0
      %1062 = vmatmul.mubr.f32.gmra.mxu0 %v982
      %v1063 = vpop.f32.mrf.mxu0
      %v1064 = vadd.f32 0.0, %v1063
      %v1065 = vpop.f32.mrf.mxu0
      %v1066 = vadd.f32 0.0, %v1065
      %1067 = vmatprep.mubr.f32.mxu0 0.0
      %1068 = vmatmul.mubr.f32.gmra.mxu0 %v985
      %v1069 = vpop.f32.mrf.mxu0
      %v1070 = vadd.f32 0.0, %v1069
      %v1071 = vpop.f32.mrf.mxu0
      %v1072 = vadd.f32 0.0, %v1071
      %1073 = vmatprep.mubr.f32.mxu0 0.0
      %1074 = vmatmul.mubr.f32.gmra.mxu0 %v988
      %v1075 = vpop.f32.mrf.mxu0
      %v1076 = vadd.f32 0.0, %v1075
      %v1077 = vpop.f32.mrf.mxu0
      %v1078 = vadd.f32 0.0, %v1077
      %1079 = vmatprep.mubr.f32.mxu0 0.0
      %1080 = vmatmul.mubr.f32.gmra.mxu0 %v991
      %v1081 = vpop.f32.mrf.mxu0
      %v1082 = vadd.f32 0.0, %v1081
      %v1083 = vpop.f32.mrf.mxu0
      %v1084 = vadd.f32 0.0, %v1083
      %1085 = vdwg.mxu0
      %v1086 = vadd.f32 %v968, %v1064
      %v1087 = vadd.f32 %v969, %v1066
      %v1088 = vadd.f32 %v970, %v1070
      %v1089 = vadd.f32 %v971, %v1072
      %v1090 = vadd.f32 %v972, %v1076
      %v1091 = vadd.f32 %v973, %v1078
      %v1092 = vadd.f32 %v974, %v1082
      %v1093 = vadd.f32 %v975, %v1084
      %1094 = vrot.lane.b32.xlu0 %v414, 127
      %v1095 = vpop.permute.xlu0 %1094
      %1096 = vrot.lane.b32.xlu0 %v420, 127
      %v1097 = vpop.permute.xlu0 %1096
      %vm1098 = vcmp.lt.s32.totalorder %v427, 127
      %v1099 = vsel %vm1098, %v1095, %v1097
      %v1100 = vsel %vm1098, %v1097, %v1095
      %s1101 = scalar_lea.vmem %s1, 10
      %v1102 = vld [vmem:[%s1101] sm:$0x3]
      %v1104 = vlaneseq
      %v1105 = vshrl.u32 %v1104, 7
      %v1106 = vsub.s32 0, %v1105
      %v1107 = vrot.slane %v1102, %v1106
      %v1108 = vlaneseq
      %v1109 = vshrl.u32 %v1108, 7
      %v1110 = vsub.s32 1, %v1109
      %v1111 = vrot.slane %v1102, %v1110
      %v1114 = vmul.f32 %v1099, %v1107
      %v1115 = vmul.f32 %v1100, %v1111
      %s1116 = scalar_lea.vmem %s2, 160
      %v1117 = vld [vmem:[%s1116] sm:$0xff]
      %v1118 = vld [vmem:[%s1116 + $0x8] sm:$0xff]
      %v1119 = vld [vmem:[%s1116 + $0x10] sm:$0xff]
      %v1120 = vld [vmem:[%s1116 + $0x18] sm:$0xff]
      %v1122 = vsel %vm476, %v1117, 0
      %v1125 = vsel %vm476, %v1118, 0
      %v1128 = vsel %vm476, %v1119, 0
      %v1131 = vsel %vm476, %v1120, 0
      %v1134 = vsel %vm489, %v1114, 0
      %v1137 = vsel %vm489, %v1115, 0
      %1139 = vmatprep.subr.mxu0 0.0
      %1140 = vmatpush1.msra.mxu0 0.0
      %1141 = vmatprep.subr.mxu0 0.0
      %1142 = vmatpush1.msra.mxu0 0.0
      %1143 = vmatprep.subr.mxu0 0.0
      %1144 = vmatpush1.msra.mxu0 0.0
      %1145 = vmatprep.subr.mxu0 0.0
      %1146 = vmatpush1.msra.mxu0 0.0
      %1147 = vmatprep.subr.mxu0 0.0
      %1148 = vmatpush1.msra.mxu0 0.0
      %1149 = vmatprep.subr.mxu0 0.0
      %1150 = vmatpush1.msra.mxu0 0.0
      %1151 = vmatprep.subr.mxu0 0.0
      %1152 = vmatpush1.msra.mxu0 0.0
      %1153 = vmatprep.subr.mxu0 0.0
      %1154 = vmatpush1.msra.mxu0 0.0
      %1155 = vmatprep.subr.mxu0 0.0
      %1156 = vmatpush1.msra.mxu0 0.0
      %1157 = vmatprep.subr.mxu0 0.0
      %1158 = vmatpush1.msra.mxu0 0.0
      %1159 = vmatprep.subr.mxu0 0.0
      %1160 = vmatpush1.msra.mxu0 0.0
      %1161 = vmatprep.subr.mxu0 0.0
      %1162 = vmatpush1.msra.mxu0 0.0
      %1163 = vmatprep.subr.mxu0 0.0
      %1164 = vmatpush1.msra.mxu0 0.0
      %1165 = vmatprep.subr.mxu0 0.0
      %1166 = vmatpush1.msra.mxu0 0.0
      %1167 = vmatprep.subr.mxu0 0.0
      %1168 = vmatpush1.msra.mxu0 0.0
      %1169 = vmatprep.subr.mxu0 %v1137
      %1170 = vmatpush1.msra.mxu0 %v1134
      %1171 = vmatprep.subr.mxu0 0.0
      %1172 = vmatpush2.msra.mxu0 0.0
      %1173 = vmatprep.subr.mxu0 0.0
      %1174 = vmatpush2.msra.mxu0 0.0
      %1175 = vmatprep.subr.mxu0 0.0
      %1176 = vmatpush2.msra.mxu0 0.0
      %1177 = vmatprep.subr.mxu0 0.0
      %1178 = vmatpush2.msra.mxu0 0.0
      %1179 = vmatprep.subr.mxu0 0.0
      %1180 = vmatpush2.msra.mxu0 0.0
      %1181 = vmatprep.subr.mxu0 0.0
      %1182 = vmatpush2.msra.mxu0 0.0
      %1183 = vmatprep.subr.mxu0 0.0
      %1184 = vmatpush2.msra.mxu0 0.0
      %1185 = vmatprep.subr.mxu0 0.0
      %1186 = vmatpush2.msra.mxu0 0.0
      %1187 = vmatprep.subr.mxu0 0.0
      %1188 = vmatpush2.msra.mxu0 0.0
      %1189 = vmatprep.subr.mxu0 0.0
      %1190 = vmatpush2.msra.mxu0 0.0
      %1191 = vmatprep.subr.mxu0 0.0
      %1192 = vmatpush2.msra.mxu0 0.0
      %1193 = vmatprep.subr.mxu0 0.0
      %1194 = vmatpush2.msra.mxu0 0.0
      %1195 = vmatprep.subr.mxu0 0.0
      %1196 = vmatpush2.msra.mxu0 0.0
      %1197 = vmatprep.subr.mxu0 0.0
      %1198 = vmatpush2.msra.mxu0 0.0
      %1199 = vmatprep.subr.mxu0 0.0
      %1200 = vmatpush2.msra.mxu0 0.0
      %1201 = vmatprep.subr.mxu0 0.0
      %1202 = vmatpush2.msra.mxu0 0.0
      %1203 = vmatprep.mubr.f32.mxu0 0.0
      %1204 = vmatmul.mubr.f32.gmra.mxu0 %v1122
      %v1205 = vpop.f32.mrf.mxu0
      %v1206 = vadd.f32 0.0, %v1205
      %v1207 = vpop.f32.mrf.mxu0
      %v1208 = vadd.f32 0.0, %v1207
      %1209 = vmatprep.mubr.f32.mxu0 0.0
      %1210 = vmatmul.mubr.f32.gmra.mxu0 %v1125
      %v1211 = vpop.f32.mrf.mxu0
      %v1212 = vadd.f32 0.0, %v1211
      %v1213 = vpop.f32.mrf.mxu0
      %v1214 = vadd.f32 0.0, %v1213
      %1215 = vmatprep.mubr.f32.mxu0 0.0
      %1216 = vmatmul.mubr.f32.gmra.mxu0 %v1128
      %v1217 = vpop.f32.mrf.mxu0
      %v1218 = vadd.f32 0.0, %v1217
      %v1219 = vpop.f32.mrf.mxu0
      %v1220 = vadd.f32 0.0, %v1219
      %1221 = vmatprep.mubr.f32.mxu0 0.0
      %1222 = vmatmul.mubr.f32.gmra.mxu0 %v1131
      %v1223 = vpop.f32.mrf.mxu0
      %v1224 = vadd.f32 0.0, %v1223
      %v1225 = vpop.f32.mrf.mxu0
      %v1226 = vadd.f32 0.0, %v1225
      %1227 = vdwg.mxu0
      %v1228 = vadd.f32 %v1086, %v1206
      %v1229 = vadd.f32 %v1087, %v1208
      %v1230 = vadd.f32 %v1088, %v1212
      %v1231 = vadd.f32 %v1089, %v1214
      %v1232 = vadd.f32 %v1090, %v1218
      %v1233 = vadd.f32 %v1091, %v1220
      %v1234 = vadd.f32 %v1092, %v1224
      %v1235 = vadd.f32 %v1093, %v1226
      %1236 = vrot.lane.b32.xlu0 %v414, 113
      %v1237 = vpop.permute.xlu0 %1236
      %1238 = vrot.lane.b32.xlu0 %v420, 113
      %v1239 = vpop.permute.xlu0 %1238
      %vm1240 = vcmp.lt.s32.totalorder %v427, 113
      %v1241 = vsel %vm1240, %v1237, %v1239
      %v1242 = vsel %vm1240, %v1239, %v1237
      %s1243 = scalar_lea.vmem %s1, 12
      %v1244 = vld [vmem:[%s1243] sm:$0x3]
      %v1246 = vlaneseq
      %v1247 = vshrl.u32 %v1246, 7
      %v1248 = vsub.s32 0, %v1247
      %v1249 = vrot.slane %v1244, %v1248
      %v1250 = vlaneseq
      %v1251 = vshrl.u32 %v1250, 7
      %v1252 = vsub.s32 1, %v1251
      %v1253 = vrot.slane %v1244, %v1252
      %v1256 = vmul.f32 %v1241, %v1249
      %v1257 = vmul.f32 %v1242, %v1253
      %s1258 = scalar_lea.vmem %s2, 192
      %v1259 = vld [vmem:[%s1258] sm:$0xff]
      %v1260 = vld [vmem:[%s1258 + $0x8] sm:$0xff]
      %v1261 = vld [vmem:[%s1258 + $0x10] sm:$0xff]
      %v1262 = vld [vmem:[%s1258 + $0x18] sm:$0xff]
      %v1264 = vsel %vm476, %v1259, 0
      %v1267 = vsel %vm476, %v1260, 0
      %v1270 = vsel %vm476, %v1261, 0
      %v1273 = vsel %vm476, %v1262, 0
      %v1276 = vsel %vm489, %v1256, 0
      %v1279 = vsel %vm489, %v1257, 0
      %1281 = vmatprep.subr.mxu0 0.0
      %1282 = vmatpush1.msra.mxu0 0.0
      %1283 = vmatprep.subr.mxu0 0.0
      %1284 = vmatpush1.msra.mxu0 0.0
      %1285 = vmatprep.subr.mxu0 0.0
      %1286 = vmatpush1.msra.mxu0 0.0
      %1287 = vmatprep.subr.mxu0 0.0
      %1288 = vmatpush1.msra.mxu0 0.0
      %1289 = vmatprep.subr.mxu0 0.0
      %1290 = vmatpush1.msra.mxu0 0.0
      %1291 = vmatprep.subr.mxu0 0.0
      %1292 = vmatpush1.msra.mxu0 0.0
      %1293 = vmatprep.subr.mxu0 0.0
      %1294 = vmatpush1.msra.mxu0 0.0
      %1295 = vmatprep.subr.mxu0 0.0
      %1296 = vmatpush1.msra.mxu0 0.0
      %1297 = vmatprep.subr.mxu0 0.0
      %1298 = vmatpush1.msra.mxu0 0.0
      %1299 = vmatprep.subr.mxu0 0.0
      %1300 = vmatpush1.msra.mxu0 0.0
      %1301 = vmatprep.subr.mxu0 0.0
      %1302 = vmatpush1.msra.mxu0 0.0
      %1303 = vmatprep.subr.mxu0 0.0
      %1304 = vmatpush1.msra.mxu0 0.0
      %1305 = vmatprep.subr.mxu0 0.0
      %1306 = vmatpush1.msra.mxu0 0.0
      %1307 = vmatprep.subr.mxu0 0.0
      %1308 = vmatpush1.msra.mxu0 0.0
      %1309 = vmatprep.subr.mxu0 0.0
      %1310 = vmatpush1.msra.mxu0 0.0
      %1311 = vmatprep.subr.mxu0 %v1279
      %1312 = vmatpush1.msra.mxu0 %v1276
      %1313 = vmatprep.subr.mxu0 0.0
      %1314 = vmatpush2.msra.mxu0 0.0
      %1315 = vmatprep.subr.mxu0 0.0
      %1316 = vmatpush2.msra.mxu0 0.0
      %1317 = vmatprep.subr.mxu0 0.0
      %1318 = vmatpush2.msra.mxu0 0.0
      %1319 = vmatprep.subr.mxu0 0.0
      %1320 = vmatpush2.msra.mxu0 0.0
      %1321 = vmatprep.subr.mxu0 0.0
      %1322 = vmatpush2.msra.mxu0 0.0
      %1323 = vmatprep.subr.mxu0 0.0
      %1324 = vmatpush2.msra.mxu0 0.0
      %1325 = vmatprep.subr.mxu0 0.0
      %1326 = vmatpush2.msra.mxu0 0.0
      %1327 = vmatprep.subr.mxu0 0.0
      %1328 = vmatpush2.msra.mxu0 0.0
      %1329 = vmatprep.subr.mxu0 0.0
      %1330 = vmatpush2.msra.mxu0 0.0
      %1331 = vmatprep.subr.mxu0 0.0
      %1332 = vmatpush2.msra.mxu0 0.0
      %1333 = vmatprep.subr.mxu0 0.0
      %1334 = vmatpush2.msra.mxu0 0.0
      %1335 = vmatprep.subr.mxu0 0.0
      %1336 = vmatpush2.msra.mxu0 0.0
      %1337 = vmatprep.subr.mxu0 0.0
      %1338 = vmatpush2.msra.mxu0 0.0
      %1339 = vmatprep.subr.mxu0 0.0
      %1340 = vmatpush2.msra.mxu0 0.0
      %1341 = vmatprep.subr.mxu0 0.0
      %1342 = vmatpush2.msra.mxu0 0.0
      %1343 = vmatprep.subr.mxu0 0.0
      %1344 = vmatpush2.msra.mxu0 0.0
      %1345 = vmatprep.mubr.f32.mxu0 0.0
      %1346 = vmatmul.mubr.f32.gmra.mxu0 %v1264
      %v1347 = vpop.f32.mrf.mxu0
      %v1348 = vadd.f32 0.0, %v1347
      %v1349 = vpop.f32.mrf.mxu0
      %v1350 = vadd.f32 0.0, %v1349
      %1351 = vmatprep.mubr.f32.mxu0 0.0
      %1352 = vmatmul.mubr.f32.gmra.mxu0 %v1267
      %v1353 = vpop.f32.mrf.mxu0
      %v1354 = vadd.f32 0.0, %v1353
      %v1355 = vpop.f32.mrf.mxu0
      %v1356 = vadd.f32 0.0, %v1355
      %1357 = vmatprep.mubr.f32.mxu0 0.0
      %1358 = vmatmul.mubr.f32.gmra.mxu0 %v1270
      %v1359 = vpop.f32.mrf.mxu0
      %v1360 = vadd.f32 0.0, %v1359
      %v1361 = vpop.f32.mrf.mxu0
      %v1362 = vadd.f32 0.0, %v1361
      %1363 = vmatprep.mubr.f32.mxu0 0.0
      %1364 = vmatmul.mubr.f32.gmra.mxu0 %v1273
      %v1365 = vpop.f32.mrf.mxu0
      %v1366 = vadd.f32 0.0, %v1365
      %v1367 = vpop.f32.mrf.mxu0
      %v1368 = vadd.f32 0.0, %v1367
      %1369 = vdwg.mxu0
      %v1370 = vadd.f32 %v1228, %v1348
      %v1371 = vadd.f32 %v1229, %v1350
      %v1372 = vadd.f32 %v1230, %v1354
      %v1373 = vadd.f32 %v1231, %v1356
      %v1374 = vadd.f32 %v1232, %v1360
      %v1375 = vadd.f32 %v1233, %v1362
      %v1376 = vadd.f32 %v1234, %v1366
      %v1377 = vadd.f32 %v1235, %v1368
      %1378 = vrot.lane.b32.xlu0 %v414, 112
      %v1379 = vpop.permute.xlu0 %1378
      %1380 = vrot.lane.b32.xlu0 %v420, 112
      %v1381 = vpop.permute.xlu0 %1380
      %vm1382 = vcmp.lt.s32.totalorder %v427, 112
      %v1383 = vsel %vm1382, %v1379, %v1381
      %v1384 = vsel %vm1382, %v1381, %v1379
      %s1385 = scalar_lea.vmem %s1, 14
      %v1386 = vld [vmem:[%s1385] sm:$0x3]
      %v1388 = vlaneseq
      %v1389 = vshrl.u32 %v1388, 7
      %v1390 = vsub.s32 0, %v1389
      %v1391 = vrot.slane %v1386, %v1390
      %v1392 = vlaneseq
      %v1393 = vshrl.u32 %v1392, 7
      %v1394 = vsub.s32 1, %v1393
      %v1395 = vrot.slane %v1386, %v1394
      %v1398 = vmul.f32 %v1383, %v1391
      %v1399 = vmul.f32 %v1384, %v1395
      %s1400 = scalar_lea.vmem %s2, 224
      %v1401 = vld [vmem:[%s1400] sm:$0xff]
      %v1402 = vld [vmem:[%s1400 + $0x8] sm:$0xff]
      %v1403 = vld [vmem:[%s1400 + $0x10] sm:$0xff]
      %v1404 = vld [vmem:[%s1400 + $0x18] sm:$0xff]
      %v1406 = vsel %vm476, %v1401, 0
      %v1409 = vsel %vm476, %v1402, 0
      %v1412 = vsel %vm476, %v1403, 0
      %v1415 = vsel %vm476, %v1404, 0
      %v1418 = vsel %vm489, %v1398, 0
      %v1421 = vsel %vm489, %v1399, 0
      %1423 = vmatprep.subr.mxu0 0.0
      %1424 = vmatpush1.msra.mxu0 0.0
      %1425 = vmatprep.subr.mxu0 0.0
      %1426 = vmatpush1.msra.mxu0 0.0
      %1427 = vmatprep.subr.mxu0 0.0
      %1428 = vmatpush1.msra.mxu0 0.0
      %1429 = vmatprep.subr.mxu0 0.0
      %1430 = vmatpush1.msra.mxu0 0.0
      %1431 = vmatprep.subr.mxu0 0.0
      %1432 = vmatpush1.msra.mxu0 0.0
      %1433 = vmatprep.subr.mxu0 0.0
      %1434 = vmatpush1.msra.mxu0 0.0
      %1435 = vmatprep.subr.mxu0 0.0
      %1436 = vmatpush1.msra.mxu0 0.0
      %1437 = vmatprep.subr.mxu0 0.0
      %1438 = vmatpush1.msra.mxu0 0.0
      %1439 = vmatprep.subr.mxu0 0.0
      %1440 = vmatpush1.msra.mxu0 0.0
      %1441 = vmatprep.subr.mxu0 0.0
      %1442 = vmatpush1.msra.mxu0 0.0
      %1443 = vmatprep.subr.mxu0 0.0
      %1444 = vmatpush1.msra.mxu0 0.0
      %1445 = vmatprep.subr.mxu0 0.0
      %1446 = vmatpush1.msra.mxu0 0.0
      %1447 = vmatprep.subr.mxu0 0.0
      %1448 = vmatpush1.msra.mxu0 0.0
      %1449 = vmatprep.subr.mxu0 0.0
      %1450 = vmatpush1.msra.mxu0 0.0
      %1451 = vmatprep.subr.mxu0 0.0
      %1452 = vmatpush1.msra.mxu0 0.0
      %1453 = vmatprep.subr.mxu0 %v1421
      %1454 = vmatpush1.msra.mxu0 %v1418
      %1455 = vmatprep.subr.mxu0 0.0
      %1456 = vmatpush2.msra.mxu0 0.0
      %1457 = vmatprep.subr.mxu0 0.0
      %1458 = vmatpush2.msra.mxu0 0.0
      %1459 = vmatprep.subr.mxu0 0.0
      %1460 = vmatpush2.msra.mxu0 0.0
      %1461 = vmatprep.subr.mxu0 0.0
      %1462 = vmatpush2.msra.mxu0 0.0
      %1463 = vmatprep.subr.mxu0 0.0
      %1464 = vmatpush2.msra.mxu0 0.0
      %1465 = vmatprep.subr.mxu0 0.0
      %1466 = vmatpush2.msra.mxu0 0.0
      %1467 = vmatprep.subr.mxu0 0.0
      %1468 = vmatpush2.msra.mxu0 0.0
      %1469 = vmatprep.subr.mxu0 0.0
      %1470 = vmatpush2.msra.mxu0 0.0
      %1471 = vmatprep.subr.mxu0 0.0
      %1472 = vmatpush2.msra.mxu0 0.0
      %1473 = vmatprep.subr.mxu0 0.0
      %1474 = vmatpush2.msra.mxu0 0.0
      %1475 = vmatprep.subr.mxu0 0.0
      %1476 = vmatpush2.msra.mxu0 0.0
      %1477 = vmatprep.subr.mxu0 0.0
      %1478 = vmatpush2.msra.mxu0 0.0
      %1479 = vmatprep.subr.mxu0 0.0
      %1480 = vmatpush2.msra.mxu0 0.0
      %1481 = vmatprep.subr.mxu0 0.0
      %1482 = vmatpush2.msra.mxu0 0.0
      %1483 = vmatprep.subr.mxu0 0.0
      %1484 = vmatpush2.msra.mxu0 0.0
      %1485 = vmatprep.subr.mxu0 0.0
      %1486 = vmatpush2.msra.mxu0 0.0
      %1487 = vmatprep.mubr.f32.mxu0 0.0
      %1488 = vmatmul.mubr.f32.gmra.mxu0 %v1406
      %v1489 = vpop.f32.mrf.mxu0
      %v1490 = vadd.f32 0.0, %v1489
      %v1491 = vpop.f32.mrf.mxu0
      %v1492 = vadd.f32 0.0, %v1491
      %1493 = vmatprep.mubr.f32.mxu0 0.0
      %1494 = vmatmul.mubr.f32.gmra.mxu0 %v1409
      %v1495 = vpop.f32.mrf.mxu0
      %v1496 = vadd.f32 0.0, %v1495
      %v1497 = vpop.f32.mrf.mxu0
      %v1498 = vadd.f32 0.0, %v1497
      %1499 = vmatprep.mubr.f32.mxu0 0.0
      %1500 = vmatmul.mubr.f32.gmra.mxu0 %v1412
      %v1501 = vpop.f32.mrf.mxu0
      %v1502 = vadd.f32 0.0, %v1501
      %v1503 = vpop.f32.mrf.mxu0
      %v1504 = vadd.f32 0.0, %v1503
      %1505 = vmatprep.mubr.f32.mxu0 0.0
      %1506 = vmatmul.mubr.f32.gmra.mxu0 %v1415
      %v1507 = vpop.f32.mrf.mxu0
      %v1508 = vadd.f32 0.0, %v1507
      %v1509 = vpop.f32.mrf.mxu0
      %v1510 = vadd.f32 0.0, %v1509
      %1511 = vdwg.mxu0
      %v1512 = vadd.f32 %v1370, %v1490
      %v1513 = vadd.f32 %v1371, %v1492
      %v1514 = vadd.f32 %v1372, %v1496
      %v1515 = vadd.f32 %v1373, %v1498
      %v1516 = vadd.f32 %v1374, %v1502
      %v1517 = vadd.f32 %v1375, %v1504
      %v1518 = vadd.f32 %v1376, %v1508
      %v1519 = vadd.f32 %v1377, %v1510
      %1520 = vrot.lane.b32.xlu0 %v414, 111
      %v1521 = vpop.permute.xlu0 %1520
      %1522 = vrot.lane.b32.xlu0 %v420, 111
      %v1523 = vpop.permute.xlu0 %1522
      %vm1524 = vcmp.lt.s32.totalorder %v427, 111
      %v1525 = vsel %vm1524, %v1521, %v1523
      %v1526 = vsel %vm1524, %v1523, %v1521
      %s1527 = scalar_lea.vmem %s1, 16
      %v1528 = vld [vmem:[%s1527] sm:$0x3]
      %v1530 = vlaneseq
      %v1531 = vshrl.u32 %v1530, 7
      %v1532 = vsub.s32 0, %v1531
      %v1533 = vrot.slane %v1528, %v1532
      %v1534 = vlaneseq
      %v1535 = vshrl.u32 %v1534, 7
      %v1536 = vsub.s32 1, %v1535
      %v1537 = vrot.slane %v1528, %v1536
      %v1540 = vmul.f32 %v1525, %v1533
      %v1541 = vmul.f32 %v1526, %v1537
      %s1542 = scalar_lea.vmem %s2, 256
      %v1543 = vld [vmem:[%s1542] sm:$0xff]
      %v1544 = vld [vmem:[%s1542 + $0x8] sm:$0xff]
      %v1545 = vld [vmem:[%s1542 + $0x10] sm:$0xff]
      %v1546 = vld [vmem:[%s1542 + $0x18] sm:$0xff]
      %v1548 = vsel %vm476, %v1543, 0
      %v1551 = vsel %vm476, %v1544, 0
      %v1554 = vsel %vm476, %v1545, 0
      %v1557 = vsel %vm476, %v1546, 0
      %v1560 = vsel %vm489, %v1540, 0
      %v1563 = vsel %vm489, %v1541, 0
      %1565 = vmatprep.subr.mxu0 0.0
      %1566 = vmatpush1.msra.mxu0 0.0
      %1567 = vmatprep.subr.mxu0 0.0
      %1568 = vmatpush1.msra.mxu0 0.0
      %1569 = vmatprep.subr.mxu0 0.0
      %1570 = vmatpush1.msra.mxu0 0.0
      %1571 = vmatprep.subr.mxu0 0.0
      %1572 = vmatpush1.msra.mxu0 0.0
      %1573 = vmatprep.subr.mxu0 0.0
      %1574 = vmatpush1.msra.mxu0 0.0
      %1575 = vmatprep.subr.mxu0 0.0
      %1576 = vmatpush1.msra.mxu0 0.0
      %1577 = vmatprep.subr.mxu0 0.0
      %1578 = vmatpush1.msra.mxu0 0.0
      %1579 = vmatprep.subr.mxu0 0.0
      %1580 = vmatpush1.msra.mxu0 0.0
      %1581 = vmatprep.subr.mxu0 0.0
      %1582 = vmatpush1.msra.mxu0 0.0
      %1583 = vmatprep.subr.mxu0 0.0
      %1584 = vmatpush1.msra.mxu0 0.0
      %1585 = vmatprep.subr.mxu0 0.0
      %1586 = vmatpush1.msra.mxu0 0.0
      %1587 = vmatprep.subr.mxu0 0.0
      %1588 = vmatpush1.msra.mxu0 0.0
      %1589 = vmatprep.subr.mxu0 0.0
      %1590 = vmatpush1.msra.mxu0 0.0
      %1591 = vmatprep.subr.mxu0 0.0
      %1592 = vmatpush1.msra.mxu0 0.0
      %1593 = vmatprep.subr.mxu0 0.0
      %1594 = vmatpush1.msra.mxu0 0.0
      %1595 = vmatprep.subr.mxu0 %v1563
      %1596 = vmatpush1.msra.mxu0 %v1560
      %1597 = vmatprep.subr.mxu0 0.0
      %1598 = vmatpush2.msra.mxu0 0.0
      %1599 = vmatprep.subr.mxu0 0.0
      %1600 = vmatpush2.msra.mxu0 0.0
      %1601 = vmatprep.subr.mxu0 0.0
      %1602 = vmatpush2.msra.mxu0 0.0
      %1603 = vmatprep.subr.mxu0 0.0
      %1604 = vmatpush2.msra.mxu0 0.0
      %1605 = vmatprep.subr.mxu0 0.0
      %1606 = vmatpush2.msra.mxu0 0.0
      %1607 = vmatprep.subr.mxu0 0.0
      %1608 = vmatpush2.msra.mxu0 0.0
      %1609 = vmatprep.subr.mxu0 0.0
      %1610 = vmatpush2.msra.mxu0 0.0
      %1611 = vmatprep.subr.mxu0 0.0
      %1612 = vmatpush2.msra.mxu0 0.0
      %1613 = vmatprep.subr.mxu0 0.0
      %1614 = vmatpush2.msra.mxu0 0.0
      %1615 = vmatprep.subr.mxu0 0.0
      %1616 = vmatpush2.msra.mxu0 0.0
      %1617 = vmatprep.subr.mxu0 0.0
      %1618 = vmatpush2.msra.mxu0 0.0
      %1619 = vmatprep.subr.mxu0 0.0
      %1620 = vmatpush2.msra.mxu0 0.0
      %1621 = vmatprep.subr.mxu0 0.0
      %1622 = vmatpush2.msra.mxu0 0.0
      %1623 = vmatprep.subr.mxu0 0.0
      %1624 = vmatpush2.msra.mxu0 0.0
      %1625 = vmatprep.subr.mxu0 0.0
      %1626 = vmatpush2.msra.mxu0 0.0
      %1627 = vmatprep.subr.mxu0 0.0
      %1628 = vmatpush2.msra.mxu0 0.0
      %1629 = vmatprep.mubr.f32.mxu0 0.0
      %1630 = vmatmul.mubr.f32.gmra.mxu0 %v1548
      %v1631 = vpop.f32.mrf.mxu0
      %v1632 = vadd.f32 0.0, %v1631
      %v1633 = vpop.f32.mrf.mxu0
      %v1634 = vadd.f32 0.0, %v1633
      %1635 = vmatprep.mubr.f32.mxu0 0.0
      %1636 = vmatmul.mubr.f32.gmra.mxu0 %v1551
      %v1637 = vpop.f32.mrf.mxu0
      %v1638 = vadd.f32 0.0, %v1637
      %v1639 = vpop.f32.mrf.mxu0
      %v1640 = vadd.f32 0.0, %v1639
      %1641 = vmatprep.mubr.f32.mxu0 0.0
      %1642 = vmatmul.mubr.f32.gmra.mxu0 %v1554
      %v1643 = vpop.f32.mrf.mxu0
      %v1644 = vadd.f32 0.0, %v1643
      %v1645 = vpop.f32.mrf.mxu0
      %v1646 = vadd.f32 0.0, %v1645
      %1647 = vmatprep.mubr.f32.mxu0 0.0
      %1648 = vmatmul.mubr.f32.gmra.mxu0 %v1557
      %v1649 = vpop.f32.mrf.mxu0
      %v1650 = vadd.f32 0.0, %v1649
      %v1651 = vpop.f32.mrf.mxu0
      %v1652 = vadd.f32 0.0, %v1651
      %1653 = vdwg.mxu0
      %v1654 = vadd.f32 %v1512, %v1632
      %v1655 = vadd.f32 %v1513, %v1634
      %v1656 = vadd.f32 %v1514, %v1638
      %v1657 = vadd.f32 %v1515, %v1640
      %v1658 = vadd.f32 %v1516, %v1644
      %v1659 = vadd.f32 %v1517, %v1646
      %v1660 = vadd.f32 %v1518, %v1650
      %v1661 = vadd.f32 %v1519, %v1652
      %1663 = vset.pattern.permute.xlu0 0
      %1664 = vperm.xlu0 %1663, %v415
      %v1665 = vpop.permute.xlu0 %1664
      %1668 = vset.pattern.permute.xlu0 0
      %1669 = vperm.xlu0 %1668, %v416
      %v1670 = vpop.permute.xlu0 %1669
      %1673 = vset.pattern.permute.xlu0 0
      %1674 = vperm.xlu0 %1673, %v417
      %v1675 = vpop.permute.xlu0 %1674
      %1678 = vset.pattern.permute.xlu0 0
      %1679 = vperm.xlu0 %1678, %v418
      %v1680 = vpop.permute.xlu0 %1679
      %v1682 = vadd.f32 %v1654, %v1665
      %v1683 = vadd.f32 %v1655, %v1665
      %v1684 = vadd.f32 %v1656, %v1670
      %v1685 = vadd.f32 %v1657, %v1670
      %v1686 = vadd.f32 %v1658, %v1675
      %v1687 = vadd.f32 %v1659, %v1675
      %v1688 = vadd.f32 %v1660, %v1680
      %v1689 = vadd.f32 %v1661, %v1680
      %v1690 = vmax.f32 %v1682, 0.0
      %v1691 = vmax.f32 %v1683, 0.0
      %v1692 = vmax.f32 %v1684, 0.0
      %v1693 = vmax.f32 %v1685, 0.0
      %v1694 = vmax.f32 %v1686, 0.0
      %v1695 = vmax.f32 %v1687, 0.0
      %v1696 = vmax.f32 %v1688, 0.0
      %v1697 = vmax.f32 %v1689, 0.0
      %v1698 = vld [vmem:[%s5] sm:$0xff]
      %v1699 = vld [vmem:[%s5 + $0x8] sm:$0xff]
      %1700 = vrot.lane.b32.xlu0 %v1690, 17
      %v1701 = vpop.permute.xlu0 %1700
      %1702 = vrot.lane.b32.xlu0 %v1692, 17
      %v1703 = vpop.permute.xlu0 %1702
      %1704 = vrot.lane.b32.xlu0 %v1694, 17
      %v1705 = vpop.permute.xlu0 %1704
      %1706 = vrot.lane.b32.xlu0 %v1696, 17
      %v1707 = vpop.permute.xlu0 %1706
      %1708 = vrot.lane.b32.xlu0 %v1691, 17
      %v1709 = vpop.permute.xlu0 %1708
      %1710 = vrot.lane.b32.xlu0 %v1693, 17
      %v1711 = vpop.permute.xlu0 %1710
      %1712 = vrot.lane.b32.xlu0 %v1695, 17
      %v1713 = vpop.permute.xlu0 %1712
      %1714 = vrot.lane.b32.xlu0 %v1697, 17
      %v1715 = vpop.permute.xlu0 %1714
      %v1716 = vsel %vm428, %v1701, %v1709
      %v1717 = vsel %vm428, %v1703, %v1711
      %v1718 = vsel %vm428, %v1705, %v1713
      %v1719 = vsel %vm428, %v1707, %v1715
      %v1720 = vsel %vm428, %v1709, %v1701
      %v1721 = vsel %vm428, %v1711, %v1703
      %v1722 = vsel %vm428, %v1713, %v1705
      %v1723 = vsel %vm428, %v1715, %v1707
      %v1724 = vmul.f32 %v1720, %v436
      %v1725 = vmul.f32 %v1716, %v440
      %v1726 = vmul.f32 %v1721, %v436
      %v1727 = vmul.f32 %v1717, %v440
      %v1728 = vmul.f32 %v1722, %v436
      %v1729 = vmul.f32 %v1718, %v440
      %v1730 = vmul.f32 %v1723, %v436
      %v1731 = vmul.f32 %v1719, %v440
      %v1732 = vld [vmem:[%s4] sm:$0xff]
      %v1733 = vld [vmem:[%s4 + $0x8] sm:$0xff]
      %1734 = vrot.lane.b32.xlu0 %v1690, 16
      %v1735 = vpop.permute.xlu0 %1734
      %1736 = vrot.lane.b32.xlu0 %v1692, 16
      %v1737 = vpop.permute.xlu0 %1736
      %1738 = vrot.lane.b32.xlu0 %v1694, 16
      %v1739 = vpop.permute.xlu0 %1738
      %1740 = vrot.lane.b32.xlu0 %v1696, 16
      %v1741 = vpop.permute.xlu0 %1740
      %1742 = vrot.lane.b32.xlu0 %v1691, 16
      %v1743 = vpop.permute.xlu0 %1742
      %1744 = vrot.lane.b32.xlu0 %v1693, 16
      %v1745 = vpop.permute.xlu0 %1744
      %1746 = vrot.lane.b32.xlu0 %v1695, 16
      %v1747 = vpop.permute.xlu0 %1746
      %1748 = vrot.lane.b32.xlu0 %v1697, 16
      %v1749 = vpop.permute.xlu0 %1748
      %v1750 = vsel %vm453, %v1735, %v1743
      %v1751 = vsel %vm453, %v1737, %v1745
      %v1752 = vsel %vm453, %v1739, %v1747
      %v1753 = vsel %vm453, %v1741, %v1749
      %v1754 = vsel %vm453, %v1743, %v1735
      %v1755 = vsel %vm453, %v1745, %v1737
      %v1756 = vsel %vm453, %v1747, %v1739
      %v1757 = vsel %vm453, %v1749, %v1741
      %v1758 = vmul.f32 %v1754, %v462
      %v1759 = vmul.f32 %v1750, %v466
      %v1760 = vmul.f32 %v1755, %v462
      %v1761 = vmul.f32 %v1751, %v466
      %v1762 = vmul.f32 %v1756, %v462
      %v1763 = vmul.f32 %v1752, %v466
      %v1764 = vmul.f32 %v1757, %v462
      %v1765 = vmul.f32 %v1753, %v466
      %s1766 = scalar_lea.vmem %s4, 16
      %v1767 = vld [vmem:[%s1766] sm:$0xff]
      %v1768 = vld [vmem:[%s1766 + $0x8] sm:$0xff]
      %vm1769 = vcmask 261120
      %v1771 = vsel %vm1769, %v1767, 0
      %v1774 = vsel %vm1769, %v1768, 0
      %1776 = vmatprep.subr.mxu0 0.0
      %1777 = vmatpush1.msra.mxu0 0.0
      %1778 = vmatprep.subr.mxu0 0.0
      %1779 = vmatpush1.msra.mxu0 0.0
      %1780 = vmatprep.subr.mxu0 0.0
      %1781 = vmatpush1.msra.mxu0 0.0
      %1782 = vmatprep.subr.mxu0 0.0
      %1783 = vmatpush1.msra.mxu0 0.0
      %1784 = vmatprep.subr.mxu0 0.0
      %1785 = vmatpush1.msra.mxu0 0.0
      %1786 = vmatprep.subr.mxu0 0.0
      %1787 = vmatpush1.msra.mxu0 0.0
      %1788 = vmatprep.subr.mxu0 0.0
      %1789 = vmatpush1.msra.mxu0 0.0
      %1790 = vmatprep.subr.mxu0 0.0
      %1791 = vmatpush1.msra.mxu0 0.0
      %1792 = vmatprep.subr.mxu0 0.0
      %1793 = vmatpush1.msra.mxu0 0.0
      %1794 = vmatprep.subr.mxu0 0.0
      %1795 = vmatpush1.msra.mxu0 0.0
      %1796 = vmatprep.subr.mxu0 0.0
      %1797 = vmatpush1.msra.mxu0 0.0
      %1798 = vmatprep.subr.mxu0 0.0
      %1799 = vmatpush1.msra.mxu0 0.0
      %1800 = vmatprep.subr.mxu0 %v1765
      %1801 = vmatpush1.msra.mxu0 %v1764
      %1802 = vmatprep.subr.mxu0 %v1763
      %1803 = vmatpush1.msra.mxu0 %v1762
      %1804 = vmatprep.subr.mxu0 %v1761
      %1805 = vmatpush1.msra.mxu0 %v1760
      %1806 = vmatprep.subr.mxu0 %v1759
      %1807 = vmatpush1.msra.mxu0 %v1758
      %1808 = vmatprep.subr.mxu0 0.0
      %1809 = vmatpush2.msra.mxu0 0.0
      %1810 = vmatprep.subr.mxu0 0.0
      %1811 = vmatpush2.msra.mxu0 0.0
      %1812 = vmatprep.subr.mxu0 0.0
      %1813 = vmatpush2.msra.mxu0 0.0
      %1814 = vmatprep.subr.mxu0 0.0
      %1815 = vmatpush2.msra.mxu0 0.0
      %1816 = vmatprep.subr.mxu0 0.0
      %1817 = vmatpush2.msra.mxu0 0.0
      %1818 = vmatprep.subr.mxu0 0.0
      %1819 = vmatpush2.msra.mxu0 0.0
      %1820 = vmatprep.subr.mxu0 0.0
      %1821 = vmatpush2.msra.mxu0 0.0
      %1822 = vmatprep.subr.mxu0 0.0
      %1823 = vmatpush2.msra.mxu0 0.0
      %1824 = vmatprep.subr.mxu0 0.0
      %1825 = vmatpush2.msra.mxu0 0.0
      %1826 = vmatprep.subr.mxu0 0.0
      %1827 = vmatpush2.msra.mxu0 0.0
      %1828 = vmatprep.subr.mxu0 0.0
      %1829 = vmatpush2.msra.mxu0 0.0
      %1830 = vmatprep.subr.mxu0 0.0
      %1831 = vmatpush2.msra.mxu0 0.0
      %1832 = vmatprep.subr.mxu0 0.0
      %1833 = vmatpush2.msra.mxu0 0.0
      %1834 = vmatprep.subr.mxu0 0.0
      %1835 = vmatpush2.msra.mxu0 0.0
      %1836 = vmatprep.subr.mxu0 0.0
      %1837 = vmatpush2.msra.mxu0 0.0
      %1838 = vmatprep.subr.mxu0 0.0
      %1839 = vmatpush2.msra.mxu0 0.0
      %1840 = vmatprep.mubr.f32.mxu0 0.0
      %1841 = vmatmul.mubr.f32.gmra.mxu0 %v1771
      %v1842 = vpop.f32.mrf.mxu0
      %v1843 = vadd.f32 0.0, %v1842
      %v1844 = vpop.f32.mrf.mxu0
      %v1845 = vadd.f32 0.0, %v1844
      %1846 = vmatprep.mubr.f32.mxu0 0.0
      %1847 = vmatmul.mubr.f32.gmra.mxu0 %v1774
      %v1848 = vpop.f32.mrf.mxu0
      %v1849 = vadd.f32 0.0, %v1848
      %v1850 = vpop.f32.mrf.mxu0
      %v1851 = vadd.f32 0.0, %v1850
      %1852 = vdwg.mxu0
      %v1854 = vsel %vm1769, %v1732, 0
      %v1857 = vsel %vm1769, %v1733, 0
      %1859 = vmatprep.subr.mxu0 0.0
      %1860 = vmatpush1.msra.mxu0 0.0
      %1861 = vmatprep.subr.mxu0 0.0
      %1862 = vmatpush1.msra.mxu0 0.0
      %1863 = vmatprep.subr.mxu0 0.0
      %1864 = vmatpush1.msra.mxu0 0.0
      %1865 = vmatprep.subr.mxu0 0.0
      %1866 = vmatpush1.msra.mxu0 0.0
      %1867 = vmatprep.subr.mxu0 0.0
      %1868 = vmatpush1.msra.mxu0 0.0
      %1869 = vmatprep.subr.mxu0 0.0
      %1870 = vmatpush1.msra.mxu0 0.0
      %1871 = vmatprep.subr.mxu0 0.0
      %1872 = vmatpush1.msra.mxu0 0.0
      %1873 = vmatprep.subr.mxu0 0.0
      %1874 = vmatpush1.msra.mxu0 0.0
      %1875 = vmatprep.subr.mxu0 0.0
      %1876 = vmatpush1.msra.mxu0 0.0
      %1877 = vmatprep.subr.mxu0 0.0
      %1878 = vmatpush1.msra.mxu0 0.0
      %1879 = vmatprep.subr.mxu0 0.0
      %1880 = vmatpush1.msra.mxu0 0.0
      %1881 = vmatprep.subr.mxu0 0.0
      %1882 = vmatpush1.msra.mxu0 0.0
      %1883 = vmatprep.subr.mxu0 %v1731
      %1884 = vmatpush1.msra.mxu0 %v1730
      %1885 = vmatprep.subr.mxu0 %v1729
      %1886 = vmatpush1.msra.mxu0 %v1728
      %1887 = vmatprep.subr.mxu0 %v1727
      %1888 = vmatpush1.msra.mxu0 %v1726
      %1889 = vmatprep.subr.mxu0 %v1725
      %1890 = vmatpush1.msra.mxu0 %v1724
      %1891 = vmatprep.subr.mxu0 0.0
      %1892 = vmatpush2.msra.mxu0 0.0
      %1893 = vmatprep.subr.mxu0 0.0
      %1894 = vmatpush2.msra.mxu0 0.0
      %1895 = vmatprep.subr.mxu0 0.0
      %1896 = vmatpush2.msra.mxu0 0.0
      %1897 = vmatprep.subr.mxu0 0.0
      %1898 = vmatpush2.msra.mxu0 0.0
      %1899 = vmatprep.subr.mxu0 0.0
      %1900 = vmatpush2.msra.mxu0 0.0
      %1901 = vmatprep.subr.mxu0 0.0
      %1902 = vmatpush2.msra.mxu0 0.0
      %1903 = vmatprep.subr.mxu0 0.0
      %1904 = vmatpush2.msra.mxu0 0.0
      %1905 = vmatprep.subr.mxu0 0.0
      %1906 = vmatpush2.msra.mxu0 0.0
      %1907 = vmatprep.subr.mxu0 0.0
      %1908 = vmatpush2.msra.mxu0 0.0
      %1909 = vmatprep.subr.mxu0 0.0
      %1910 = vmatpush2.msra.mxu0 0.0
      %1911 = vmatprep.subr.mxu0 0.0
      %1912 = vmatpush2.msra.mxu0 0.0
      %1913 = vmatprep.subr.mxu0 0.0
      %1914 = vmatpush2.msra.mxu0 0.0
      %1915 = vmatprep.subr.mxu0 0.0
      %1916 = vmatpush2.msra.mxu0 0.0
      %1917 = vmatprep.subr.mxu0 0.0
      %1918 = vmatpush2.msra.mxu0 0.0
      %1919 = vmatprep.subr.mxu0 0.0
      %1920 = vmatpush2.msra.mxu0 0.0
      %1921 = vmatprep.subr.mxu0 0.0
      %1922 = vmatpush2.msra.mxu0 0.0
      %1923 = vmatprep.mubr.f32.mxu0 0.0
      %1924 = vmatmul.mubr.f32.gmra.mxu0 %v1854
      %v1925 = vpop.f32.mrf.mxu0
      %v1926 = vadd.f32 %v1843, %v1925
      %v1927 = vpop.f32.mrf.mxu0
      %v1928 = vadd.f32 %v1845, %v1927
      %1929 = vmatprep.mubr.f32.mxu0 0.0
      %1930 = vmatmul.mubr.f32.gmra.mxu0 %v1857
      %v1931 = vpop.f32.mrf.mxu0
      %v1932 = vadd.f32 %v1849, %v1931
      %v1933 = vpop.f32.mrf.mxu0
      %v1934 = vadd.f32 %v1851, %v1933
      %1935 = vdwg.mxu0
      %1936 = vrot.lane.b32.xlu0 %v1690, 15
      %v1937 = vpop.permute.xlu0 %1936
      %1938 = vrot.lane.b32.xlu0 %v1692, 15
      %v1939 = vpop.permute.xlu0 %1938
      %1940 = vrot.lane.b32.xlu0 %v1694, 15
      %v1941 = vpop.permute.xlu0 %1940
      %1942 = vrot.lane.b32.xlu0 %v1696, 15
      %v1943 = vpop.permute.xlu0 %1942
      %1944 = vrot.lane.b32.xlu0 %v1691, 15
      %v1945 = vpop.permute.xlu0 %1944
      %1946 = vrot.lane.b32.xlu0 %v1693, 15
      %v1947 = vpop.permute.xlu0 %1946
      %1948 = vrot.lane.b32.xlu0 %v1695, 15
      %v1949 = vpop.permute.xlu0 %1948
      %1950 = vrot.lane.b32.xlu0 %v1697, 15
      %v1951 = vpop.permute.xlu0 %1950
      %v1952 = vsel %vm696, %v1937, %v1945
      %v1953 = vsel %vm696, %v1939, %v1947
      %v1954 = vsel %vm696, %v1941, %v1949
      %v1955 = vsel %vm696, %v1943, %v1951
      %v1956 = vsel %vm696, %v1945, %v1937
      %v1957 = vsel %vm696, %v1947, %v1939
      %v1958 = vsel %vm696, %v1949, %v1941
      %v1959 = vsel %vm696, %v1951, %v1943
      %v1960 = vmul.f32 %v1956, %v705
      %v1961 = vmul.f32 %v1952, %v709
      %v1962 = vmul.f32 %v1957, %v705
      %v1963 = vmul.f32 %v1953, %v709
      %v1964 = vmul.f32 %v1958, %v705
      %v1965 = vmul.f32 %v1954, %v709
      %v1966 = vmul.f32 %v1959, %v705
      %v1967 = vmul.f32 %v1955, %v709
      %s1968 = scalar_lea.vmem %s4, 32
      %v1969 = vld [vmem:[%s1968] sm:$0xff]
      %v1970 = vld [vmem:[%s1968 + $0x8] sm:$0xff]
      %v1972 = vsel %vm1769, %v1969, 0
      %v1975 = vsel %vm1769, %v1970, 0
      %1977 = vmatprep.subr.mxu0 0.0
      %1978 = vmatpush1.msra.mxu0 0.0
      %1979 = vmatprep.subr.mxu0 0.0
      %1980 = vmatpush1.msra.mxu0 0.0
      %1981 = vmatprep.subr.mxu0 0.0
      %1982 = vmatpush1.msra.mxu0 0.0
      %1983 = vmatprep.subr.mxu0 0.0
      %1984 = vmatpush1.msra.mxu0 0.0
      %1985 = vmatprep.subr.mxu0 0.0
      %1986 = vmatpush1.msra.mxu0 0.0
      %1987 = vmatprep.subr.mxu0 0.0
      %1988 = vmatpush1.msra.mxu0 0.0
      %1989 = vmatprep.subr.mxu0 0.0
      %1990 = vmatpush1.msra.mxu0 0.0
      %1991 = vmatprep.subr.mxu0 0.0
      %1992 = vmatpush1.msra.mxu0 0.0
      %1993 = vmatprep.subr.mxu0 0.0
      %1994 = vmatpush1.msra.mxu0 0.0
      %1995 = vmatprep.subr.mxu0 0.0
      %1996 = vmatpush1.msra.mxu0 0.0
      %1997 = vmatprep.subr.mxu0 0.0
      %1998 = vmatpush1.msra.mxu0 0.0
      %1999 = vmatprep.subr.mxu0 0.0
      %2000 = vmatpush1.msra.mxu0 0.0
      %2001 = vmatprep.subr.mxu0 %v1967
      %2002 = vmatpush1.msra.mxu0 %v1966
      %2003 = vmatprep.subr.mxu0 %v1965
      %2004 = vmatpush1.msra.mxu0 %v1964
      %2005 = vmatprep.subr.mxu0 %v1963
      %2006 = vmatpush1.msra.mxu0 %v1962
      %2007 = vmatprep.subr.mxu0 %v1961
      %2008 = vmatpush1.msra.mxu0 %v1960
      %2009 = vmatprep.subr.mxu0 0.0
      %2010 = vmatpush2.msra.mxu0 0.0
      %2011 = vmatprep.subr.mxu0 0.0
      %2012 = vmatpush2.msra.mxu0 0.0
      %2013 = vmatprep.subr.mxu0 0.0
      %2014 = vmatpush2.msra.mxu0 0.0
      %2015 = vmatprep.subr.mxu0 0.0
      %2016 = vmatpush2.msra.mxu0 0.0
      %2017 = vmatprep.subr.mxu0 0.0
      %2018 = vmatpush2.msra.mxu0 0.0
      %2019 = vmatprep.subr.mxu0 0.0
      %2020 = vmatpush2.msra.mxu0 0.0
      %2021 = vmatprep.subr.mxu0 0.0
      %2022 = vmatpush2.msra.mxu0 0.0
      %2023 = vmatprep.subr.mxu0 0.0
      %2024 = vmatpush2.msra.mxu0 0.0
      %2025 = vmatprep.subr.mxu0 0.0
      %2026 = vmatpush2.msra.mxu0 0.0
      %2027 = vmatprep.subr.mxu0 0.0
      %2028 = vmatpush2.msra.mxu0 0.0
      %2029 = vmatprep.subr.mxu0 0.0
      %2030 = vmatpush2.msra.mxu0 0.0
      %2031 = vmatprep.subr.mxu0 0.0
      %2032 = vmatpush2.msra.mxu0 0.0
      %2033 = vmatprep.subr.mxu0 0.0
      %2034 = vmatpush2.msra.mxu0 0.0
      %2035 = vmatprep.subr.mxu0 0.0
      %2036 = vmatpush2.msra.mxu0 0.0
      %2037 = vmatprep.subr.mxu0 0.0
      %2038 = vmatpush2.msra.mxu0 0.0
      %2039 = vmatprep.subr.mxu0 0.0
      %2040 = vmatpush2.msra.mxu0 0.0
      %2041 = vmatprep.mubr.f32.mxu0 0.0
      %2042 = vmatmul.mubr.f32.gmra.mxu0 %v1972
      %v2043 = vpop.f32.mrf.mxu0
      %v2044 = vadd.f32 0.0, %v2043
      %v2045 = vpop.f32.mrf.mxu0
      %v2046 = vadd.f32 0.0, %v2045
      %2047 = vmatprep.mubr.f32.mxu0 0.0
      %2048 = vmatmul.mubr.f32.gmra.mxu0 %v1975
      %v2049 = vpop.f32.mrf.mxu0
      %v2050 = vadd.f32 0.0, %v2049
      %v2051 = vpop.f32.mrf.mxu0
      %v2052 = vadd.f32 0.0, %v2051
      %2053 = vdwg.mxu0
      %v2054 = vadd.f32 %v1926, %v2044
      %v2055 = vadd.f32 %v1928, %v2046
      %v2056 = vadd.f32 %v1932, %v2050
      %v2057 = vadd.f32 %v1934, %v2052
      %2058 = vrot.lane.b32.xlu0 %v1690, 1
      %v2059 = vpop.permute.xlu0 %2058
      %2060 = vrot.lane.b32.xlu0 %v1692, 1
      %v2061 = vpop.permute.xlu0 %2060
      %2062 = vrot.lane.b32.xlu0 %v1694, 1
      %v2063 = vpop.permute.xlu0 %2062
      %2064 = vrot.lane.b32.xlu0 %v1696, 1
      %v2065 = vpop.permute.xlu0 %2064
      %2066 = vrot.lane.b32.xlu0 %v1691, 1
      %v2067 = vpop.permute.xlu0 %2066
      %2068 = vrot.lane.b32.xlu0 %v1693, 1
      %v2069 = vpop.permute.xlu0 %2068
      %2070 = vrot.lane.b32.xlu0 %v1695, 1
      %v2071 = vpop.permute.xlu0 %2070
      %2072 = vrot.lane.b32.xlu0 %v1697, 1
      %v2073 = vpop.permute.xlu0 %2072
      %v2074 = vsel %vm838, %v2059, %v2067
      %v2075 = vsel %vm838, %v2061, %v2069
      %v2076 = vsel %vm838, %v2063, %v2071
      %v2077 = vsel %vm838, %v2065, %v2073
      %v2078 = vsel %vm838, %v2067, %v2059
      %v2079 = vsel %vm838, %v2069, %v2061
      %v2080 = vsel %vm838, %v2071, %v2063
      %v2081 = vsel %vm838, %v2073, %v2065
      %v2082 = vmul.f32 %v2078, %v847
      %v2083 = vmul.f32 %v2074, %v851
      %v2084 = vmul.f32 %v2079, %v847
      %v2085 = vmul.f32 %v2075, %v851
      %v2086 = vmul.f32 %v2080, %v847
      %v2087 = vmul.f32 %v2076, %v851
      %v2088 = vmul.f32 %v2081, %v847
      %v2089 = vmul.f32 %v2077, %v851
      %s2090 = scalar_lea.vmem %s4, 48
      %v2091 = vld [vmem:[%s2090] sm:$0xff]
      %v2092 = vld [vmem:[%s2090 + $0x8] sm:$0xff]
      %v2094 = vsel %vm1769, %v2091, 0
      %v2097 = vsel %vm1769, %v2092, 0
      %2099 = vmatprep.subr.mxu0 0.0
      %2100 = vmatpush1.msra.mxu0 0.0
      %2101 = vmatprep.subr.mxu0 0.0
      %2102 = vmatpush1.msra.mxu0 0.0
      %2103 = vmatprep.subr.mxu0 0.0
      %2104 = vmatpush1.msra.mxu0 0.0
      %2105 = vmatprep.subr.mxu0 0.0
      %2106 = vmatpush1.msra.mxu0 0.0
      %2107 = vmatprep.subr.mxu0 0.0
      %2108 = vmatpush1.msra.mxu0 0.0
      %2109 = vmatprep.subr.mxu0 0.0
      %2110 = vmatpush1.msra.mxu0 0.0
      %2111 = vmatprep.subr.mxu0 0.0
      %2112 = vmatpush1.msra.mxu0 0.0
      %2113 = vmatprep.subr.mxu0 0.0
      %2114 = vmatpush1.msra.mxu0 0.0
      %2115 = vmatprep.subr.mxu0 0.0
      %2116 = vmatpush1.msra.mxu0 0.0
      %2117 = vmatprep.subr.mxu0 0.0
      %2118 = vmatpush1.msra.mxu0 0.0
      %2119 = vmatprep.subr.mxu0 0.0
      %2120 = vmatpush1.msra.mxu0 0.0
      %2121 = vmatprep.subr.mxu0 0.0
      %2122 = vmatpush1.msra.mxu0 0.0
      %2123 = vmatprep.subr.mxu0 %v2089
      %2124 = vmatpush1.msra.mxu0 %v2088
      %2125 = vmatprep.subr.mxu0 %v2087
      %2126 = vmatpush1.msra.mxu0 %v2086
      %2127 = vmatprep.subr.mxu0 %v2085
      %2128 = vmatpush1.msra.mxu0 %v2084
      %2129 = vmatprep.subr.mxu0 %v2083
      %2130 = vmatpush1.msra.mxu0 %v2082
      %2131 = vmatprep.subr.mxu0 0.0
      %2132 = vmatpush2.msra.mxu0 0.0
      %2133 = vmatprep.subr.mxu0 0.0
      %2134 = vmatpush2.msra.mxu0 0.0
      %2135 = vmatprep.subr.mxu0 0.0
      %2136 = vmatpush2.msra.mxu0 0.0
      %2137 = vmatprep.subr.mxu0 0.0
      %2138 = vmatpush2.msra.mxu0 0.0
      %2139 = vmatprep.subr.mxu0 0.0
      %2140 = vmatpush2.msra.mxu0 0.0
      %2141 = vmatprep.subr.mxu0 0.0
      %2142 = vmatpush2.msra.mxu0 0.0
      %2143 = vmatprep.subr.mxu0 0.0
      %2144 = vmatpush2.msra.mxu0 0.0
      %2145 = vmatprep.subr.mxu0 0.0
      %2146 = vmatpush2.msra.mxu0 0.0
      %2147 = vmatprep.subr.mxu0 0.0
      %2148 = vmatpush2.msra.mxu0 0.0
      %2149 = vmatprep.subr.mxu0 0.0
      %2150 = vmatpush2.msra.mxu0 0.0
      %2151 = vmatprep.subr.mxu0 0.0
      %2152 = vmatpush2.msra.mxu0 0.0
      %2153 = vmatprep.subr.mxu0 0.0
      %2154 = vmatpush2.msra.mxu0 0.0
      %2155 = vmatprep.subr.mxu0 0.0
      %2156 = vmatpush2.msra.mxu0 0.0
      %2157 = vmatprep.subr.mxu0 0.0
      %2158 = vmatpush2.msra.mxu0 0.0
      %2159 = vmatprep.subr.mxu0 0.0
      %2160 = vmatpush2.msra.mxu0 0.0
      %2161 = vmatprep.subr.mxu0 0.0
      %2162 = vmatpush2.msra.mxu0 0.0
      %2163 = vmatprep.mubr.f32.mxu0 0.0
      %2164 = vmatmul.mubr.f32.gmra.mxu0 %v2094
      %v2165 = vpop.f32.mrf.mxu0
      %v2166 = vadd.f32 0.0, %v2165
      %v2167 = vpop.f32.mrf.mxu0
      %v2168 = vadd.f32 0.0, %v2167
      %2169 = vmatprep.mubr.f32.mxu0 0.0
      %2170 = vmatmul.mubr.f32.gmra.mxu0 %v2097
      %v2171 = vpop.f32.mrf.mxu0
      %v2172 = vadd.f32 0.0, %v2171
      %v2173 = vpop.f32.mrf.mxu0
      %v2174 = vadd.f32 0.0, %v2173
      %2175 = vdwg.mxu0
      %v2176 = vadd.f32 %v2054, %v2166
      %v2177 = vadd.f32 %v2055, %v2168
      %v2178 = vadd.f32 %v2056, %v2172
      %v2179 = vadd.f32 %v2057, %v2174
      %s2180 = scalar_lea.vmem %s4, 64
      %v2181 = vld [vmem:[%s2180] sm:$0xff]
      %v2182 = vld [vmem:[%s2180 + $0x8] sm:$0xff]
      %v2184 = vsel %vm1769, %v2181, 0
      %v2187 = vsel %vm1769, %v2182, 0
      %2189 = vmatprep.subr.mxu0 0.0
      %2190 = vmatpush1.msra.mxu0 0.0
      %2191 = vmatprep.subr.mxu0 0.0
      %2192 = vmatpush1.msra.mxu0 0.0
      %2193 = vmatprep.subr.mxu0 0.0
      %2194 = vmatpush1.msra.mxu0 0.0
      %2195 = vmatprep.subr.mxu0 0.0
      %2196 = vmatpush1.msra.mxu0 0.0
      %2197 = vmatprep.subr.mxu0 0.0
      %2198 = vmatpush1.msra.mxu0 0.0
      %2199 = vmatprep.subr.mxu0 0.0
      %2200 = vmatpush1.msra.mxu0 0.0
      %2201 = vmatprep.subr.mxu0 0.0
      %2202 = vmatpush1.msra.mxu0 0.0
      %2203 = vmatprep.subr.mxu0 0.0
      %2204 = vmatpush1.msra.mxu0 0.0
      %2205 = vmatprep.subr.mxu0 0.0
      %2206 = vmatpush1.msra.mxu0 0.0
      %2207 = vmatprep.subr.mxu0 0.0
      %2208 = vmatpush1.msra.mxu0 0.0
      %2209 = vmatprep.subr.mxu0 0.0
      %2210 = vmatpush1.msra.mxu0 0.0
      %2211 = vmatprep.subr.mxu0 0.0
      %2212 = vmatpush1.msra.mxu0 0.0
      %2213 = vmatprep.subr.mxu0 %v1697
      %2214 = vmatpush1.msra.mxu0 %v1696
      %2215 = vmatprep.subr.mxu0 %v1695
      %2216 = vmatpush1.msra.mxu0 %v1694
      %2217 = vmatprep.subr.mxu0 %v1693
      %2218 = vmatpush1.msra.mxu0 %v1692
      %2219 = vmatprep.subr.mxu0 %v1691
      %2220 = vmatpush1.msra.mxu0 %v1690
      %2221 = vmatprep.subr.mxu0 0.0
      %2222 = vmatpush2.msra.mxu0 0.0
      %2223 = vmatprep.subr.mxu0 0.0
      %2224 = vmatpush2.msra.mxu0 0.0
      %2225 = vmatprep.subr.mxu0 0.0
      %2226 = vmatpush2.msra.mxu0 0.0
      %2227 = vmatprep.subr.mxu0 0.0
      %2228 = vmatpush2.msra.mxu0 0.0
      %2229 = vmatprep.subr.mxu0 0.0
      %2230 = vmatpush2.msra.mxu0 0.0
      %2231 = vmatprep.subr.mxu0 0.0
      %2232 = vmatpush2.msra.mxu0 0.0
      %2233 = vmatprep.subr.mxu0 0.0
      %2234 = vmatpush2.msra.mxu0 0.0
      %2235 = vmatprep.subr.mxu0 0.0
      %2236 = vmatpush2.msra.mxu0 0.0
      %2237 = vmatprep.subr.mxu0 0.0
      %2238 = vmatpush2.msra.mxu0 0.0
      %2239 = vmatprep.subr.mxu0 0.0
      %2240 = vmatpush2.msra.mxu0 0.0
      %2241 = vmatprep.subr.mxu0 0.0
      %2242 = vmatpush2.msra.mxu0 0.0
      %2243 = vmatprep.subr.mxu0 0.0
      %2244 = vmatpush2.msra.mxu0 0.0
      %2245 = vmatprep.subr.mxu0 0.0
      %2246 = vmatpush2.msra.mxu0 0.0
      %2247 = vmatprep.subr.mxu0 0.0
      %2248 = vmatpush2.msra.mxu0 0.0
      %2249 = vmatprep.subr.mxu0 0.0
      %2250 = vmatpush2.msra.mxu0 0.0
      %2251 = vmatprep.subr.mxu0 0.0
      %2252 = vmatpush2.msra.mxu0 0.0
      %2253 = vmatprep.mubr.f32.mxu0 0.0
      %2254 = vmatmul.mubr.f32.gmra.mxu0 %v2184
      %v2255 = vpop.f32.mrf.mxu0
      %v2256 = vadd.f32 0.0, %v2255
      %v2257 = vpop.f32.mrf.mxu0
      %v2258 = vadd.f32 0.0, %v2257
      %2259 = vmatprep.mubr.f32.mxu0 0.0
      %2260 = vmatmul.mubr.f32.gmra.mxu0 %v2187
      %v2261 = vpop.f32.mrf.mxu0
      %v2262 = vadd.f32 0.0, %v2261
      %v2263 = vpop.f32.mrf.mxu0
      %v2264 = vadd.f32 0.0, %v2263
      %2265 = vdwg.mxu0
      %v2266 = vadd.f32 %v2176, %v2256
      %v2267 = vadd.f32 %v2177, %v2258
      %v2268 = vadd.f32 %v2178, %v2262
      %v2269 = vadd.f32 %v2179, %v2264
      %2270 = vrot.lane.b32.xlu0 %v1690, 127
      %v2271 = vpop.permute.xlu0 %2270
      %2272 = vrot.lane.b32.xlu0 %v1692, 127
      %v2273 = vpop.permute.xlu0 %2272
      %2274 = vrot.lane.b32.xlu0 %v1694, 127
      %v2275 = vpop.permute.xlu0 %2274
      %2276 = vrot.lane.b32.xlu0 %v1696, 127
      %v2277 = vpop.permute.xlu0 %2276
      %2278 = vrot.lane.b32.xlu0 %v1691, 127
      %v2279 = vpop.permute.xlu0 %2278
      %2280 = vrot.lane.b32.xlu0 %v1693, 127
      %v2281 = vpop.permute.xlu0 %2280
      %2282 = vrot.lane.b32.xlu0 %v1695, 127
      %v2283 = vpop.permute.xlu0 %2282
      %2284 = vrot.lane.b32.xlu0 %v1697, 127
      %v2285 = vpop.permute.xlu0 %2284
      %v2286 = vsel %vm1098, %v2271, %v2279
      %v2287 = vsel %vm1098, %v2273, %v2281
      %v2288 = vsel %vm1098, %v2275, %v2283
      %v2289 = vsel %vm1098, %v2277, %v2285
      %v2290 = vsel %vm1098, %v2279, %v2271
      %v2291 = vsel %vm1098, %v2281, %v2273
      %v2292 = vsel %vm1098, %v2283, %v2275
      %v2293 = vsel %vm1098, %v2285, %v2277
      %v2294 = vmul.f32 %v2286, %v1107
      %v2295 = vmul.f32 %v2290, %v1111
      %v2296 = vmul.f32 %v2287, %v1107
      %v2297 = vmul.f32 %v2291, %v1111
      %v2298 = vmul.f32 %v2288, %v1107
      %v2299 = vmul.f32 %v2292, %v1111
      %v2300 = vmul.f32 %v2289, %v1107
      %v2301 = vmul.f32 %v2293, %v1111
      %s2302 = scalar_lea.vmem %s4, 80
      %v2303 = vld [vmem:[%s2302] sm:$0xff]
      %v2304 = vld [vmem:[%s2302 + $0x8] sm:$0xff]
      %v2306 = vsel %vm1769, %v2303, 0
      %v2309 = vsel %vm1769, %v2304, 0
      %2311 = vmatprep.subr.mxu0 0.0
      %2312 = vmatpush1.msra.mxu0 0.0
      %2313 = vmatprep.subr.mxu0 0.0
      %2314 = vmatpush1.msra.mxu0 0.0
      %2315 = vmatprep.subr.mxu0 0.0
      %2316 = vmatpush1.msra.mxu0 0.0
      %2317 = vmatprep.subr.mxu0 0.0
      %2318 = vmatpush1.msra.mxu0 0.0
      %2319 = vmatprep.subr.mxu0 0.0
      %2320 = vmatpush1.msra.mxu0 0.0
      %2321 = vmatprep.subr.mxu0 0.0
      %2322 = vmatpush1.msra.mxu0 0.0
      %2323 = vmatprep.subr.mxu0 0.0
      %2324 = vmatpush1.msra.mxu0 0.0
      %2325 = vmatprep.subr.mxu0 0.0
      %2326 = vmatpush1.msra.mxu0 0.0
      %2327 = vmatprep.subr.mxu0 0.0
      %2328 = vmatpush1.msra.mxu0 0.0
      %2329 = vmatprep.subr.mxu0 0.0
      %2330 = vmatpush1.msra.mxu0 0.0
      %2331 = vmatprep.subr.mxu0 0.0
      %2332 = vmatpush1.msra.mxu0 0.0
      %2333 = vmatprep.subr.mxu0 0.0
      %2334 = vmatpush1.msra.mxu0 0.0
      %2335 = vmatprep.subr.mxu0 %v2301
      %2336 = vmatpush1.msra.mxu0 %v2300
      %2337 = vmatprep.subr.mxu0 %v2299
      %2338 = vmatpush1.msra.mxu0 %v2298
      %2339 = vmatprep.subr.mxu0 %v2297
      %2340 = vmatpush1.msra.mxu0 %v2296
      %2341 = vmatprep.subr.mxu0 %v2295
      %2342 = vmatpush1.msra.mxu0 %v2294
      %2343 = vmatprep.subr.mxu0 0.0
      %2344 = vmatpush2.msra.mxu0 0.0
      %2345 = vmatprep.subr.mxu0 0.0
      %2346 = vmatpush2.msra.mxu0 0.0
      %2347 = vmatprep.subr.mxu0 0.0
      %2348 = vmatpush2.msra.mxu0 0.0
      %2349 = vmatprep.subr.mxu0 0.0
      %2350 = vmatpush2.msra.mxu0 0.0
      %2351 = vmatprep.subr.mxu0 0.0
      %2352 = vmatpush2.msra.mxu0 0.0
      %2353 = vmatprep.subr.mxu0 0.0
      %2354 = vmatpush2.msra.mxu0 0.0
      %2355 = vmatprep.subr.mxu0 0.0
      %2356 = vmatpush2.msra.mxu0 0.0
      %2357 = vmatprep.subr.mxu0 0.0
      %2358 = vmatpush2.msra.mxu0 0.0
      %2359 = vmatprep.subr.mxu0 0.0
      %2360 = vmatpush2.msra.mxu0 0.0
      %2361 = vmatprep.subr.mxu0 0.0
      %2362 = vmatpush2.msra.mxu0 0.0
      %2363 = vmatprep.subr.mxu0 0.0
      %2364 = vmatpush2.msra.mxu0 0.0
      %2365 = vmatprep.subr.mxu0 0.0
      %2366 = vmatpush2.msra.mxu0 0.0
      %2367 = vmatprep.subr.mxu0 0.0
      %2368 = vmatpush2.msra.mxu0 0.0
      %2369 = vmatprep.subr.mxu0 0.0
      %2370 = vmatpush2.msra.mxu0 0.0
      %2371 = vmatprep.subr.mxu0 0.0
      %2372 = vmatpush2.msra.mxu0 0.0
      %2373 = vmatprep.subr.mxu0 0.0
      %2374 = vmatpush2.msra.mxu0 0.0
      %2375 = vmatprep.mubr.f32.mxu0 0.0
      %2376 = vmatmul.mubr.f32.gmra.mxu0 %v2306
      %v2377 = vpop.f32.mrf.mxu0
      %v2378 = vadd.f32 0.0, %v2377
      %v2379 = vpop.f32.mrf.mxu0
      %v2380 = vadd.f32 0.0, %v2379
      %2381 = vmatprep.mubr.f32.mxu0 0.0
      %2382 = vmatmul.mubr.f32.gmra.mxu0 %v2309
      %v2383 = vpop.f32.mrf.mxu0
      %v2384 = vadd.f32 0.0, %v2383
      %v2385 = vpop.f32.mrf.mxu0
      %v2386 = vadd.f32 0.0, %v2385
      %2387 = vdwg.mxu0
      %v2388 = vadd.f32 %v2266, %v2378
      %v2389 = vadd.f32 %v2267, %v2380
      %v2390 = vadd.f32 %v2268, %v2384
      %v2391 = vadd.f32 %v2269, %v2386
      %2392 = vrot.lane.b32.xlu0 %v1690, 113
      %v2393 = vpop.permute.xlu0 %2392
      %2394 = vrot.lane.b32.xlu0 %v1692, 113
      %v2395 = vpop.permute.xlu0 %2394
      %2396 = vrot.lane.b32.xlu0 %v1694, 113
      %v2397 = vpop.permute.xlu0 %2396
      %2398 = vrot.lane.b32.xlu0 %v1696, 113
      %v2399 = vpop.permute.xlu0 %2398
      %2400 = vrot.lane.b32.xlu0 %v1691, 113
      %v2401 = vpop.permute.xlu0 %2400
      %2402 = vrot.lane.b32.xlu0 %v1693, 113
      %v2403 = vpop.permute.xlu0 %2402
      %2404 = vrot.lane.b32.xlu0 %v1695, 113
      %v2405 = vpop.permute.xlu0 %2404
      %2406 = vrot.lane.b32.xlu0 %v1697, 113
      %v2407 = vpop.permute.xlu0 %2406
      %v2408 = vsel %vm1240, %v2393, %v2401
      %v2409 = vsel %vm1240, %v2395, %v2403
      %v2410 = vsel %vm1240, %v2397, %v2405
      %v2411 = vsel %vm1240, %v2399, %v2407
      %v2412 = vsel %vm1240, %v2401, %v2393
      %v2413 = vsel %vm1240, %v2403, %v2395
      %v2414 = vsel %vm1240, %v2405, %v2397
      %v2415 = vsel %vm1240, %v2407, %v2399
      %v2416 = vmul.f32 %v2408, %v1249
      %v2417 = vmul.f32 %v2412, %v1253
      %v2418 = vmul.f32 %v2409, %v1249
      %v2419 = vmul.f32 %v2413, %v1253
      %v2420 = vmul.f32 %v2410, %v1249
      %v2421 = vmul.f32 %v2414, %v1253
      %v2422 = vmul.f32 %v2411, %v1249
      %v2423 = vmul.f32 %v2415, %v1253
      %s2424 = scalar_lea.vmem %s4, 96
      %v2425 = vld [vmem:[%s2424] sm:$0xff]
      %v2426 = vld [vmem:[%s2424 + $0x8] sm:$0xff]
      %v2428 = vsel %vm1769, %v2425, 0
      %v2431 = vsel %vm1769, %v2426, 0
      %2433 = vmatprep.subr.mxu0 0.0
      %2434 = vmatpush1.msra.mxu0 0.0
      %2435 = vmatprep.subr.mxu0 0.0
      %2436 = vmatpush1.msra.mxu0 0.0
      %2437 = vmatprep.subr.mxu0 0.0
      %2438 = vmatpush1.msra.mxu0 0.0
      %2439 = vmatprep.subr.mxu0 0.0
      %2440 = vmatpush1.msra.mxu0 0.0
      %2441 = vmatprep.subr.mxu0 0.0
      %2442 = vmatpush1.msra.mxu0 0.0
      %2443 = vmatprep.subr.mxu0 0.0
      %2444 = vmatpush1.msra.mxu0 0.0
      %2445 = vmatprep.subr.mxu0 0.0
      %2446 = vmatpush1.msra.mxu0 0.0
      %2447 = vmatprep.subr.mxu0 0.0
      %2448 = vmatpush1.msra.mxu0 0.0
      %2449 = vmatprep.subr.mxu0 0.0
      %2450 = vmatpush1.msra.mxu0 0.0
      %2451 = vmatprep.subr.mxu0 0.0
      %2452 = vmatpush1.msra.mxu0 0.0
      %2453 = vmatprep.subr.mxu0 0.0
      %2454 = vmatpush1.msra.mxu0 0.0
      %2455 = vmatprep.subr.mxu0 0.0
      %2456 = vmatpush1.msra.mxu0 0.0
      %2457 = vmatprep.subr.mxu0 %v2423
      %2458 = vmatpush1.msra.mxu0 %v2422
      %2459 = vmatprep.subr.mxu0 %v2421
      %2460 = vmatpush1.msra.mxu0 %v2420
      %2461 = vmatprep.subr.mxu0 %v2419
      %2462 = vmatpush1.msra.mxu0 %v2418
      %2463 = vmatprep.subr.mxu0 %v2417
      %2464 = vmatpush1.msra.mxu0 %v2416
      %2465 = vmatprep.subr.mxu0 0.0
      %2466 = vmatpush2.msra.mxu0 0.0
      %2467 = vmatprep.subr.mxu0 0.0
      %2468 = vmatpush2.msra.mxu0 0.0
      %2469 = vmatprep.subr.mxu0 0.0
      %2470 = vmatpush2.msra.mxu0 0.0
      %2471 = vmatprep.subr.mxu0 0.0
      %2472 = vmatpush2.msra.mxu0 0.0
      %2473 = vmatprep.subr.mxu0 0.0
      %2474 = vmatpush2.msra.mxu0 0.0
      %2475 = vmatprep.subr.mxu0 0.0
      %2476 = vmatpush2.msra.mxu0 0.0
      %2477 = vmatprep.subr.mxu0 0.0
      %2478 = vmatpush2.msra.mxu0 0.0
      %2479 = vmatprep.subr.mxu0 0.0
      %2480 = vmatpush2.msra.mxu0 0.0
      %2481 = vmatprep.subr.mxu0 0.0
      %2482 = vmatpush2.msra.mxu0 0.0
      %2483 = vmatprep.subr.mxu0 0.0
      %2484 = vmatpush2.msra.mxu0 0.0
      %2485 = vmatprep.subr.mxu0 0.0
      %2486 = vmatpush2.msra.mxu0 0.0
      %2487 = vmatprep.subr.mxu0 0.0
      %2488 = vmatpush2.msra.mxu0 0.0
      %2489 = vmatprep.subr.mxu0 0.0
      %2490 = vmatpush2.msra.mxu0 0.0
      %2491 = vmatprep.subr.mxu0 0.0
      %2492 = vmatpush2.msra.mxu0 0.0
      %2493 = vmatprep.subr.mxu0 0.0
      %2494 = vmatpush2.msra.mxu0 0.0
      %2495 = vmatprep.subr.mxu0 0.0
      %2496 = vmatpush2.msra.mxu0 0.0
      %2497 = vmatprep.mubr.f32.mxu0 0.0
      %2498 = vmatmul.mubr.f32.gmra.mxu0 %v2428
      %v2499 = vpop.f32.mrf.mxu0
      %v2500 = vadd.f32 0.0, %v2499
      %v2501 = vpop.f32.mrf.mxu0
      %v2502 = vadd.f32 0.0, %v2501
      %2503 = vmatprep.mubr.f32.mxu0 0.0
      %2504 = vmatmul.mubr.f32.gmra.mxu0 %v2431
      %v2505 = vpop.f32.mrf.mxu0
      %v2506 = vadd.f32 0.0, %v2505
      %v2507 = vpop.f32.mrf.mxu0
      %v2508 = vadd.f32 0.0, %v2507
      %2509 = vdwg.mxu0
      %v2510 = vadd.f32 %v2388, %v2500
      %v2511 = vadd.f32 %v2389, %v2502
      %v2512 = vadd.f32 %v2390, %v2506
      %v2513 = vadd.f32 %v2391, %v2508
      %2514 = vrot.lane.b32.xlu0 %v1690, 112
      %v2515 = vpop.permute.xlu0 %2514
      %2516 = vrot.lane.b32.xlu0 %v1692, 112
      %v2517 = vpop.permute.xlu0 %2516
      %2518 = vrot.lane.b32.xlu0 %v1694, 112
      %v2519 = vpop.permute.xlu0 %2518
      %2520 = vrot.lane.b32.xlu0 %v1696, 112
      %v2521 = vpop.permute.xlu0 %2520
      %2522 = vrot.lane.b32.xlu0 %v1691, 112
      %v2523 = vpop.permute.xlu0 %2522
      %2524 = vrot.lane.b32.xlu0 %v1693, 112
      %v2525 = vpop.permute.xlu0 %2524
      %2526 = vrot.lane.b32.xlu0 %v1695, 112
      %v2527 = vpop.permute.xlu0 %2526
      %2528 = vrot.lane.b32.xlu0 %v1697, 112
      %v2529 = vpop.permute.xlu0 %2528
      %v2530 = vsel %vm1382, %v2515, %v2523
      %v2531 = vsel %vm1382, %v2517, %v2525
      %v2532 = vsel %vm1382, %v2519, %v2527
      %v2533 = vsel %vm1382, %v2521, %v2529
      %v2534 = vsel %vm1382, %v2523, %v2515
      %v2535 = vsel %vm1382, %v2525, %v2517
      %v2536 = vsel %vm1382, %v2527, %v2519
      %v2537 = vsel %vm1382, %v2529, %v2521
      %v2538 = vmul.f32 %v2530, %v1391
      %v2539 = vmul.f32 %v2534, %v1395
      %v2540 = vmul.f32 %v2531, %v1391
      %v2541 = vmul.f32 %v2535, %v1395
      %v2542 = vmul.f32 %v2532, %v1391
      %v2543 = vmul.f32 %v2536, %v1395
      %v2544 = vmul.f32 %v2533, %v1391
      %v2545 = vmul.f32 %v2537, %v1395
      %s2546 = scalar_lea.vmem %s4, 112
      %v2547 = vld [vmem:[%s2546] sm:$0xff]
      %v2548 = vld [vmem:[%s2546 + $0x8] sm:$0xff]
      %v2550 = vsel %vm1769, %v2547, 0
      %v2553 = vsel %vm1769, %v2548, 0
      %2555 = vmatprep.subr.mxu0 0.0
      %2556 = vmatpush1.msra.mxu0 0.0
      %2557 = vmatprep.subr.mxu0 0.0
      %2558 = vmatpush1.msra.mxu0 0.0
      %2559 = vmatprep.subr.mxu0 0.0
      %2560 = vmatpush1.msra.mxu0 0.0
      %2561 = vmatprep.subr.mxu0 0.0
      %2562 = vmatpush1.msra.mxu0 0.0
      %2563 = vmatprep.subr.mxu0 0.0
      %2564 = vmatpush1.msra.mxu0 0.0
      %2565 = vmatprep.subr.mxu0 0.0
      %2566 = vmatpush1.msra.mxu0 0.0
      %2567 = vmatprep.subr.mxu0 0.0
      %2568 = vmatpush1.msra.mxu0 0.0
      %2569 = vmatprep.subr.mxu0 0.0
      %2570 = vmatpush1.msra.mxu0 0.0
      %2571 = vmatprep.subr.mxu0 0.0
      %2572 = vmatpush1.msra.mxu0 0.0
      %2573 = vmatprep.subr.mxu0 0.0
      %2574 = vmatpush1.msra.mxu0 0.0
      %2575 = vmatprep.subr.mxu0 0.0
      %2576 = vmatpush1.msra.mxu0 0.0
      %2577 = vmatprep.subr.mxu0 0.0
      %2578 = vmatpush1.msra.mxu0 0.0
      %2579 = vmatprep.subr.mxu0 %v2545
      %2580 = vmatpush1.msra.mxu0 %v2544
      %2581 = vmatprep.subr.mxu0 %v2543
      %2582 = vmatpush1.msra.mxu0 %v2542
      %2583 = vmatprep.subr.mxu0 %v2541
      %2584 = vmatpush1.msra.mxu0 %v2540
      %2585 = vmatprep.subr.mxu0 %v2539
      %2586 = vmatpush1.msra.mxu0 %v2538
      %2587 = vmatprep.subr.mxu0 0.0
      %2588 = vmatpush2.msra.mxu0 0.0
      %2589 = vmatprep.subr.mxu0 0.0
      %2590 = vmatpush2.msra.mxu0 0.0
      %2591 = vmatprep.subr.mxu0 0.0
      %2592 = vmatpush2.msra.mxu0 0.0
      %2593 = vmatprep.subr.mxu0 0.0
      %2594 = vmatpush2.msra.mxu0 0.0
      %2595 = vmatprep.subr.mxu0 0.0
      %2596 = vmatpush2.msra.mxu0 0.0
      %2597 = vmatprep.subr.mxu0 0.0
      %2598 = vmatpush2.msra.mxu0 0.0
      %2599 = vmatprep.subr.mxu0 0.0
      %2600 = vmatpush2.msra.mxu0 0.0
      %2601 = vmatprep.subr.mxu0 0.0
      %2602 = vmatpush2.msra.mxu0 0.0
      %2603 = vmatprep.subr.mxu0 0.0
      %2604 = vmatpush2.msra.mxu0 0.0
      %2605 = vmatprep.subr.mxu0 0.0
      %2606 = vmatpush2.msra.mxu0 0.0
      %2607 = vmatprep.subr.mxu0 0.0
      %2608 = vmatpush2.msra.mxu0 0.0
      %2609 = vmatprep.subr.mxu0 0.0
      %2610 = vmatpush2.msra.mxu0 0.0
      %2611 = vmatprep.subr.mxu0 0.0
      %2612 = vmatpush2.msra.mxu0 0.0
      %2613 = vmatprep.subr.mxu0 0.0
      %2614 = vmatpush2.msra.mxu0 0.0
      %2615 = vmatprep.subr.mxu0 0.0
      %2616 = vmatpush2.msra.mxu0 0.0
      %2617 = vmatprep.subr.mxu0 0.0
      %2618 = vmatpush2.msra.mxu0 0.0
      %2619 = vmatprep.mubr.f32.mxu0 0.0
      %2620 = vmatmul.mubr.f32.gmra.mxu0 %v2550
      %v2621 = vpop.f32.mrf.mxu0
      %v2622 = vadd.f32 0.0, %v2621
      %v2623 = vpop.f32.mrf.mxu0
      %v2624 = vadd.f32 0.0, %v2623
      %2625 = vmatprep.mubr.f32.mxu0 0.0
      %2626 = vmatmul.mubr.f32.gmra.mxu0 %v2553
      %v2627 = vpop.f32.mrf.mxu0
      %v2628 = vadd.f32 0.0, %v2627
      %v2629 = vpop.f32.mrf.mxu0
      %v2630 = vadd.f32 0.0, %v2629
      %2631 = vdwg.mxu0
      %v2632 = vadd.f32 %v2510, %v2622
      %v2633 = vadd.f32 %v2511, %v2624
      %v2634 = vadd.f32 %v2512, %v2628
      %v2635 = vadd.f32 %v2513, %v2630
      %2636 = vrot.lane.b32.xlu0 %v1690, 111
      %v2637 = vpop.permute.xlu0 %2636
      %2638 = vrot.lane.b32.xlu0 %v1692, 111
      %v2639 = vpop.permute.xlu0 %2638
      %2640 = vrot.lane.b32.xlu0 %v1694, 111
      %v2641 = vpop.permute.xlu0 %2640
      %2642 = vrot.lane.b32.xlu0 %v1696, 111
      %v2643 = vpop.permute.xlu0 %2642
      %2644 = vrot.lane.b32.xlu0 %v1691, 111
      %v2645 = vpop.permute.xlu0 %2644
      %2646 = vrot.lane.b32.xlu0 %v1693, 111
      %v2647 = vpop.permute.xlu0 %2646
      %2648 = vrot.lane.b32.xlu0 %v1695, 111
      %v2649 = vpop.permute.xlu0 %2648
      %2650 = vrot.lane.b32.xlu0 %v1697, 111
      %v2651 = vpop.permute.xlu0 %2650
      %v2652 = vsel %vm1524, %v2637, %v2645
      %v2653 = vsel %vm1524, %v2639, %v2647
      %v2654 = vsel %vm1524, %v2641, %v2649
      %v2655 = vsel %vm1524, %v2643, %v2651
      %v2656 = vsel %vm1524, %v2645, %v2637
      %v2657 = vsel %vm1524, %v2647, %v2639
      %v2658 = vsel %vm1524, %v2649, %v2641
      %v2659 = vsel %vm1524, %v2651, %v2643
      %v2660 = vmul.f32 %v2652, %v1533
      %v2661 = vmul.f32 %v2656, %v1537
      %v2662 = vmul.f32 %v2653, %v1533
      %v2663 = vmul.f32 %v2657, %v1537
      %v2664 = vmul.f32 %v2654, %v1533
      %v2665 = vmul.f32 %v2658, %v1537
      %v2666 = vmul.f32 %v2655, %v1533
      %v2667 = vmul.f32 %v2659, %v1537
      %s2668 = scalar_lea.vmem %s4, 128
      %v2669 = vld [vmem:[%s2668] sm:$0xff]
      %v2670 = vld [vmem:[%s2668 + $0x8] sm:$0xff]
      %v2672 = vsel %vm1769, %v2669, 0
      %v2675 = vsel %vm1769, %v2670, 0
      %2677 = vmatprep.subr.mxu0 0.0
      %2678 = vmatpush1.msra.mxu0 0.0
      %2679 = vmatprep.subr.mxu0 0.0
      %2680 = vmatpush1.msra.mxu0 0.0
      %2681 = vmatprep.subr.mxu0 0.0
      %2682 = vmatpush1.msra.mxu0 0.0
      %2683 = vmatprep.subr.mxu0 0.0
      %2684 = vmatpush1.msra.mxu0 0.0
      %2685 = vmatprep.subr.mxu0 0.0
      %2686 = vmatpush1.msra.mxu0 0.0
      %2687 = vmatprep.subr.mxu0 0.0
      %2688 = vmatpush1.msra.mxu0 0.0
      %2689 = vmatprep.subr.mxu0 0.0
      %2690 = vmatpush1.msra.mxu0 0.0
      %2691 = vmatprep.subr.mxu0 0.0
      %2692 = vmatpush1.msra.mxu0 0.0
      %2693 = vmatprep.subr.mxu0 0.0
      %2694 = vmatpush1.msra.mxu0 0.0
      %2695 = vmatprep.subr.mxu0 0.0
      %2696 = vmatpush1.msra.mxu0 0.0
      %2697 = vmatprep.subr.mxu0 0.0
      %2698 = vmatpush1.msra.mxu0 0.0
      %2699 = vmatprep.subr.mxu0 0.0
      %2700 = vmatpush1.msra.mxu0 0.0
      %2701 = vmatprep.subr.mxu0 %v2667
      %2702 = vmatpush1.msra.mxu0 %v2666
      %2703 = vmatprep.subr.mxu0 %v2665
      %2704 = vmatpush1.msra.mxu0 %v2664
      %2705 = vmatprep.subr.mxu0 %v2663
      %2706 = vmatpush1.msra.mxu0 %v2662
      %2707 = vmatprep.subr.mxu0 %v2661
      %2708 = vmatpush1.msra.mxu0 %v2660
      %2709 = vmatprep.subr.mxu0 0.0
      %2710 = vmatpush2.msra.mxu0 0.0
      %2711 = vmatprep.subr.mxu0 0.0
      %2712 = vmatpush2.msra.mxu0 0.0
      %2713 = vmatprep.subr.mxu0 0.0
      %2714 = vmatpush2.msra.mxu0 0.0
      %2715 = vmatprep.subr.mxu0 0.0
      %2716 = vmatpush2.msra.mxu0 0.0
      %2717 = vmatprep.subr.mxu0 0.0
      %2718 = vmatpush2.msra.mxu0 0.0
      %2719 = vmatprep.subr.mxu0 0.0
      %2720 = vmatpush2.msra.mxu0 0.0
      %2721 = vmatprep.subr.mxu0 0.0
      %2722 = vmatpush2.msra.mxu0 0.0
      %2723 = vmatprep.subr.mxu0 0.0
      %2724 = vmatpush2.msra.mxu0 0.0
      %2725 = vmatprep.subr.mxu0 0.0
      %2726 = vmatpush2.msra.mxu0 0.0
      %2727 = vmatprep.subr.mxu0 0.0
      %2728 = vmatpush2.msra.mxu0 0.0
      %2729 = vmatprep.subr.mxu0 0.0
      %2730 = vmatpush2.msra.mxu0 0.0
      %2731 = vmatprep.subr.mxu0 0.0
      %2732 = vmatpush2.msra.mxu0 0.0
      %2733 = vmatprep.subr.mxu0 0.0
      %2734 = vmatpush2.msra.mxu0 0.0
      %2735 = vmatprep.subr.mxu0 0.0
      %2736 = vmatpush2.msra.mxu0 0.0
      %2737 = vmatprep.subr.mxu0 0.0
      %2738 = vmatpush2.msra.mxu0 0.0
      %2739 = vmatprep.subr.mxu0 0.0
      %2740 = vmatpush2.msra.mxu0 0.0
      %2741 = vmatprep.mubr.f32.mxu0 0.0
      %2742 = vmatmul.mubr.f32.gmra.mxu0 %v2672
      %v2743 = vpop.f32.mrf.mxu0
      %v2744 = vadd.f32 0.0, %v2743
      %v2745 = vpop.f32.mrf.mxu0
      %v2746 = vadd.f32 0.0, %v2745
      %2747 = vmatprep.mubr.f32.mxu0 0.0
      %2748 = vmatmul.mubr.f32.gmra.mxu0 %v2675
      %v2749 = vpop.f32.mrf.mxu0
      %v2750 = vadd.f32 0.0, %v2749
      %v2751 = vpop.f32.mrf.mxu0
      %v2752 = vadd.f32 0.0, %v2751
      %2753 = vdwg.mxu0
      %v2754 = vadd.f32 %v2632, %v2744
      %v2755 = vadd.f32 %v2633, %v2746
      %v2756 = vadd.f32 %v2634, %v2750
      %v2757 = vadd.f32 %v2635, %v2752
      %2759 = vset.pattern.permute.xlu0 0
      %2760 = vperm.xlu0 %2759, %v1698
      %v2761 = vpop.permute.xlu0 %2760
      %2764 = vset.pattern.permute.xlu0 0
      %2765 = vperm.xlu0 %2764, %v1699
      %v2766 = vpop.permute.xlu0 %2765
      %v2768 = vadd.f32 %v2754, %v2761
      %v2769 = vadd.f32 %v2755, %v2761
      %v2770 = vadd.f32 %v2756, %v2766
      %v2771 = vadd.f32 %v2757, %v2766
      %v2772 = vmax.f32 %v2768, 0.0
      %v2773 = vmax.f32 %v2769, 0.0
      %v2774 = vmax.f32 %v2770, 0.0
      %v2775 = vmax.f32 %v2771, 0.0
      %v2776 = vld [vmem:[%s6] sm:$0xff]
      %v2777 = vld [vmem:[%s6 + $0x8] sm:$0xff]
      %v2778 = vld [vmem:[%s6 + $0x10] sm:$0xff]
      %v2779 = vld [vmem:[%s6 + $0x18] sm:$0xff]
      %vm2780 = vcmask 130048
      %v2782 = vsel %vm2780, %v2776, 0
      %v2785 = vsel %vm2780, %v2777, 0
      %v2788 = vsel %vm2780, %v2778, 0
      %v2791 = vsel %vm2780, %v2779, 0
      %2793 = vmatprep.subr.mxu0 0.0
      %2794 = vmatpush1.msra.mxu0 0.0
      %2795 = vmatprep.subr.mxu0 0.0
      %2796 = vmatpush1.msra.mxu0 0.0
      %2797 = vmatprep.subr.mxu0 0.0
      %2798 = vmatpush1.msra.mxu0 0.0
      %2799 = vmatprep.subr.mxu0 0.0
      %2800 = vmatpush1.msra.mxu0 0.0
      %2801 = vmatprep.subr.mxu0 0.0
      %2802 = vmatpush1.msra.mxu0 0.0
      %2803 = vmatprep.subr.mxu0 0.0
      %2804 = vmatpush1.msra.mxu0 0.0
      %2805 = vmatprep.subr.mxu0 0.0
      %2806 = vmatpush1.msra.mxu0 0.0
      %2807 = vmatprep.subr.mxu0 0.0
      %2808 = vmatpush1.msra.mxu0 0.0
      %2809 = vmatprep.subr.mxu0 0.0
      %2810 = vmatpush1.msra.mxu0 0.0
      %2811 = vmatprep.subr.mxu0 0.0
      %2812 = vmatpush1.msra.mxu0 0.0
      %2813 = vmatprep.subr.mxu0 0.0
      %2814 = vmatpush1.msra.mxu0 0.0
      %2815 = vmatprep.subr.mxu0 0.0
      %2816 = vmatpush1.msra.mxu0 0.0
      %2817 = vmatprep.subr.mxu0 0.0
      %2818 = vmatpush1.msra.mxu0 0.0
      %2819 = vmatprep.subr.mxu0 0.0
      %2820 = vmatpush1.msra.mxu0 0.0
      %2821 = vmatprep.subr.mxu0 %v2775
      %2822 = vmatpush1.msra.mxu0 %v2774
      %2823 = vmatprep.subr.mxu0 %v2773
      %2824 = vmatpush1.msra.mxu0 %v2772
      %2825 = vmatprep.subr.mxu0 0.0
      %2826 = vmatpush2.msra.mxu0 0.0
      %2827 = vmatprep.subr.mxu0 0.0
      %2828 = vmatpush2.msra.mxu0 0.0
      %2829 = vmatprep.subr.mxu0 0.0
      %2830 = vmatpush2.msra.mxu0 0.0
      %2831 = vmatprep.subr.mxu0 0.0
      %2832 = vmatpush2.msra.mxu0 0.0
      %2833 = vmatprep.subr.mxu0 0.0
      %2834 = vmatpush2.msra.mxu0 0.0
      %2835 = vmatprep.subr.mxu0 0.0
      %2836 = vmatpush2.msra.mxu0 0.0
      %2837 = vmatprep.subr.mxu0 0.0
      %2838 = vmatpush2.msra.mxu0 0.0
      %2839 = vmatprep.subr.mxu0 0.0
      %2840 = vmatpush2.msra.mxu0 0.0
      %2841 = vmatprep.subr.mxu0 0.0
      %2842 = vmatpush2.msra.mxu0 0.0
      %2843 = vmatprep.subr.mxu0 0.0
      %2844 = vmatpush2.msra.mxu0 0.0
      %2845 = vmatprep.subr.mxu0 0.0
      %2846 = vmatpush2.msra.mxu0 0.0
      %2847 = vmatprep.subr.mxu0 0.0
      %2848 = vmatpush2.msra.mxu0 0.0
      %2849 = vmatprep.subr.mxu0 0.0
      %2850 = vmatpush2.msra.mxu0 0.0
      %2851 = vmatprep.subr.mxu0 0.0
      %2852 = vmatpush2.msra.mxu0 0.0
      %2853 = vmatprep.subr.mxu0 0.0
      %2854 = vmatpush2.msra.mxu0 0.0
      %2855 = vmatprep.subr.mxu0 0.0
      %2856 = vmatpush2.msra.mxu0 0.0
      %2857 = vmatprep.mubr.f32.mxu0 0.0
      %2858 = vmatmul.mubr.f32.gmra.mxu0 %v2782
      %v2859 = vpop.f32.mrf.mxu0
      %v2860 = vadd.f32 0.0, %v2859
      %v2861 = vpop.f32.mrf.mxu0
      %v2862 = vadd.f32 0.0, %v2861
      %2863 = vmatprep.mubr.f32.mxu0 0.0
      %2864 = vmatmul.mubr.f32.gmra.mxu0 %v2785
      %v2865 = vpop.f32.mrf.mxu0
      %v2866 = vadd.f32 0.0, %v2865
      %v2867 = vpop.f32.mrf.mxu0
      %v2868 = vadd.f32 0.0, %v2867
      %2869 = vmatprep.mubr.f32.mxu0 0.0
      %2870 = vmatmul.mubr.f32.gmra.mxu0 %v2788
      %v2871 = vpop.f32.mrf.mxu0
      %v2872 = vadd.f32 0.0, %v2871
      %v2873 = vpop.f32.mrf.mxu0
      %v2874 = vadd.f32 0.0, %v2873
      %2875 = vmatprep.mubr.f32.mxu0 0.0
      %2876 = vmatmul.mubr.f32.gmra.mxu0 %v2791
      %v2877 = vpop.f32.mrf.mxu0
      %v2878 = vadd.f32 0.0, %v2877
      %v2879 = vpop.f32.mrf.mxu0
      %v2880 = vadd.f32 0.0, %v2879
      %2881 = vdwg.mxu0
      %v2882 = vadd.f32 %v1682, %v2860
      %v2883 = vadd.f32 %v1683, %v2862
      %v2884 = vadd.f32 %v1684, %v2866
      %v2885 = vadd.f32 %v1685, %v2868
      %v2886 = vadd.f32 %v1686, %v2872
      %v2887 = vadd.f32 %v1687, %v2874
      %v2888 = vadd.f32 %v1688, %v2878
      %v2889 = vadd.f32 %v1689, %v2880
      %v2890 = vld [vmem:[%s7] sm:$0xff]
      %v2891 = vld [vmem:[%s7 + $0x8] sm:$0xff]
      %v2892 = vld [vmem:[%s7 + $0x10] sm:$0xff]
      %v2893 = vld [vmem:[%s7 + $0x18] sm:$0xff]
      %2895 = vset.pattern.permute.xlu0 0
      %2896 = vperm.xlu0 %2895, %v2890
      %v2897 = vpop.permute.xlu0 %2896
      %2900 = vset.pattern.permute.xlu0 0
      %2901 = vperm.xlu0 %2900, %v2891
      %v2902 = vpop.permute.xlu0 %2901
      %2905 = vset.pattern.permute.xlu0 0
      %2906 = vperm.xlu0 %2905, %v2892
      %v2907 = vpop.permute.xlu0 %2906
      %2910 = vset.pattern.permute.xlu0 0
      %2911 = vperm.xlu0 %2910, %v2893
      %v2912 = vpop.permute.xlu0 %2911
      %v2914 = vadd.f32 %v2882, %v2897
      %v2915 = vadd.f32 %v2883, %v2897
      %v2916 = vadd.f32 %v2884, %v2902
      %v2917 = vadd.f32 %v2885, %v2902
      %v2918 = vadd.f32 %v2886, %v2907
      %v2919 = vadd.f32 %v2887, %v2907
      %v2920 = vadd.f32 %v2888, %v2912
      %v2921 = vadd.f32 %v2889, %v2912
      %v2922 = vmax.f32 %v2914, 0.0
      %v2923 = vmax.f32 %v2915, 0.0
      %v2924 = vmax.f32 %v2916, 0.0
      %v2925 = vmax.f32 %v2917, 0.0
      %v2926 = vmax.f32 %v2918, 0.0
      %v2927 = vmax.f32 %v2919, 0.0
      %v2928 = vmax.f32 %v2920, 0.0
      %v2929 = vmax.f32 %v2921, 0.0
      %s2930 = scalar_lea.vmem %s5, 16
      %v2931 = vld [vmem:[%s2930] sm:$0xff]
      %v2932 = vld [vmem:[%s2930 + $0x8] sm:$0xff]
      %2933 = vrot.lane.b32.xlu0 %v2922, 17
      %v2934 = vpop.permute.xlu0 %2933
      %2935 = vrot.lane.b32.xlu0 %v2924, 17
      %v2936 = vpop.permute.xlu0 %2935
      %2937 = vrot.lane.b32.xlu0 %v2926, 17
      %v2938 = vpop.permute.xlu0 %2937
      %2939 = vrot.lane.b32.xlu0 %v2928, 17
      %v2940 = vpop.permute.xlu0 %2939
      %2941 = vrot.lane.b32.xlu0 %v2923, 17
      %v2942 = vpop.permute.xlu0 %2941
      %2943 = vrot.lane.b32.xlu0 %v2925, 17
      %v2944 = vpop.permute.xlu0 %2943
      %2945 = vrot.lane.b32.xlu0 %v2927, 17
      %v2946 = vpop.permute.xlu0 %2945
      %2947 = vrot.lane.b32.xlu0 %v2929, 17
      %v2948 = vpop.permute.xlu0 %2947
      %v2949 = vsel %vm428, %v2934, %v2942
      %v2950 = vsel %vm428, %v2936, %v2944
      %v2951 = vsel %vm428, %v2938, %v2946
      %v2952 = vsel %vm428, %v2940, %v2948
      %v2953 = vsel %vm428, %v2942, %v2934
      %v2954 = vsel %vm428, %v2944, %v2936
      %v2955 = vsel %vm428, %v2946, %v2938
      %v2956 = vsel %vm428, %v2948, %v2940
      %v2957 = vmul.f32 %v2953, %v436
      %v2958 = vmul.f32 %v2949, %v440
      %v2959 = vmul.f32 %v2954, %v436
      %v2960 = vmul.f32 %v2950, %v440
      %v2961 = vmul.f32 %v2955, %v436
      %v2962 = vmul.f32 %v2951, %v440
      %v2963 = vmul.f32 %v2956, %v436
      %v2964 = vmul.f32 %v2952, %v440
      %s2965 = scalar_lea.vmem %s4, 144
      %v2966 = vld [vmem:[%s2965] sm:$0xff]
      %v2967 = vld [vmem:[%s2965 + $0x8] sm:$0xff]
      %2968 = vrot.lane.b32.xlu0 %v2922, 16
      %v2969 = vpop.permute.xlu0 %2968
      %2970 = vrot.lane.b32.xlu0 %v2924, 16
      %v2971 = vpop.permute.xlu0 %2970
      %2972 = vrot.lane.b32.xlu0 %v2926, 16
      %v2973 = vpop.permute.xlu0 %2972
      %2974 = vrot.lane.b32.xlu0 %v2928, 16
      %v2975 = vpop.permute.xlu0 %2974
      %2976 = vrot.lane.b32.xlu0 %v2923, 16
      %v2977 = vpop.permute.xlu0 %2976
      %2978 = vrot.lane.b32.xlu0 %v2925, 16
      %v2979 = vpop.permute.xlu0 %2978
      %2980 = vrot.lane.b32.xlu0 %v2927, 16
      %v2981 = vpop.permute.xlu0 %2980
      %2982 = vrot.lane.b32.xlu0 %v2929, 16
      %v2983 = vpop.permute.xlu0 %2982
      %v2984 = vsel %vm453, %v2969, %v2977
      %v2985 = vsel %vm453, %v2971, %v2979
      %v2986 = vsel %vm453, %v2973, %v2981
      %v2987 = vsel %vm453, %v2975, %v2983
      %v2988 = vsel %vm453, %v2977, %v2969
      %v2989 = vsel %vm453, %v2979, %v2971
      %v2990 = vsel %vm453, %v2981, %v2973
      %v2991 = vsel %vm453, %v2983, %v2975
      %v2992 = vmul.f32 %v2988, %v462
      %v2993 = vmul.f32 %v2984, %v466
      %v2994 = vmul.f32 %v2989, %v462
      %v2995 = vmul.f32 %v2985, %v466
      %v2996 = vmul.f32 %v2990, %v462
      %v2997 = vmul.f32 %v2986, %v466
      %v2998 = vmul.f32 %v2991, %v462
      %v2999 = vmul.f32 %v2987, %v466
      %s3000 = scalar_lea.vmem %s4, 160
      %v3001 = vld [vmem:[%s3000] sm:$0xff]
      %v3002 = vld [vmem:[%s3000 + $0x8] sm:$0xff]
      %v3004 = vsel %vm1769, %v3001, 0
      %v3007 = vsel %vm1769, %v3002, 0
      %3009 = vmatprep.subr.mxu0 0.0
      %3010 = vmatpush1.msra.mxu0 0.0
      %3011 = vmatprep.subr.mxu0 0.0
      %3012 = vmatpush1.msra.mxu0 0.0
      %3013 = vmatprep.subr.mxu0 0.0
      %3014 = vmatpush1.msra.mxu0 0.0
      %3015 = vmatprep.subr.mxu0 0.0
      %3016 = vmatpush1.msra.mxu0 0.0
      %3017 = vmatprep.subr.mxu0 0.0
      %3018 = vmatpush1.msra.mxu0 0.0
      %3019 = vmatprep.subr.mxu0 0.0
      %3020 = vmatpush1.msra.mxu0 0.0
      %3021 = vmatprep.subr.mxu0 0.0
      %3022 = vmatpush1.msra.mxu0 0.0
      %3023 = vmatprep.subr.mxu0 0.0
      %3024 = vmatpush1.msra.mxu0 0.0
      %3025 = vmatprep.subr.mxu0 0.0
      %3026 = vmatpush1.msra.mxu0 0.0
      %3027 = vmatprep.subr.mxu0 0.0
      %3028 = vmatpush1.msra.mxu0 0.0
      %3029 = vmatprep.subr.mxu0 0.0
      %3030 = vmatpush1.msra.mxu0 0.0
      %3031 = vmatprep.subr.mxu0 0.0
      %3032 = vmatpush1.msra.mxu0 0.0
      %3033 = vmatprep.subr.mxu0 %v2999
      %3034 = vmatpush1.msra.mxu0 %v2998
      %3035 = vmatprep.subr.mxu0 %v2997
      %3036 = vmatpush1.msra.mxu0 %v2996
      %3037 = vmatprep.subr.mxu0 %v2995
      %3038 = vmatpush1.msra.mxu0 %v2994
      %3039 = vmatprep.subr.mxu0 %v2993
      %3040 = vmatpush1.msra.mxu0 %v2992
      %3041 = vmatprep.subr.mxu0 0.0
      %3042 = vmatpush2.msra.mxu0 0.0
      %3043 = vmatprep.subr.mxu0 0.0
      %3044 = vmatpush2.msra.mxu0 0.0
      %3045 = vmatprep.subr.mxu0 0.0
      %3046 = vmatpush2.msra.mxu0 0.0
      %3047 = vmatprep.subr.mxu0 0.0
      %3048 = vmatpush2.msra.mxu0 0.0
      %3049 = vmatprep.subr.mxu0 0.0
      %3050 = vmatpush2.msra.mxu0 0.0
      %3051 = vmatprep.subr.mxu0 0.0
      %3052 = vmatpush2.msra.mxu0 0.0
      %3053 = vmatprep.subr.mxu0 0.0
      %3054 = vmatpush2.msra.mxu0 0.0
      %3055 = vmatprep.subr.mxu0 0.0
      %3056 = vmatpush2.msra.mxu0 0.0
      %3057 = vmatprep.subr.mxu0 0.0
      %3058 = vmatpush2.msra.mxu0 0.0
      %3059 = vmatprep.subr.mxu0 0.0
      %3060 = vmatpush2.msra.mxu0 0.0
      %3061 = vmatprep.subr.mxu0 0.0
      %3062 = vmatpush2.msra.mxu0 0.0
      %3063 = vmatprep.subr.mxu0 0.0
      %3064 = vmatpush2.msra.mxu0 0.0
      %3065 = vmatprep.subr.mxu0 0.0
      %3066 = vmatpush2.msra.mxu0 0.0
      %3067 = vmatprep.subr.mxu0 0.0
      %3068 = vmatpush2.msra.mxu0 0.0
      %3069 = vmatprep.subr.mxu0 0.0
      %3070 = vmatpush2.msra.mxu0 0.0
      %3071 = vmatprep.subr.mxu0 0.0
      %3072 = vmatpush2.msra.mxu0 0.0
      %3073 = vmatprep.mubr.f32.mxu0 0.0
      %3074 = vmatmul.mubr.f32.gmra.mxu0 %v3004
      %v3075 = vpop.f32.mrf.mxu0
      %v3076 = vadd.f32 0.0, %v3075
      %v3077 = vpop.f32.mrf.mxu0
      %v3078 = vadd.f32 0.0, %v3077
      %3079 = vmatprep.mubr.f32.mxu0 0.0
      %3080 = vmatmul.mubr.f32.gmra.mxu0 %v3007
      %v3081 = vpop.f32.mrf.mxu0
      %v3082 = vadd.f32 0.0, %v3081
      %v3083 = vpop.f32.mrf.mxu0
      %v3084 = vadd.f32 0.0, %v3083
      %3085 = vdwg.mxu0
      %v3087 = vsel %vm1769, %v2966, 0
      %v3090 = vsel %vm1769, %v2967, 0
      %3092 = vmatprep.subr.mxu0 0.0
      %3093 = vmatpush1.msra.mxu0 0.0
      %3094 = vmatprep.subr.mxu0 0.0
      %3095 = vmatpush1.msra.mxu0 0.0
      %3096 = vmatprep.subr.mxu0 0.0
      %3097 = vmatpush1.msra.mxu0 0.0
      %3098 = vmatprep.subr.mxu0 0.0
      %3099 = vmatpush1.msra.mxu0 0.0
      %3100 = vmatprep.subr.mxu0 0.0
      %3101 = vmatpush1.msra.mxu0 0.0
      %3102 = vmatprep.subr.mxu0 0.0
      %3103 = vmatpush1.msra.mxu0 0.0
      %3104 = vmatprep.subr.mxu0 0.0
      %3105 = vmatpush1.msra.mxu0 0.0
      %3106 = vmatprep.subr.mxu0 0.0
      %3107 = vmatpush1.msra.mxu0 0.0
      %3108 = vmatprep.subr.mxu0 0.0
      %3109 = vmatpush1.msra.mxu0 0.0
      %3110 = vmatprep.subr.mxu0 0.0
      %3111 = vmatpush1.msra.mxu0 0.0
      %3112 = vmatprep.subr.mxu0 0.0
      %3113 = vmatpush1.msra.mxu0 0.0
      %3114 = vmatprep.subr.mxu0 0.0
      %3115 = vmatpush1.msra.mxu0 0.0
      %3116 = vmatprep.subr.mxu0 %v2964
      %3117 = vmatpush1.msra.mxu0 %v2963
      %3118 = vmatprep.subr.mxu0 %v2962
      %3119 = vmatpush1.msra.mxu0 %v2961
      %3120 = vmatprep.subr.mxu0 %v2960
      %3121 = vmatpush1.msra.mxu0 %v2959
      %3122 = vmatprep.subr.mxu0 %v2958
      %3123 = vmatpush1.msra.mxu0 %v2957
      %3124 = vmatprep.subr.mxu0 0.0
      %3125 = vmatpush2.msra.mxu0 0.0
      %3126 = vmatprep.subr.mxu0 0.0
      %3127 = vmatpush2.msra.mxu0 0.0
      %3128 = vmatprep.subr.mxu0 0.0
      %3129 = vmatpush2.msra.mxu0 0.0
      %3130 = vmatprep.subr.mxu0 0.0
      %3131 = vmatpush2.msra.mxu0 0.0
      %3132 = vmatprep.subr.mxu0 0.0
      %3133 = vmatpush2.msra.mxu0 0.0
      %3134 = vmatprep.subr.mxu0 0.0
      %3135 = vmatpush2.msra.mxu0 0.0
      %3136 = vmatprep.subr.mxu0 0.0
      %3137 = vmatpush2.msra.mxu0 0.0
      %3138 = vmatprep.subr.mxu0 0.0
      %3139 = vmatpush2.msra.mxu0 0.0
      %3140 = vmatprep.subr.mxu0 0.0
      %3141 = vmatpush2.msra.mxu0 0.0
      %3142 = vmatprep.subr.mxu0 0.0
      %3143 = vmatpush2.msra.mxu0 0.0
      %3144 = vmatprep.subr.mxu0 0.0
      %3145 = vmatpush2.msra.mxu0 0.0
      %3146 = vmatprep.subr.mxu0 0.0
      %3147 = vmatpush2.msra.mxu0 0.0
      %3148 = vmatprep.subr.mxu0 0.0
      %3149 = vmatpush2.msra.mxu0 0.0
      %3150 = vmatprep.subr.mxu0 0.0
      %3151 = vmatpush2.msra.mxu0 0.0
      %3152 = vmatprep.subr.mxu0 0.0
      %3153 = vmatpush2.msra.mxu0 0.0
      %3154 = vmatprep.subr.mxu0 0.0
      %3155 = vmatpush2.msra.mxu0 0.0
      %3156 = vmatprep.mubr.f32.mxu0 0.0
      %3157 = vmatmul.mubr.f32.gmra.mxu0 %v3087
      %v3158 = vpop.f32.mrf.mxu0
      %v3159 = vadd.f32 %v3076, %v3158
      %v3160 = vpop.f32.mrf.mxu0
      %v3161 = vadd.f32 %v3078, %v3160
      %3162 = vmatprep.mubr.f32.mxu0 0.0
      %3163 = vmatmul.mubr.f32.gmra.mxu0 %v3090
      %v3164 = vpop.f32.mrf.mxu0
      %v3165 = vadd.f32 %v3082, %v3164
      %v3166 = vpop.f32.mrf.mxu0
      %v3167 = vadd.f32 %v3084, %v3166
      %3168 = vdwg.mxu0
      %3169 = vrot.lane.b32.xlu0 %v2922, 15
      %v3170 = vpop.permute.xlu0 %3169
      %3171 = vrot.lane.b32.xlu0 %v2924, 15
      %v3172 = vpop.permute.xlu0 %3171
      %3173 = vrot.lane.b32.xlu0 %v2926, 15
      %v3174 = vpop.permute.xlu0 %3173
      %3175 = vrot.lane.b32.xlu0 %v2928, 15
      %v3176 = vpop.permute.xlu0 %3175
      %3177 = vrot.lane.b32.xlu0 %v2923, 15
      %v3178 = vpop.permute.xlu0 %3177
      %3179 = vrot.lane.b32.xlu0 %v2925, 15
      %v3180 = vpop.permute.xlu0 %3179
      %3181 = vrot.lane.b32.xlu0 %v2927, 15
      %v3182 = vpop.permute.xlu0 %3181
      %3183 = vrot.lane.b32.xlu0 %v2929, 15
      %v3184 = vpop.permute.xlu0 %3183
      %v3185 = vsel %vm696, %v3170, %v3178
      %v3186 = vsel %vm696, %v3172, %v3180
      %v3187 = vsel %vm696, %v3174, %v3182
      %v3188 = vsel %vm696, %v3176, %v3184
      %v3189 = vsel %vm696, %v3178, %v3170
      %v3190 = vsel %vm696, %v3180, %v3172
      %v3191 = vsel %vm696, %v3182, %v3174
      %v3192 = vsel %vm696, %v3184, %v3176
      %v3193 = vmul.f32 %v3189, %v705
      %v3194 = vmul.f32 %v3185, %v709
      %v3195 = vmul.f32 %v3190, %v705
      %v3196 = vmul.f32 %v3186, %v709
      %v3197 = vmul.f32 %v3191, %v705
      %v3198 = vmul.f32 %v3187, %v709
      %v3199 = vmul.f32 %v3192, %v705
      %v3200 = vmul.f32 %v3188, %v709
      %s3201 = scalar_lea.vmem %s4, 176
      %v3202 = vld [vmem:[%s3201] sm:$0xff]
      %v3203 = vld [vmem:[%s3201 + $0x8] sm:$0xff]
      %v3205 = vsel %vm1769, %v3202, 0
      %v3208 = vsel %vm1769, %v3203, 0
      %3210 = vmatprep.subr.mxu0 0.0
      %3211 = vmatpush1.msra.mxu0 0.0
      %3212 = vmatprep.subr.mxu0 0.0
      %3213 = vmatpush1.msra.mxu0 0.0
      %3214 = vmatprep.subr.mxu0 0.0
      %3215 = vmatpush1.msra.mxu0 0.0
      %3216 = vmatprep.subr.mxu0 0.0
      %3217 = vmatpush1.msra.mxu0 0.0
      %3218 = vmatprep.subr.mxu0 0.0
      %3219 = vmatpush1.msra.mxu0 0.0
      %3220 = vmatprep.subr.mxu0 0.0
      %3221 = vmatpush1.msra.mxu0 0.0
      %3222 = vmatprep.subr.mxu0 0.0
      %3223 = vmatpush1.msra.mxu0 0.0
      %3224 = vmatprep.subr.mxu0 0.0
      %3225 = vmatpush1.msra.mxu0 0.0
      %3226 = vmatprep.subr.mxu0 0.0
      %3227 = vmatpush1.msra.mxu0 0.0
      %3228 = vmatprep.subr.mxu0 0.0
      %3229 = vmatpush1.msra.mxu0 0.0
      %3230 = vmatprep.subr.mxu0 0.0
      %3231 = vmatpush1.msra.mxu0 0.0
      %3232 = vmatprep.subr.mxu0 0.0
      %3233 = vmatpush1.msra.mxu0 0.0
      %3234 = vmatprep.subr.mxu0 %v3200
      %3235 = vmatpush1.msra.mxu0 %v3199
      %3236 = vmatprep.subr.mxu0 %v3198
      %3237 = vmatpush1.msra.mxu0 %v3197
      %3238 = vmatprep.subr.mxu0 %v3196
      %3239 = vmatpush1.msra.mxu0 %v3195
      %3240 = vmatprep.subr.mxu0 %v3194
      %3241 = vmatpush1.msra.mxu0 %v3193
      %3242 = vmatprep.subr.mxu0 0.0
      %3243 = vmatpush2.msra.mxu0 0.0
      %3244 = vmatprep.subr.mxu0 0.0
      %3245 = vmatpush2.msra.mxu0 0.0
      %3246 = vmatprep.subr.mxu0 0.0
      %3247 = vmatpush2.msra.mxu0 0.0
      %3248 = vmatprep.subr.mxu0 0.0
      %3249 = vmatpush2.msra.mxu0 0.0
      %3250 = vmatprep.subr.mxu0 0.0
      %3251 = vmatpush2.msra.mxu0 0.0
      %3252 = vmatprep.subr.mxu0 0.0
      %3253 = vmatpush2.msra.mxu0 0.0
      %3254 = vmatprep.subr.mxu0 0.0
      %3255 = vmatpush2.msra.mxu0 0.0
      %3256 = vmatprep.subr.mxu0 0.0
      %3257 = vmatpush2.msra.mxu0 0.0
      %3258 = vmatprep.subr.mxu0 0.0
      %3259 = vmatpush2.msra.mxu0 0.0
      %3260 = vmatprep.subr.mxu0 0.0
      %3261 = vmatpush2.msra.mxu0 0.0
      %3262 = vmatprep.subr.mxu0 0.0
      %3263 = vmatpush2.msra.mxu0 0.0
      %3264 = vmatprep.subr.mxu0 0.0
      %3265 = vmatpush2.msra.mxu0 0.0
      %3266 = vmatprep.subr.mxu0 0.0
      %3267 = vmatpush2.msra.mxu0 0.0
      %3268 = vmatprep.subr.mxu0 0.0
      %3269 = vmatpush2.msra.mxu0 0.0
      %3270 = vmatprep.subr.mxu0 0.0
      %3271 = vmatpush2.msra.mxu0 0.0
      %3272 = vmatprep.subr.mxu0 0.0
      %3273 = vmatpush2.msra.mxu0 0.0
      %3274 = vmatprep.mubr.f32.mxu0 0.0
      %3275 = vmatmul.mubr.f32.gmra.mxu0 %v3205
      %v3276 = vpop.f32.mrf.mxu0
      %v3277 = vadd.f32 0.0, %v3276
      %v3278 = vpop.f32.mrf.mxu0
      %v3279 = vadd.f32 0.0, %v3278
      %3280 = vmatprep.mubr.f32.mxu0 0.0
      %3281 = vmatmul.mubr.f32.gmra.mxu0 %v3208
      %v3282 = vpop.f32.mrf.mxu0
      %v3283 = vadd.f32 0.0, %v3282
      %v3284 = vpop.f32.mrf.mxu0
      %v3285 = vadd.f32 0.0, %v3284
      %3286 = vdwg.mxu0
      %v3287 = vadd.f32 %v3159, %v3277
      %v3288 = vadd.f32 %v3161, %v3279
      %v3289 = vadd.f32 %v3165, %v3283
      %v3290 = vadd.f32 %v3167, %v3285
      %3291 = vrot.lane.b32.xlu0 %v2922, 1
      %v3292 = vpop.permute.xlu0 %3291
      %3293 = vrot.lane.b32.xlu0 %v2924, 1
      %v3294 = vpop.permute.xlu0 %3293
      %3295 = vrot.lane.b32.xlu0 %v2926, 1
      %v3296 = vpop.permute.xlu0 %3295
      %3297 = vrot.lane.b32.xlu0 %v2928, 1
      %v3298 = vpop.permute.xlu0 %3297
      %3299 = vrot.lane.b32.xlu0 %v2923, 1
      %v3300 = vpop.permute.xlu0 %3299
      %3301 = vrot.lane.b32.xlu0 %v2925, 1
      %v3302 = vpop.permute.xlu0 %3301
      %3303 = vrot.lane.b32.xlu0 %v2927, 1
      %v3304 = vpop.permute.xlu0 %3303
      %3305 = vrot.lane.b32.xlu0 %v2929, 1
      %v3306 = vpop.permute.xlu0 %3305
      %v3307 = vsel %vm838, %v3292, %v3300
      %v3308 = vsel %vm838, %v3294, %v3302
      %v3309 = vsel %vm838, %v3296, %v3304
      %v3310 = vsel %vm838, %v3298, %v3306
      %v3311 = vsel %vm838, %v3300, %v3292
      %v3312 = vsel %vm838, %v3302, %v3294
      %v3313 = vsel %vm838, %v3304, %v3296
      %v3314 = vsel %vm838, %v3306, %v3298
      %v3315 = vmul.f32 %v3311, %v847
      %v3316 = vmul.f32 %v3307, %v851
      %v3317 = vmul.f32 %v3312, %v847
      %v3318 = vmul.f32 %v3308, %v851
      %v3319 = vmul.f32 %v3313, %v847
      %v3320 = vmul.f32 %v3309, %v851
      %v3321 = vmul.f32 %v3314, %v847
      %v3322 = vmul.f32 %v3310, %v851
      %s3323 = scalar_lea.vmem %s4, 192
      %v3324 = vld [vmem:[%s3323] sm:$0xff]
      %v3325 = vld [vmem:[%s3323 + $0x8] sm:$0xff]
      %v3327 = vsel %vm1769, %v3324, 0
      %v3330 = vsel %vm1769, %v3325, 0
      %3332 = vmatprep.subr.mxu0 0.0
      %3333 = vmatpush1.msra.mxu0 0.0
      %3334 = vmatprep.subr.mxu0 0.0
      %3335 = vmatpush1.msra.mxu0 0.0
      %3336 = vmatprep.subr.mxu0 0.0
      %3337 = vmatpush1.msra.mxu0 0.0
      %3338 = vmatprep.subr.mxu0 0.0
      %3339 = vmatpush1.msra.mxu0 0.0
      %3340 = vmatprep.subr.mxu0 0.0
      %3341 = vmatpush1.msra.mxu0 0.0
      %3342 = vmatprep.subr.mxu0 0.0
      %3343 = vmatpush1.msra.mxu0 0.0
      %3344 = vmatprep.subr.mxu0 0.0
      %3345 = vmatpush1.msra.mxu0 0.0
      %3346 = vmatprep.subr.mxu0 0.0
      %3347 = vmatpush1.msra.mxu0 0.0
      %3348 = vmatprep.subr.mxu0 0.0
      %3349 = vmatpush1.msra.mxu0 0.0
      %3350 = vmatprep.subr.mxu0 0.0
      %3351 = vmatpush1.msra.mxu0 0.0
      %3352 = vmatprep.subr.mxu0 0.0
      %3353 = vmatpush1.msra.mxu0 0.0
      %3354 = vmatprep.subr.mxu0 0.0
      %3355 = vmatpush1.msra.mxu0 0.0
      %3356 = vmatprep.subr.mxu0 %v3322
      %3357 = vmatpush1.msra.mxu0 %v3321
      %3358 = vmatprep.subr.mxu0 %v3320
      %3359 = vmatpush1.msra.mxu0 %v3319
      %3360 = vmatprep.subr.mxu0 %v3318
      %3361 = vmatpush1.msra.mxu0 %v3317
      %3362 = vmatprep.subr.mxu0 %v3316
      %3363 = vmatpush1.msra.mxu0 %v3315
      %3364 = vmatprep.subr.mxu0 0.0
      %3365 = vmatpush2.msra.mxu0 0.0
      %3366 = vmatprep.subr.mxu0 0.0
      %3367 = vmatpush2.msra.mxu0 0.0
      %3368 = vmatprep.subr.mxu0 0.0
      %3369 = vmatpush2.msra.mxu0 0.0
      %3370 = vmatprep.subr.mxu0 0.0
      %3371 = vmatpush2.msra.mxu0 0.0
      %3372 = vmatprep.subr.mxu0 0.0
      %3373 = vmatpush2.msra.mxu0 0.0
      %3374 = vmatprep.subr.mxu0 0.0
      %3375 = vmatpush2.msra.mxu0 0.0
      %3376 = vmatprep.subr.mxu0 0.0
      %3377 = vmatpush2.msra.mxu0 0.0
      %3378 = vmatprep.subr.mxu0 0.0
      %3379 = vmatpush2.msra.mxu0 0.0
      %3380 = vmatprep.subr.mxu0 0.0
      %3381 = vmatpush2.msra.mxu0 0.0
      %3382 = vmatprep.subr.mxu0 0.0
      %3383 = vmatpush2.msra.mxu0 0.0
      %3384 = vmatprep.subr.mxu0 0.0
      %3385 = vmatpush2.msra.mxu0 0.0
      %3386 = vmatprep.subr.mxu0 0.0
      %3387 = vmatpush2.msra.mxu0 0.0
      %3388 = vmatprep.subr.mxu0 0.0
      %3389 = vmatpush2.msra.mxu0 0.0
      %3390 = vmatprep.subr.mxu0 0.0
      %3391 = vmatpush2.msra.mxu0 0.0
      %3392 = vmatprep.subr.mxu0 0.0
      %3393 = vmatpush2.msra.mxu0 0.0
      %3394 = vmatprep.subr.mxu0 0.0
      %3395 = vmatpush2.msra.mxu0 0.0
      %3396 = vmatprep.mubr.f32.mxu0 0.0
      %3397 = vmatmul.mubr.f32.gmra.mxu0 %v3327
      %v3398 = vpop.f32.mrf.mxu0
      %v3399 = vadd.f32 0.0, %v3398
      %v3400 = vpop.f32.mrf.mxu0
      %v3401 = vadd.f32 0.0, %v3400
      %3402 = vmatprep.mubr.f32.mxu0 0.0
      %3403 = vmatmul.mubr.f32.gmra.mxu0 %v3330
      %v3404 = vpop.f32.mrf.mxu0
      %v3405 = vadd.f32 0.0, %v3404
      %v3406 = vpop.f32.mrf.mxu0
      %v3407 = vadd.f32 0.0, %v3406
      %3408 = vdwg.mxu0
      %v3409 = vadd.f32 %v3287, %v3399
      %v3410 = vadd.f32 %v3288, %v3401
      %v3411 = vadd.f32 %v3289, %v3405
      %v3412 = vadd.f32 %v3290, %v3407
      %s3413 = scalar_lea.vmem %s4, 208
      %v3414 = vld [vmem:[%s3413] sm:$0xff]
      %v3415 = vld [vmem:[%s3413 + $0x8] sm:$0xff]
      %v3417 = vsel %vm1769, %v3414, 0
      %v3420 = vsel %vm1769, %v3415, 0
      %3422 = vmatprep.subr.mxu0 0.0
      %3423 = vmatpush1.msra.mxu0 0.0
      %3424 = vmatprep.subr.mxu0 0.0
      %3425 = vmatpush1.msra.mxu0 0.0
      %3426 = vmatprep.subr.mxu0 0.0
      %3427 = vmatpush1.msra.mxu0 0.0
      %3428 = vmatprep.subr.mxu0 0.0
      %3429 = vmatpush1.msra.mxu0 0.0
      %3430 = vmatprep.subr.mxu0 0.0
      %3431 = vmatpush1.msra.mxu0 0.0
      %3432 = vmatprep.subr.mxu0 0.0
      %3433 = vmatpush1.msra.mxu0 0.0
      %3434 = vmatprep.subr.mxu0 0.0
      %3435 = vmatpush1.msra.mxu0 0.0
      %3436 = vmatprep.subr.mxu0 0.0
      %3437 = vmatpush1.msra.mxu0 0.0
      %3438 = vmatprep.subr.mxu0 0.0
      %3439 = vmatpush1.msra.mxu0 0.0
      %3440 = vmatprep.subr.mxu0 0.0
      %3441 = vmatpush1.msra.mxu0 0.0
      %3442 = vmatprep.subr.mxu0 0.0
      %3443 = vmatpush1.msra.mxu0 0.0
      %3444 = vmatprep.subr.mxu0 0.0
      %3445 = vmatpush1.msra.mxu0 0.0
      %3446 = vmatprep.subr.mxu0 %v2929
      %3447 = vmatpush1.msra.mxu0 %v2928
      %3448 = vmatprep.subr.mxu0 %v2927
      %3449 = vmatpush1.msra.mxu0 %v2926
      %3450 = vmatprep.subr.mxu0 %v2925
      %3451 = vmatpush1.msra.mxu0 %v2924
      %3452 = vmatprep.subr.mxu0 %v2923
      %3453 = vmatpush1.msra.mxu0 %v2922
      %3454 = vmatprep.subr.mxu0 0.0
      %3455 = vmatpush2.msra.mxu0 0.0
      %3456 = vmatprep.subr.mxu0 0.0
      %3457 = vmatpush2.msra.mxu0 0.0
      %3458 = vmatprep.subr.mxu0 0.0
      %3459 = vmatpush2.msra.mxu0 0.0
      %3460 = vmatprep.subr.mxu0 0.0
      %3461 = vmatpush2.msra.mxu0 0.0
      %3462 = vmatprep.subr.mxu0 0.0
      %3463 = vmatpush2.msra.mxu0 0.0
      %3464 = vmatprep.subr.mxu0 0.0
      %3465 = vmatpush2.msra.mxu0 0.0
      %3466 = vmatprep.subr.mxu0 0.0
      %3467 = vmatpush2.msra.mxu0 0.0
      %3468 = vmatprep.subr.mxu0 0.0
      %3469 = vmatpush2.msra.mxu0 0.0
      %3470 = vmatprep.subr.mxu0 0.0
      %3471 = vmatpush2.msra.mxu0 0.0
      %3472 = vmatprep.subr.mxu0 0.0
      %3473 = vmatpush2.msra.mxu0 0.0
      %3474 = vmatprep.subr.mxu0 0.0
      %3475 = vmatpush2.msra.mxu0 0.0
      %3476 = vmatprep.subr.mxu0 0.0
      %3477 = vmatpush2.msra.mxu0 0.0
      %3478 = vmatprep.subr.mxu0 0.0
      %3479 = vmatpush2.msra.mxu0 0.0
      %3480 = vmatprep.subr.mxu0 0.0
      %3481 = vmatpush2.msra.mxu0 0.0
      %3482 = vmatprep.subr.mxu0 0.0
      %3483 = vmatpush2.msra.mxu0 0.0
      %3484 = vmatprep.subr.mxu0 0.0
      %3485 = vmatpush2.msra.mxu0 0.0
      %3486 = vmatprep.mubr.f32.mxu0 0.0
      %3487 = vmatmul.mubr.f32.gmra.mxu0 %v3417
      %v3488 = vpop.f32.mrf.mxu0
      %v3489 = vadd.f32 0.0, %v3488
      %v3490 = vpop.f32.mrf.mxu0
      %v3491 = vadd.f32 0.0, %v3490
      %3492 = vmatprep.mubr.f32.mxu0 0.0
      %3493 = vmatmul.mubr.f32.gmra.mxu0 %v3420
      %v3494 = vpop.f32.mrf.mxu0
      %v3495 = vadd.f32 0.0, %v3494
      %v3496 = vpop.f32.mrf.mxu0
      %v3497 = vadd.f32 0.0, %v3496
      %3498 = vdwg.mxu0
      %v3499 = vadd.f32 %v3409, %v3489
      %v3500 = vadd.f32 %v3410, %v3491
      %v3501 = vadd.f32 %v3411, %v3495
      %v3502 = vadd.f32 %v3412, %v3497
      %3503 = vrot.lane.b32.xlu0 %v2922, 127
      %v3504 = vpop.permute.xlu0 %3503
      %3505 = vrot.lane.b32.xlu0 %v2924, 127
      %v3506 = vpop.permute.xlu0 %3505
      %3507 = vrot.lane.b32.xlu0 %v2926, 127
      %v3508 = vpop.permute.xlu0 %3507
      %3509 = vrot.lane.b32.xlu0 %v2928, 127
      %v3510 = vpop.permute.xlu0 %3509
      %3511 = vrot.lane.b32.xlu0 %v2923, 127
      %v3512 = vpop.permute.xlu0 %3511
      %3513 = vrot.lane.b32.xlu0 %v2925, 127
      %v3514 = vpop.permute.xlu0 %3513
      %3515 = vrot.lane.b32.xlu0 %v2927, 127
      %v3516 = vpop.permute.xlu0 %3515
      %3517 = vrot.lane.b32.xlu0 %v2929, 127
      %v3518 = vpop.permute.xlu0 %3517
      %v3519 = vsel %vm1098, %v3504, %v3512
      %v3520 = vsel %vm1098, %v3506, %v3514
      %v3521 = vsel %vm1098, %v3508, %v3516
      %v3522 = vsel %vm1098, %v3510, %v3518
      %v3523 = vsel %vm1098, %v3512, %v3504
      %v3524 = vsel %vm1098, %v3514, %v3506
      %v3525 = vsel %vm1098, %v3516, %v3508
      %v3526 = vsel %vm1098, %v3518, %v3510
      %v3527 = vmul.f32 %v3519, %v1107
      %v3528 = vmul.f32 %v3523, %v1111
      %v3529 = vmul.f32 %v3520, %v1107
      %v3530 = vmul.f32 %v3524, %v1111
      %v3531 = vmul.f32 %v3521, %v1107
      %v3532 = vmul.f32 %v3525, %v1111
      %v3533 = vmul.f32 %v3522, %v1107
      %v3534 = vmul.f32 %v3526, %v1111
      %s3535 = scalar_lea.vmem %s4, 224
      %v3536 = vld [vmem:[%s3535] sm:$0xff]
      %v3537 = vld [vmem:[%s3535 + $0x8] sm:$0xff]
      %v3539 = vsel %vm1769, %v3536, 0
      %v3542 = vsel %vm1769, %v3537, 0
      %3544 = vmatprep.subr.mxu0 0.0
      %3545 = vmatpush1.msra.mxu0 0.0
      %3546 = vmatprep.subr.mxu0 0.0
      %3547 = vmatpush1.msra.mxu0 0.0
      %3548 = vmatprep.subr.mxu0 0.0
      %3549 = vmatpush1.msra.mxu0 0.0
      %3550 = vmatprep.subr.mxu0 0.0
      %3551 = vmatpush1.msra.mxu0 0.0
      %3552 = vmatprep.subr.mxu0 0.0
      %3553 = vmatpush1.msra.mxu0 0.0
      %3554 = vmatprep.subr.mxu0 0.0
      %3555 = vmatpush1.msra.mxu0 0.0
      %3556 = vmatprep.subr.mxu0 0.0
      %3557 = vmatpush1.msra.mxu0 0.0
      %3558 = vmatprep.subr.mxu0 0.0
      %3559 = vmatpush1.msra.mxu0 0.0
      %3560 = vmatprep.subr.mxu0 0.0
      %3561 = vmatpush1.msra.mxu0 0.0
      %3562 = vmatprep.subr.mxu0 0.0
      %3563 = vmatpush1.msra.mxu0 0.0
      %3564 = vmatprep.subr.mxu0 0.0
      %3565 = vmatpush1.msra.mxu0 0.0
      %3566 = vmatprep.subr.mxu0 0.0
      %3567 = vmatpush1.msra.mxu0 0.0
      %3568 = vmatprep.subr.mxu0 %v3534
      %3569 = vmatpush1.msra.mxu0 %v3533
      %3570 = vmatprep.subr.mxu0 %v3532
      %3571 = vmatpush1.msra.mxu0 %v3531
      %3572 = vmatprep.subr.mxu0 %v3530
      %3573 = vmatpush1.msra.mxu0 %v3529
      %3574 = vmatprep.subr.mxu0 %v3528
      %3575 = vmatpush1.msra.mxu0 %v3527
      %3576 = vmatprep.subr.mxu0 0.0
      %3577 = vmatpush2.msra.mxu0 0.0
      %3578 = vmatprep.subr.mxu0 0.0
      %3579 = vmatpush2.msra.mxu0 0.0
      %3580 = vmatprep.subr.mxu0 0.0
      %3581 = vmatpush2.msra.mxu0 0.0
      %3582 = vmatprep.subr.mxu0 0.0
      %3583 = vmatpush2.msra.mxu0 0.0
      %3584 = vmatprep.subr.mxu0 0.0
      %3585 = vmatpush2.msra.mxu0 0.0
      %3586 = vmatprep.subr.mxu0 0.0
      %3587 = vmatpush2.msra.mxu0 0.0
      %3588 = vmatprep.subr.mxu0 0.0
      %3589 = vmatpush2.msra.mxu0 0.0
      %3590 = vmatprep.subr.mxu0 0.0
      %3591 = vmatpush2.msra.mxu0 0.0
      %3592 = vmatprep.subr.mxu0 0.0
      %3593 = vmatpush2.msra.mxu0 0.0
      %3594 = vmatprep.subr.mxu0 0.0
      %3595 = vmatpush2.msra.mxu0 0.0
      %3596 = vmatprep.subr.mxu0 0.0
      %3597 = vmatpush2.msra.mxu0 0.0
      %3598 = vmatprep.subr.mxu0 0.0
      %3599 = vmatpush2.msra.mxu0 0.0
      %3600 = vmatprep.subr.mxu0 0.0
      %3601 = vmatpush2.msra.mxu0 0.0
      %3602 = vmatprep.subr.mxu0 0.0
      %3603 = vmatpush2.msra.mxu0 0.0
      %3604 = vmatprep.subr.mxu0 0.0
      %3605 = vmatpush2.msra.mxu0 0.0
      %3606 = vmatprep.subr.mxu0 0.0
      %3607 = vmatpush2.msra.mxu0 0.0
      %3608 = vmatprep.mubr.f32.mxu0 0.0
      %3609 = vmatmul.mubr.f32.gmra.mxu0 %v3539
      %v3610 = vpop.f32.mrf.mxu0
      %v3611 = vadd.f32 0.0, %v3610
      %v3612 = vpop.f32.mrf.mxu0
      %v3613 = vadd.f32 0.0, %v3612
      %3614 = vmatprep.mubr.f32.mxu0 0.0
      %3615 = vmatmul.mubr.f32.gmra.mxu0 %v3542
      %v3616 = vpop.f32.mrf.mxu0
      %v3617 = vadd.f32 0.0, %v3616
      %v3618 = vpop.f32.mrf.mxu0
      %v3619 = vadd.f32 0.0, %v3618
      %3620 = vdwg.mxu0
      %v3621 = vadd.f32 %v3499, %v3611
      %v3622 = vadd.f32 %v3500, %v3613
      %v3623 = vadd.f32 %v3501, %v3617
      %v3624 = vadd.f32 %v3502, %v3619
      %3625 = vrot.lane.b32.xlu0 %v2922, 113
      %v3626 = vpop.permute.xlu0 %3625
      %3627 = vrot.lane.b32.xlu0 %v2924, 113
      %v3628 = vpop.permute.xlu0 %3627
      %3629 = vrot.lane.b32.xlu0 %v2926, 113
      %v3630 = vpop.permute.xlu0 %3629
      %3631 = vrot.lane.b32.xlu0 %v2928, 113
      %v3632 = vpop.permute.xlu0 %3631
      %3633 = vrot.lane.b32.xlu0 %v2923, 113
      %v3634 = vpop.permute.xlu0 %3633
      %3635 = vrot.lane.b32.xlu0 %v2925, 113
      %v3636 = vpop.permute.xlu0 %3635
      %3637 = vrot.lane.b32.xlu0 %v2927, 113
      %v3638 = vpop.permute.xlu0 %3637
      %3639 = vrot.lane.b32.xlu0 %v2929, 113
      %v3640 = vpop.permute.xlu0 %3639
      %v3641 = vsel %vm1240, %v3626, %v3634
      %v3642 = vsel %vm1240, %v3628, %v3636
      %v3643 = vsel %vm1240, %v3630, %v3638
      %v3644 = vsel %vm1240, %v3632, %v3640
      %v3645 = vsel %vm1240, %v3634, %v3626
      %v3646 = vsel %vm1240, %v3636, %v3628
      %v3647 = vsel %vm1240, %v3638, %v3630
      %v3648 = vsel %vm1240, %v3640, %v3632
      %v3649 = vmul.f32 %v3641, %v1249
      %v3650 = vmul.f32 %v3645, %v1253
      %v3651 = vmul.f32 %v3642, %v1249
      %v3652 = vmul.f32 %v3646, %v1253
      %v3653 = vmul.f32 %v3643, %v1249
      %v3654 = vmul.f32 %v3647, %v1253
      %v3655 = vmul.f32 %v3644, %v1249
      %v3656 = vmul.f32 %v3648, %v1253
      %s3657 = scalar_lea.vmem %s4, 240
      %v3658 = vld [vmem:[%s3657] sm:$0xff]
      %v3659 = vld [vmem:[%s3657 + $0x8] sm:$0xff]
      %v3661 = vsel %vm1769, %v3658, 0
      %v3664 = vsel %vm1769, %v3659, 0
      %3666 = vmatprep.subr.mxu0 0.0
      %3667 = vmatpush1.msra.mxu0 0.0
      %3668 = vmatprep.subr.mxu0 0.0
      %3669 = vmatpush1.msra.mxu0 0.0
      %3670 = vmatprep.subr.mxu0 0.0
      %3671 = vmatpush1.msra.mxu0 0.0
      %3672 = vmatprep.subr.mxu0 0.0
      %3673 = vmatpush1.msra.mxu0 0.0
      %3674 = vmatprep.subr.mxu0 0.0
      %3675 = vmatpush1.msra.mxu0 0.0
      %3676 = vmatprep.subr.mxu0 0.0
      %3677 = vmatpush1.msra.mxu0 0.0
      %3678 = vmatprep.subr.mxu0 0.0
      %3679 = vmatpush1.msra.mxu0 0.0
      %3680 = vmatprep.subr.mxu0 0.0
      %3681 = vmatpush1.msra.mxu0 0.0
      %3682 = vmatprep.subr.mxu0 0.0
      %3683 = vmatpush1.msra.mxu0 0.0
      %3684 = vmatprep.subr.mxu0 0.0
      %3685 = vmatpush1.msra.mxu0 0.0
      %3686 = vmatprep.subr.mxu0 0.0
      %3687 = vmatpush1.msra.mxu0 0.0
      %3688 = vmatprep.subr.mxu0 0.0
      %3689 = vmatpush1.msra.mxu0 0.0
      %3690 = vmatprep.subr.mxu0 %v3656
      %3691 = vmatpush1.msra.mxu0 %v3655
      %3692 = vmatprep.subr.mxu0 %v3654
      %3693 = vmatpush1.msra.mxu0 %v3653
      %3694 = vmatprep.subr.mxu0 %v3652
      %3695 = vmatpush1.msra.mxu0 %v3651
      %3696 = vmatprep.subr.mxu0 %v3650
      %3697 = vmatpush1.msra.mxu0 %v3649
      %3698 = vmatprep.subr.mxu0 0.0
      %3699 = vmatpush2.msra.mxu0 0.0
      %3700 = vmatprep.subr.mxu0 0.0
      %3701 = vmatpush2.msra.mxu0 0.0
      %3702 = vmatprep.subr.mxu0 0.0
      %3703 = vmatpush2.msra.mxu0 0.0
      %3704 = vmatprep.subr.mxu0 0.0
      %3705 = vmatpush2.msra.mxu0 0.0
      %3706 = vmatprep.subr.mxu0 0.0
      %3707 = vmatpush2.msra.mxu0 0.0
      %3708 = vmatprep.subr.mxu0 0.0
      %3709 = vmatpush2.msra.mxu0 0.0
      %3710 = vmatprep.subr.mxu0 0.0
      %3711 = vmatpush2.msra.mxu0 0.0
      %3712 = vmatprep.subr.mxu0 0.0
      %3713 = vmatpush2.msra.mxu0 0.0
      %3714 = vmatprep.subr.mxu0 0.0
      %3715 = vmatpush2.msra.mxu0 0.0
      %3716 = vmatprep.subr.mxu0 0.0
      %3717 = vmatpush2.msra.mxu0 0.0
      %3718 = vmatprep.subr.mxu0 0.0
      %3719 = vmatpush2.msra.mxu0 0.0
      %3720 = vmatprep.subr.mxu0 0.0
      %3721 = vmatpush2.msra.mxu0 0.0
      %3722 = vmatprep.subr.mxu0 0.0
      %3723 = vmatpush2.msra.mxu0 0.0
      %3724 = vmatprep.subr.mxu0 0.0
      %3725 = vmatpush2.msra.mxu0 0.0
      %3726 = vmatprep.subr.mxu0 0.0
      %3727 = vmatpush2.msra.mxu0 0.0
      %3728 = vmatprep.subr.mxu0 0.0
      %3729 = vmatpush2.msra.mxu0 0.0
      %3730 = vmatprep.mubr.f32.mxu0 0.0
      %3731 = vmatmul.mubr.f32.gmra.mxu0 %v3661
      %v3732 = vpop.f32.mrf.mxu0
      %v3733 = vadd.f32 0.0, %v3732
      %v3734 = vpop.f32.mrf.mxu0
      %v3735 = vadd.f32 0.0, %v3734
      %3736 = vmatprep.mubr.f32.mxu0 0.0
      %3737 = vmatmul.mubr.f32.gmra.mxu0 %v3664
      %v3738 = vpop.f32.mrf.mxu0
      %v3739 = vadd.f32 0.0, %v3738
      %v3740 = vpop.f32.mrf.mxu0
      %v3741 = vadd.f32 0.0, %v3740
      %3742 = vdwg.mxu0
      %v3743 = vadd.f32 %v3621, %v3733
      %v3744 = vadd.f32 %v3622, %v3735
      %v3745 = vadd.f32 %v3623, %v3739
      %v3746 = vadd.f32 %v3624, %v3741
      %3747 = vrot.lane.b32.xlu0 %v2922, 112
      %v3748 = vpop.permute.xlu0 %3747
      %3749 = vrot.lane.b32.xlu0 %v2924, 112
      %v3750 = vpop.permute.xlu0 %3749
      %3751 = vrot.lane.b32.xlu0 %v2926, 112
      %v3752 = vpop.permute.xlu0 %3751
      %3753 = vrot.lane.b32.xlu0 %v2928, 112
      %v3754 = vpop.permute.xlu0 %3753
      %3755 = vrot.lane.b32.xlu0 %v2923, 112
      %v3756 = vpop.permute.xlu0 %3755
      %3757 = vrot.lane.b32.xlu0 %v2925, 112
      %v3758 = vpop.permute.xlu0 %3757
      %3759 = vrot.lane.b32.xlu0 %v2927, 112
      %v3760 = vpop.permute.xlu0 %3759
      %3761 = vrot.lane.b32.xlu0 %v2929, 112
      %v3762 = vpop.permute.xlu0 %3761
      %v3763 = vsel %vm1382, %v3748, %v3756
      %v3764 = vsel %vm1382, %v3750, %v3758
      %v3765 = vsel %vm1382, %v3752, %v3760
      %v3766 = vsel %vm1382, %v3754, %v3762
      %v3767 = vsel %vm1382, %v3756, %v3748
      %v3768 = vsel %vm1382, %v3758, %v3750
      %v3769 = vsel %vm1382, %v3760, %v3752
      %v3770 = vsel %vm1382, %v3762, %v3754
      %v3771 = vmul.f32 %v3763, %v1391
      %v3772 = vmul.f32 %v3767, %v1395
      %v3773 = vmul.f32 %v3764, %v1391
      %v3774 = vmul.f32 %v3768, %v1395
      %v3775 = vmul.f32 %v3765, %v1391
      %v3776 = vmul.f32 %v3769, %v1395
      %v3777 = vmul.f32 %v3766, %v1391
      %v3778 = vmul.f32 %v3770, %v1395
      %s3779 = scalar_lea.vmem %s4, 256
      %v3780 = vld [vmem:[%s3779] sm:$0xff]
      %v3781 = vld [vmem:[%s3779 + $0x8] sm:$0xff]
      %v3783 = vsel %vm1769, %v3780, 0
      %v3786 = vsel %vm1769, %v3781, 0
      %3788 = vmatprep.subr.mxu0 0.0
      %3789 = vmatpush1.msra.mxu0 0.0
      %3790 = vmatprep.subr.mxu0 0.0
      %3791 = vmatpush1.msra.mxu0 0.0
      %3792 = vmatprep.subr.mxu0 0.0
      %3793 = vmatpush1.msra.mxu0 0.0
      %3794 = vmatprep.subr.mxu0 0.0
      %3795 = vmatpush1.msra.mxu0 0.0
      %3796 = vmatprep.subr.mxu0 0.0
      %3797 = vmatpush1.msra.mxu0 0.0
      %3798 = vmatprep.subr.mxu0 0.0
      %3799 = vmatpush1.msra.mxu0 0.0
      %3800 = vmatprep.subr.mxu0 0.0
      %3801 = vmatpush1.msra.mxu0 0.0
      %3802 = vmatprep.subr.mxu0 0.0
      %3803 = vmatpush1.msra.mxu0 0.0
      %3804 = vmatprep.subr.mxu0 0.0
      %3805 = vmatpush1.msra.mxu0 0.0
      %3806 = vmatprep.subr.mxu0 0.0
      %3807 = vmatpush1.msra.mxu0 0.0
      %3808 = vmatprep.subr.mxu0 0.0
      %3809 = vmatpush1.msra.mxu0 0.0
      %3810 = vmatprep.subr.mxu0 0.0
      %3811 = vmatpush1.msra.mxu0 0.0
      %3812 = vmatprep.subr.mxu0 %v3778
      %3813 = vmatpush1.msra.mxu0 %v3777
      %3814 = vmatprep.subr.mxu0 %v3776
      %3815 = vmatpush1.msra.mxu0 %v3775
      %3816 = vmatprep.subr.mxu0 %v3774
      %3817 = vmatpush1.msra.mxu0 %v3773
      %3818 = vmatprep.subr.mxu0 %v3772
      %3819 = vmatpush1.msra.mxu0 %v3771
      %3820 = vmatprep.subr.mxu0 0.0
      %3821 = vmatpush2.msra.mxu0 0.0
      %3822 = vmatprep.subr.mxu0 0.0
      %3823 = vmatpush2.msra.mxu0 0.0
      %3824 = vmatprep.subr.mxu0 0.0
      %3825 = vmatpush2.msra.mxu0 0.0
      %3826 = vmatprep.subr.mxu0 0.0
      %3827 = vmatpush2.msra.mxu0 0.0
      %3828 = vmatprep.subr.mxu0 0.0
      %3829 = vmatpush2.msra.mxu0 0.0
      %3830 = vmatprep.subr.mxu0 0.0
      %3831 = vmatpush2.msra.mxu0 0.0
      %3832 = vmatprep.subr.mxu0 0.0
      %3833 = vmatpush2.msra.mxu0 0.0
      %3834 = vmatprep.subr.mxu0 0.0
      %3835 = vmatpush2.msra.mxu0 0.0
      %3836 = vmatprep.subr.mxu0 0.0
      %3837 = vmatpush2.msra.mxu0 0.0
      %3838 = vmatprep.subr.mxu0 0.0
      %3839 = vmatpush2.msra.mxu0 0.0
      %3840 = vmatprep.subr.mxu0 0.0
      %3841 = vmatpush2.msra.mxu0 0.0
      %3842 = vmatprep.subr.mxu0 0.0
      %3843 = vmatpush2.msra.mxu0 0.0
      %3844 = vmatprep.subr.mxu0 0.0
      %3845 = vmatpush2.msra.mxu0 0.0
      %3846 = vmatprep.subr.mxu0 0.0
      %3847 = vmatpush2.msra.mxu0 0.0
      %3848 = vmatprep.subr.mxu0 0.0
      %3849 = vmatpush2.msra.mxu0 0.0
      %3850 = vmatprep.subr.mxu0 0.0
      %3851 = vmatpush2.msra.mxu0 0.0
      %3852 = vmatprep.mubr.f32.mxu0 0.0
      %3853 = vmatmul.mubr.f32.gmra.mxu0 %v3783
      %v3854 = vpop.f32.mrf.mxu0
      %v3855 = vadd.f32 0.0, %v3854
      %v3856 = vpop.f32.mrf.mxu0
      %v3857 = vadd.f32 0.0, %v3856
      %3858 = vmatprep.mubr.f32.mxu0 0.0
      %3859 = vmatmul.mubr.f32.gmra.mxu0 %v3786
      %v3860 = vpop.f32.mrf.mxu0
      %v3861 = vadd.f32 0.0, %v3860
      %v3862 = vpop.f32.mrf.mxu0
      %v3863 = vadd.f32 0.0, %v3862
      %3864 = vdwg.mxu0
      %v3865 = vadd.f32 %v3743, %v3855
      %v3866 = vadd.f32 %v3744, %v3857
      %v3867 = vadd.f32 %v3745, %v3861
      %v3868 = vadd.f32 %v3746, %v3863
      %3869 = vrot.lane.b32.xlu0 %v2922, 111
      %v3870 = vpop.permute.xlu0 %3869
      %3871 = vrot.lane.b32.xlu0 %v2924, 111
      %v3872 = vpop.permute.xlu0 %3871
      %3873 = vrot.lane.b32.xlu0 %v2926, 111
      %v3874 = vpop.permute.xlu0 %3873
      %3875 = vrot.lane.b32.xlu0 %v2928, 111
      %v3876 = vpop.permute.xlu0 %3875
      %3877 = vrot.lane.b32.xlu0 %v2923, 111
      %v3878 = vpop.permute.xlu0 %3877
      %3879 = vrot.lane.b32.xlu0 %v2925, 111
      %v3880 = vpop.permute.xlu0 %3879
      %3881 = vrot.lane.b32.xlu0 %v2927, 111
      %v3882 = vpop.permute.xlu0 %3881
      %3883 = vrot.lane.b32.xlu0 %v2929, 111
      %v3884 = vpop.permute.xlu0 %3883
      %v3885 = vsel %vm1524, %v3870, %v3878
      %v3886 = vsel %vm1524, %v3872, %v3880
      %v3887 = vsel %vm1524, %v3874, %v3882
      %v3888 = vsel %vm1524, %v3876, %v3884
      %v3889 = vsel %vm1524, %v3878, %v3870
      %v3890 = vsel %vm1524, %v3880, %v3872
      %v3891 = vsel %vm1524, %v3882, %v3874
      %v3892 = vsel %vm1524, %v3884, %v3876
      %v3893 = vmul.f32 %v3885, %v1533
      %v3894 = vmul.f32 %v3889, %v1537
      %v3895 = vmul.f32 %v3886, %v1533
      %v3896 = vmul.f32 %v3890, %v1537
      %v3897 = vmul.f32 %v3887, %v1533
      %v3898 = vmul.f32 %v3891, %v1537
      %v3899 = vmul.f32 %v3888, %v1533
      %v3900 = vmul.f32 %v3892, %v1537
      %s3901 = scalar_lea.vmem %s4, 272
      %v3902 = vld [vmem:[%s3901] sm:$0xff]
      %v3903 = vld [vmem:[%s3901 + $0x8] sm:$0xff]
      %v3905 = vsel %vm1769, %v3902, 0
      %v3908 = vsel %vm1769, %v3903, 0
      %3910 = vmatprep.subr.mxu0 0.0
      %3911 = vmatpush1.msra.mxu0 0.0
      %3912 = vmatprep.subr.mxu0 0.0
      %3913 = vmatpush1.msra.mxu0 0.0
      %3914 = vmatprep.subr.mxu0 0.0
      %3915 = vmatpush1.msra.mxu0 0.0
      %3916 = vmatprep.subr.mxu0 0.0
      %3917 = vmatpush1.msra.mxu0 0.0
      %3918 = vmatprep.subr.mxu0 0.0
      %3919 = vmatpush1.msra.mxu0 0.0
      %3920 = vmatprep.subr.mxu0 0.0
      %3921 = vmatpush1.msra.mxu0 0.0
      %3922 = vmatprep.subr.mxu0 0.0
      %3923 = vmatpush1.msra.mxu0 0.0
      %3924 = vmatprep.subr.mxu0 0.0
      %3925 = vmatpush1.msra.mxu0 0.0
      %3926 = vmatprep.subr.mxu0 0.0
      %3927 = vmatpush1.msra.mxu0 0.0
      %3928 = vmatprep.subr.mxu0 0.0
      %3929 = vmatpush1.msra.mxu0 0.0
      %3930 = vmatprep.subr.mxu0 0.0
      %3931 = vmatpush1.msra.mxu0 0.0
      %3932 = vmatprep.subr.mxu0 0.0
      %3933 = vmatpush1.msra.mxu0 0.0
      %3934 = vmatprep.subr.mxu0 %v3900
      %3935 = vmatpush1.msra.mxu0 %v3899
      %3936 = vmatprep.subr.mxu0 %v3898
      %3937 = vmatpush1.msra.mxu0 %v3897
      %3938 = vmatprep.subr.mxu0 %v3896
      %3939 = vmatpush1.msra.mxu0 %v3895
      %3940 = vmatprep.subr.mxu0 %v3894
      %3941 = vmatpush1.msra.mxu0 %v3893
      %3942 = vmatprep.subr.mxu0 0.0
      %3943 = vmatpush2.msra.mxu0 0.0
      %3944 = vmatprep.subr.mxu0 0.0
      %3945 = vmatpush2.msra.mxu0 0.0
      %3946 = vmatprep.subr.mxu0 0.0
      %3947 = vmatpush2.msra.mxu0 0.0
      %3948 = vmatprep.subr.mxu0 0.0
      %3949 = vmatpush2.msra.mxu0 0.0
      %3950 = vmatprep.subr.mxu0 0.0
      %3951 = vmatpush2.msra.mxu0 0.0
      %3952 = vmatprep.subr.mxu0 0.0
      %3953 = vmatpush2.msra.mxu0 0.0
      %3954 = vmatprep.subr.mxu0 0.0
      %3955 = vmatpush2.msra.mxu0 0.0
      %3956 = vmatprep.subr.mxu0 0.0
      %3957 = vmatpush2.msra.mxu0 0.0
      %3958 = vmatprep.subr.mxu0 0.0
      %3959 = vmatpush2.msra.mxu0 0.0
      %3960 = vmatprep.subr.mxu0 0.0
      %3961 = vmatpush2.msra.mxu0 0.0
      %3962 = vmatprep.subr.mxu0 0.0
      %3963 = vmatpush2.msra.mxu0 0.0
      %3964 = vmatprep.subr.mxu0 0.0
      %3965 = vmatpush2.msra.mxu0 0.0
      %3966 = vmatprep.subr.mxu0 0.0
      %3967 = vmatpush2.msra.mxu0 0.0
      %3968 = vmatprep.subr.mxu0 0.0
      %3969 = vmatpush2.msra.mxu0 0.0
      %3970 = vmatprep.subr.mxu0 0.0
      %3971 = vmatpush2.msra.mxu0 0.0
      %3972 = vmatprep.subr.mxu0 0.0
      %3973 = vmatpush2.msra.mxu0 0.0
      %3974 = vmatprep.mubr.f32.mxu0 0.0
      %3975 = vmatmul.mubr.f32.gmra.mxu0 %v3905
      %v3976 = vpop.f32.mrf.mxu0
      %v3977 = vadd.f32 0.0, %v3976
      %v3978 = vpop.f32.mrf.mxu0
      %v3979 = vadd.f32 0.0, %v3978
      %3980 = vmatprep.mubr.f32.mxu0 0.0
      %3981 = vmatmul.mubr.f32.gmra.mxu0 %v3908
      %v3982 = vpop.f32.mrf.mxu0
      %v3983 = vadd.f32 0.0, %v3982
      %v3984 = vpop.f32.mrf.mxu0
      %v3985 = vadd.f32 0.0, %v3984
      %3986 = vdwg.mxu0
      %v3987 = vadd.f32 %v3865, %v3977
      %v3988 = vadd.f32 %v3866, %v3979
      %v3989 = vadd.f32 %v3867, %v3983
      %v3990 = vadd.f32 %v3868, %v3985
      %3992 = vset.pattern.permute.xlu0 0
      %3993 = vperm.xlu0 %3992, %v2931
      %v3994 = vpop.permute.xlu0 %3993
      %3997 = vset.pattern.permute.xlu0 0
      %3998 = vperm.xlu0 %3997, %v2932
      %v3999 = vpop.permute.xlu0 %3998
      %v4001 = vadd.f32 %v3987, %v3994
      %v4002 = vadd.f32 %v3988, %v3994
      %v4003 = vadd.f32 %v3989, %v3999
      %v4004 = vadd.f32 %v3990, %v3999
      %v4005 = vmax.f32 %v4001, 0.0
      %v4006 = vmax.f32 %v4002, 0.0
      %v4007 = vmax.f32 %v4003, 0.0
      %v4008 = vmax.f32 %v4004, 0.0
      %s4009 = scalar_lea.vmem %s6, 32
      %v4010 = vld [vmem:[%s4009] sm:$0xff]
      %v4011 = vld [vmem:[%s4009 + $0x8] sm:$0xff]
      %v4012 = vld [vmem:[%s4009 + $0x10] sm:$0xff]
      %v4013 = vld [vmem:[%s4009 + $0x18] sm:$0xff]
      %v4015 = vsel %vm2780, %v4010, 0
      %v4018 = vsel %vm2780, %v4011, 0
      %v4021 = vsel %vm2780, %v4012, 0
      %v4024 = vsel %vm2780, %v4013, 0
      %4026 = vmatprep.subr.mxu0 0.0
      %4027 = vmatpush1.msra.mxu0 0.0
      %4028 = vmatprep.subr.mxu0 0.0
      %4029 = vmatpush1.msra.mxu0 0.0
      %4030 = vmatprep.subr.mxu0 0.0
      %4031 = vmatpush1.msra.mxu0 0.0
      %4032 = vmatprep.subr.mxu0 0.0
      %4033 = vmatpush1.msra.mxu0 0.0
      %4034 = vmatprep.subr.mxu0 0.0
      %4035 = vmatpush1.msra.mxu0 0.0
      %4036 = vmatprep.subr.mxu0 0.0
      %4037 = vmatpush1.msra.mxu0 0.0
      %4038 = vmatprep.subr.mxu0 0.0
      %4039 = vmatpush1.msra.mxu0 0.0
      %4040 = vmatprep.subr.mxu0 0.0
      %4041 = vmatpush1.msra.mxu0 0.0
      %4042 = vmatprep.subr.mxu0 0.0
      %4043 = vmatpush1.msra.mxu0 0.0
      %4044 = vmatprep.subr.mxu0 0.0
      %4045 = vmatpush1.msra.mxu0 0.0
      %4046 = vmatprep.subr.mxu0 0.0
      %4047 = vmatpush1.msra.mxu0 0.0
      %4048 = vmatprep.subr.mxu0 0.0
      %4049 = vmatpush1.msra.mxu0 0.0
      %4050 = vmatprep.subr.mxu0 0.0
      %4051 = vmatpush1.msra.mxu0 0.0
      %4052 = vmatprep.subr.mxu0 0.0
      %4053 = vmatpush1.msra.mxu0 0.0
      %4054 = vmatprep.subr.mxu0 %v4008
      %4055 = vmatpush1.msra.mxu0 %v4007
      %4056 = vmatprep.subr.mxu0 %v4006
      %4057 = vmatpush1.msra.mxu0 %v4005
      %4058 = vmatprep.subr.mxu0 0.0
      %4059 = vmatpush2.msra.mxu0 0.0
      %4060 = vmatprep.subr.mxu0 0.0
      %4061 = vmatpush2.msra.mxu0 0.0
      %4062 = vmatprep.subr.mxu0 0.0
      %4063 = vmatpush2.msra.mxu0 0.0
      %4064 = vmatprep.subr.mxu0 0.0
      %4065 = vmatpush2.msra.mxu0 0.0
      %4066 = vmatprep.subr.mxu0 0.0
      %4067 = vmatpush2.msra.mxu0 0.0
      %4068 = vmatprep.subr.mxu0 0.0
      %4069 = vmatpush2.msra.mxu0 0.0
      %4070 = vmatprep.subr.mxu0 0.0
      %4071 = vmatpush2.msra.mxu0 0.0
      %4072 = vmatprep.subr.mxu0 0.0
      %4073 = vmatpush2.msra.mxu0 0.0
      %4074 = vmatprep.subr.mxu0 0.0
      %4075 = vmatpush2.msra.mxu0 0.0
      %4076 = vmatprep.subr.mxu0 0.0
      %4077 = vmatpush2.msra.mxu0 0.0
      %4078 = vmatprep.subr.mxu0 0.0
      %4079 = vmatpush2.msra.mxu0 0.0
      %4080 = vmatprep.subr.mxu0 0.0
      %4081 = vmatpush2.msra.mxu0 0.0
      %4082 = vmatprep.subr.mxu0 0.0
      %4083 = vmatpush2.msra.mxu0 0.0
      %4084 = vmatprep.subr.mxu0 0.0
      %4085 = vmatpush2.msra.mxu0 0.0
      %4086 = vmatprep.subr.mxu0 0.0
      %4087 = vmatpush2.msra.mxu0 0.0
      %4088 = vmatprep.subr.mxu0 0.0
      %4089 = vmatpush2.msra.mxu0 0.0
      %4090 = vmatprep.mubr.f32.mxu0 0.0
      %4091 = vmatmul.mubr.f32.gmra.mxu0 %v4015
      %v4092 = vpop.f32.mrf.mxu0
      %v4093 = vadd.f32 0.0, %v4092
      %v4094 = vpop.f32.mrf.mxu0
      %v4095 = vadd.f32 0.0, %v4094
      %4096 = vmatprep.mubr.f32.mxu0 0.0
      %4097 = vmatmul.mubr.f32.gmra.mxu0 %v4018
      %v4098 = vpop.f32.mrf.mxu0
      %v4099 = vadd.f32 0.0, %v4098
      %v4100 = vpop.f32.mrf.mxu0
      %v4101 = vadd.f32 0.0, %v4100
      %4102 = vmatprep.mubr.f32.mxu0 0.0
      %4103 = vmatmul.mubr.f32.gmra.mxu0 %v4021
      %v4104 = vpop.f32.mrf.mxu0
      %v4105 = vadd.f32 0.0, %v4104
      %v4106 = vpop.f32.mrf.mxu0
      %v4107 = vadd.f32 0.0, %v4106
      %4108 = vmatprep.mubr.f32.mxu0 0.0
      %4109 = vmatmul.mubr.f32.gmra.mxu0 %v4024
      %v4110 = vpop.f32.mrf.mxu0
      %v4111 = vadd.f32 0.0, %v4110
      %v4112 = vpop.f32.mrf.mxu0
      %v4113 = vadd.f32 0.0, %v4112
      %4114 = vdwg.mxu0
      %v4115 = vadd.f32 %v2914, %v4093
      %v4116 = vadd.f32 %v2915, %v4095
      %v4117 = vadd.f32 %v2916, %v4099
      %v4118 = vadd.f32 %v2917, %v4101
      %v4119 = vadd.f32 %v2918, %v4105
      %v4120 = vadd.f32 %v2919, %v4107
      %v4121 = vadd.f32 %v2920, %v4111
      %v4122 = vadd.f32 %v2921, %v4113
      %s4123 = scalar_lea.vmem %s7, 32
      %v4124 = vld [vmem:[%s4123] sm:$0xff]
      %v4125 = vld [vmem:[%s4123 + $0x8] sm:$0xff]
      %v4126 = vld [vmem:[%s4123 + $0x10] sm:$0xff]
      %v4127 = vld [vmem:[%s4123 + $0x18] sm:$0xff]
      %4129 = vset.pattern.permute.xlu0 0
      %4130 = vperm.xlu0 %4129, %v4124
      %v4131 = vpop.permute.xlu0 %4130
      %4134 = vset.pattern.permute.xlu0 0
      %4135 = vperm.xlu0 %4134, %v4125
      %v4136 = vpop.permute.xlu0 %4135
      %4139 = vset.pattern.permute.xlu0 0
      %4140 = vperm.xlu0 %4139, %v4126
      %v4141 = vpop.permute.xlu0 %4140
      %4144 = vset.pattern.permute.xlu0 0
      %4145 = vperm.xlu0 %4144, %v4127
      %v4146 = vpop.permute.xlu0 %4145
      %v4148 = vadd.f32 %v4115, %v4131
      %v4149 = vadd.f32 %v4116, %v4131
      %v4150 = vadd.f32 %v4117, %v4136
      %v4151 = vadd.f32 %v4118, %v4136
      %v4152 = vadd.f32 %v4119, %v4141
      %v4153 = vadd.f32 %v4120, %v4141
      %v4154 = vadd.f32 %v4121, %v4146
      %v4155 = vadd.f32 %v4122, %v4146
      %v4156 = vmax.f32 %v4148, 0.0
      %v4157 = vmax.f32 %v4149, 0.0
      %v4158 = vmax.f32 %v4150, 0.0
      %v4159 = vmax.f32 %v4151, 0.0
      %v4160 = vmax.f32 %v4152, 0.0
      %v4161 = vmax.f32 %v4153, 0.0
      %v4162 = vmax.f32 %v4154, 0.0
      %v4163 = vmax.f32 %v4155, 0.0
      %v4164 = vld [vmem:[%s9] sm:$0xff]
      %v4165 = vld [vmem:[%s9 + $0x8] sm:$0xff]
      %v4166 = vld [vmem:[%s9 + $0x10] sm:$0xff]
      %v4167 = vld [vmem:[%s9 + $0x18] sm:$0xff]
      %v4168 = vld [vmem:[%s9 + $0x20] sm:$0xff]
      %v4169 = vld [vmem:[%s9 + $0x28] sm:$0xff]
      %v4170 = vld [vmem:[%s9 + $0x30] sm:$0xff]
      %v4171 = vld [vmem:[%s9 + $0x38] sm:$0xff]
      %4172 = vrot.lane.b32.xlu0 %v4156, 17
      %v4173 = vpop.permute.xlu0 %4172
      %4174 = vrot.lane.b32.xlu0 %v4158, 17
      %v4175 = vpop.permute.xlu0 %4174
      %4176 = vrot.lane.b32.xlu0 %v4160, 17
      %v4177 = vpop.permute.xlu0 %4176
      %4178 = vrot.lane.b32.xlu0 %v4162, 17
      %v4179 = vpop.permute.xlu0 %4178
      %4180 = vrot.lane.b32.xlu0 %v4157, 17
      %v4181 = vpop.permute.xlu0 %4180
      %4182 = vrot.lane.b32.xlu0 %v4159, 17
      %v4183 = vpop.permute.xlu0 %4182
      %4184 = vrot.lane.b32.xlu0 %v4161, 17
      %v4185 = vpop.permute.xlu0 %4184
      %4186 = vrot.lane.b32.xlu0 %v4163, 17
      %v4187 = vpop.permute.xlu0 %4186
      %v4188 = vsel %vm428, %v4173, %v4181
      %v4189 = vsel %vm428, %v4175, %v4183
      %v4190 = vsel %vm428, %v4177, %v4185
      %v4191 = vsel %vm428, %v4179, %v4187
      %v4192 = vsel %vm428, %v4181, %v4173
      %v4193 = vsel %vm428, %v4183, %v4175
      %v4194 = vsel %vm428, %v4185, %v4177
      %v4195 = vsel %vm428, %v4187, %v4179
      %v4196 = vmul.f32 %v4192, %v436
      %v4197 = vmul.f32 %v4188, %v440
      %v4198 = vmul.f32 %v4193, %v436
      %v4199 = vmul.f32 %v4189, %v440
      %v4200 = vmul.f32 %v4194, %v436
      %v4201 = vmul.f32 %v4190, %v440
      %v4202 = vmul.f32 %v4195, %v436
      %v4203 = vmul.f32 %v4191, %v440
      %v4204 = vld [vmem:[%s8] sm:$0xff]
      %v4205 = vld [vmem:[%s8 + $0x8] sm:$0xff]
      %v4206 = vld [vmem:[%s8 + $0x10] sm:$0xff]
      %v4207 = vld [vmem:[%s8 + $0x18] sm:$0xff]
      %v4208 = vld [vmem:[%s8 + $0x20] sm:$0xff]
      %v4209 = vld [vmem:[%s8 + $0x28] sm:$0xff]
      %v4210 = vld [vmem:[%s8 + $0x30] sm:$0xff]
      %v4211 = vld [vmem:[%s8 + $0x38] sm:$0xff]
      %4212 = vrot.lane.b32.xlu0 %v4156, 16
      %v4213 = vpop.permute.xlu0 %4212
      %4214 = vrot.lane.b32.xlu0 %v4158, 16
      %v4215 = vpop.permute.xlu0 %4214
      %4216 = vrot.lane.b32.xlu0 %v4160, 16
      %v4217 = vpop.permute.xlu0 %4216
      %4218 = vrot.lane.b32.xlu0 %v4162, 16
      %v4219 = vpop.permute.xlu0 %4218
      %4220 = vrot.lane.b32.xlu0 %v4157, 16
      %v4221 = vpop.permute.xlu0 %4220
      %4222 = vrot.lane.b32.xlu0 %v4159, 16
      %v4223 = vpop.permute.xlu0 %4222
      %4224 = vrot.lane.b32.xlu0 %v4161, 16
      %v4225 = vpop.permute.xlu0 %4224
      %4226 = vrot.lane.b32.xlu0 %v4163, 16
      %v4227 = vpop.permute.xlu0 %4226
      %v4228 = vsel %vm453, %v4213, %v4221
      %v4229 = vsel %vm453, %v4215, %v4223
      %v4230 = vsel %vm453, %v4217, %v4225
      %v4231 = vsel %vm453, %v4219, %v4227
      %v4232 = vsel %vm453, %v4221, %v4213
      %v4233 = vsel %vm453, %v4223, %v4215
      %v4234 = vsel %vm453, %v4225, %v4217
      %v4235 = vsel %vm453, %v4227, %v4219
      %v4236 = vmul.f32 %v4232, %v462
      %v4237 = vmul.f32 %v4228, %v466
      %v4238 = vmul.f32 %v4233, %v462
      %v4239 = vmul.f32 %v4229, %v466
      %v4240 = vmul.f32 %v4234, %v462
      %v4241 = vmul.f32 %v4230, %v466
      %v4242 = vmul.f32 %v4235, %v462
      %v4243 = vmul.f32 %v4231, %v466
      %s4244 = scalar_lea.vmem %s8, 64
      %v4245 = vld [vmem:[%s4244] sm:$0xff]
      %v4246 = vld [vmem:[%s4244 + $0x8] sm:$0xff]
      %v4247 = vld [vmem:[%s4244 + $0x10] sm:$0xff]
      %v4248 = vld [vmem:[%s4244 + $0x18] sm:$0xff]
      %v4249 = vld [vmem:[%s4244 + $0x20] sm:$0xff]
      %v4250 = vld [vmem:[%s4244 + $0x28] sm:$0xff]
      %v4251 = vld [vmem:[%s4244 + $0x30] sm:$0xff]
      %v4252 = vld [vmem:[%s4244 + $0x38] sm:$0xff]
      %v4254 = vsel %vm1769, %v4245, 0
      %v4257 = vsel %vm1769, %v4246, 0
      %v4260 = vsel %vm1769, %v4247, 0
      %v4263 = vsel %vm1769, %v4248, 0
      %v4266 = vsel %vm1769, %v4249, 0
      %v4269 = vsel %vm1769, %v4250, 0
      %v4272 = vsel %vm1769, %v4251, 0
      %v4275 = vsel %vm1769, %v4252, 0
      %4277 = vmatprep.subr.mxu0 0.0
      %4278 = vmatpush1.msra.mxu0 0.0
      %4279 = vmatprep.subr.mxu0 0.0
      %4280 = vmatpush1.msra.mxu0 0.0
      %4281 = vmatprep.subr.mxu0 0.0
      %4282 = vmatpush1.msra.mxu0 0.0
      %4283 = vmatprep.subr.mxu0 0.0
      %4284 = vmatpush1.msra.mxu0 0.0
      %4285 = vmatprep.subr.mxu0 0.0
      %4286 = vmatpush1.msra.mxu0 0.0
      %4287 = vmatprep.subr.mxu0 0.0
      %4288 = vmatpush1.msra.mxu0 0.0
      %4289 = vmatprep.subr.mxu0 0.0
      %4290 = vmatpush1.msra.mxu0 0.0
      %4291 = vmatprep.subr.mxu0 0.0
      %4292 = vmatpush1.msra.mxu0 0.0
      %4293 = vmatprep.subr.mxu0 0.0
      %4294 = vmatpush1.msra.mxu0 0.0
      %4295 = vmatprep.subr.mxu0 0.0
      %4296 = vmatpush1.msra.mxu0 0.0
      %4297 = vmatprep.subr.mxu0 0.0
      %4298 = vmatpush1.msra.mxu0 0.0
      %4299 = vmatprep.subr.mxu0 0.0
      %4300 = vmatpush1.msra.mxu0 0.0
      %4301 = vmatprep.subr.mxu0 %v4243
      %4302 = vmatpush1.msra.mxu0 %v4242
      %4303 = vmatprep.subr.mxu0 %v4241
      %4304 = vmatpush1.msra.mxu0 %v4240
      %4305 = vmatprep.subr.mxu0 %v4239
      %4306 = vmatpush1.msra.mxu0 %v4238
      %4307 = vmatprep.subr.mxu0 %v4237
      %4308 = vmatpush1.msra.mxu0 %v4236
      %4309 = vmatprep.subr.mxu0 0.0
      %4310 = vmatpush2.msra.mxu0 0.0
      %4311 = vmatprep.subr.mxu0 0.0
      %4312 = vmatpush2.msra.mxu0 0.0
      %4313 = vmatprep.subr.mxu0 0.0
      %4314 = vmatpush2.msra.mxu0 0.0
      %4315 = vmatprep.subr.mxu0 0.0
      %4316 = vmatpush2.msra.mxu0 0.0
      %4317 = vmatprep.subr.mxu0 0.0
      %4318 = vmatpush2.msra.mxu0 0.0
      %4319 = vmatprep.subr.mxu0 0.0
      %4320 = vmatpush2.msra.mxu0 0.0
      %4321 = vmatprep.subr.mxu0 0.0
      %4322 = vmatpush2.msra.mxu0 0.0
      %4323 = vmatprep.subr.mxu0 0.0
      %4324 = vmatpush2.msra.mxu0 0.0
      %4325 = vmatprep.subr.mxu0 0.0
      %4326 = vmatpush2.msra.mxu0 0.0
      %4327 = vmatprep.subr.mxu0 0.0
      %4328 = vmatpush2.msra.mxu0 0.0
      %4329 = vmatprep.subr.mxu0 0.0
      %4330 = vmatpush2.msra.mxu0 0.0
      %4331 = vmatprep.subr.mxu0 0.0
      %4332 = vmatpush2.msra.mxu0 0.0
      %4333 = vmatprep.subr.mxu0 0.0
      %4334 = vmatpush2.msra.mxu0 0.0
      %4335 = vmatprep.subr.mxu0 0.0
      %4336 = vmatpush2.msra.mxu0 0.0
      %4337 = vmatprep.subr.mxu0 0.0
      %4338 = vmatpush2.msra.mxu0 0.0
      %4339 = vmatprep.subr.mxu0 0.0
      %4340 = vmatpush2.msra.mxu0 0.0
      %4341 = vmatprep.mubr.f32.mxu0 0.0
      %4342 = vmatmul.mubr.f32.gmra.mxu0 %v4254
      %v4343 = vpop.f32.mrf.mxu0
      %v4344 = vadd.f32 0.0, %v4343
      %v4345 = vpop.f32.mrf.mxu0
      %v4346 = vadd.f32 0.0, %v4345
      %4347 = vmatprep.mubr.f32.mxu0 0.0
      %4348 = vmatmul.mubr.f32.gmra.mxu0 %v4257
      %v4349 = vpop.f32.mrf.mxu0
      %v4350 = vadd.f32 0.0, %v4349
      %v4351 = vpop.f32.mrf.mxu0
      %v4352 = vadd.f32 0.0, %v4351
      %4353 = vmatprep.mubr.f32.mxu0 0.0
      %4354 = vmatmul.mubr.f32.gmra.mxu0 %v4260
      %v4355 = vpop.f32.mrf.mxu0
      %v4356 = vadd.f32 0.0, %v4355
      %v4357 = vpop.f32.mrf.mxu0
      %v4358 = vadd.f32 0.0, %v4357
      %4359 = vmatprep.mubr.f32.mxu0 0.0
      %4360 = vmatmul.mubr.f32.gmra.mxu0 %v4263
      %v4361 = vpop.f32.mrf.mxu0
      %v4362 = vadd.f32 0.0, %v4361
      %v4363 = vpop.f32.mrf.mxu0
      %v4364 = vadd.f32 0.0, %v4363
      %4365 = vmatprep.mubr.f32.mxu0 0.0
      %4366 = vmatmul.mubr.f32.gmra.mxu0 %v4266
      %v4367 = vpop.f32.mrf.mxu0
      %v4368 = vadd.f32 0.0, %v4367
      %v4369 = vpop.f32.mrf.mxu0
      %v4370 = vadd.f32 0.0, %v4369
      %4371 = vmatprep.mubr.f32.mxu0 0.0
      %4372 = vmatmul.mubr.f32.gmra.mxu0 %v4269
      %v4373 = vpop.f32.mrf.mxu0
      %v4374 = vadd.f32 0.0, %v4373
      %v4375 = vpop.f32.mrf.mxu0
      %v4376 = vadd.f32 0.0, %v4375
      %4377 = vmatprep.mubr.f32.mxu0 0.0
      %4378 = vmatmul.mubr.f32.gmra.mxu0 %v4272
      %v4379 = vpop.f32.mrf.mxu0
      %v4380 = vadd.f32 0.0, %v4379
      %v4381 = vpop.f32.mrf.mxu0
      %v4382 = vadd.f32 0.0, %v4381
      %4383 = vmatprep.mubr.f32.mxu0 0.0
      %4384 = vmatmul.mubr.f32.gmra.mxu0 %v4275
      %v4385 = vpop.f32.mrf.mxu0
      %v4386 = vadd.f32 0.0, %v4385
      %v4387 = vpop.f32.mrf.mxu0
      %v4388 = vadd.f32 0.0, %v4387
      %4389 = vdwg.mxu0
      %v4391 = vsel %vm1769, %v4204, 0
      %v4394 = vsel %vm1769, %v4205, 0
      %v4397 = vsel %vm1769, %v4206, 0
      %v4400 = vsel %vm1769, %v4207, 0
      %v4403 = vsel %vm1769, %v4208, 0
      %v4406 = vsel %vm1769, %v4209, 0
      %v4409 = vsel %vm1769, %v4210, 0
      %v4412 = vsel %vm1769, %v4211, 0
      %4414 = vmatprep.subr.mxu0 0.0
      %4415 = vmatpush1.msra.mxu0 0.0
      %4416 = vmatprep.subr.mxu0 0.0
      %4417 = vmatpush1.msra.mxu0 0.0
      %4418 = vmatprep.subr.mxu0 0.0
      %4419 = vmatpush1.msra.mxu0 0.0
      %4420 = vmatprep.subr.mxu0 0.0
      %4421 = vmatpush1.msra.mxu0 0.0
      %4422 = vmatprep.subr.mxu0 0.0
      %4423 = vmatpush1.msra.mxu0 0.0
      %4424 = vmatprep.subr.mxu0 0.0
      %4425 = vmatpush1.msra.mxu0 0.0
      %4426 = vmatprep.subr.mxu0 0.0
      %4427 = vmatpush1.msra.mxu0 0.0
      %4428 = vmatprep.subr.mxu0 0.0
      %4429 = vmatpush1.msra.mxu0 0.0
      %4430 = vmatprep.subr.mxu0 0.0
      %4431 = vmatpush1.msra.mxu0 0.0
      %4432 = vmatprep.subr.mxu0 0.0
      %4433 = vmatpush1.msra.mxu0 0.0
      %4434 = vmatprep.subr.mxu0 0.0
      %4435 = vmatpush1.msra.mxu0 0.0
      %4436 = vmatprep.subr.mxu0 0.0
      %4437 = vmatpush1.msra.mxu0 0.0
      %4438 = vmatprep.subr.mxu0 %v4203
      %4439 = vmatpush1.msra.mxu0 %v4202
      %4440 = vmatprep.subr.mxu0 %v4201
      %4441 = vmatpush1.msra.mxu0 %v4200
      %4442 = vmatprep.subr.mxu0 %v4199
      %4443 = vmatpush1.msra.mxu0 %v4198
      %4444 = vmatprep.subr.mxu0 %v4197
      %4445 = vmatpush1.msra.mxu0 %v4196
      %4446 = vmatprep.subr.mxu0 0.0
      %4447 = vmatpush2.msra.mxu0 0.0
      %4448 = vmatprep.subr.mxu0 0.0
      %4449 = vmatpush2.msra.mxu0 0.0
      %4450 = vmatprep.subr.mxu0 0.0
      %4451 = vmatpush2.msra.mxu0 0.0
      %4452 = vmatprep.subr.mxu0 0.0
      %4453 = vmatpush2.msra.mxu0 0.0
      %4454 = vmatprep.subr.mxu0 0.0
      %4455 = vmatpush2.msra.mxu0 0.0
      %4456 = vmatprep.subr.mxu0 0.0
      %4457 = vmatpush2.msra.mxu0 0.0
      %4458 = vmatprep.subr.mxu0 0.0
      %4459 = vmatpush2.msra.mxu0 0.0
      %4460 = vmatprep.subr.mxu0 0.0
      %4461 = vmatpush2.msra.mxu0 0.0
      %4462 = vmatprep.subr.mxu0 0.0
      %4463 = vmatpush2.msra.mxu0 0.0
      %4464 = vmatprep.subr.mxu0 0.0
      %4465 = vmatpush2.msra.mxu0 0.0
      %4466 = vmatprep.subr.mxu0 0.0
      %4467 = vmatpush2.msra.mxu0 0.0
      %4468 = vmatprep.subr.mxu0 0.0
      %4469 = vmatpush2.msra.mxu0 0.0
      %4470 = vmatprep.subr.mxu0 0.0
      %4471 = vmatpush2.msra.mxu0 0.0
      %4472 = vmatprep.subr.mxu0 0.0
      %4473 = vmatpush2.msra.mxu0 0.0
      %4474 = vmatprep.subr.mxu0 0.0
      %4475 = vmatpush2.msra.mxu0 0.0
      %4476 = vmatprep.subr.mxu0 0.0
      %4477 = vmatpush2.msra.mxu0 0.0
      %4478 = vmatprep.mubr.f32.mxu0 0.0
      %4479 = vmatmul.mubr.f32.gmra.mxu0 %v4391
      %v4480 = vpop.f32.mrf.mxu0
      %v4481 = vadd.f32 %v4344, %v4480
      %v4482 = vpop.f32.mrf.mxu0
      %v4483 = vadd.f32 %v4346, %v4482
      %4484 = vmatprep.mubr.f32.mxu0 0.0
      %4485 = vmatmul.mubr.f32.gmra.mxu0 %v4394
      %v4486 = vpop.f32.mrf.mxu0
      %v4487 = vadd.f32 %v4350, %v4486
      %v4488 = vpop.f32.mrf.mxu0
      %v4489 = vadd.f32 %v4352, %v4488
      %4490 = vmatprep.mubr.f32.mxu0 0.0
      %4491 = vmatmul.mubr.f32.gmra.mxu0 %v4397
      %v4492 = vpop.f32.mrf.mxu0
      %v4493 = vadd.f32 %v4356, %v4492
      %v4494 = vpop.f32.mrf.mxu0
      %v4495 = vadd.f32 %v4358, %v4494
      %4496 = vmatprep.mubr.f32.mxu0 0.0
      %4497 = vmatmul.mubr.f32.gmra.mxu0 %v4400
      %v4498 = vpop.f32.mrf.mxu0
      %v4499 = vadd.f32 %v4362, %v4498
      %v4500 = vpop.f32.mrf.mxu0
      %v4501 = vadd.f32 %v4364, %v4500
      %4502 = vmatprep.mubr.f32.mxu0 0.0
      %4503 = vmatmul.mubr.f32.gmra.mxu0 %v4403
      %v4504 = vpop.f32.mrf.mxu0
      %v4505 = vadd.f32 %v4368, %v4504
      %v4506 = vpop.f32.mrf.mxu0
      %v4507 = vadd.f32 %v4370, %v4506
      %4508 = vmatprep.mubr.f32.mxu0 0.0
      %4509 = vmatmul.mubr.f32.gmra.mxu0 %v4406
      %v4510 = vpop.f32.mrf.mxu0
      %v4511 = vadd.f32 %v4374, %v4510
      %v4512 = vpop.f32.mrf.mxu0
      %v4513 = vadd.f32 %v4376, %v4512
      %4514 = vmatprep.mubr.f32.mxu0 0.0
      %4515 = vmatmul.mubr.f32.gmra.mxu0 %v4409
      %v4516 = vpop.f32.mrf.mxu0
      %v4517 = vadd.f32 %v4380, %v4516
      %v4518 = vpop.f32.mrf.mxu0
      %v4519 = vadd.f32 %v4382, %v4518
      %4520 = vmatprep.mubr.f32.mxu0 0.0
      %4521 = vmatmul.mubr.f32.gmra.mxu0 %v4412
      %v4522 = vpop.f32.mrf.mxu0
      %v4523 = vadd.f32 %v4386, %v4522
      %v4524 = vpop.f32.mrf.mxu0
      %v4525 = vadd.f32 %v4388, %v4524
      %4526 = vdwg.mxu0
      %4527 = vrot.lane.b32.xlu0 %v4156, 15
      %v4528 = vpop.permute.xlu0 %4527
      %4529 = vrot.lane.b32.xlu0 %v4158, 15
      %v4530 = vpop.permute.xlu0 %4529
      %4531 = vrot.lane.b32.xlu0 %v4160, 15
      %v4532 = vpop.permute.xlu0 %4531
      %4533 = vrot.lane.b32.xlu0 %v4162, 15
      %v4534 = vpop.permute.xlu0 %4533
      %4535 = vrot.lane.b32.xlu0 %v4157, 15
      %v4536 = vpop.permute.xlu0 %4535
      %4537 = vrot.lane.b32.xlu0 %v4159, 15
      %v4538 = vpop.permute.xlu0 %4537
      %4539 = vrot.lane.b32.xlu0 %v4161, 15
      %v4540 = vpop.permute.xlu0 %4539
      %4541 = vrot.lane.b32.xlu0 %v4163, 15
      %v4542 = vpop.permute.xlu0 %4541
      %v4543 = vsel %vm696, %v4528, %v4536
      %v4544 = vsel %vm696, %v4530, %v4538
      %v4545 = vsel %vm696, %v4532, %v4540
      %v4546 = vsel %vm696, %v4534, %v4542
      %v4547 = vsel %vm696, %v4536, %v4528
      %v4548 = vsel %vm696, %v4538, %v4530
      %v4549 = vsel %vm696, %v4540, %v4532
      %v4550 = vsel %vm696, %v4542, %v4534
      %v4551 = vmul.f32 %v4547, %v705
      %v4552 = vmul.f32 %v4543, %v709
      %v4553 = vmul.f32 %v4548, %v705
      %v4554 = vmul.f32 %v4544, %v709
      %v4555 = vmul.f32 %v4549, %v705
      %v4556 = vmul.f32 %v4545, %v709
      %v4557 = vmul.f32 %v4550, %v705
      %v4558 = vmul.f32 %v4546, %v709
      %s4559 = scalar_lea.vmem %s8, 128
      %v4560 = vld [vmem:[%s4559] sm:$0xff]
      %v4561 = vld [vmem:[%s4559 + $0x8] sm:$0xff]
      %v4562 = vld [vmem:[%s4559 + $0x10] sm:$0xff]
      %v4563 = vld [vmem:[%s4559 + $0x18] sm:$0xff]
      %v4564 = vld [vmem:[%s4559 + $0x20] sm:$0xff]
      %v4565 = vld [vmem:[%s4559 + $0x28] sm:$0xff]
      %v4566 = vld [vmem:[%s4559 + $0x30] sm:$0xff]
      %v4567 = vld [vmem:[%s4559 + $0x38] sm:$0xff]
      %v4569 = vsel %vm1769, %v4560, 0
      %v4572 = vsel %vm1769, %v4561, 0
      %v4575 = vsel %vm1769, %v4562, 0
      %v4578 = vsel %vm1769, %v4563, 0
      %v4581 = vsel %vm1769, %v4564, 0
      %v4584 = vsel %vm1769, %v4565, 0
      %v4587 = vsel %vm1769, %v4566, 0
      %v4590 = vsel %vm1769, %v4567, 0
      %4592 = vmatprep.subr.mxu0 0.0
      %4593 = vmatpush1.msra.mxu0 0.0
      %4594 = vmatprep.subr.mxu0 0.0
      %4595 = vmatpush1.msra.mxu0 0.0
      %4596 = vmatprep.subr.mxu0 0.0
      %4597 = vmatpush1.msra.mxu0 0.0
      %4598 = vmatprep.subr.mxu0 0.0
      %4599 = vmatpush1.msra.mxu0 0.0
      %4600 = vmatprep.subr.mxu0 0.0
      %4601 = vmatpush1.msra.mxu0 0.0
      %4602 = vmatprep.subr.mxu0 0.0
      %4603 = vmatpush1.msra.mxu0 0.0
      %4604 = vmatprep.subr.mxu0 0.0
      %4605 = vmatpush1.msra.mxu0 0.0
      %4606 = vmatprep.subr.mxu0 0.0
      %4607 = vmatpush1.msra.mxu0 0.0
      %4608 = vmatprep.subr.mxu0 0.0
      %4609 = vmatpush1.msra.mxu0 0.0
      %4610 = vmatprep.subr.mxu0 0.0
      %4611 = vmatpush1.msra.mxu0 0.0
      %4612 = vmatprep.subr.mxu0 0.0
      %4613 = vmatpush1.msra.mxu0 0.0
      %4614 = vmatprep.subr.mxu0 0.0
      %4615 = vmatpush1.msra.mxu0 0.0
      %4616 = vmatprep.subr.mxu0 %v4558
      %4617 = vmatpush1.msra.mxu0 %v4557
      %4618 = vmatprep.subr.mxu0 %v4556
      %4619 = vmatpush1.msra.mxu0 %v4555
      %4620 = vmatprep.subr.mxu0 %v4554
      %4621 = vmatpush1.msra.mxu0 %v4553
      %4622 = vmatprep.subr.mxu0 %v4552
      %4623 = vmatpush1.msra.mxu0 %v4551
      %4624 = vmatprep.subr.mxu0 0.0
      %4625 = vmatpush2.msra.mxu0 0.0
      %4626 = vmatprep.subr.mxu0 0.0
      %4627 = vmatpush2.msra.mxu0 0.0
      %4628 = vmatprep.subr.mxu0 0.0
      %4629 = vmatpush2.msra.mxu0 0.0
      %4630 = vmatprep.subr.mxu0 0.0
      %4631 = vmatpush2.msra.mxu0 0.0
      %4632 = vmatprep.subr.mxu0 0.0
      %4633 = vmatpush2.msra.mxu0 0.0
      %4634 = vmatprep.subr.mxu0 0.0
      %4635 = vmatpush2.msra.mxu0 0.0
      %4636 = vmatprep.subr.mxu0 0.0
      %4637 = vmatpush2.msra.mxu0 0.0
      %4638 = vmatprep.subr.mxu0 0.0
      %4639 = vmatpush2.msra.mxu0 0.0
      %4640 = vmatprep.subr.mxu0 0.0
      %4641 = vmatpush2.msra.mxu0 0.0
      %4642 = vmatprep.subr.mxu0 0.0
      %4643 = vmatpush2.msra.mxu0 0.0
      %4644 = vmatprep.subr.mxu0 0.0
      %4645 = vmatpush2.msra.mxu0 0.0
      %4646 = vmatprep.subr.mxu0 0.0
      %4647 = vmatpush2.msra.mxu0 0.0
      %4648 = vmatprep.subr.mxu0 0.0
      %4649 = vmatpush2.msra.mxu0 0.0
      %4650 = vmatprep.subr.mxu0 0.0
      %4651 = vmatpush2.msra.mxu0 0.0
      %4652 = vmatprep.subr.mxu0 0.0
      %4653 = vmatpush2.msra.mxu0 0.0
      %4654 = vmatprep.subr.mxu0 0.0
      %4655 = vmatpush2.msra.mxu0 0.0
      %4656 = vmatprep.mubr.f32.mxu0 0.0
      %4657 = vmatmul.mubr.f32.gmra.mxu0 %v4569
      %v4658 = vpop.f32.mrf.mxu0
      %v4659 = vadd.f32 0.0, %v4658
      %v4660 = vpop.f32.mrf.mxu0
      %v4661 = vadd.f32 0.0, %v4660
      %4662 = vmatprep.mubr.f32.mxu0 0.0
      %4663 = vmatmul.mubr.f32.gmra.mxu0 %v4572
      %v4664 = vpop.f32.mrf.mxu0
      %v4665 = vadd.f32 0.0, %v4664
      %v4666 = vpop.f32.mrf.mxu0
      %v4667 = vadd.f32 0.0, %v4666
      %4668 = vmatprep.mubr.f32.mxu0 0.0
      %4669 = vmatmul.mubr.f32.gmra.mxu0 %v4575
      %v4670 = vpop.f32.mrf.mxu0
      %v4671 = vadd.f32 0.0, %v4670
      %v4672 = vpop.f32.mrf.mxu0
      %v4673 = vadd.f32 0.0, %v4672
      %4674 = vmatprep.mubr.f32.mxu0 0.0
      %4675 = vmatmul.mubr.f32.gmra.mxu0 %v4578
      %v4676 = vpop.f32.mrf.mxu0
      %v4677 = vadd.f32 0.0, %v4676
      %v4678 = vpop.f32.mrf.mxu0
      %v4679 = vadd.f32 0.0, %v4678
      %4680 = vmatprep.mubr.f32.mxu0 0.0
      %4681 = vmatmul.mubr.f32.gmra.mxu0 %v4581
      %v4682 = vpop.f32.mrf.mxu0
      %v4683 = vadd.f32 0.0, %v4682
      %v4684 = vpop.f32.mrf.mxu0
      %v4685 = vadd.f32 0.0, %v4684
      %4686 = vmatprep.mubr.f32.mxu0 0.0
      %4687 = vmatmul.mubr.f32.gmra.mxu0 %v4584
      %v4688 = vpop.f32.mrf.mxu0
      %v4689 = vadd.f32 0.0, %v4688
      %v4690 = vpop.f32.mrf.mxu0
      %v4691 = vadd.f32 0.0, %v4690
      %4692 = vmatprep.mubr.f32.mxu0 0.0
      %4693 = vmatmul.mubr.f32.gmra.mxu0 %v4587
      %v4694 = vpop.f32.mrf.mxu0
      %v4695 = vadd.f32 0.0, %v4694
      %v4696 = vpop.f32.mrf.mxu0
      %v4697 = vadd.f32 0.0, %v4696
      %4698 = vmatprep.mubr.f32.mxu0 0.0
      %4699 = vmatmul.mubr.f32.gmra.mxu0 %v4590
      %v4700 = vpop.f32.mrf.mxu0
      %v4701 = vadd.f32 0.0, %v4700
      %v4702 = vpop.f32.mrf.mxu0
      %v4703 = vadd.f32 0.0, %v4702
      %4704 = vdwg.mxu0
      %v4705 = vadd.f32 %v4481, %v4659
      %v4706 = vadd.f32 %v4483, %v4661
      %v4707 = vadd.f32 %v4487, %v4665
      %v4708 = vadd.f32 %v4489, %v4667
      %v4709 = vadd.f32 %v4493, %v4671
      %v4710 = vadd.f32 %v4495, %v4673
      %v4711 = vadd.f32 %v4499, %v4677
      %v4712 = vadd.f32 %v4501, %v4679
      %v4713 = vadd.f32 %v4505, %v4683
      %v4714 = vadd.f32 %v4507, %v4685
      %v4715 = vadd.f32 %v4511, %v4689
      %v4716 = vadd.f32 %v4513, %v4691
      %v4717 = vadd.f32 %v4517, %v4695
      %v4718 = vadd.f32 %v4519, %v4697
      %v4719 = vadd.f32 %v4523, %v4701
      %v4720 = vadd.f32 %v4525, %v4703
      %4721 = vrot.lane.b32.xlu0 %v4156, 1
      %v4722 = vpop.permute.xlu0 %4721
      %4723 = vrot.lane.b32.xlu0 %v4158, 1
      %v4724 = vpop.permute.xlu0 %4723
      %4725 = vrot.lane.b32.xlu0 %v4160, 1
      %v4726 = vpop.permute.xlu0 %4725
      %4727 = vrot.lane.b32.xlu0 %v4162, 1
      %v4728 = vpop.permute.xlu0 %4727
      %4729 = vrot.lane.b32.xlu0 %v4157, 1
      %v4730 = vpop.permute.xlu0 %4729
      %4731 = vrot.lane.b32.xlu0 %v4159, 1
      %v4732 = vpop.permute.xlu0 %4731
      %4733 = vrot.lane.b32.xlu0 %v4161, 1
      %v4734 = vpop.permute.xlu0 %4733
      %4735 = vrot.lane.b32.xlu0 %v4163, 1
      %v4736 = vpop.permute.xlu0 %4735
      %v4737 = vsel %vm838, %v4722, %v4730
      %v4738 = vsel %vm838, %v4724, %v4732
      %v4739 = vsel %vm838, %v4726, %v4734
      %v4740 = vsel %vm838, %v4728, %v4736
      %v4741 = vsel %vm838, %v4730, %v4722
      %v4742 = vsel %vm838, %v4732, %v4724
      %v4743 = vsel %vm838, %v4734, %v4726
      %v4744 = vsel %vm838, %v4736, %v4728
      %v4745 = vmul.f32 %v4741, %v847
      %v4746 = vmul.f32 %v4737, %v851
      %v4747 = vmul.f32 %v4742, %v847
      %v4748 = vmul.f32 %v4738, %v851
      %v4749 = vmul.f32 %v4743, %v847
      %v4750 = vmul.f32 %v4739, %v851
      %v4751 = vmul.f32 %v4744, %v847
      %v4752 = vmul.f32 %v4740, %v851
      %s4753 = scalar_lea.vmem %s8, 192
      %v4754 = vld [vmem:[%s4753] sm:$0xff]
      %v4755 = vld [vmem:[%s4753 + $0x8] sm:$0xff]
      %v4756 = vld [vmem:[%s4753 + $0x10] sm:$0xff]
      %v4757 = vld [vmem:[%s4753 + $0x18] sm:$0xff]
      %v4758 = vld [vmem:[%s4753 + $0x20] sm:$0xff]
      %v4759 = vld [vmem:[%s4753 + $0x28] sm:$0xff]
      %v4760 = vld [vmem:[%s4753 + $0x30] sm:$0xff]
      %v4761 = vld [vmem:[%s4753 + $0x38] sm:$0xff]
      %v4763 = vsel %vm1769, %v4754, 0
      %v4766 = vsel %vm1769, %v4755, 0
      %v4769 = vsel %vm1769, %v4756, 0
      %v4772 = vsel %vm1769, %v4757, 0
      %v4775 = vsel %vm1769, %v4758, 0
      %v4778 = vsel %vm1769, %v4759, 0
      %v4781 = vsel %vm1769, %v4760, 0
      %v4784 = vsel %vm1769, %v4761, 0
      %4786 = vmatprep.subr.mxu0 0.0
      %4787 = vmatpush1.msra.mxu0 0.0
      %4788 = vmatprep.subr.mxu0 0.0
      %4789 = vmatpush1.msra.mxu0 0.0
      %4790 = vmatprep.subr.mxu0 0.0
      %4791 = vmatpush1.msra.mxu0 0.0
      %4792 = vmatprep.subr.mxu0 0.0
      %4793 = vmatpush1.msra.mxu0 0.0
      %4794 = vmatprep.subr.mxu0 0.0
      %4795 = vmatpush1.msra.mxu0 0.0
      %4796 = vmatprep.subr.mxu0 0.0
      %4797 = vmatpush1.msra.mxu0 0.0
      %4798 = vmatprep.subr.mxu0 0.0
      %4799 = vmatpush1.msra.mxu0 0.0
      %4800 = vmatprep.subr.mxu0 0.0
      %4801 = vmatpush1.msra.mxu0 0.0
      %4802 = vmatprep.subr.mxu0 0.0
      %4803 = vmatpush1.msra.mxu0 0.0
      %4804 = vmatprep.subr.mxu0 0.0
      %4805 = vmatpush1.msra.mxu0 0.0
      %4806 = vmatprep.subr.mxu0 0.0
      %4807 = vmatpush1.msra.mxu0 0.0
      %4808 = vmatprep.subr.mxu0 0.0
      %4809 = vmatpush1.msra.mxu0 0.0
      %4810 = vmatprep.subr.mxu0 %v4752
      %4811 = vmatpush1.msra.mxu0 %v4751
      %4812 = vmatprep.subr.mxu0 %v4750
      %4813 = vmatpush1.msra.mxu0 %v4749
      %4814 = vmatprep.subr.mxu0 %v4748
      %4815 = vmatpush1.msra.mxu0 %v4747
      %4816 = vmatprep.subr.mxu0 %v4746
      %4817 = vmatpush1.msra.mxu0 %v4745
      %4818 = vmatprep.subr.mxu0 0.0
      %4819 = vmatpush2.msra.mxu0 0.0
      %4820 = vmatprep.subr.mxu0 0.0
      %4821 = vmatpush2.msra.mxu0 0.0
      %4822 = vmatprep.subr.mxu0 0.0
      %4823 = vmatpush2.msra.mxu0 0.0
      %4824 = vmatprep.subr.mxu0 0.0
      %4825 = vmatpush2.msra.mxu0 0.0
      %4826 = vmatprep.subr.mxu0 0.0
      %4827 = vmatpush2.msra.mxu0 0.0
      %4828 = vmatprep.subr.mxu0 0.0
      %4829 = vmatpush2.msra.mxu0 0.0
      %4830 = vmatprep.subr.mxu0 0.0
      %4831 = vmatpush2.msra.mxu0 0.0
      %4832 = vmatprep.subr.mxu0 0.0
      %4833 = vmatpush2.msra.mxu0 0.0
      %4834 = vmatprep.subr.mxu0 0.0
      %4835 = vmatpush2.msra.mxu0 0.0
      %4836 = vmatprep.subr.mxu0 0.0
      %4837 = vmatpush2.msra.mxu0 0.0
      %4838 = vmatprep.subr.mxu0 0.0
      %4839 = vmatpush2.msra.mxu0 0.0
      %4840 = vmatprep.subr.mxu0 0.0
      %4841 = vmatpush2.msra.mxu0 0.0
      %4842 = vmatprep.subr.mxu0 0.0
      %4843 = vmatpush2.msra.mxu0 0.0
      %4844 = vmatprep.subr.mxu0 0.0
      %4845 = vmatpush2.msra.mxu0 0.0
      %4846 = vmatprep.subr.mxu0 0.0
      %4847 = vmatpush2.msra.mxu0 0.0
      %4848 = vmatprep.subr.mxu0 0.0
      %4849 = vmatpush2.msra.mxu0 0.0
      %4850 = vmatprep.mubr.f32.mxu0 0.0
      %4851 = vmatmul.mubr.f32.gmra.mxu0 %v4763
      %v4852 = vpop.f32.mrf.mxu0
      %v4853 = vadd.f32 0.0, %v4852
      %v4854 = vpop.f32.mrf.mxu0
      %v4855 = vadd.f32 0.0, %v4854
      %4856 = vmatprep.mubr.f32.mxu0 0.0
      %4857 = vmatmul.mubr.f32.gmra.mxu0 %v4766
      %v4858 = vpop.f32.mrf.mxu0
      %v4859 = vadd.f32 0.0, %v4858
      %v4860 = vpop.f32.mrf.mxu0
      %v4861 = vadd.f32 0.0, %v4860
      %4862 = vmatprep.mubr.f32.mxu0 0.0
      %4863 = vmatmul.mubr.f32.gmra.mxu0 %v4769
      %v4864 = vpop.f32.mrf.mxu0
      %v4865 = vadd.f32 0.0, %v4864
      %v4866 = vpop.f32.mrf.mxu0
      %v4867 = vadd.f32 0.0, %v4866
      %4868 = vmatprep.mubr.f32.mxu0 0.0
      %4869 = vmatmul.mubr.f32.gmra.mxu0 %v4772
      %v4870 = vpop.f32.mrf.mxu0
      %v4871 = vadd.f32 0.0, %v4870
      %v4872 = vpop.f32.mrf.mxu0
      %v4873 = vadd.f32 0.0, %v4872
      %4874 = vmatprep.mubr.f32.mxu0 0.0
      %4875 = vmatmul.mubr.f32.gmra.mxu0 %v4775
      %v4876 = vpop.f32.mrf.mxu0
      %v4877 = vadd.f32 0.0, %v4876
      %v4878 = vpop.f32.mrf.mxu0
      %v4879 = vadd.f32 0.0, %v4878
      %4880 = vmatprep.mubr.f32.mxu0 0.0
      %4881 = vmatmul.mubr.f32.gmra.mxu0 %v4778
      %v4882 = vpop.f32.mrf.mxu0
      %v4883 = vadd.f32 0.0, %v4882
      %v4884 = vpop.f32.mrf.mxu0
      %v4885 = vadd.f32 0.0, %v4884
      %4886 = vmatprep.mubr.f32.mxu0 0.0
      %4887 = vmatmul.mubr.f32.gmra.mxu0 %v4781
      %v4888 = vpop.f32.mrf.mxu0
      %v4889 = vadd.f32 0.0, %v4888
      %v4890 = vpop.f32.mrf.mxu0
      %v4891 = vadd.f32 0.0, %v4890
      %4892 = vmatprep.mubr.f32.mxu0 0.0
      %4893 = vmatmul.mubr.f32.gmra.mxu0 %v4784
      %v4894 = vpop.f32.mrf.mxu0
      %v4895 = vadd.f32 0.0, %v4894
      %v4896 = vpop.f32.mrf.mxu0
      %v4897 = vadd.f32 0.0, %v4896
      %4898 = vdwg.mxu0
      %v4899 = vadd.f32 %v4705, %v4853
      %v4900 = vadd.f32 %v4706, %v4855
      %v4901 = vadd.f32 %v4707, %v4859
      %v4902 = vadd.f32 %v4708, %v4861
      %v4903 = vadd.f32 %v4709, %v4865
      %v4904 = vadd.f32 %v4710, %v4867
      %v4905 = vadd.f32 %v4711, %v4871
      %v4906 = vadd.f32 %v4712, %v4873
      %v4907 = vadd.f32 %v4713, %v4877
      %v4908 = vadd.f32 %v4714, %v4879
      %v4909 = vadd.f32 %v4715, %v4883
      %v4910 = vadd.f32 %v4716, %v4885
      %v4911 = vadd.f32 %v4717, %v4889
      %v4912 = vadd.f32 %v4718, %v4891
      %v4913 = vadd.f32 %v4719, %v4895
      %v4914 = vadd.f32 %v4720, %v4897
      %s4915 = scalar_lea.vmem %s8, 256
      %v4916 = vld [vmem:[%s4915] sm:$0xff]
      %v4917 = vld [vmem:[%s4915 + $0x8] sm:$0xff]
      %v4918 = vld [vmem:[%s4915 + $0x10] sm:$0xff]
      %v4919 = vld [vmem:[%s4915 + $0x18] sm:$0xff]
      %v4920 = vld [vmem:[%s4915 + $0x20] sm:$0xff]
      %v4921 = vld [vmem:[%s4915 + $0x28] sm:$0xff]
      %v4922 = vld [vmem:[%s4915 + $0x30] sm:$0xff]
      %v4923 = vld [vmem:[%s4915 + $0x38] sm:$0xff]
      %v4925 = vsel %vm1769, %v4916, 0
      %v4928 = vsel %vm1769, %v4917, 0
      %v4931 = vsel %vm1769, %v4918, 0
      %v4934 = vsel %vm1769, %v4919, 0
      %v4937 = vsel %vm1769, %v4920, 0
      %v4940 = vsel %vm1769, %v4921, 0
      %v4943 = vsel %vm1769, %v4922, 0
      %v4946 = vsel %vm1769, %v4923, 0
      %4948 = vmatprep.subr.mxu0 0.0
      %4949 = vmatpush1.msra.mxu0 0.0
      %4950 = vmatprep.subr.mxu0 0.0
      %4951 = vmatpush1.msra.mxu0 0.0
      %4952 = vmatprep.subr.mxu0 0.0
      %4953 = vmatpush1.msra.mxu0 0.0
      %4954 = vmatprep.subr.mxu0 0.0
      %4955 = vmatpush1.msra.mxu0 0.0
      %4956 = vmatprep.subr.mxu0 0.0
      %4957 = vmatpush1.msra.mxu0 0.0
      %4958 = vmatprep.subr.mxu0 0.0
      %4959 = vmatpush1.msra.mxu0 0.0
      %4960 = vmatprep.subr.mxu0 0.0
      %4961 = vmatpush1.msra.mxu0 0.0
      %4962 = vmatprep.subr.mxu0 0.0
      %4963 = vmatpush1.msra.mxu0 0.0
      %4964 = vmatprep.subr.mxu0 0.0
      %4965 = vmatpush1.msra.mxu0 0.0
      %4966 = vmatprep.subr.mxu0 0.0
      %4967 = vmatpush1.msra.mxu0 0.0
      %4968 = vmatprep.subr.mxu0 0.0
      %4969 = vmatpush1.msra.mxu0 0.0
      %4970 = vmatprep.subr.mxu0 0.0
      %4971 = vmatpush1.msra.mxu0 0.0
      %4972 = vmatprep.subr.mxu0 %v4163
      %4973 = vmatpush1.msra.mxu0 %v4162
      %4974 = vmatprep.subr.mxu0 %v4161
      %4975 = vmatpush1.msra.mxu0 %v4160
      %4976 = vmatprep.subr.mxu0 %v4159
      %4977 = vmatpush1.msra.mxu0 %v4158
      %4978 = vmatprep.subr.mxu0 %v4157
      %4979 = vmatpush1.msra.mxu0 %v4156
      %4980 = vmatprep.subr.mxu0 0.0
      %4981 = vmatpush2.msra.mxu0 0.0
      %4982 = vmatprep.subr.mxu0 0.0
      %4983 = vmatpush2.msra.mxu0 0.0
      %4984 = vmatprep.subr.mxu0 0.0
      %4985 = vmatpush2.msra.mxu0 0.0
      %4986 = vmatprep.subr.mxu0 0.0
      %4987 = vmatpush2.msra.mxu0 0.0
      %4988 = vmatprep.subr.mxu0 0.0
      %4989 = vmatpush2.msra.mxu0 0.0
      %4990 = vmatprep.subr.mxu0 0.0
      %4991 = vmatpush2.msra.mxu0 0.0
      %4992 = vmatprep.subr.mxu0 0.0
      %4993 = vmatpush2.msra.mxu0 0.0
      %4994 = vmatprep.subr.mxu0 0.0
      %4995 = vmatpush2.msra.mxu0 0.0
      %4996 = vmatprep.subr.mxu0 0.0
      %4997 = vmatpush2.msra.mxu0 0.0
      %4998 = vmatprep.subr.mxu0 0.0
      %4999 = vmatpush2.msra.mxu0 0.0
      %5000 = vmatprep.subr.mxu0 0.0
      %5001 = vmatpush2.msra.mxu0 0.0
      %5002 = vmatprep.subr.mxu0 0.0
      %5003 = vmatpush2.msra.mxu0 0.0
      %5004 = vmatprep.subr.mxu0 0.0
      %5005 = vmatpush2.msra.mxu0 0.0
      %5006 = vmatprep.subr.mxu0 0.0
      %5007 = vmatpush2.msra.mxu0 0.0
      %5008 = vmatprep.subr.mxu0 0.0
      %5009 = vmatpush2.msra.mxu0 0.0
      %5010 = vmatprep.subr.mxu0 0.0
      %5011 = vmatpush2.msra.mxu0 0.0
      %5012 = vmatprep.mubr.f32.mxu0 0.0
      %5013 = vmatmul.mubr.f32.gmra.mxu0 %v4925
      %v5014 = vpop.f32.mrf.mxu0
      %v5015 = vadd.f32 0.0, %v5014
      %v5016 = vpop.f32.mrf.mxu0
      %v5017 = vadd.f32 0.0, %v5016
      %5018 = vmatprep.mubr.f32.mxu0 0.0
      %5019 = vmatmul.mubr.f32.gmra.mxu0 %v4928
      %v5020 = vpop.f32.mrf.mxu0
      %v5021 = vadd.f32 0.0, %v5020
      %v5022 = vpop.f32.mrf.mxu0
      %v5023 = vadd.f32 0.0, %v5022
      %5024 = vmatprep.mubr.f32.mxu0 0.0
      %5025 = vmatmul.mubr.f32.gmra.mxu0 %v4931
      %v5026 = vpop.f32.mrf.mxu0
      %v5027 = vadd.f32 0.0, %v5026
      %v5028 = vpop.f32.mrf.mxu0
      %v5029 = vadd.f32 0.0, %v5028
      %5030 = vmatprep.mubr.f32.mxu0 0.0
      %5031 = vmatmul.mubr.f32.gmra.mxu0 %v4934
      %v5032 = vpop.f32.mrf.mxu0
      %v5033 = vadd.f32 0.0, %v5032
      %v5034 = vpop.f32.mrf.mxu0
      %v5035 = vadd.f32 0.0, %v5034
      %5036 = vmatprep.mubr.f32.mxu0 0.0
      %5037 = vmatmul.mubr.f32.gmra.mxu0 %v4937
      %v5038 = vpop.f32.mrf.mxu0
      %v5039 = vadd.f32 0.0, %v5038
      %v5040 = vpop.f32.mrf.mxu0
      %v5041 = vadd.f32 0.0, %v5040
      %5042 = vmatprep.mubr.f32.mxu0 0.0
      %5043 = vmatmul.mubr.f32.gmra.mxu0 %v4940
      %v5044 = vpop.f32.mrf.mxu0
      %v5045 = vadd.f32 0.0, %v5044
      %v5046 = vpop.f32.mrf.mxu0
      %v5047 = vadd.f32 0.0, %v5046
      %5048 = vmatprep.mubr.f32.mxu0 0.0
      %5049 = vmatmul.mubr.f32.gmra.mxu0 %v4943
      %v5050 = vpop.f32.mrf.mxu0
      %v5051 = vadd.f32 0.0, %v5050
      %v5052 = vpop.f32.mrf.mxu0
      %v5053 = vadd.f32 0.0, %v5052
      %5054 = vmatprep.mubr.f32.mxu0 0.0
      %5055 = vmatmul.mubr.f32.gmra.mxu0 %v4946
      %v5056 = vpop.f32.mrf.mxu0
      %v5057 = vadd.f32 0.0, %v5056
      %v5058 = vpop.f32.mrf.mxu0
      %v5059 = vadd.f32 0.0, %v5058
      %5060 = vdwg.mxu0
      %v5061 = vadd.f32 %v4899, %v5015
      %v5062 = vadd.f32 %v4900, %v5017
      %v5063 = vadd.f32 %v4901, %v5021
      %v5064 = vadd.f32 %v4902, %v5023
      %v5065 = vadd.f32 %v4903, %v5027
      %v5066 = vadd.f32 %v4904, %v5029
      %v5067 = vadd.f32 %v4905, %v5033
      %v5068 = vadd.f32 %v4906, %v5035
      %v5069 = vadd.f32 %v4907, %v5039
      %v5070 = vadd.f32 %v4908, %v5041
      %v5071 = vadd.f32 %v4909, %v5045
      %v5072 = vadd.f32 %v4910, %v5047
      %v5073 = vadd.f32 %v4911, %v5051
      %v5074 = vadd.f32 %v4912, %v5053
      %v5075 = vadd.f32 %v4913, %v5057
      %v5076 = vadd.f32 %v4914, %v5059
      %5077 = vrot.lane.b32.xlu0 %v4156, 127
      %v5078 = vpop.permute.xlu0 %5077
      %5079 = vrot.lane.b32.xlu0 %v4158, 127
      %v5080 = vpop.permute.xlu0 %5079
      %5081 = vrot.lane.b32.xlu0 %v4160, 127
      %v5082 = vpop.permute.xlu0 %5081
      %5083 = vrot.lane.b32.xlu0 %v4162, 127
      %v5084 = vpop.permute.xlu0 %5083
      %5085 = vrot.lane.b32.xlu0 %v4157, 127
      %v5086 = vpop.permute.xlu0 %5085
      %5087 = vrot.lane.b32.xlu0 %v4159, 127
      %v5088 = vpop.permute.xlu0 %5087
      %5089 = vrot.lane.b32.xlu0 %v4161, 127
      %v5090 = vpop.permute.xlu0 %5089
      %5091 = vrot.lane.b32.xlu0 %v4163, 127
      %v5092 = vpop.permute.xlu0 %5091
      %v5093 = vsel %vm1098, %v5078, %v5086
      %v5094 = vsel %vm1098, %v5080, %v5088
      %v5095 = vsel %vm1098, %v5082, %v5090
      %v5096 = vsel %vm1098, %v5084, %v5092
      %v5097 = vsel %vm1098, %v5086, %v5078
      %v5098 = vsel %vm1098, %v5088, %v5080
      %v5099 = vsel %vm1098, %v5090, %v5082
      %v5100 = vsel %vm1098, %v5092, %v5084
      %v5101 = vmul.f32 %v5093, %v1107
      %v5102 = vmul.f32 %v5097, %v1111
      %v5103 = vmul.f32 %v5094, %v1107
      %v5104 = vmul.f32 %v5098, %v1111
      %v5105 = vmul.f32 %v5095, %v1107
      %v5106 = vmul.f32 %v5099, %v1111
      %v5107 = vmul.f32 %v5096, %v1107
      %v5108 = vmul.f32 %v5100, %v1111
      %s5109 = scalar_lea.vmem %s8, 320
      %v5110 = vld [vmem:[%s5109] sm:$0xff]
      %v5111 = vld [vmem:[%s5109 + $0x8] sm:$0xff]
      %v5112 = vld [vmem:[%s5109 + $0x10] sm:$0xff]
      %v5113 = vld [vmem:[%s5109 + $0x18] sm:$0xff]
      %v5114 = vld [vmem:[%s5109 + $0x20] sm:$0xff]
      %v5115 = vld [vmem:[%s5109 + $0x28] sm:$0xff]
      %v5116 = vld [vmem:[%s5109 + $0x30] sm:$0xff]
      %v5117 = vld [vmem:[%s5109 + $0x38] sm:$0xff]
      %v5119 = vsel %vm1769, %v5110, 0
      %v5122 = vsel %vm1769, %v5111, 0
      %v5125 = vsel %vm1769, %v5112, 0
      %v5128 = vsel %vm1769, %v5113, 0
      %v5131 = vsel %vm1769, %v5114, 0
      %v5134 = vsel %vm1769, %v5115, 0
      %v5137 = vsel %vm1769, %v5116, 0
      %v5140 = vsel %vm1769, %v5117, 0
      %5142 = vmatprep.subr.mxu0 0.0
      %5143 = vmatpush1.msra.mxu0 0.0
      %5144 = vmatprep.subr.mxu0 0.0
      %5145 = vmatpush1.msra.mxu0 0.0
      %5146 = vmatprep.subr.mxu0 0.0
      %5147 = vmatpush1.msra.mxu0 0.0
      %5148 = vmatprep.subr.mxu0 0.0
      %5149 = vmatpush1.msra.mxu0 0.0
      %5150 = vmatprep.subr.mxu0 0.0
      %5151 = vmatpush1.msra.mxu0 0.0
      %5152 = vmatprep.subr.mxu0 0.0
      %5153 = vmatpush1.msra.mxu0 0.0
      %5154 = vmatprep.subr.mxu0 0.0
      %5155 = vmatpush1.msra.mxu0 0.0
      %5156 = vmatprep.subr.mxu0 0.0
      %5157 = vmatpush1.msra.mxu0 0.0
      %5158 = vmatprep.subr.mxu0 0.0
      %5159 = vmatpush1.msra.mxu0 0.0
      %5160 = vmatprep.subr.mxu0 0.0
      %5161 = vmatpush1.msra.mxu0 0.0
      %5162 = vmatprep.subr.mxu0 0.0
      %5163 = vmatpush1.msra.mxu0 0.0
      %5164 = vmatprep.subr.mxu0 0.0
      %5165 = vmatpush1.msra.mxu0 0.0
      %5166 = vmatprep.subr.mxu0 %v5108
      %5167 = vmatpush1.msra.mxu0 %v5107
      %5168 = vmatprep.subr.mxu0 %v5106
      %5169 = vmatpush1.msra.mxu0 %v5105
      %5170 = vmatprep.subr.mxu0 %v5104
      %5171 = vmatpush1.msra.mxu0 %v5103
      %5172 = vmatprep.subr.mxu0 %v5102
      %5173 = vmatpush1.msra.mxu0 %v5101
      %5174 = vmatprep.subr.mxu0 0.0
      %5175 = vmatpush2.msra.mxu0 0.0
      %5176 = vmatprep.subr.mxu0 0.0
      %5177 = vmatpush2.msra.mxu0 0.0
      %5178 = vmatprep.subr.mxu0 0.0
      %5179 = vmatpush2.msra.mxu0 0.0
      %5180 = vmatprep.subr.mxu0 0.0
      %5181 = vmatpush2.msra.mxu0 0.0
      %5182 = vmatprep.subr.mxu0 0.0
      %5183 = vmatpush2.msra.mxu0 0.0
      %5184 = vmatprep.subr.mxu0 0.0
      %5185 = vmatpush2.msra.mxu0 0.0
      %5186 = vmatprep.subr.mxu0 0.0
      %5187 = vmatpush2.msra.mxu0 0.0
      %5188 = vmatprep.subr.mxu0 0.0
      %5189 = vmatpush2.msra.mxu0 0.0
      %5190 = vmatprep.subr.mxu0 0.0
      %5191 = vmatpush2.msra.mxu0 0.0
      %5192 = vmatprep.subr.mxu0 0.0
      %5193 = vmatpush2.msra.mxu0 0.0
      %5194 = vmatprep.subr.mxu0 0.0
      %5195 = vmatpush2.msra.mxu0 0.0
      %5196 = vmatprep.subr.mxu0 0.0
      %5197 = vmatpush2.msra.mxu0 0.0
      %5198 = vmatprep.subr.mxu0 0.0
      %5199 = vmatpush2.msra.mxu0 0.0
      %5200 = vmatprep.subr.mxu0 0.0
      %5201 = vmatpush2.msra.mxu0 0.0
      %5202 = vmatprep.subr.mxu0 0.0
      %5203 = vmatpush2.msra.mxu0 0.0
      %5204 = vmatprep.subr.mxu0 0.0
      %5205 = vmatpush2.msra.mxu0 0.0
      %5206 = vmatprep.mubr.f32.mxu0 0.0
      %5207 = vmatmul.mubr.f32.gmra.mxu0 %v5119
      %v5208 = vpop.f32.mrf.mxu0
      %v5209 = vadd.f32 0.0, %v5208
      %v5210 = vpop.f32.mrf.mxu0
      %v5211 = vadd.f32 0.0, %v5210
      %5212 = vmatprep.mubr.f32.mxu0 0.0
      %5213 = vmatmul.mubr.f32.gmra.mxu0 %v5122
      %v5214 = vpop.f32.mrf.mxu0
      %v5215 = vadd.f32 0.0, %v5214
      %v5216 = vpop.f32.mrf.mxu0
      %v5217 = vadd.f32 0.0, %v5216
      %5218 = vmatprep.mubr.f32.mxu0 0.0
      %5219 = vmatmul.mubr.f32.gmra.mxu0 %v5125
      %v5220 = vpop.f32.mrf.mxu0
      %v5221 = vadd.f32 0.0, %v5220
      %v5222 = vpop.f32.mrf.mxu0
      %v5223 = vadd.f32 0.0, %v5222
      %5224 = vmatprep.mubr.f32.mxu0 0.0
      %5225 = vmatmul.mubr.f32.gmra.mxu0 %v5128
      %v5226 = vpop.f32.mrf.mxu0
      %v5227 = vadd.f32 0.0, %v5226
      %v5228 = vpop.f32.mrf.mxu0
      %v5229 = vadd.f32 0.0, %v5228
      %5230 = vmatprep.mubr.f32.mxu0 0.0
      %5231 = vmatmul.mubr.f32.gmra.mxu0 %v5131
      %v5232 = vpop.f32.mrf.mxu0
      %v5233 = vadd.f32 0.0, %v5232
      %v5234 = vpop.f32.mrf.mxu0
      %v5235 = vadd.f32 0.0, %v5234
      %5236 = vmatprep.mubr.f32.mxu0 0.0
      %5237 = vmatmul.mubr.f32.gmra.mxu0 %v5134
      %v5238 = vpop.f32.mrf.mxu0
      %v5239 = vadd.f32 0.0, %v5238
      %v5240 = vpop.f32.mrf.mxu0
      %v5241 = vadd.f32 0.0, %v5240
      %5242 = vmatprep.mubr.f32.mxu0 0.0
      %5243 = vmatmul.mubr.f32.gmra.mxu0 %v5137
      %v5244 = vpop.f32.mrf.mxu0
      %v5245 = vadd.f32 0.0, %v5244
      %v5246 = vpop.f32.mrf.mxu0
      %v5247 = vadd.f32 0.0, %v5246
      %5248 = vmatprep.mubr.f32.mxu0 0.0
      %5249 = vmatmul.mubr.f32.gmra.mxu0 %v5140
      %v5250 = vpop.f32.mrf.mxu0
      %v5251 = vadd.f32 0.0, %v5250
      %v5252 = vpop.f32.mrf.mxu0
      %v5253 = vadd.f32 0.0, %v5252
      %5254 = vdwg.mxu0
      %v5255 = vadd.f32 %v5061, %v5209
      %v5256 = vadd.f32 %v5062, %v5211
      %v5257 = vadd.f32 %v5063, %v5215
      %v5258 = vadd.f32 %v5064, %v5217
      %v5259 = vadd.f32 %v5065, %v5221
      %v5260 = vadd.f32 %v5066, %v5223
      %v5261 = vadd.f32 %v5067, %v5227
      %v5262 = vadd.f32 %v5068, %v5229
      %v5263 = vadd.f32 %v5069, %v5233
      %v5264 = vadd.f32 %v5070, %v5235
      %v5265 = vadd.f32 %v5071, %v5239
      %v5266 = vadd.f32 %v5072, %v5241
      %v5267 = vadd.f32 %v5073, %v5245
      %v5268 = vadd.f32 %v5074, %v5247
      %v5269 = vadd.f32 %v5075, %v5251
      %v5270 = vadd.f32 %v5076, %v5253
      %5271 = vrot.lane.b32.xlu0 %v4156, 113
      %v5272 = vpop.permute.xlu0 %5271
      %5273 = vrot.lane.b32.xlu0 %v4158, 113
      %v5274 = vpop.permute.xlu0 %5273
      %5275 = vrot.lane.b32.xlu0 %v4160, 113
      %v5276 = vpop.permute.xlu0 %5275
      %5277 = vrot.lane.b32.xlu0 %v4162, 113
      %v5278 = vpop.permute.xlu0 %5277
      %5279 = vrot.lane.b32.xlu0 %v4157, 113
      %v5280 = vpop.permute.xlu0 %5279
      %5281 = vrot.lane.b32.xlu0 %v4159, 113
      %v5282 = vpop.permute.xlu0 %5281
      %5283 = vrot.lane.b32.xlu0 %v4161, 113
      %v5284 = vpop.permute.xlu0 %5283
      %5285 = vrot.lane.b32.xlu0 %v4163, 113
      %v5286 = vpop.permute.xlu0 %5285
      %v5287 = vsel %vm1240, %v5272, %v5280
      %v5288 = vsel %vm1240, %v5274, %v5282
      %v5289 = vsel %vm1240, %v5276, %v5284
      %v5290 = vsel %vm1240, %v5278, %v5286
      %v5291 = vsel %vm1240, %v5280, %v5272
      %v5292 = vsel %vm1240, %v5282, %v5274
      %v5293 = vsel %vm1240, %v5284, %v5276
      %v5294 = vsel %vm1240, %v5286, %v5278
      %v5295 = vmul.f32 %v5287, %v1249
      %v5296 = vmul.f32 %v5291, %v1253
      %v5297 = vmul.f32 %v5288, %v1249
      %v5298 = vmul.f32 %v5292, %v1253
      %v5299 = vmul.f32 %v5289, %v1249
      %v5300 = vmul.f32 %v5293, %v1253
      %v5301 = vmul.f32 %v5290, %v1249
      %v5302 = vmul.f32 %v5294, %v1253
      %s5303 = scalar_lea.vmem %s8, 384
      %v5304 = vld [vmem:[%s5303] sm:$0xff]
      %v5305 = vld [vmem:[%s5303 + $0x8] sm:$0xff]
      %v5306 = vld [vmem:[%s5303 + $0x10] sm:$0xff]
      %v5307 = vld [vmem:[%s5303 + $0x18] sm:$0xff]
      %v5308 = vld [vmem:[%s5303 + $0x20] sm:$0xff]
      %v5309 = vld [vmem:[%s5303 + $0x28] sm:$0xff]
      %v5310 = vld [vmem:[%s5303 + $0x30] sm:$0xff]
      %v5311 = vld [vmem:[%s5303 + $0x38] sm:$0xff]
      %v5313 = vsel %vm1769, %v5304, 0
      %v5316 = vsel %vm1769, %v5305, 0
      %v5319 = vsel %vm1769, %v5306, 0
      %v5322 = vsel %vm1769, %v5307, 0
      %v5325 = vsel %vm1769, %v5308, 0
      %v5328 = vsel %vm1769, %v5309, 0
      %v5331 = vsel %vm1769, %v5310, 0
      %v5334 = vsel %vm1769, %v5311, 0
      %5336 = vmatprep.subr.mxu0 0.0
      %5337 = vmatpush1.msra.mxu0 0.0
      %5338 = vmatprep.subr.mxu0 0.0
      %5339 = vmatpush1.msra.mxu0 0.0
      %5340 = vmatprep.subr.mxu0 0.0
      %5341 = vmatpush1.msra.mxu0 0.0
      %5342 = vmatprep.subr.mxu0 0.0
      %5343 = vmatpush1.msra.mxu0 0.0
      %5344 = vmatprep.subr.mxu0 0.0
      %5345 = vmatpush1.msra.mxu0 0.0
      %5346 = vmatprep.subr.mxu0 0.0
      %5347 = vmatpush1.msra.mxu0 0.0
      %5348 = vmatprep.subr.mxu0 0.0
      %5349 = vmatpush1.msra.mxu0 0.0
      %5350 = vmatprep.subr.mxu0 0.0
      %5351 = vmatpush1.msra.mxu0 0.0
      %5352 = vmatprep.subr.mxu0 0.0
      %5353 = vmatpush1.msra.mxu0 0.0
      %5354 = vmatprep.subr.mxu0 0.0
      %5355 = vmatpush1.msra.mxu0 0.0
      %5356 = vmatprep.subr.mxu0 0.0
      %5357 = vmatpush1.msra.mxu0 0.0
      %5358 = vmatprep.subr.mxu0 0.0
      %5359 = vmatpush1.msra.mxu0 0.0
      %5360 = vmatprep.subr.mxu0 %v5302
      %5361 = vmatpush1.msra.mxu0 %v5301
      %5362 = vmatprep.subr.mxu0 %v5300
      %5363 = vmatpush1.msra.mxu0 %v5299
      %5364 = vmatprep.subr.mxu0 %v5298
      %5365 = vmatpush1.msra.mxu0 %v5297
      %5366 = vmatprep.subr.mxu0 %v5296
      %5367 = vmatpush1.msra.mxu0 %v5295
      %5368 = vmatprep.subr.mxu0 0.0
      %5369 = vmatpush2.msra.mxu0 0.0
      %5370 = vmatprep.subr.mxu0 0.0
      %5371 = vmatpush2.msra.mxu0 0.0
      %5372 = vmatprep.subr.mxu0 0.0
      %5373 = vmatpush2.msra.mxu0 0.0
      %5374 = vmatprep.subr.mxu0 0.0
      %5375 = vmatpush2.msra.mxu0 0.0
      %5376 = vmatprep.subr.mxu0 0.0
      %5377 = vmatpush2.msra.mxu0 0.0
      %5378 = vmatprep.subr.mxu0 0.0
      %5379 = vmatpush2.msra.mxu0 0.0
      %5380 = vmatprep.subr.mxu0 0.0
      %5381 = vmatpush2.msra.mxu0 0.0
      %5382 = vmatprep.subr.mxu0 0.0
      %5383 = vmatpush2.msra.mxu0 0.0
      %5384 = vmatprep.subr.mxu0 0.0
      %5385 = vmatpush2.msra.mxu0 0.0
      %5386 = vmatprep.subr.mxu0 0.0
      %5387 = vmatpush2.msra.mxu0 0.0
      %5388 = vmatprep.subr.mxu0 0.0
      %5389 = vmatpush2.msra.mxu0 0.0
      %5390 = vmatprep.subr.mxu0 0.0
      %5391 = vmatpush2.msra.mxu0 0.0
      %5392 = vmatprep.subr.mxu0 0.0
      %5393 = vmatpush2.msra.mxu0 0.0
      %5394 = vmatprep.subr.mxu0 0.0
      %5395 = vmatpush2.msra.mxu0 0.0
      %5396 = vmatprep.subr.mxu0 0.0
      %5397 = vmatpush2.msra.mxu0 0.0
      %5398 = vmatprep.subr.mxu0 0.0
      %5399 = vmatpush2.msra.mxu0 0.0
      %5400 = vmatprep.mubr.f32.mxu0 0.0
      %5401 = vmatmul.mubr.f32.gmra.mxu0 %v5313
      %v5402 = vpop.f32.mrf.mxu0
      %v5403 = vadd.f32 0.0, %v5402
      %v5404 = vpop.f32.mrf.mxu0
      %v5405 = vadd.f32 0.0, %v5404
      %5406 = vmatprep.mubr.f32.mxu0 0.0
      %5407 = vmatmul.mubr.f32.gmra.mxu0 %v5316
      %v5408 = vpop.f32.mrf.mxu0
      %v5409 = vadd.f32 0.0, %v5408
      %v5410 = vpop.f32.mrf.mxu0
      %v5411 = vadd.f32 0.0, %v5410
      %5412 = vmatprep.mubr.f32.mxu0 0.0
      %5413 = vmatmul.mubr.f32.gmra.mxu0 %v5319
      %v5414 = vpop.f32.mrf.mxu0
      %v5415 = vadd.f32 0.0, %v5414
      %v5416 = vpop.f32.mrf.mxu0
      %v5417 = vadd.f32 0.0, %v5416
      %5418 = vmatprep.mubr.f32.mxu0 0.0
      %5419 = vmatmul.mubr.f32.gmra.mxu0 %v5322
      %v5420 = vpop.f32.mrf.mxu0
      %v5421 = vadd.f32 0.0, %v5420
      %v5422 = vpop.f32.mrf.mxu0
      %v5423 = vadd.f32 0.0, %v5422
      %5424 = vmatprep.mubr.f32.mxu0 0.0
      %5425 = vmatmul.mubr.f32.gmra.mxu0 %v5325
      %v5426 = vpop.f32.mrf.mxu0
      %v5427 = vadd.f32 0.0, %v5426
      %v5428 = vpop.f32.mrf.mxu0
      %v5429 = vadd.f32 0.0, %v5428
      %5430 = vmatprep.mubr.f32.mxu0 0.0
      %5431 = vmatmul.mubr.f32.gmra.mxu0 %v5328
      %v5432 = vpop.f32.mrf.mxu0
      %v5433 = vadd.f32 0.0, %v5432
      %v5434 = vpop.f32.mrf.mxu0
      %v5435 = vadd.f32 0.0, %v5434
      %5436 = vmatprep.mubr.f32.mxu0 0.0
      %5437 = vmatmul.mubr.f32.gmra.mxu0 %v5331
      %v5438 = vpop.f32.mrf.mxu0
      %v5439 = vadd.f32 0.0, %v5438
      %v5440 = vpop.f32.mrf.mxu0
      %v5441 = vadd.f32 0.0, %v5440
      %5442 = vmatprep.mubr.f32.mxu0 0.0
      %5443 = vmatmul.mubr.f32.gmra.mxu0 %v5334
      %v5444 = vpop.f32.mrf.mxu0
      %v5445 = vadd.f32 0.0, %v5444
      %v5446 = vpop.f32.mrf.mxu0
      %v5447 = vadd.f32 0.0, %v5446
      %5448 = vdwg.mxu0
      %v5449 = vadd.f32 %v5255, %v5403
      %v5450 = vadd.f32 %v5256, %v5405
      %v5451 = vadd.f32 %v5257, %v5409
      %v5452 = vadd.f32 %v5258, %v5411
      %v5453 = vadd.f32 %v5259, %v5415
      %v5454 = vadd.f32 %v5260, %v5417
      %v5455 = vadd.f32 %v5261, %v5421
      %v5456 = vadd.f32 %v5262, %v5423
      %v5457 = vadd.f32 %v5263, %v5427
      %v5458 = vadd.f32 %v5264, %v5429
      %v5459 = vadd.f32 %v5265, %v5433
      %v5460 = vadd.f32 %v5266, %v5435
      %v5461 = vadd.f32 %v5267, %v5439
      %v5462 = vadd.f32 %v5268, %v5441
      %v5463 = vadd.f32 %v5269, %v5445
      %v5464 = vadd.f32 %v5270, %v5447
      %5465 = vrot.lane.b32.xlu0 %v4156, 112
      %v5466 = vpop.permute.xlu0 %5465
      %5467 = vrot.lane.b32.xlu0 %v4158, 112
      %v5468 = vpop.permute.xlu0 %5467
      %5469 = vrot.lane.b32.xlu0 %v4160, 112
      %v5470 = vpop.permute.xlu0 %5469
      %5471 = vrot.lane.b32.xlu0 %v4162, 112
      %v5472 = vpop.permute.xlu0 %5471
      %5473 = vrot.lane.b32.xlu0 %v4157, 112
      %v5474 = vpop.permute.xlu0 %5473
      %5475 = vrot.lane.b32.xlu0 %v4159, 112
      %v5476 = vpop.permute.xlu0 %5475
      %5477 = vrot.lane.b32.xlu0 %v4161, 112
      %v5478 = vpop.permute.xlu0 %5477
      %5479 = vrot.lane.b32.xlu0 %v4163, 112
      %v5480 = vpop.permute.xlu0 %5479
      %v5481 = vsel %vm1382, %v5466, %v5474
      %v5482 = vsel %vm1382, %v5468, %v5476
      %v5483 = vsel %vm1382, %v5470, %v5478
      %v5484 = vsel %vm1382, %v5472, %v5480
      %v5485 = vsel %vm1382, %v5474, %v5466
      %v5486 = vsel %vm1382, %v5476, %v5468
      %v5487 = vsel %vm1382, %v5478, %v5470
      %v5488 = vsel %vm1382, %v5480, %v5472
      %v5489 = vmul.f32 %v5481, %v1391
      %v5490 = vmul.f32 %v5485, %v1395
      %v5491 = vmul.f32 %v5482, %v1391
      %v5492 = vmul.f32 %v5486, %v1395
      %v5493 = vmul.f32 %v5483, %v1391
      %v5494 = vmul.f32 %v5487, %v1395
      %v5495 = vmul.f32 %v5484, %v1391
      %v5496 = vmul.f32 %v5488, %v1395
      %s5497 = scalar_lea.vmem %s8, 448
      %v5498 = vld [vmem:[%s5497] sm:$0xff]
      %v5499 = vld [vmem:[%s5497 + $0x8] sm:$0xff]
      %v5500 = vld [vmem:[%s5497 + $0x10] sm:$0xff]
      %v5501 = vld [vmem:[%s5497 + $0x18] sm:$0xff]
      %v5502 = vld [vmem:[%s5497 + $0x20] sm:$0xff]
      %v5503 = vld [vmem:[%s5497 + $0x28] sm:$0xff]
      %v5504 = vld [vmem:[%s5497 + $0x30] sm:$0xff]
      %v5505 = vld [vmem:[%s5497 + $0x38] sm:$0xff]
      %v5507 = vsel %vm1769, %v5498, 0
      %v5510 = vsel %vm1769, %v5499, 0
      %v5513 = vsel %vm1769, %v5500, 0
      %v5516 = vsel %vm1769, %v5501, 0
      %v5519 = vsel %vm1769, %v5502, 0
      %v5522 = vsel %vm1769, %v5503, 0
      %v5525 = vsel %vm1769, %v5504, 0
      %v5528 = vsel %vm1769, %v5505, 0
      %5530 = vmatprep.subr.mxu0 0.0
      %5531 = vmatpush1.msra.mxu0 0.0
      %5532 = vmatprep.subr.mxu0 0.0
      %5533 = vmatpush1.msra.mxu0 0.0
      %5534 = vmatprep.subr.mxu0 0.0
      %5535 = vmatpush1.msra.mxu0 0.0
      %5536 = vmatprep.subr.mxu0 0.0
      %5537 = vmatpush1.msra.mxu0 0.0
      %5538 = vmatprep.subr.mxu0 0.0
      %5539 = vmatpush1.msra.mxu0 0.0
      %5540 = vmatprep.subr.mxu0 0.0
      %5541 = vmatpush1.msra.mxu0 0.0
      %5542 = vmatprep.subr.mxu0 0.0
      %5543 = vmatpush1.msra.mxu0 0.0
      %5544 = vmatprep.subr.mxu0 0.0
      %5545 = vmatpush1.msra.mxu0 0.0
      %5546 = vmatprep.subr.mxu0 0.0
      %5547 = vmatpush1.msra.mxu0 0.0
      %5548 = vmatprep.subr.mxu0 0.0
      %5549 = vmatpush1.msra.mxu0 0.0
      %5550 = vmatprep.subr.mxu0 0.0
      %5551 = vmatpush1.msra.mxu0 0.0
      %5552 = vmatprep.subr.mxu0 0.0
      %5553 = vmatpush1.msra.mxu0 0.0
      %5554 = vmatprep.subr.mxu0 %v5496
      %5555 = vmatpush1.msra.mxu0 %v5495
      %5556 = vmatprep.subr.mxu0 %v5494
      %5557 = vmatpush1.msra.mxu0 %v5493
      %5558 = vmatprep.subr.mxu0 %v5492
      %5559 = vmatpush1.msra.mxu0 %v5491
      %5560 = vmatprep.subr.mxu0 %v5490
      %5561 = vmatpush1.msra.mxu0 %v5489
      %5562 = vmatprep.subr.mxu0 0.0
      %5563 = vmatpush2.msra.mxu0 0.0
      %5564 = vmatprep.subr.mxu0 0.0
      %5565 = vmatpush2.msra.mxu0 0.0
      %5566 = vmatprep.subr.mxu0 0.0
      %5567 = vmatpush2.msra.mxu0 0.0
      %5568 = vmatprep.subr.mxu0 0.0
      %5569 = vmatpush2.msra.mxu0 0.0
      %5570 = vmatprep.subr.mxu0 0.0
      %5571 = vmatpush2.msra.mxu0 0.0
      %5572 = vmatprep.subr.mxu0 0.0
      %5573 = vmatpush2.msra.mxu0 0.0
      %5574 = vmatprep.subr.mxu0 0.0
      %5575 = vmatpush2.msra.mxu0 0.0
      %5576 = vmatprep.subr.mxu0 0.0
      %5577 = vmatpush2.msra.mxu0 0.0
      %5578 = vmatprep.subr.mxu0 0.0
      %5579 = vmatpush2.msra.mxu0 0.0
      %5580 = vmatprep.subr.mxu0 0.0
      %5581 = vmatpush2.msra.mxu0 0.0
      %5582 = vmatprep.subr.mxu0 0.0
      %5583 = vmatpush2.msra.mxu0 0.0
      %5584 = vmatprep.subr.mxu0 0.0
      %5585 = vmatpush2.msra.mxu0 0.0
      %5586 = vmatprep.subr.mxu0 0.0
      %5587 = vmatpush2.msra.mxu0 0.0
      %5588 = vmatprep.subr.mxu0 0.0
      %5589 = vmatpush2.msra.mxu0 0.0
      %5590 = vmatprep.subr.mxu0 0.0
      %5591 = vmatpush2.msra.mxu0 0.0
      %5592 = vmatprep.subr.mxu0 0.0
      %5593 = vmatpush2.msra.mxu0 0.0
      %5594 = vmatprep.mubr.f32.mxu0 0.0
      %5595 = vmatmul.mubr.f32.gmra.mxu0 %v5507
      %v5596 = vpop.f32.mrf.mxu0
      %v5597 = vadd.f32 0.0, %v5596
      %v5598 = vpop.f32.mrf.mxu0
      %v5599 = vadd.f32 0.0, %v5598
      %5600 = vmatprep.mubr.f32.mxu0 0.0
      %5601 = vmatmul.mubr.f32.gmra.mxu0 %v5510
      %v5602 = vpop.f32.mrf.mxu0
      %v5603 = vadd.f32 0.0, %v5602
      %v5604 = vpop.f32.mrf.mxu0
      %v5605 = vadd.f32 0.0, %v5604
      %5606 = vmatprep.mubr.f32.mxu0 0.0
      %5607 = vmatmul.mubr.f32.gmra.mxu0 %v5513
      %v5608 = vpop.f32.mrf.mxu0
      %v5609 = vadd.f32 0.0, %v5608
      %v5610 = vpop.f32.mrf.mxu0
      %v5611 = vadd.f32 0.0, %v5610
      %5612 = vmatprep.mubr.f32.mxu0 0.0
      %5613 = vmatmul.mubr.f32.gmra.mxu0 %v5516
      %v5614 = vpop.f32.mrf.mxu0
      %v5615 = vadd.f32 0.0, %v5614
      %v5616 = vpop.f32.mrf.mxu0
      %v5617 = vadd.f32 0.0, %v5616
      %5618 = vmatprep.mubr.f32.mxu0 0.0
      %5619 = vmatmul.mubr.f32.gmra.mxu0 %v5519
      %v5620 = vpop.f32.mrf.mxu0
      %v5621 = vadd.f32 0.0, %v5620
      %v5622 = vpop.f32.mrf.mxu0
      %v5623 = vadd.f32 0.0, %v5622
      %5624 = vmatprep.mubr.f32.mxu0 0.0
      %5625 = vmatmul.mubr.f32.gmra.mxu0 %v5522
      %v5626 = vpop.f32.mrf.mxu0
      %v5627 = vadd.f32 0.0, %v5626
      %v5628 = vpop.f32.mrf.mxu0
      %v5629 = vadd.f32 0.0, %v5628
      %5630 = vmatprep.mubr.f32.mxu0 0.0
      %5631 = vmatmul.mubr.f32.gmra.mxu0 %v5525
      %v5632 = vpop.f32.mrf.mxu0
      %v5633 = vadd.f32 0.0, %v5632
      %v5634 = vpop.f32.mrf.mxu0
      %v5635 = vadd.f32 0.0, %v5634
      %5636 = vmatprep.mubr.f32.mxu0 0.0
      %5637 = vmatmul.mubr.f32.gmra.mxu0 %v5528
      %v5638 = vpop.f32.mrf.mxu0
      %v5639 = vadd.f32 0.0, %v5638
      %v5640 = vpop.f32.mrf.mxu0
      %v5641 = vadd.f32 0.0, %v5640
      %5642 = vdwg.mxu0
      %v5643 = vadd.f32 %v5449, %v5597
      %v5644 = vadd.f32 %v5450, %v5599
      %v5645 = vadd.f32 %v5451, %v5603
      %v5646 = vadd.f32 %v5452, %v5605
      %v5647 = vadd.f32 %v5453, %v5609
      %v5648 = vadd.f32 %v5454, %v5611
      %v5649 = vadd.f32 %v5455, %v5615
      %v5650 = vadd.f32 %v5456, %v5617
      %v5651 = vadd.f32 %v5457, %v5621
      %v5652 = vadd.f32 %v5458, %v5623
      %v5653 = vadd.f32 %v5459, %v5627
      %v5654 = vadd.f32 %v5460, %v5629
      %v5655 = vadd.f32 %v5461, %v5633
      %v5656 = vadd.f32 %v5462, %v5635
      %v5657 = vadd.f32 %v5463, %v5639
      %v5658 = vadd.f32 %v5464, %v5641
      %5659 = vrot.lane.b32.xlu0 %v4156, 111
      %v5660 = vpop.permute.xlu0 %5659
      %5661 = vrot.lane.b32.xlu0 %v4158, 111
      %v5662 = vpop.permute.xlu0 %5661
      %5663 = vrot.lane.b32.xlu0 %v4160, 111
      %v5664 = vpop.permute.xlu0 %5663
      %5665 = vrot.lane.b32.xlu0 %v4162, 111
      %v5666 = vpop.permute.xlu0 %5665
      %5667 = vrot.lane.b32.xlu0 %v4157, 111
      %v5668 = vpop.permute.xlu0 %5667
      %5669 = vrot.lane.b32.xlu0 %v4159, 111
      %v5670 = vpop.permute.xlu0 %5669
      %5671 = vrot.lane.b32.xlu0 %v4161, 111
      %v5672 = vpop.permute.xlu0 %5671
      %5673 = vrot.lane.b32.xlu0 %v4163, 111
      %v5674 = vpop.permute.xlu0 %5673
      %v5675 = vsel %vm1524, %v5660, %v5668
      %v5676 = vsel %vm1524, %v5662, %v5670
      %v5677 = vsel %vm1524, %v5664, %v5672
      %v5678 = vsel %vm1524, %v5666, %v5674
      %v5679 = vsel %vm1524, %v5668, %v5660
      %v5680 = vsel %vm1524, %v5670, %v5662
      %v5681 = vsel %vm1524, %v5672, %v5664
      %v5682 = vsel %vm1524, %v5674, %v5666
      %v5683 = vmul.f32 %v5675, %v1533
      %v5684 = vmul.f32 %v5679, %v1537
      %v5685 = vmul.f32 %v5676, %v1533
      %v5686 = vmul.f32 %v5680, %v1537
      %v5687 = vmul.f32 %v5677, %v1533
      %v5688 = vmul.f32 %v5681, %v1537
      %v5689 = vmul.f32 %v5678, %v1533
      %v5690 = vmul.f32 %v5682, %v1537
      %s5691 = scalar_lea.vmem %s8, 512
      %v5692 = vld [vmem:[%s5691] sm:$0xff]
      %v5693 = vld [vmem:[%s5691 + $0x8] sm:$0xff]
      %v5694 = vld [vmem:[%s5691 + $0x10] sm:$0xff]
      %v5695 = vld [vmem:[%s5691 + $0x18] sm:$0xff]
      %v5696 = vld [vmem:[%s5691 + $0x20] sm:$0xff]
      %v5697 = vld [vmem:[%s5691 + $0x28] sm:$0xff]
      %v5698 = vld [vmem:[%s5691 + $0x30] sm:$0xff]
      %v5699 = vld [vmem:[%s5691 + $0x38] sm:$0xff]
      %v5701 = vsel %vm1769, %v5692, 0
      %v5704 = vsel %vm1769, %v5693, 0
      %v5707 = vsel %vm1769, %v5694, 0
      %v5710 = vsel %vm1769, %v5695, 0
      %v5713 = vsel %vm1769, %v5696, 0
      %v5716 = vsel %vm1769, %v5697, 0
      %v5719 = vsel %vm1769, %v5698, 0
      %v5722 = vsel %vm1769, %v5699, 0
      %5724 = vmatprep.subr.mxu0 0.0
      %5725 = vmatpush1.msra.mxu0 0.0
      %5726 = vmatprep.subr.mxu0 0.0
      %5727 = vmatpush1.msra.mxu0 0.0
      %5728 = vmatprep.subr.mxu0 0.0
      %5729 = vmatpush1.msra.mxu0 0.0
      %5730 = vmatprep.subr.mxu0 0.0
      %5731 = vmatpush1.msra.mxu0 0.0
      %5732 = vmatprep.subr.mxu0 0.0
      %5733 = vmatpush1.msra.mxu0 0.0
      %5734 = vmatprep.subr.mxu0 0.0
      %5735 = vmatpush1.msra.mxu0 0.0
      %5736 = vmatprep.subr.mxu0 0.0
      %5737 = vmatpush1.msra.mxu0 0.0
      %5738 = vmatprep.subr.mxu0 0.0
      %5739 = vmatpush1.msra.mxu0 0.0
      %5740 = vmatprep.subr.mxu0 0.0
      %5741 = vmatpush1.msra.mxu0 0.0
      %5742 = vmatprep.subr.mxu0 0.0
      %5743 = vmatpush1.msra.mxu0 0.0
      %5744 = vmatprep.subr.mxu0 0.0
      %5745 = vmatpush1.msra.mxu0 0.0
      %5746 = vmatprep.subr.mxu0 0.0
      %5747 = vmatpush1.msra.mxu0 0.0
      %5748 = vmatprep.subr.mxu0 %v5690
      %5749 = vmatpush1.msra.mxu0 %v5689
      %5750 = vmatprep.subr.mxu0 %v5688
      %5751 = vmatpush1.msra.mxu0 %v5687
      %5752 = vmatprep.subr.mxu0 %v5686
      %5753 = vmatpush1.msra.mxu0 %v5685
      %5754 = vmatprep.subr.mxu0 %v5684
      %5755 = vmatpush1.msra.mxu0 %v5683
      %5756 = vmatprep.subr.mxu0 0.0
      %5757 = vmatpush2.msra.mxu0 0.0
      %5758 = vmatprep.subr.mxu0 0.0
      %5759 = vmatpush2.msra.mxu0 0.0
      %5760 = vmatprep.subr.mxu0 0.0
      %5761 = vmatpush2.msra.mxu0 0.0
      %5762 = vmatprep.subr.mxu0 0.0
      %5763 = vmatpush2.msra.mxu0 0.0
      %5764 = vmatprep.subr.mxu0 0.0
      %5765 = vmatpush2.msra.mxu0 0.0
      %5766 = vmatprep.subr.mxu0 0.0
      %5767 = vmatpush2.msra.mxu0 0.0
      %5768 = vmatprep.subr.mxu0 0.0
      %5769 = vmatpush2.msra.mxu0 0.0
      %5770 = vmatprep.subr.mxu0 0.0
      %5771 = vmatpush2.msra.mxu0 0.0
      %5772 = vmatprep.subr.mxu0 0.0
      %5773 = vmatpush2.msra.mxu0 0.0
      %5774 = vmatprep.subr.mxu0 0.0
      %5775 = vmatpush2.msra.mxu0 0.0
      %5776 = vmatprep.subr.mxu0 0.0
      %5777 = vmatpush2.msra.mxu0 0.0
      %5778 = vmatprep.subr.mxu0 0.0
      %5779 = vmatpush2.msra.mxu0 0.0
      %5780 = vmatprep.subr.mxu0 0.0
      %5781 = vmatpush2.msra.mxu0 0.0
      %5782 = vmatprep.subr.mxu0 0.0
      %5783 = vmatpush2.msra.mxu0 0.0
      %5784 = vmatprep.subr.mxu0 0.0
      %5785 = vmatpush2.msra.mxu0 0.0
      %5786 = vmatprep.subr.mxu0 0.0
      %5787 = vmatpush2.msra.mxu0 0.0
      %5788 = vmatprep.mubr.f32.mxu0 0.0
      %5789 = vmatmul.mubr.f32.gmra.mxu0 %v5701
      %v5790 = vpop.f32.mrf.mxu0
      %v5791 = vadd.f32 0.0, %v5790
      %v5792 = vpop.f32.mrf.mxu0
      %v5793 = vadd.f32 0.0, %v5792
      %5794 = vmatprep.mubr.f32.mxu0 0.0
      %5795 = vmatmul.mubr.f32.gmra.mxu0 %v5704
      %v5796 = vpop.f32.mrf.mxu0
      %v5797 = vadd.f32 0.0, %v5796
      %v5798 = vpop.f32.mrf.mxu0
      %v5799 = vadd.f32 0.0, %v5798
      %5800 = vmatprep.mubr.f32.mxu0 0.0
      %5801 = vmatmul.mubr.f32.gmra.mxu0 %v5707
      %v5802 = vpop.f32.mrf.mxu0
      %v5803 = vadd.f32 0.0, %v5802
      %v5804 = vpop.f32.mrf.mxu0
      %v5805 = vadd.f32 0.0, %v5804
      %5806 = vmatprep.mubr.f32.mxu0 0.0
      %5807 = vmatmul.mubr.f32.gmra.mxu0 %v5710
      %v5808 = vpop.f32.mrf.mxu0
      %v5809 = vadd.f32 0.0, %v5808
      %v5810 = vpop.f32.mrf.mxu0
      %v5811 = vadd.f32 0.0, %v5810
      %5812 = vmatprep.mubr.f32.mxu0 0.0
      %5813 = vmatmul.mubr.f32.gmra.mxu0 %v5713
      %v5814 = vpop.f32.mrf.mxu0
      %v5815 = vadd.f32 0.0, %v5814
      %v5816 = vpop.f32.mrf.mxu0
      %v5817 = vadd.f32 0.0, %v5816
      %5818 = vmatprep.mubr.f32.mxu0 0.0
      %5819 = vmatmul.mubr.f32.gmra.mxu0 %v5716
      %v5820 = vpop.f32.mrf.mxu0
      %v5821 = vadd.f32 0.0, %v5820
      %v5822 = vpop.f32.mrf.mxu0
      %v5823 = vadd.f32 0.0, %v5822
      %5824 = vmatprep.mubr.f32.mxu0 0.0
      %5825 = vmatmul.mubr.f32.gmra.mxu0 %v5719
      %v5826 = vpop.f32.mrf.mxu0
      %v5827 = vadd.f32 0.0, %v5826
      %v5828 = vpop.f32.mrf.mxu0
      %v5829 = vadd.f32 0.0, %v5828
      %5830 = vmatprep.mubr.f32.mxu0 0.0
      %5831 = vmatmul.mubr.f32.gmra.mxu0 %v5722
      %v5832 = vpop.f32.mrf.mxu0
      %v5833 = vadd.f32 0.0, %v5832
      %v5834 = vpop.f32.mrf.mxu0
      %v5835 = vadd.f32 0.0, %v5834
      %5836 = vdwg.mxu0
      %v5837 = vadd.f32 %v5643, %v5791
      %v5838 = vadd.f32 %v5644, %v5793
      %v5839 = vadd.f32 %v5645, %v5797
      %v5840 = vadd.f32 %v5646, %v5799
      %v5841 = vadd.f32 %v5647, %v5803
      %v5842 = vadd.f32 %v5648, %v5805
      %v5843 = vadd.f32 %v5649, %v5809
      %v5844 = vadd.f32 %v5650, %v5811
      %v5845 = vadd.f32 %v5651, %v5815
      %v5846 = vadd.f32 %v5652, %v5817
      %v5847 = vadd.f32 %v5653, %v5821
      %v5848 = vadd.f32 %v5654, %v5823
      %v5849 = vadd.f32 %v5655, %v5827
      %v5850 = vadd.f32 %v5656, %v5829
      %v5851 = vadd.f32 %v5657, %v5833
      %v5852 = vadd.f32 %v5658, %v5835
      %5854 = vset.pattern.permute.xlu0 0
      %5855 = vperm.xlu0 %5854, %v4164
      %v5856 = vpop.permute.xlu0 %5855
      %5859 = vset.pattern.permute.xlu0 0
      %5860 = vperm.xlu0 %5859, %v4165
      %v5861 = vpop.permute.xlu0 %5860
      %5864 = vset.pattern.permute.xlu0 0
      %5865 = vperm.xlu0 %5864, %v4166
      %v5866 = vpop.permute.xlu0 %5865
      %5869 = vset.pattern.permute.xlu0 0
      %5870 = vperm.xlu0 %5869, %v4167
      %v5871 = vpop.permute.xlu0 %5870
      %5874 = vset.pattern.permute.xlu0 0
      %5875 = vperm.xlu0 %5874, %v4168
      %v5876 = vpop.permute.xlu0 %5875
      %5879 = vset.pattern.permute.xlu0 0
      %5880 = vperm.xlu0 %5879, %v4169
      %v5881 = vpop.permute.xlu0 %5880
      %5884 = vset.pattern.permute.xlu0 0
      %5885 = vperm.xlu0 %5884, %v4170
      %v5886 = vpop.permute.xlu0 %5885
      %5889 = vset.pattern.permute.xlu0 0
      %5890 = vperm.xlu0 %5889, %v4171
      %v5891 = vpop.permute.xlu0 %5890
      %v5893 = vadd.f32 %v5837, %v5856
      %v5894 = vadd.f32 %v5838, %v5856
      %v5895 = vadd.f32 %v5839, %v5861
      %v5896 = vadd.f32 %v5840, %v5861
      %v5897 = vadd.f32 %v5841, %v5866
      %v5898 = vadd.f32 %v5842, %v5866
      %v5899 = vadd.f32 %v5843, %v5871
      %v5900 = vadd.f32 %v5844, %v5871
      %v5901 = vadd.f32 %v5845, %v5876
      %v5902 = vadd.f32 %v5846, %v5876
      %v5903 = vadd.f32 %v5847, %v5881
      %v5904 = vadd.f32 %v5848, %v5881
      %v5905 = vadd.f32 %v5849, %v5886
      %v5906 = vadd.f32 %v5850, %v5886
      %v5907 = vadd.f32 %v5851, %v5891
      %v5908 = vadd.f32 %v5852, %v5891
      %v5909 = vmax.f32 %v5893, 0.0
      %v5910 = vmax.f32 %v5894, 0.0
      %v5911 = vmax.f32 %v5895, 0.0
      %v5912 = vmax.f32 %v5896, 0.0
      %v5913 = vmax.f32 %v5897, 0.0
      %v5914 = vmax.f32 %v5898, 0.0
      %v5915 = vmax.f32 %v5899, 0.0
      %v5916 = vmax.f32 %v5900, 0.0
      %v5917 = vmax.f32 %v5901, 0.0
      %v5918 = vmax.f32 %v5902, 0.0
      %v5919 = vmax.f32 %v5903, 0.0
      %v5920 = vmax.f32 %v5904, 0.0
      %v5921 = vmax.f32 %v5905, 0.0
      %v5922 = vmax.f32 %v5906, 0.0
      %v5923 = vmax.f32 %v5907, 0.0
      %v5924 = vmax.f32 %v5908, 0.0
      %v5925 = vld [vmem:[%s11] sm:$0xff]
      %v5926 = vld [vmem:[%s11 + $0x8] sm:$0xff]
      %5927 = vrot.lane.b32.xlu0 %v5909, 17
      %v5928 = vpop.permute.xlu0 %5927
      %5929 = vrot.lane.b32.xlu0 %v5911, 17
      %v5930 = vpop.permute.xlu0 %5929
      %5931 = vrot.lane.b32.xlu0 %v5913, 17
      %v5932 = vpop.permute.xlu0 %5931
      %5933 = vrot.lane.b32.xlu0 %v5915, 17
      %v5934 = vpop.permute.xlu0 %5933
      %5935 = vrot.lane.b32.xlu0 %v5917, 17
      %v5936 = vpop.permute.xlu0 %5935
      %5937 = vrot.lane.b32.xlu0 %v5919, 17
      %v5938 = vpop.permute.xlu0 %5937
      %5939 = vrot.lane.b32.xlu0 %v5921, 17
      %v5940 = vpop.permute.xlu0 %5939
      %5941 = vrot.lane.b32.xlu0 %v5923, 17
      %v5942 = vpop.permute.xlu0 %5941
      %5943 = vrot.lane.b32.xlu0 %v5910, 17
      %v5944 = vpop.permute.xlu0 %5943
      %5945 = vrot.lane.b32.xlu0 %v5912, 17
      %v5946 = vpop.permute.xlu0 %5945
      %5947 = vrot.lane.b32.xlu0 %v5914, 17
      %v5948 = vpop.permute.xlu0 %5947
      %5949 = vrot.lane.b32.xlu0 %v5916, 17
      %v5950 = vpop.permute.xlu0 %5949
      %5951 = vrot.lane.b32.xlu0 %v5918, 17
      %v5952 = vpop.permute.xlu0 %5951
      %5953 = vrot.lane.b32.xlu0 %v5920, 17
      %v5954 = vpop.permute.xlu0 %5953
      %5955 = vrot.lane.b32.xlu0 %v5922, 17
      %v5956 = vpop.permute.xlu0 %5955
      %5957 = vrot.lane.b32.xlu0 %v5924, 17
      %v5958 = vpop.permute.xlu0 %5957
      %v5959 = vsel %vm428, %v5928, %v5944
      %v5960 = vsel %vm428, %v5930, %v5946
      %v5961 = vsel %vm428, %v5932, %v5948
      %v5962 = vsel %vm428, %v5934, %v5950
      %v5963 = vsel %vm428, %v5936, %v5952
      %v5964 = vsel %vm428, %v5938, %v5954
      %v5965 = vsel %vm428, %v5940, %v5956
      %v5966 = vsel %vm428, %v5942, %v5958
      %v5967 = vsel %vm428, %v5944, %v5928
      %v5968 = vsel %vm428, %v5946, %v5930
      %v5969 = vsel %vm428, %v5948, %v5932
      %v5970 = vsel %vm428, %v5950, %v5934
      %v5971 = vsel %vm428, %v5952, %v5936
      %v5972 = vsel %vm428, %v5954, %v5938
      %v5973 = vsel %vm428, %v5956, %v5940
      %v5974 = vsel %vm428, %v5958, %v5942
      %v5975 = vmul.f32 %v5967, %v436
      %v5976 = vmul.f32 %v5959, %v440
      %v5977 = vmul.f32 %v5968, %v436
      %v5978 = vmul.f32 %v5960, %v440
      %v5979 = vmul.f32 %v5969, %v436
      %v5980 = vmul.f32 %v5961, %v440
      %v5981 = vmul.f32 %v5970, %v436
      %v5982 = vmul.f32 %v5962, %v440
      %v5983 = vmul.f32 %v5971, %v436
      %v5984 = vmul.f32 %v5963, %v440
      %v5985 = vmul.f32 %v5972, %v436
      %v5986 = vmul.f32 %v5964, %v440
      %v5987 = vmul.f32 %v5973, %v436
      %v5988 = vmul.f32 %v5965, %v440
      %v5989 = vmul.f32 %v5974, %v436
      %v5990 = vmul.f32 %v5966, %v440
      %v5991 = vld [vmem:[%s10] sm:$0xff]
      %v5992 = vld [vmem:[%s10 + $0x8] sm:$0xff]
      %5993 = vrot.lane.b32.xlu0 %v5909, 16
      %v5994 = vpop.permute.xlu0 %5993
      %5995 = vrot.lane.b32.xlu0 %v5911, 16
      %v5996 = vpop.permute.xlu0 %5995
      %5997 = vrot.lane.b32.xlu0 %v5913, 16
      %v5998 = vpop.permute.xlu0 %5997
      %5999 = vrot.lane.b32.xlu0 %v5915, 16
      %v6000 = vpop.permute.xlu0 %5999
      %6001 = vrot.lane.b32.xlu0 %v5917, 16
      %v6002 = vpop.permute.xlu0 %6001
      %6003 = vrot.lane.b32.xlu0 %v5919, 16
      %v6004 = vpop.permute.xlu0 %6003
      %6005 = vrot.lane.b32.xlu0 %v5921, 16
      %v6006 = vpop.permute.xlu0 %6005
      %6007 = vrot.lane.b32.xlu0 %v5923, 16
      %v6008 = vpop.permute.xlu0 %6007
      %6009 = vrot.lane.b32.xlu0 %v5910, 16
      %v6010 = vpop.permute.xlu0 %6009
      %6011 = vrot.lane.b32.xlu0 %v5912, 16
      %v6012 = vpop.permute.xlu0 %6011
      %6013 = vrot.lane.b32.xlu0 %v5914, 16
      %v6014 = vpop.permute.xlu0 %6013
      %6015 = vrot.lane.b32.xlu0 %v5916, 16
      %v6016 = vpop.permute.xlu0 %6015
      %6017 = vrot.lane.b32.xlu0 %v5918, 16
      %v6018 = vpop.permute.xlu0 %6017
      %6019 = vrot.lane.b32.xlu0 %v5920, 16
      %v6020 = vpop.permute.xlu0 %6019
      %6021 = vrot.lane.b32.xlu0 %v5922, 16
      %v6022 = vpop.permute.xlu0 %6021
      %6023 = vrot.lane.b32.xlu0 %v5924, 16
      %v6024 = vpop.permute.xlu0 %6023
      %v6025 = vsel %vm453, %v5994, %v6010
      %v6026 = vsel %vm453, %v5996, %v6012
      %v6027 = vsel %vm453, %v5998, %v6014
      %v6028 = vsel %vm453, %v6000, %v6016
      %v6029 = vsel %vm453, %v6002, %v6018
      %v6030 = vsel %vm453, %v6004, %v6020
      %v6031 = vsel %vm453, %v6006, %v6022
      %v6032 = vsel %vm453, %v6008, %v6024
      %v6033 = vsel %vm453, %v6010, %v5994
      %v6034 = vsel %vm453, %v6012, %v5996
      %v6035 = vsel %vm453, %v6014, %v5998
      %v6036 = vsel %vm453, %v6016, %v6000
      %v6037 = vsel %vm453, %v6018, %v6002
      %v6038 = vsel %vm453, %v6020, %v6004
      %v6039 = vsel %vm453, %v6022, %v6006
      %v6040 = vsel %vm453, %v6024, %v6008
      %v6041 = vmul.f32 %v6033, %v462
      %v6042 = vmul.f32 %v6025, %v466
      %v6043 = vmul.f32 %v6034, %v462
      %v6044 = vmul.f32 %v6026, %v466
      %v6045 = vmul.f32 %v6035, %v462
      %v6046 = vmul.f32 %v6027, %v466
      %v6047 = vmul.f32 %v6036, %v462
      %v6048 = vmul.f32 %v6028, %v466
      %v6049 = vmul.f32 %v6037, %v462
      %v6050 = vmul.f32 %v6029, %v466
      %v6051 = vmul.f32 %v6038, %v462
      %v6052 = vmul.f32 %v6030, %v466
      %v6053 = vmul.f32 %v6039, %v462
      %v6054 = vmul.f32 %v6031, %v466
      %v6055 = vmul.f32 %v6040, %v462
      %v6056 = vmul.f32 %v6032, %v466
      %s6057 = scalar_lea.vmem %s10, 16
      %v6058 = vld [vmem:[%s6057] sm:$0xff]
      %v6059 = vld [vmem:[%s6057 + $0x8] sm:$0xff]
      %vm6060 = vcmask 523264
      %v6062 = vsel %vm6060, %v6058, 0
      %v6065 = vsel %vm6060, %v6059, 0
      %6067 = vmatprep.subr.mxu0 0.0
      %6068 = vmatpush1.msra.mxu0 0.0
      %6069 = vmatprep.subr.mxu0 0.0
      %6070 = vmatpush1.msra.mxu0 0.0
      %6071 = vmatprep.subr.mxu0 0.0
      %6072 = vmatpush1.msra.mxu0 0.0
      %6073 = vmatprep.subr.mxu0 0.0
      %6074 = vmatpush1.msra.mxu0 0.0
      %6075 = vmatprep.subr.mxu0 0.0
      %6076 = vmatpush1.msra.mxu0 0.0
      %6077 = vmatprep.subr.mxu0 0.0
      %6078 = vmatpush1.msra.mxu0 0.0
      %6079 = vmatprep.subr.mxu0 0.0
      %6080 = vmatpush1.msra.mxu0 0.0
      %6081 = vmatprep.subr.mxu0 0.0
      %6082 = vmatpush1.msra.mxu0 0.0
      %6083 = vmatprep.subr.mxu0 %v6056
      %6084 = vmatpush1.msra.mxu0 %v6055
      %6085 = vmatprep.subr.mxu0 %v6054
      %6086 = vmatpush1.msra.mxu0 %v6053
      %6087 = vmatprep.subr.mxu0 %v6052
      %6088 = vmatpush1.msra.mxu0 %v6051
      %6089 = vmatprep.subr.mxu0 %v6050
      %6090 = vmatpush1.msra.mxu0 %v6049
      %6091 = vmatprep.subr.mxu0 %v6048
      %6092 = vmatpush1.msra.mxu0 %v6047
      %6093 = vmatprep.subr.mxu0 %v6046
      %6094 = vmatpush1.msra.mxu0 %v6045
      %6095 = vmatprep.subr.mxu0 %v6044
      %6096 = vmatpush1.msra.mxu0 %v6043
      %6097 = vmatprep.subr.mxu0 %v6042
      %6098 = vmatpush1.msra.mxu0 %v6041
      %6099 = vmatprep.subr.mxu0 0.0
      %6100 = vmatpush2.msra.mxu0 0.0
      %6101 = vmatprep.subr.mxu0 0.0
      %6102 = vmatpush2.msra.mxu0 0.0
      %6103 = vmatprep.subr.mxu0 0.0
      %6104 = vmatpush2.msra.mxu0 0.0
      %6105 = vmatprep.subr.mxu0 0.0
      %6106 = vmatpush2.msra.mxu0 0.0
      %6107 = vmatprep.subr.mxu0 0.0
      %6108 = vmatpush2.msra.mxu0 0.0
      %6109 = vmatprep.subr.mxu0 0.0
      %6110 = vmatpush2.msra.mxu0 0.0
      %6111 = vmatprep.subr.mxu0 0.0
      %6112 = vmatpush2.msra.mxu0 0.0
      %6113 = vmatprep.subr.mxu0 0.0
      %6114 = vmatpush2.msra.mxu0 0.0
      %6115 = vmatprep.subr.mxu0 0.0
      %6116 = vmatpush2.msra.mxu0 0.0
      %6117 = vmatprep.subr.mxu0 0.0
      %6118 = vmatpush2.msra.mxu0 0.0
      %6119 = vmatprep.subr.mxu0 0.0
      %6120 = vmatpush2.msra.mxu0 0.0
      %6121 = vmatprep.subr.mxu0 0.0
      %6122 = vmatpush2.msra.mxu0 0.0
      %6123 = vmatprep.subr.mxu0 0.0
      %6124 = vmatpush2.msra.mxu0 0.0
      %6125 = vmatprep.subr.mxu0 0.0
      %6126 = vmatpush2.msra.mxu0 0.0
      %6127 = vmatprep.subr.mxu0 0.0
      %6128 = vmatpush2.msra.mxu0 0.0
      %6129 = vmatprep.subr.mxu0 0.0
      %6130 = vmatpush2.msra.mxu0 0.0
      %6131 = vmatprep.mubr.f32.mxu0 0.0
      %6132 = vmatmul.mubr.f32.gmra.mxu0 %v6062
      %v6133 = vpop.f32.mrf.mxu0
      %v6134 = vadd.f32 0.0, %v6133
      %v6135 = vpop.f32.mrf.mxu0
      %v6136 = vadd.f32 0.0, %v6135
      %6137 = vmatprep.mubr.f32.mxu0 0.0
      %6138 = vmatmul.mubr.f32.gmra.mxu0 %v6065
      %v6139 = vpop.f32.mrf.mxu0
      %v6140 = vadd.f32 0.0, %v6139
      %v6141 = vpop.f32.mrf.mxu0
      %v6142 = vadd.f32 0.0, %v6141
      %6143 = vdwg.mxu0
      %v6145 = vsel %vm6060, %v5991, 0
      %v6148 = vsel %vm6060, %v5992, 0
      %6150 = vmatprep.subr.mxu0 0.0
      %6151 = vmatpush1.msra.mxu0 0.0
      %6152 = vmatprep.subr.mxu0 0.0
      %6153 = vmatpush1.msra.mxu0 0.0
      %6154 = vmatprep.subr.mxu0 0.0
      %6155 = vmatpush1.msra.mxu0 0.0
      %6156 = vmatprep.subr.mxu0 0.0
      %6157 = vmatpush1.msra.mxu0 0.0
      %6158 = vmatprep.subr.mxu0 0.0
      %6159 = vmatpush1.msra.mxu0 0.0
      %6160 = vmatprep.subr.mxu0 0.0
      %6161 = vmatpush1.msra.mxu0 0.0
      %6162 = vmatprep.subr.mxu0 0.0
      %6163 = vmatpush1.msra.mxu0 0.0
      %6164 = vmatprep.subr.mxu0 0.0
      %6165 = vmatpush1.msra.mxu0 0.0
      %6166 = vmatprep.subr.mxu0 %v5990
      %6167 = vmatpush1.msra.mxu0 %v5989
      %6168 = vmatprep.subr.mxu0 %v5988
      %6169 = vmatpush1.msra.mxu0 %v5987
      %6170 = vmatprep.subr.mxu0 %v5986
      %6171 = vmatpush1.msra.mxu0 %v5985
      %6172 = vmatprep.subr.mxu0 %v5984
      %6173 = vmatpush1.msra.mxu0 %v5983
      %6174 = vmatprep.subr.mxu0 %v5982
      %6175 = vmatpush1.msra.mxu0 %v5981
      %6176 = vmatprep.subr.mxu0 %v5980
      %6177 = vmatpush1.msra.mxu0 %v5979
      %6178 = vmatprep.subr.mxu0 %v5978
      %6179 = vmatpush1.msra.mxu0 %v5977
      %6180 = vmatprep.subr.mxu0 %v5976
      %6181 = vmatpush1.msra.mxu0 %v5975
      %6182 = vmatprep.subr.mxu0 0.0
      %6183 = vmatpush2.msra.mxu0 0.0
      %6184 = vmatprep.subr.mxu0 0.0
      %6185 = vmatpush2.msra.mxu0 0.0
      %6186 = vmatprep.subr.mxu0 0.0
      %6187 = vmatpush2.msra.mxu0 0.0
      %6188 = vmatprep.subr.mxu0 0.0
      %6189 = vmatpush2.msra.mxu0 0.0
      %6190 = vmatprep.subr.mxu0 0.0
      %6191 = vmatpush2.msra.mxu0 0.0
      %6192 = vmatprep.subr.mxu0 0.0
      %6193 = vmatpush2.msra.mxu0 0.0
      %6194 = vmatprep.subr.mxu0 0.0
      %6195 = vmatpush2.msra.mxu0 0.0
      %6196 = vmatprep.subr.mxu0 0.0
      %6197 = vmatpush2.msra.mxu0 0.0
      %6198 = vmatprep.subr.mxu0 0.0
      %6199 = vmatpush2.msra.mxu0 0.0
      %6200 = vmatprep.subr.mxu0 0.0
      %6201 = vmatpush2.msra.mxu0 0.0
      %6202 = vmatprep.subr.mxu0 0.0
      %6203 = vmatpush2.msra.mxu0 0.0
      %6204 = vmatprep.subr.mxu0 0.0
      %6205 = vmatpush2.msra.mxu0 0.0
      %6206 = vmatprep.subr.mxu0 0.0
      %6207 = vmatpush2.msra.mxu0 0.0
      %6208 = vmatprep.subr.mxu0 0.0
      %6209 = vmatpush2.msra.mxu0 0.0
      %6210 = vmatprep.subr.mxu0 0.0
      %6211 = vmatpush2.msra.mxu0 0.0
      %6212 = vmatprep.subr.mxu0 0.0
      %6213 = vmatpush2.msra.mxu0 0.0
      %6214 = vmatprep.mubr.f32.mxu0 0.0
      %6215 = vmatmul.mubr.f32.gmra.mxu0 %v6145
      %v6216 = vpop.f32.mrf.mxu0
      %v6217 = vadd.f32 %v6134, %v6216
      %v6218 = vpop.f32.mrf.mxu0
      %v6219 = vadd.f32 %v6136, %v6218
      %6220 = vmatprep.mubr.f32.mxu0 0.0
      %6221 = vmatmul.mubr.f32.gmra.mxu0 %v6148
      %v6222 = vpop.f32.mrf.mxu0
      %v6223 = vadd.f32 %v6140, %v6222
      %v6224 = vpop.f32.mrf.mxu0
      %v6225 = vadd.f32 %v6142, %v6224
      %6226 = vdwg.mxu0
      %6227 = vrot.lane.b32.xlu0 %v5909, 15
      %v6228 = vpop.permute.xlu0 %6227
      %6229 = vrot.lane.b32.xlu0 %v5911, 15
      %v6230 = vpop.permute.xlu0 %6229
      %6231 = vrot.lane.b32.xlu0 %v5913, 15
      %v6232 = vpop.permute.xlu0 %6231
      %6233 = vrot.lane.b32.xlu0 %v5915, 15
      %v6234 = vpop.permute.xlu0 %6233
      %6235 = vrot.lane.b32.xlu0 %v5917, 15
      %v6236 = vpop.permute.xlu0 %6235
      %6237 = vrot.lane.b32.xlu0 %v5919, 15
      %v6238 = vpop.permute.xlu0 %6237
      %6239 = vrot.lane.b32.xlu0 %v5921, 15
      %v6240 = vpop.permute.xlu0 %6239
      %6241 = vrot.lane.b32.xlu0 %v5923, 15
      %v6242 = vpop.permute.xlu0 %6241
      %6243 = vrot.lane.b32.xlu0 %v5910, 15
      %v6244 = vpop.permute.xlu0 %6243
      %6245 = vrot.lane.b32.xlu0 %v5912, 15
      %v6246 = vpop.permute.xlu0 %6245
      %6247 = vrot.lane.b32.xlu0 %v5914, 15
      %v6248 = vpop.permute.xlu0 %6247
      %6249 = vrot.lane.b32.xlu0 %v5916, 15
      %v6250 = vpop.permute.xlu0 %6249
      %6251 = vrot.lane.b32.xlu0 %v5918, 15
      %v6252 = vpop.permute.xlu0 %6251
      %6253 = vrot.lane.b32.xlu0 %v5920, 15
      %v6254 = vpop.permute.xlu0 %6253
      %6255 = vrot.lane.b32.xlu0 %v5922, 15
      %v6256 = vpop.permute.xlu0 %6255
      %6257 = vrot.lane.b32.xlu0 %v5924, 15
      %v6258 = vpop.permute.xlu0 %6257
      %v6259 = vsel %vm696, %v6228, %v6244
      %v6260 = vsel %vm696, %v6230, %v6246
      %v6261 = vsel %vm696, %v6232, %v6248
      %v6262 = vsel %vm696, %v6234, %v6250
      %v6263 = vsel %vm696, %v6236, %v6252
      %v6264 = vsel %vm696, %v6238, %v6254
      %v6265 = vsel %vm696, %v6240, %v6256
      %v6266 = vsel %vm696, %v6242, %v6258
      %v6267 = vsel %vm696, %v6244, %v6228
      %v6268 = vsel %vm696, %v6246, %v6230
      %v6269 = vsel %vm696, %v6248, %v6232
      %v6270 = vsel %vm696, %v6250, %v6234
      %v6271 = vsel %vm696, %v6252, %v6236
      %v6272 = vsel %vm696, %v6254, %v6238
      %v6273 = vsel %vm696, %v6256, %v6240
      %v6274 = vsel %vm696, %v6258, %v6242
      %v6275 = vmul.f32 %v6267, %v705
      %v6276 = vmul.f32 %v6259, %v709
      %v6277 = vmul.f32 %v6268, %v705
      %v6278 = vmul.f32 %v6260, %v709
      %v6279 = vmul.f32 %v6269, %v705
      %v6280 = vmul.f32 %v6261, %v709
      %v6281 = vmul.f32 %v6270, %v705
      %v6282 = vmul.f32 %v6262, %v709
      %v6283 = vmul.f32 %v6271, %v705
      %v6284 = vmul.f32 %v6263, %v709
      %v6285 = vmul.f32 %v6272, %v705
      %v6286 = vmul.f32 %v6264, %v709
      %v6287 = vmul.f32 %v6273, %v705
      %v6288 = vmul.f32 %v6265, %v709
      %v6289 = vmul.f32 %v6274, %v705
      %v6290 = vmul.f32 %v6266, %v709
      %s6291 = scalar_lea.vmem %s10, 32
      %v6292 = vld [vmem:[%s6291] sm:$0xff]
      %v6293 = vld [vmem:[%s6291 + $0x8] sm:$0xff]
      %v6295 = vsel %vm6060, %v6292, 0
      %v6298 = vsel %vm6060, %v6293, 0
      %6300 = vmatprep.subr.mxu0 0.0
      %6301 = vmatpush1.msra.mxu0 0.0
      %6302 = vmatprep.subr.mxu0 0.0
      %6303 = vmatpush1.msra.mxu0 0.0
      %6304 = vmatprep.subr.mxu0 0.0
      %6305 = vmatpush1.msra.mxu0 0.0
      %6306 = vmatprep.subr.mxu0 0.0
      %6307 = vmatpush1.msra.mxu0 0.0
      %6308 = vmatprep.subr.mxu0 0.0
      %6309 = vmatpush1.msra.mxu0 0.0
      %6310 = vmatprep.subr.mxu0 0.0
      %6311 = vmatpush1.msra.mxu0 0.0
      %6312 = vmatprep.subr.mxu0 0.0
      %6313 = vmatpush1.msra.mxu0 0.0
      %6314 = vmatprep.subr.mxu0 0.0
      %6315 = vmatpush1.msra.mxu0 0.0
      %6316 = vmatprep.subr.mxu0 %v6290
      %6317 = vmatpush1.msra.mxu0 %v6289
      %6318 = vmatprep.subr.mxu0 %v6288
      %6319 = vmatpush1.msra.mxu0 %v6287
      %6320 = vmatprep.subr.mxu0 %v6286
      %6321 = vmatpush1.msra.mxu0 %v6285
      %6322 = vmatprep.subr.mxu0 %v6284
      %6323 = vmatpush1.msra.mxu0 %v6283
      %6324 = vmatprep.subr.mxu0 %v6282
      %6325 = vmatpush1.msra.mxu0 %v6281
      %6326 = vmatprep.subr.mxu0 %v6280
      %6327 = vmatpush1.msra.mxu0 %v6279
      %6328 = vmatprep.subr.mxu0 %v6278
      %6329 = vmatpush1.msra.mxu0 %v6277
      %6330 = vmatprep.subr.mxu0 %v6276
      %6331 = vmatpush1.msra.mxu0 %v6275
      %6332 = vmatprep.subr.mxu0 0.0
      %6333 = vmatpush2.msra.mxu0 0.0
      %6334 = vmatprep.subr.mxu0 0.0
      %6335 = vmatpush2.msra.mxu0 0.0
      %6336 = vmatprep.subr.mxu0 0.0
      %6337 = vmatpush2.msra.mxu0 0.0
      %6338 = vmatprep.subr.mxu0 0.0
      %6339 = vmatpush2.msra.mxu0 0.0
      %6340 = vmatprep.subr.mxu0 0.0
      %6341 = vmatpush2.msra.mxu0 0.0
      %6342 = vmatprep.subr.mxu0 0.0
      %6343 = vmatpush2.msra.mxu0 0.0
      %6344 = vmatprep.subr.mxu0 0.0
      %6345 = vmatpush2.msra.mxu0 0.0
      %6346 = vmatprep.subr.mxu0 0.0
      %6347 = vmatpush2.msra.mxu0 0.0
      %6348 = vmatprep.subr.mxu0 0.0
      %6349 = vmatpush2.msra.mxu0 0.0
      %6350 = vmatprep.subr.mxu0 0.0
      %6351 = vmatpush2.msra.mxu0 0.0
      %6352 = vmatprep.subr.mxu0 0.0
      %6353 = vmatpush2.msra.mxu0 0.0
      %6354 = vmatprep.subr.mxu0 0.0
      %6355 = vmatpush2.msra.mxu0 0.0
      %6356 = vmatprep.subr.mxu0 0.0
      %6357 = vmatpush2.msra.mxu0 0.0
      %6358 = vmatprep.subr.mxu0 0.0
      %6359 = vmatpush2.msra.mxu0 0.0
      %6360 = vmatprep.subr.mxu0 0.0
      %6361 = vmatpush2.msra.mxu0 0.0
      %6362 = vmatprep.subr.mxu0 0.0
      %6363 = vmatpush2.msra.mxu0 0.0
      %6364 = vmatprep.mubr.f32.mxu0 0.0
      %6365 = vmatmul.mubr.f32.gmra.mxu0 %v6295
      %v6366 = vpop.f32.mrf.mxu0
      %v6367 = vadd.f32 0.0, %v6366
      %v6368 = vpop.f32.mrf.mxu0
      %v6369 = vadd.f32 0.0, %v6368
      %6370 = vmatprep.mubr.f32.mxu0 0.0
      %6371 = vmatmul.mubr.f32.gmra.mxu0 %v6298
      %v6372 = vpop.f32.mrf.mxu0
      %v6373 = vadd.f32 0.0, %v6372
      %v6374 = vpop.f32.mrf.mxu0
      %v6375 = vadd.f32 0.0, %v6374
      %6376 = vdwg.mxu0
      %v6377 = vadd.f32 %v6217, %v6367
      %v6378 = vadd.f32 %v6219, %v6369
      %v6379 = vadd.f32 %v6223, %v6373
      %v6380 = vadd.f32 %v6225, %v6375
      %6381 = vrot.lane.b32.xlu0 %v5909, 1
      %v6382 = vpop.permute.xlu0 %6381
      %6383 = vrot.lane.b32.xlu0 %v5911, 1
      %v6384 = vpop.permute.xlu0 %6383
      %6385 = vrot.lane.b32.xlu0 %v5913, 1
      %v6386 = vpop.permute.xlu0 %6385
      %6387 = vrot.lane.b32.xlu0 %v5915, 1
      %v6388 = vpop.permute.xlu0 %6387
      %6389 = vrot.lane.b32.xlu0 %v5917, 1
      %v6390 = vpop.permute.xlu0 %6389
      %6391 = vrot.lane.b32.xlu0 %v5919, 1
      %v6392 = vpop.permute.xlu0 %6391
      %6393 = vrot.lane.b32.xlu0 %v5921, 1
      %v6394 = vpop.permute.xlu0 %6393
      %6395 = vrot.lane.b32.xlu0 %v5923, 1
      %v6396 = vpop.permute.xlu0 %6395
      %6397 = vrot.lane.b32.xlu0 %v5910, 1
      %v6398 = vpop.permute.xlu0 %6397
      %6399 = vrot.lane.b32.xlu0 %v5912, 1
      %v6400 = vpop.permute.xlu0 %6399
      %6401 = vrot.lane.b32.xlu0 %v5914, 1
      %v6402 = vpop.permute.xlu0 %6401
      %6403 = vrot.lane.b32.xlu0 %v5916, 1
      %v6404 = vpop.permute.xlu0 %6403
      %6405 = vrot.lane.b32.xlu0 %v5918, 1
      %v6406 = vpop.permute.xlu0 %6405
      %6407 = vrot.lane.b32.xlu0 %v5920, 1
      %v6408 = vpop.permute.xlu0 %6407
      %6409 = vrot.lane.b32.xlu0 %v5922, 1
      %v6410 = vpop.permute.xlu0 %6409
      %6411 = vrot.lane.b32.xlu0 %v5924, 1
      %v6412 = vpop.permute.xlu0 %6411
      %v6413 = vsel %vm838, %v6382, %v6398
      %v6414 = vsel %vm838, %v6384, %v6400
      %v6415 = vsel %vm838, %v6386, %v6402
      %v6416 = vsel %vm838, %v6388, %v6404
      %v6417 = vsel %vm838, %v6390, %v6406
      %v6418 = vsel %vm838, %v6392, %v6408
      %v6419 = vsel %vm838, %v6394, %v6410
      %v6420 = vsel %vm838, %v6396, %v6412
      %v6421 = vsel %vm838, %v6398, %v6382
      %v6422 = vsel %vm838, %v6400, %v6384
      %v6423 = vsel %vm838, %v6402, %v6386
      %v6424 = vsel %vm838, %v6404, %v6388
      %v6425 = vsel %vm838, %v6406, %v6390
      %v6426 = vsel %vm838, %v6408, %v6392
      %v6427 = vsel %vm838, %v6410, %v6394
      %v6428 = vsel %vm838, %v6412, %v6396
      %v6429 = vmul.f32 %v6421, %v847
      %v6430 = vmul.f32 %v6413, %v851
      %v6431 = vmul.f32 %v6422, %v847
      %v6432 = vmul.f32 %v6414, %v851
      %v6433 = vmul.f32 %v6423, %v847
      %v6434 = vmul.f32 %v6415, %v851
      %v6435 = vmul.f32 %v6424, %v847
      %v6436 = vmul.f32 %v6416, %v851
      %v6437 = vmul.f32 %v6425, %v847
      %v6438 = vmul.f32 %v6417, %v851
      %v6439 = vmul.f32 %v6426, %v847
      %v6440 = vmul.f32 %v6418, %v851
      %v6441 = vmul.f32 %v6427, %v847
      %v6442 = vmul.f32 %v6419, %v851
      %v6443 = vmul.f32 %v6428, %v847
      %v6444 = vmul.f32 %v6420, %v851
      %s6445 = scalar_lea.vmem %s10, 48
      %v6446 = vld [vmem:[%s6445] sm:$0xff]
      %v6447 = vld [vmem:[%s6445 + $0x8] sm:$0xff]
      %v6449 = vsel %vm6060, %v6446, 0
      %v6452 = vsel %vm6060, %v6447, 0
      %6454 = vmatprep.subr.mxu0 0.0
      %6455 = vmatpush1.msra.mxu0 0.0
      %6456 = vmatprep.subr.mxu0 0.0
      %6457 = vmatpush1.msra.mxu0 0.0
      %6458 = vmatprep.subr.mxu0 0.0
      %6459 = vmatpush1.msra.mxu0 0.0
      %6460 = vmatprep.subr.mxu0 0.0
      %6461 = vmatpush1.msra.mxu0 0.0
      %6462 = vmatprep.subr.mxu0 0.0
      %6463 = vmatpush1.msra.mxu0 0.0
      %6464 = vmatprep.subr.mxu0 0.0
      %6465 = vmatpush1.msra.mxu0 0.0
      %6466 = vmatprep.subr.mxu0 0.0
      %6467 = vmatpush1.msra.mxu0 0.0
      %6468 = vmatprep.subr.mxu0 0.0
      %6469 = vmatpush1.msra.mxu0 0.0
      %6470 = vmatprep.subr.mxu0 %v6444
      %6471 = vmatpush1.msra.mxu0 %v6443
      %6472 = vmatprep.subr.mxu0 %v6442
      %6473 = vmatpush1.msra.mxu0 %v6441
      %6474 = vmatprep.subr.mxu0 %v6440
      %6475 = vmatpush1.msra.mxu0 %v6439
      %6476 = vmatprep.subr.mxu0 %v6438
      %6477 = vmatpush1.msra.mxu0 %v6437
      %6478 = vmatprep.subr.mxu0 %v6436
      %6479 = vmatpush1.msra.mxu0 %v6435
      %6480 = vmatprep.subr.mxu0 %v6434
      %6481 = vmatpush1.msra.mxu0 %v6433
      %6482 = vmatprep.subr.mxu0 %v6432
      %6483 = vmatpush1.msra.mxu0 %v6431
      %6484 = vmatprep.subr.mxu0 %v6430
      %6485 = vmatpush1.msra.mxu0 %v6429
      %6486 = vmatprep.subr.mxu0 0.0
      %6487 = vmatpush2.msra.mxu0 0.0
      %6488 = vmatprep.subr.mxu0 0.0
      %6489 = vmatpush2.msra.mxu0 0.0
      %6490 = vmatprep.subr.mxu0 0.0
      %6491 = vmatpush2.msra.mxu0 0.0
      %6492 = vmatprep.subr.mxu0 0.0
      %6493 = vmatpush2.msra.mxu0 0.0
      %6494 = vmatprep.subr.mxu0 0.0
      %6495 = vmatpush2.msra.mxu0 0.0
      %6496 = vmatprep.subr.mxu0 0.0
      %6497 = vmatpush2.msra.mxu0 0.0
      %6498 = vmatprep.subr.mxu0 0.0
      %6499 = vmatpush2.msra.mxu0 0.0
      %6500 = vmatprep.subr.mxu0 0.0
      %6501 = vmatpush2.msra.mxu0 0.0
      %6502 = vmatprep.subr.mxu0 0.0
      %6503 = vmatpush2.msra.mxu0 0.0
      %6504 = vmatprep.subr.mxu0 0.0
      %6505 = vmatpush2.msra.mxu0 0.0
      %6506 = vmatprep.subr.mxu0 0.0
      %6507 = vmatpush2.msra.mxu0 0.0
      %6508 = vmatprep.subr.mxu0 0.0
      %6509 = vmatpush2.msra.mxu0 0.0
      %6510 = vmatprep.subr.mxu0 0.0
      %6511 = vmatpush2.msra.mxu0 0.0
      %6512 = vmatprep.subr.mxu0 0.0
      %6513 = vmatpush2.msra.mxu0 0.0
      %6514 = vmatprep.subr.mxu0 0.0
      %6515 = vmatpush2.msra.mxu0 0.0
      %6516 = vmatprep.subr.mxu0 0.0
      %6517 = vmatpush2.msra.mxu0 0.0
      %6518 = vmatprep.mubr.f32.mxu0 0.0
      %6519 = vmatmul.mubr.f32.gmra.mxu0 %v6449
      %v6520 = vpop.f32.mrf.mxu0
      %v6521 = vadd.f32 0.0, %v6520
      %v6522 = vpop.f32.mrf.mxu0
      %v6523 = vadd.f32 0.0, %v6522
      %6524 = vmatprep.mubr.f32.mxu0 0.0
      %6525 = vmatmul.mubr.f32.gmra.mxu0 %v6452
      %v6526 = vpop.f32.mrf.mxu0
      %v6527 = vadd.f32 0.0, %v6526
      %v6528 = vpop.f32.mrf.mxu0
      %v6529 = vadd.f32 0.0, %v6528
      %6530 = vdwg.mxu0
      %v6531 = vadd.f32 %v6377, %v6521
      %v6532 = vadd.f32 %v6378, %v6523
      %v6533 = vadd.f32 %v6379, %v6527
      %v6534 = vadd.f32 %v6380, %v6529
      %s6535 = scalar_lea.vmem %s10, 64
      %v6536 = vld [vmem:[%s6535] sm:$0xff]
      %v6537 = vld [vmem:[%s6535 + $0x8] sm:$0xff]
      %v6539 = vsel %vm6060, %v6536, 0
      %v6542 = vsel %vm6060, %v6537, 0
      %6544 = vmatprep.subr.mxu0 0.0
      %6545 = vmatpush1.msra.mxu0 0.0
      %6546 = vmatprep.subr.mxu0 0.0
      %6547 = vmatpush1.msra.mxu0 0.0
      %6548 = vmatprep.subr.mxu0 0.0
      %6549 = vmatpush1.msra.mxu0 0.0
      %6550 = vmatprep.subr.mxu0 0.0
      %6551 = vmatpush1.msra.mxu0 0.0
      %6552 = vmatprep.subr.mxu0 0.0
      %6553 = vmatpush1.msra.mxu0 0.0
      %6554 = vmatprep.subr.mxu0 0.0
      %6555 = vmatpush1.msra.mxu0 0.0
      %6556 = vmatprep.subr.mxu0 0.0
      %6557 = vmatpush1.msra.mxu0 0.0
      %6558 = vmatprep.subr.mxu0 0.0
      %6559 = vmatpush1.msra.mxu0 0.0
      %6560 = vmatprep.subr.mxu0 %v5924
      %6561 = vmatpush1.msra.mxu0 %v5923
      %6562 = vmatprep.subr.mxu0 %v5922
      %6563 = vmatpush1.msra.mxu0 %v5921
      %6564 = vmatprep.subr.mxu0 %v5920
      %6565 = vmatpush1.msra.mxu0 %v5919
      %6566 = vmatprep.subr.mxu0 %v5918
      %6567 = vmatpush1.msra.mxu0 %v5917
      %6568 = vmatprep.subr.mxu0 %v5916
      %6569 = vmatpush1.msra.mxu0 %v5915
      %6570 = vmatprep.subr.mxu0 %v5914
      %6571 = vmatpush1.msra.mxu0 %v5913
      %6572 = vmatprep.subr.mxu0 %v5912
      %6573 = vmatpush1.msra.mxu0 %v5911
      %6574 = vmatprep.subr.mxu0 %v5910
      %6575 = vmatpush1.msra.mxu0 %v5909
      %6576 = vmatprep.subr.mxu0 0.0
      %6577 = vmatpush2.msra.mxu0 0.0
      %6578 = vmatprep.subr.mxu0 0.0
      %6579 = vmatpush2.msra.mxu0 0.0
      %6580 = vmatprep.subr.mxu0 0.0
      %6581 = vmatpush2.msra.mxu0 0.0
      %6582 = vmatprep.subr.mxu0 0.0
      %6583 = vmatpush2.msra.mxu0 0.0
      %6584 = vmatprep.subr.mxu0 0.0
      %6585 = vmatpush2.msra.mxu0 0.0
      %6586 = vmatprep.subr.mxu0 0.0
      %6587 = vmatpush2.msra.mxu0 0.0
      %6588 = vmatprep.subr.mxu0 0.0
      %6589 = vmatpush2.msra.mxu0 0.0
      %6590 = vmatprep.subr.mxu0 0.0
      %6591 = vmatpush2.msra.mxu0 0.0
      %6592 = vmatprep.subr.mxu0 0.0
      %6593 = vmatpush2.msra.mxu0 0.0
      %6594 = vmatprep.subr.mxu0 0.0
      %6595 = vmatpush2.msra.mxu0 0.0
      %6596 = vmatprep.subr.mxu0 0.0
      %6597 = vmatpush2.msra.mxu0 0.0
      %6598 = vmatprep.subr.mxu0 0.0
      %6599 = vmatpush2.msra.mxu0 0.0
      %6600 = vmatprep.subr.mxu0 0.0
      %6601 = vmatpush2.msra.mxu0 0.0
      %6602 = vmatprep.subr.mxu0 0.0
      %6603 = vmatpush2.msra.mxu0 0.0
      %6604 = vmatprep.subr.mxu0 0.0
      %6605 = vmatpush2.msra.mxu0 0.0
      %6606 = vmatprep.subr.mxu0 0.0
      %6607 = vmatpush2.msra.mxu0 0.0
      %6608 = vmatprep.mubr.f32.mxu0 0.0
      %6609 = vmatmul.mubr.f32.gmra.mxu0 %v6539
      %v6610 = vpop.f32.mrf.mxu0
      %v6611 = vadd.f32 0.0, %v6610
      %v6612 = vpop.f32.mrf.mxu0
      %v6613 = vadd.f32 0.0, %v6612
      %6614 = vmatprep.mubr.f32.mxu0 0.0
      %6615 = vmatmul.mubr.f32.gmra.mxu0 %v6542
      %v6616 = vpop.f32.mrf.mxu0
      %v6617 = vadd.f32 0.0, %v6616
      %v6618 = vpop.f32.mrf.mxu0
      %v6619 = vadd.f32 0.0, %v6618
      %6620 = vdwg.mxu0
      %v6621 = vadd.f32 %v6531, %v6611
      %v6622 = vadd.f32 %v6532, %v6613
      %v6623 = vadd.f32 %v6533, %v6617
      %v6624 = vadd.f32 %v6534, %v6619
      %6625 = vrot.lane.b32.xlu0 %v5909, 127
      %v6626 = vpop.permute.xlu0 %6625
      %6627 = vrot.lane.b32.xlu0 %v5911, 127
      %v6628 = vpop.permute.xlu0 %6627
      %6629 = vrot.lane.b32.xlu0 %v5913, 127
      %v6630 = vpop.permute.xlu0 %6629
      %6631 = vrot.lane.b32.xlu0 %v5915, 127
      %v6632 = vpop.permute.xlu0 %6631
      %6633 = vrot.lane.b32.xlu0 %v5917, 127
      %v6634 = vpop.permute.xlu0 %6633
      %6635 = vrot.lane.b32.xlu0 %v5919, 127
      %v6636 = vpop.permute.xlu0 %6635
      %6637 = vrot.lane.b32.xlu0 %v5921, 127
      %v6638 = vpop.permute.xlu0 %6637
      %6639 = vrot.lane.b32.xlu0 %v5923, 127
      %v6640 = vpop.permute.xlu0 %6639
      %6641 = vrot.lane.b32.xlu0 %v5910, 127
      %v6642 = vpop.permute.xlu0 %6641
      %6643 = vrot.lane.b32.xlu0 %v5912, 127
      %v6644 = vpop.permute.xlu0 %6643
      %6645 = vrot.lane.b32.xlu0 %v5914, 127
      %v6646 = vpop.permute.xlu0 %6645
      %6647 = vrot.lane.b32.xlu0 %v5916, 127
      %v6648 = vpop.permute.xlu0 %6647
      %6649 = vrot.lane.b32.xlu0 %v5918, 127
      %v6650 = vpop.permute.xlu0 %6649
      %6651 = vrot.lane.b32.xlu0 %v5920, 127
      %v6652 = vpop.permute.xlu0 %6651
      %6653 = vrot.lane.b32.xlu0 %v5922, 127
      %v6654 = vpop.permute.xlu0 %6653
      %6655 = vrot.lane.b32.xlu0 %v5924, 127
      %v6656 = vpop.permute.xlu0 %6655
      %v6657 = vsel %vm1098, %v6626, %v6642
      %v6658 = vsel %vm1098, %v6628, %v6644
      %v6659 = vsel %vm1098, %v6630, %v6646
      %v6660 = vsel %vm1098, %v6632, %v6648
      %v6661 = vsel %vm1098, %v6634, %v6650
      %v6662 = vsel %vm1098, %v6636, %v6652
      %v6663 = vsel %vm1098, %v6638, %v6654
      %v6664 = vsel %vm1098, %v6640, %v6656
      %v6665 = vsel %vm1098, %v6642, %v6626
      %v6666 = vsel %vm1098, %v6644, %v6628
      %v6667 = vsel %vm1098, %v6646, %v6630
      %v6668 = vsel %vm1098, %v6648, %v6632
      %v6669 = vsel %vm1098, %v6650, %v6634
      %v6670 = vsel %vm1098, %v6652, %v6636
      %v6671 = vsel %vm1098, %v6654, %v6638
      %v6672 = vsel %vm1098, %v6656, %v6640
      %v6673 = vmul.f32 %v6657, %v1107
      %v6674 = vmul.f32 %v6665, %v1111
      %v6675 = vmul.f32 %v6658, %v1107
      %v6676 = vmul.f32 %v6666, %v1111
      %v6677 = vmul.f32 %v6659, %v1107
      %v6678 = vmul.f32 %v6667, %v1111
      %v6679 = vmul.f32 %v6660, %v1107
      %v6680 = vmul.f32 %v6668, %v1111
      %v6681 = vmul.f32 %v6661, %v1107
      %v6682 = vmul.f32 %v6669, %v1111
      %v6683 = vmul.f32 %v6662, %v1107
      %v6684 = vmul.f32 %v6670, %v1111
      %v6685 = vmul.f32 %v6663, %v1107
      %v6686 = vmul.f32 %v6671, %v1111
      %v6687 = vmul.f32 %v6664, %v1107
      %v6688 = vmul.f32 %v6672, %v1111
      %s6689 = scalar_lea.vmem %s10, 80
      %v6690 = vld [vmem:[%s6689] sm:$0xff]
      %v6691 = vld [vmem:[%s6689 + $0x8] sm:$0xff]
      %v6693 = vsel %vm6060, %v6690, 0
      %v6696 = vsel %vm6060, %v6691, 0
      %6698 = vmatprep.subr.mxu0 0.0
      %6699 = vmatpush1.msra.mxu0 0.0
      %6700 = vmatprep.subr.mxu0 0.0
      %6701 = vmatpush1.msra.mxu0 0.0
      %6702 = vmatprep.subr.mxu0 0.0
      %6703 = vmatpush1.msra.mxu0 0.0
      %6704 = vmatprep.subr.mxu0 0.0
      %6705 = vmatpush1.msra.mxu0 0.0
      %6706 = vmatprep.subr.mxu0 0.0
      %6707 = vmatpush1.msra.mxu0 0.0
      %6708 = vmatprep.subr.mxu0 0.0
      %6709 = vmatpush1.msra.mxu0 0.0
      %6710 = vmatprep.subr.mxu0 0.0
      %6711 = vmatpush1.msra.mxu0 0.0
      %6712 = vmatprep.subr.mxu0 0.0
      %6713 = vmatpush1.msra.mxu0 0.0
      %6714 = vmatprep.subr.mxu0 %v6688
      %6715 = vmatpush1.msra.mxu0 %v6687
      %6716 = vmatprep.subr.mxu0 %v6686
      %6717 = vmatpush1.msra.mxu0 %v6685
      %6718 = vmatprep.subr.mxu0 %v6684
      %6719 = vmatpush1.msra.mxu0 %v6683
      %6720 = vmatprep.subr.mxu0 %v6682
      %6721 = vmatpush1.msra.mxu0 %v6681
      %6722 = vmatprep.subr.mxu0 %v6680
      %6723 = vmatpush1.msra.mxu0 %v6679
      %6724 = vmatprep.subr.mxu0 %v6678
      %6725 = vmatpush1.msra.mxu0 %v6677
      %6726 = vmatprep.subr.mxu0 %v6676
      %6727 = vmatpush1.msra.mxu0 %v6675
      %6728 = vmatprep.subr.mxu0 %v6674
      %6729 = vmatpush1.msra.mxu0 %v6673
      %6730 = vmatprep.subr.mxu0 0.0
      %6731 = vmatpush2.msra.mxu0 0.0
      %6732 = vmatprep.subr.mxu0 0.0
      %6733 = vmatpush2.msra.mxu0 0.0
      %6734 = vmatprep.subr.mxu0 0.0
      %6735 = vmatpush2.msra.mxu0 0.0
      %6736 = vmatprep.subr.mxu0 0.0
      %6737 = vmatpush2.msra.mxu0 0.0
      %6738 = vmatprep.subr.mxu0 0.0
      %6739 = vmatpush2.msra.mxu0 0.0
      %6740 = vmatprep.subr.mxu0 0.0
      %6741 = vmatpush2.msra.mxu0 0.0
      %6742 = vmatprep.subr.mxu0 0.0
      %6743 = vmatpush2.msra.mxu0 0.0
      %6744 = vmatprep.subr.mxu0 0.0
      %6745 = vmatpush2.msra.mxu0 0.0
      %6746 = vmatprep.subr.mxu0 0.0
      %6747 = vmatpush2.msra.mxu0 0.0
      %6748 = vmatprep.subr.mxu0 0.0
      %6749 = vmatpush2.msra.mxu0 0.0
      %6750 = vmatprep.subr.mxu0 0.0
      %6751 = vmatpush2.msra.mxu0 0.0
      %6752 = vmatprep.subr.mxu0 0.0
      %6753 = vmatpush2.msra.mxu0 0.0
      %6754 = vmatprep.subr.mxu0 0.0
      %6755 = vmatpush2.msra.mxu0 0.0
      %6756 = vmatprep.subr.mxu0 0.0
      %6757 = vmatpush2.msra.mxu0 0.0
      %6758 = vmatprep.subr.mxu0 0.0
      %6759 = vmatpush2.msra.mxu0 0.0
      %6760 = vmatprep.subr.mxu0 0.0
      %6761 = vmatpush2.msra.mxu0 0.0
      %6762 = vmatprep.mubr.f32.mxu0 0.0
      %6763 = vmatmul.mubr.f32.gmra.mxu0 %v6693
      %v6764 = vpop.f32.mrf.mxu0
      %v6765 = vadd.f32 0.0, %v6764
      %v6766 = vpop.f32.mrf.mxu0
      %v6767 = vadd.f32 0.0, %v6766
      %6768 = vmatprep.mubr.f32.mxu0 0.0
      %6769 = vmatmul.mubr.f32.gmra.mxu0 %v6696
      %v6770 = vpop.f32.mrf.mxu0
      %v6771 = vadd.f32 0.0, %v6770
      %v6772 = vpop.f32.mrf.mxu0
      %v6773 = vadd.f32 0.0, %v6772
      %6774 = vdwg.mxu0
      %v6775 = vadd.f32 %v6621, %v6765
      %v6776 = vadd.f32 %v6622, %v6767
      %v6777 = vadd.f32 %v6623, %v6771
      %v6778 = vadd.f32 %v6624, %v6773
      %6779 = vrot.lane.b32.xlu0 %v5909, 113
      %v6780 = vpop.permute.xlu0 %6779
      %6781 = vrot.lane.b32.xlu0 %v5911, 113
      %v6782 = vpop.permute.xlu0 %6781
      %6783 = vrot.lane.b32.xlu0 %v5913, 113
      %v6784 = vpop.permute.xlu0 %6783
      %6785 = vrot.lane.b32.xlu0 %v5915, 113
      %v6786 = vpop.permute.xlu0 %6785
      %6787 = vrot.lane.b32.xlu0 %v5917, 113
      %v6788 = vpop.permute.xlu0 %6787
      %6789 = vrot.lane.b32.xlu0 %v5919, 113
      %v6790 = vpop.permute.xlu0 %6789
      %6791 = vrot.lane.b32.xlu0 %v5921, 113
      %v6792 = vpop.permute.xlu0 %6791
      %6793 = vrot.lane.b32.xlu0 %v5923, 113
      %v6794 = vpop.permute.xlu0 %6793
      %6795 = vrot.lane.b32.xlu0 %v5910, 113
      %v6796 = vpop.permute.xlu0 %6795
      %6797 = vrot.lane.b32.xlu0 %v5912, 113
      %v6798 = vpop.permute.xlu0 %6797
      %6799 = vrot.lane.b32.xlu0 %v5914, 113
      %v6800 = vpop.permute.xlu0 %6799
      %6801 = vrot.lane.b32.xlu0 %v5916, 113
      %v6802 = vpop.permute.xlu0 %6801
      %6803 = vrot.lane.b32.xlu0 %v5918, 113
      %v6804 = vpop.permute.xlu0 %6803
      %6805 = vrot.lane.b32.xlu0 %v5920, 113
      %v6806 = vpop.permute.xlu0 %6805
      %6807 = vrot.lane.b32.xlu0 %v5922, 113
      %v6808 = vpop.permute.xlu0 %6807
      %6809 = vrot.lane.b32.xlu0 %v5924, 113
      %v6810 = vpop.permute.xlu0 %6809
      %v6811 = vsel %vm1240, %v6780, %v6796
      %v6812 = vsel %vm1240, %v6782, %v6798
      %v6813 = vsel %vm1240, %v6784, %v6800
      %v6814 = vsel %vm1240, %v6786, %v6802
      %v6815 = vsel %vm1240, %v6788, %v6804
      %v6816 = vsel %vm1240, %v6790, %v6806
      %v6817 = vsel %vm1240, %v6792, %v6808
      %v6818 = vsel %vm1240, %v6794, %v6810
      %v6819 = vsel %vm1240, %v6796, %v6780
      %v6820 = vsel %vm1240, %v6798, %v6782
      %v6821 = vsel %vm1240, %v6800, %v6784
      %v6822 = vsel %vm1240, %v6802, %v6786
      %v6823 = vsel %vm1240, %v6804, %v6788
      %v6824 = vsel %vm1240, %v6806, %v6790
      %v6825 = vsel %vm1240, %v6808, %v6792
      %v6826 = vsel %vm1240, %v6810, %v6794
      %v6827 = vmul.f32 %v6811, %v1249
      %v6828 = vmul.f32 %v6819, %v1253
      %v6829 = vmul.f32 %v6812, %v1249
      %v6830 = vmul.f32 %v6820, %v1253
      %v6831 = vmul.f32 %v6813, %v1249
      %v6832 = vmul.f32 %v6821, %v1253
      %v6833 = vmul.f32 %v6814, %v1249
      %v6834 = vmul.f32 %v6822, %v1253
      %v6835 = vmul.f32 %v6815, %v1249
      %v6836 = vmul.f32 %v6823, %v1253
      %v6837 = vmul.f32 %v6816, %v1249
      %v6838 = vmul.f32 %v6824, %v1253
      %v6839 = vmul.f32 %v6817, %v1249
      %v6840 = vmul.f32 %v6825, %v1253
      %v6841 = vmul.f32 %v6818, %v1249
      %v6842 = vmul.f32 %v6826, %v1253
      %s6843 = scalar_lea.vmem %s10, 96
      %v6844 = vld [vmem:[%s6843] sm:$0xff]
      %v6845 = vld [vmem:[%s6843 + $0x8] sm:$0xff]
      %v6847 = vsel %vm6060, %v6844, 0
      %v6850 = vsel %vm6060, %v6845, 0
      %6852 = vmatprep.subr.mxu0 0.0
      %6853 = vmatpush1.msra.mxu0 0.0
      %6854 = vmatprep.subr.mxu0 0.0
      %6855 = vmatpush1.msra.mxu0 0.0
      %6856 = vmatprep.subr.mxu0 0.0
      %6857 = vmatpush1.msra.mxu0 0.0
      %6858 = vmatprep.subr.mxu0 0.0
      %6859 = vmatpush1.msra.mxu0 0.0
      %6860 = vmatprep.subr.mxu0 0.0
      %6861 = vmatpush1.msra.mxu0 0.0
      %6862 = vmatprep.subr.mxu0 0.0
      %6863 = vmatpush1.msra.mxu0 0.0
      %6864 = vmatprep.subr.mxu0 0.0
      %6865 = vmatpush1.msra.mxu0 0.0
      %6866 = vmatprep.subr.mxu0 0.0
      %6867 = vmatpush1.msra.mxu0 0.0
      %6868 = vmatprep.subr.mxu0 %v6842
      %6869 = vmatpush1.msra.mxu0 %v6841
      %6870 = vmatprep.subr.mxu0 %v6840
      %6871 = vmatpush1.msra.mxu0 %v6839
      %6872 = vmatprep.subr.mxu0 %v6838
      %6873 = vmatpush1.msra.mxu0 %v6837
      %6874 = vmatprep.subr.mxu0 %v6836
      %6875 = vmatpush1.msra.mxu0 %v6835
      %6876 = vmatprep.subr.mxu0 %v6834
      %6877 = vmatpush1.msra.mxu0 %v6833
      %6878 = vmatprep.subr.mxu0 %v6832
      %6879 = vmatpush1.msra.mxu0 %v6831
      %6880 = vmatprep.subr.mxu0 %v6830
      %6881 = vmatpush1.msra.mxu0 %v6829
      %6882 = vmatprep.subr.mxu0 %v6828
      %6883 = vmatpush1.msra.mxu0 %v6827
      %6884 = vmatprep.subr.mxu0 0.0
      %6885 = vmatpush2.msra.mxu0 0.0
      %6886 = vmatprep.subr.mxu0 0.0
      %6887 = vmatpush2.msra.mxu0 0.0
      %6888 = vmatprep.subr.mxu0 0.0
      %6889 = vmatpush2.msra.mxu0 0.0
      %6890 = vmatprep.subr.mxu0 0.0
      %6891 = vmatpush2.msra.mxu0 0.0
      %6892 = vmatprep.subr.mxu0 0.0
      %6893 = vmatpush2.msra.mxu0 0.0
      %6894 = vmatprep.subr.mxu0 0.0
      %6895 = vmatpush2.msra.mxu0 0.0
      %6896 = vmatprep.subr.mxu0 0.0
      %6897 = vmatpush2.msra.mxu0 0.0
      %6898 = vmatprep.subr.mxu0 0.0
      %6899 = vmatpush2.msra.mxu0 0.0
      %6900 = vmatprep.subr.mxu0 0.0
      %6901 = vmatpush2.msra.mxu0 0.0
      %6902 = vmatprep.subr.mxu0 0.0
      %6903 = vmatpush2.msra.mxu0 0.0
      %6904 = vmatprep.subr.mxu0 0.0
      %6905 = vmatpush2.msra.mxu0 0.0
      %6906 = vmatprep.subr.mxu0 0.0
      %6907 = vmatpush2.msra.mxu0 0.0
      %6908 = vmatprep.subr.mxu0 0.0
      %6909 = vmatpush2.msra.mxu0 0.0
      %6910 = vmatprep.subr.mxu0 0.0
      %6911 = vmatpush2.msra.mxu0 0.0
      %6912 = vmatprep.subr.mxu0 0.0
      %6913 = vmatpush2.msra.mxu0 0.0
      %6914 = vmatprep.subr.mxu0 0.0
      %6915 = vmatpush2.msra.mxu0 0.0
      %6916 = vmatprep.mubr.f32.mxu0 0.0
      %6917 = vmatmul.mubr.f32.gmra.mxu0 %v6847
      %v6918 = vpop.f32.mrf.mxu0
      %v6919 = vadd.f32 0.0, %v6918
      %v6920 = vpop.f32.mrf.mxu0
      %v6921 = vadd.f32 0.0, %v6920
      %6922 = vmatprep.mubr.f32.mxu0 0.0
      %6923 = vmatmul.mubr.f32.gmra.mxu0 %v6850
      %v6924 = vpop.f32.mrf.mxu0
      %v6925 = vadd.f32 0.0, %v6924
      %v6926 = vpop.f32.mrf.mxu0
      %v6927 = vadd.f32 0.0, %v6926
      %6928 = vdwg.mxu0
      %v6929 = vadd.f32 %v6775, %v6919
      %v6930 = vadd.f32 %v6776, %v6921
      %v6931 = vadd.f32 %v6777, %v6925
      %v6932 = vadd.f32 %v6778, %v6927
      %6933 = vrot.lane.b32.xlu0 %v5909, 112
      %v6934 = vpop.permute.xlu0 %6933
      %6935 = vrot.lane.b32.xlu0 %v5911, 112
      %v6936 = vpop.permute.xlu0 %6935
      %6937 = vrot.lane.b32.xlu0 %v5913, 112
      %v6938 = vpop.permute.xlu0 %6937
      %6939 = vrot.lane.b32.xlu0 %v5915, 112
      %v6940 = vpop.permute.xlu0 %6939
      %6941 = vrot.lane.b32.xlu0 %v5917, 112
      %v6942 = vpop.permute.xlu0 %6941
      %6943 = vrot.lane.b32.xlu0 %v5919, 112
      %v6944 = vpop.permute.xlu0 %6943
      %6945 = vrot.lane.b32.xlu0 %v5921, 112
      %v6946 = vpop.permute.xlu0 %6945
      %6947 = vrot.lane.b32.xlu0 %v5923, 112
      %v6948 = vpop.permute.xlu0 %6947
      %6949 = vrot.lane.b32.xlu0 %v5910, 112
      %v6950 = vpop.permute.xlu0 %6949
      %6951 = vrot.lane.b32.xlu0 %v5912, 112
      %v6952 = vpop.permute.xlu0 %6951
      %6953 = vrot.lane.b32.xlu0 %v5914, 112
      %v6954 = vpop.permute.xlu0 %6953
      %6955 = vrot.lane.b32.xlu0 %v5916, 112
      %v6956 = vpop.permute.xlu0 %6955
      %6957 = vrot.lane.b32.xlu0 %v5918, 112
      %v6958 = vpop.permute.xlu0 %6957
      %6959 = vrot.lane.b32.xlu0 %v5920, 112
      %v6960 = vpop.permute.xlu0 %6959
      %6961 = vrot.lane.b32.xlu0 %v5922, 112
      %v6962 = vpop.permute.xlu0 %6961
      %6963 = vrot.lane.b32.xlu0 %v5924, 112
      %v6964 = vpop.permute.xlu0 %6963
      %v6965 = vsel %vm1382, %v6934, %v6950
      %v6966 = vsel %vm1382, %v6936, %v6952
      %v6967 = vsel %vm1382, %v6938, %v6954
      %v6968 = vsel %vm1382, %v6940, %v6956
      %v6969 = vsel %vm1382, %v6942, %v6958
      %v6970 = vsel %vm1382, %v6944, %v6960
      %v6971 = vsel %vm1382, %v6946, %v6962
      %v6972 = vsel %vm1382, %v6948, %v6964
      %v6973 = vsel %vm1382, %v6950, %v6934
      %v6974 = vsel %vm1382, %v6952, %v6936
      %v6975 = vsel %vm1382, %v6954, %v6938
      %v6976 = vsel %vm1382, %v6956, %v6940
      %v6977 = vsel %vm1382, %v6958, %v6942
      %v6978 = vsel %vm1382, %v6960, %v6944
      %v6979 = vsel %vm1382, %v6962, %v6946
      %v6980 = vsel %vm1382, %v6964, %v6948
      %v6981 = vmul.f32 %v6965, %v1391
      %v6982 = vmul.f32 %v6973, %v1395
      %v6983 = vmul.f32 %v6966, %v1391
      %v6984 = vmul.f32 %v6974, %v1395
      %v6985 = vmul.f32 %v6967, %v1391
      %v6986 = vmul.f32 %v6975, %v1395
      %v6987 = vmul.f32 %v6968, %v1391
      %v6988 = vmul.f32 %v6976, %v1395
      %v6989 = vmul.f32 %v6969, %v1391
      %v6990 = vmul.f32 %v6977, %v1395
      %v6991 = vmul.f32 %v6970, %v1391
      %v6992 = vmul.f32 %v6978, %v1395
      %v6993 = vmul.f32 %v6971, %v1391
      %v6994 = vmul.f32 %v6979, %v1395
      %v6995 = vmul.f32 %v6972, %v1391
      %v6996 = vmul.f32 %v6980, %v1395
      %s6997 = scalar_lea.vmem %s10, 112
      %v6998 = vld [vmem:[%s6997] sm:$0xff]
      %v6999 = vld [vmem:[%s6997 + $0x8] sm:$0xff]
      %v7001 = vsel %vm6060, %v6998, 0
      %v7004 = vsel %vm6060, %v6999, 0
      %7006 = vmatprep.subr.mxu0 0.0
      %7007 = vmatpush1.msra.mxu0 0.0
      %7008 = vmatprep.subr.mxu0 0.0
      %7009 = vmatpush1.msra.mxu0 0.0
      %7010 = vmatprep.subr.mxu0 0.0
      %7011 = vmatpush1.msra.mxu0 0.0
      %7012 = vmatprep.subr.mxu0 0.0
      %7013 = vmatpush1.msra.mxu0 0.0
      %7014 = vmatprep.subr.mxu0 0.0
      %7015 = vmatpush1.msra.mxu0 0.0
      %7016 = vmatprep.subr.mxu0 0.0
      %7017 = vmatpush1.msra.mxu0 0.0
      %7018 = vmatprep.subr.mxu0 0.0
      %7019 = vmatpush1.msra.mxu0 0.0
      %7020 = vmatprep.subr.mxu0 0.0
      %7021 = vmatpush1.msra.mxu0 0.0
      %7022 = vmatprep.subr.mxu0 %v6996
      %7023 = vmatpush1.msra.mxu0 %v6995
      %7024 = vmatprep.subr.mxu0 %v6994
      %7025 = vmatpush1.msra.mxu0 %v6993
      %7026 = vmatprep.subr.mxu0 %v6992
      %7027 = vmatpush1.msra.mxu0 %v6991
      %7028 = vmatprep.subr.mxu0 %v6990
      %7029 = vmatpush1.msra.mxu0 %v6989
      %7030 = vmatprep.subr.mxu0 %v6988
      %7031 = vmatpush1.msra.mxu0 %v6987
      %7032 = vmatprep.subr.mxu0 %v6986
      %7033 = vmatpush1.msra.mxu0 %v6985
      %7034 = vmatprep.subr.mxu0 %v6984
      %7035 = vmatpush1.msra.mxu0 %v6983
      %7036 = vmatprep.subr.mxu0 %v6982
      %7037 = vmatpush1.msra.mxu0 %v6981
      %7038 = vmatprep.subr.mxu0 0.0
      %7039 = vmatpush2.msra.mxu0 0.0
      %7040 = vmatprep.subr.mxu0 0.0
      %7041 = vmatpush2.msra.mxu0 0.0
      %7042 = vmatprep.subr.mxu0 0.0
      %7043 = vmatpush2.msra.mxu0 0.0
      %7044 = vmatprep.subr.mxu0 0.0
      %7045 = vmatpush2.msra.mxu0 0.0
      %7046 = vmatprep.subr.mxu0 0.0
      %7047 = vmatpush2.msra.mxu0 0.0
      %7048 = vmatprep.subr.mxu0 0.0
      %7049 = vmatpush2.msra.mxu0 0.0
      %7050 = vmatprep.subr.mxu0 0.0
      %7051 = vmatpush2.msra.mxu0 0.0
      %7052 = vmatprep.subr.mxu0 0.0
      %7053 = vmatpush2.msra.mxu0 0.0
      %7054 = vmatprep.subr.mxu0 0.0
      %7055 = vmatpush2.msra.mxu0 0.0
      %7056 = vmatprep.subr.mxu0 0.0
      %7057 = vmatpush2.msra.mxu0 0.0
      %7058 = vmatprep.subr.mxu0 0.0
      %7059 = vmatpush2.msra.mxu0 0.0
      %7060 = vmatprep.subr.mxu0 0.0
      %7061 = vmatpush2.msra.mxu0 0.0
      %7062 = vmatprep.subr.mxu0 0.0
      %7063 = vmatpush2.msra.mxu0 0.0
      %7064 = vmatprep.subr.mxu0 0.0
      %7065 = vmatpush2.msra.mxu0 0.0
      %7066 = vmatprep.subr.mxu0 0.0
      %7067 = vmatpush2.msra.mxu0 0.0
      %7068 = vmatprep.subr.mxu0 0.0
      %7069 = vmatpush2.msra.mxu0 0.0
      %7070 = vmatprep.mubr.f32.mxu0 0.0
      %7071 = vmatmul.mubr.f32.gmra.mxu0 %v7001
      %v7072 = vpop.f32.mrf.mxu0
      %v7073 = vadd.f32 0.0, %v7072
      %v7074 = vpop.f32.mrf.mxu0
      %v7075 = vadd.f32 0.0, %v7074
      %7076 = vmatprep.mubr.f32.mxu0 0.0
      %7077 = vmatmul.mubr.f32.gmra.mxu0 %v7004
      %v7078 = vpop.f32.mrf.mxu0
      %v7079 = vadd.f32 0.0, %v7078
      %v7080 = vpop.f32.mrf.mxu0
      %v7081 = vadd.f32 0.0, %v7080
      %7082 = vdwg.mxu0
      %v7083 = vadd.f32 %v6929, %v7073
      %v7084 = vadd.f32 %v6930, %v7075
      %v7085 = vadd.f32 %v6931, %v7079
      %v7086 = vadd.f32 %v6932, %v7081
      %7087 = vrot.lane.b32.xlu0 %v5909, 111
      %v7088 = vpop.permute.xlu0 %7087
      %7089 = vrot.lane.b32.xlu0 %v5911, 111
      %v7090 = vpop.permute.xlu0 %7089
      %7091 = vrot.lane.b32.xlu0 %v5913, 111
      %v7092 = vpop.permute.xlu0 %7091
      %7093 = vrot.lane.b32.xlu0 %v5915, 111
      %v7094 = vpop.permute.xlu0 %7093
      %7095 = vrot.lane.b32.xlu0 %v5917, 111
      %v7096 = vpop.permute.xlu0 %7095
      %7097 = vrot.lane.b32.xlu0 %v5919, 111
      %v7098 = vpop.permute.xlu0 %7097
      %7099 = vrot.lane.b32.xlu0 %v5921, 111
      %v7100 = vpop.permute.xlu0 %7099
      %7101 = vrot.lane.b32.xlu0 %v5923, 111
      %v7102 = vpop.permute.xlu0 %7101
      %7103 = vrot.lane.b32.xlu0 %v5910, 111
      %v7104 = vpop.permute.xlu0 %7103
      %7105 = vrot.lane.b32.xlu0 %v5912, 111
      %v7106 = vpop.permute.xlu0 %7105
      %7107 = vrot.lane.b32.xlu0 %v5914, 111
      %v7108 = vpop.permute.xlu0 %7107
      %7109 = vrot.lane.b32.xlu0 %v5916, 111
      %v7110 = vpop.permute.xlu0 %7109
      %7111 = vrot.lane.b32.xlu0 %v5918, 111
      %v7112 = vpop.permute.xlu0 %7111
      %7113 = vrot.lane.b32.xlu0 %v5920, 111
      %v7114 = vpop.permute.xlu0 %7113
      %7115 = vrot.lane.b32.xlu0 %v5922, 111
      %v7116 = vpop.permute.xlu0 %7115
      %7117 = vrot.lane.b32.xlu0 %v5924, 111
      %v7118 = vpop.permute.xlu0 %7117
      %v7119 = vsel %vm1524, %v7088, %v7104
      %v7120 = vsel %vm1524, %v7090, %v7106
      %v7121 = vsel %vm1524, %v7092, %v7108
      %v7122 = vsel %vm1524, %v7094, %v7110
      %v7123 = vsel %vm1524, %v7096, %v7112
      %v7124 = vsel %vm1524, %v7098, %v7114
      %v7125 = vsel %vm1524, %v7100, %v7116
      %v7126 = vsel %vm1524, %v7102, %v7118
      %v7127 = vsel %vm1524, %v7104, %v7088
      %v7128 = vsel %vm1524, %v7106, %v7090
      %v7129 = vsel %vm1524, %v7108, %v7092
      %v7130 = vsel %vm1524, %v7110, %v7094
      %v7131 = vsel %vm1524, %v7112, %v7096
      %v7132 = vsel %vm1524, %v7114, %v7098
      %v7133 = vsel %vm1524, %v7116, %v7100
      %v7134 = vsel %vm1524, %v7118, %v7102
      %v7135 = vmul.f32 %v7119, %v1533
      %v7136 = vmul.f32 %v7127, %v1537
      %v7137 = vmul.f32 %v7120, %v1533
      %v7138 = vmul.f32 %v7128, %v1537
      %v7139 = vmul.f32 %v7121, %v1533
      %v7140 = vmul.f32 %v7129, %v1537
      %v7141 = vmul.f32 %v7122, %v1533
      %v7142 = vmul.f32 %v7130, %v1537
      %v7143 = vmul.f32 %v7123, %v1533
      %v7144 = vmul.f32 %v7131, %v1537
      %v7145 = vmul.f32 %v7124, %v1533
      %v7146 = vmul.f32 %v7132, %v1537
      %v7147 = vmul.f32 %v7125, %v1533
      %v7148 = vmul.f32 %v7133, %v1537
      %v7149 = vmul.f32 %v7126, %v1533
      %v7150 = vmul.f32 %v7134, %v1537
      %s7151 = scalar_lea.vmem %s10, 128
      %v7152 = vld [vmem:[%s7151] sm:$0xff]
      %v7153 = vld [vmem:[%s7151 + $0x8] sm:$0xff]
      %v7155 = vsel %vm6060, %v7152, 0
      %v7158 = vsel %vm6060, %v7153, 0
      %7160 = vmatprep.subr.mxu0 0.0
      %7161 = vmatpush1.msra.mxu0 0.0
      %7162 = vmatprep.subr.mxu0 0.0
      %7163 = vmatpush1.msra.mxu0 0.0
      %7164 = vmatprep.subr.mxu0 0.0
      %7165 = vmatpush1.msra.mxu0 0.0
      %7166 = vmatprep.subr.mxu0 0.0
      %7167 = vmatpush1.msra.mxu0 0.0
      %7168 = vmatprep.subr.mxu0 0.0
      %7169 = vmatpush1.msra.mxu0 0.0
      %7170 = vmatprep.subr.mxu0 0.0
      %7171 = vmatpush1.msra.mxu0 0.0
      %7172 = vmatprep.subr.mxu0 0.0
      %7173 = vmatpush1.msra.mxu0 0.0
      %7174 = vmatprep.subr.mxu0 0.0
      %7175 = vmatpush1.msra.mxu0 0.0
      %7176 = vmatprep.subr.mxu0 %v7150
      %7177 = vmatpush1.msra.mxu0 %v7149
      %7178 = vmatprep.subr.mxu0 %v7148
      %7179 = vmatpush1.msra.mxu0 %v7147
      %7180 = vmatprep.subr.mxu0 %v7146
      %7181 = vmatpush1.msra.mxu0 %v7145
      %7182 = vmatprep.subr.mxu0 %v7144
      %7183 = vmatpush1.msra.mxu0 %v7143
      %7184 = vmatprep.subr.mxu0 %v7142
      %7185 = vmatpush1.msra.mxu0 %v7141
      %7186 = vmatprep.subr.mxu0 %v7140
      %7187 = vmatpush1.msra.mxu0 %v7139
      %7188 = vmatprep.subr.mxu0 %v7138
      %7189 = vmatpush1.msra.mxu0 %v7137
      %7190 = vmatprep.subr.mxu0 %v7136
      %7191 = vmatpush1.msra.mxu0 %v7135
      %7192 = vmatprep.subr.mxu0 0.0
      %7193 = vmatpush2.msra.mxu0 0.0
      %7194 = vmatprep.subr.mxu0 0.0
      %7195 = vmatpush2.msra.mxu0 0.0
      %7196 = vmatprep.subr.mxu0 0.0
      %7197 = vmatpush2.msra.mxu0 0.0
      %7198 = vmatprep.subr.mxu0 0.0
      %7199 = vmatpush2.msra.mxu0 0.0
      %7200 = vmatprep.subr.mxu0 0.0
      %7201 = vmatpush2.msra.mxu0 0.0
      %7202 = vmatprep.subr.mxu0 0.0
      %7203 = vmatpush2.msra.mxu0 0.0
      %7204 = vmatprep.subr.mxu0 0.0
      %7205 = vmatpush2.msra.mxu0 0.0
      %7206 = vmatprep.subr.mxu0 0.0
      %7207 = vmatpush2.msra.mxu0 0.0
      %7208 = vmatprep.subr.mxu0 0.0
      %7209 = vmatpush2.msra.mxu0 0.0
      %7210 = vmatprep.subr.mxu0 0.0
      %7211 = vmatpush2.msra.mxu0 0.0
      %7212 = vmatprep.subr.mxu0 0.0
      %7213 = vmatpush2.msra.mxu0 0.0
      %7214 = vmatprep.subr.mxu0 0.0
      %7215 = vmatpush2.msra.mxu0 0.0
      %7216 = vmatprep.subr.mxu0 0.0
      %7217 = vmatpush2.msra.mxu0 0.0
      %7218 = vmatprep.subr.mxu0 0.0
      %7219 = vmatpush2.msra.mxu0 0.0
      %7220 = vmatprep.subr.mxu0 0.0
      %7221 = vmatpush2.msra.mxu0 0.0
      %7222 = vmatprep.subr.mxu0 0.0
      %7223 = vmatpush2.msra.mxu0 0.0
      %7224 = vmatprep.mubr.f32.mxu0 0.0
      %7225 = vmatmul.mubr.f32.gmra.mxu0 %v7155
      %v7226 = vpop.f32.mrf.mxu0
      %v7227 = vadd.f32 0.0, %v7226
      %v7228 = vpop.f32.mrf.mxu0
      %v7229 = vadd.f32 0.0, %v7228
      %7230 = vmatprep.mubr.f32.mxu0 0.0
      %7231 = vmatmul.mubr.f32.gmra.mxu0 %v7158
      %v7232 = vpop.f32.mrf.mxu0
      %v7233 = vadd.f32 0.0, %v7232
      %v7234 = vpop.f32.mrf.mxu0
      %v7235 = vadd.f32 0.0, %v7234
      %7236 = vdwg.mxu0
      %v7237 = vadd.f32 %v7083, %v7227
      %v7238 = vadd.f32 %v7084, %v7229
      %v7239 = vadd.f32 %v7085, %v7233
      %v7240 = vadd.f32 %v7086, %v7235
      %7242 = vset.pattern.permute.xlu0 0
      %7243 = vperm.xlu0 %7242, %v5925
      %v7244 = vpop.permute.xlu0 %7243
      %7247 = vset.pattern.permute.xlu0 0
      %7248 = vperm.xlu0 %7247, %v5926
      %v7249 = vpop.permute.xlu0 %7248
      %v7251 = vadd.f32 %v7237, %v7244
      %v7252 = vadd.f32 %v7238, %v7244
      %v7253 = vadd.f32 %v7239, %v7249
      %v7254 = vadd.f32 %v7240, %v7249
      %7255 = vst [vmem:[%s413] sm:$0xff] %v7251
      %7256 = vst [vmem:[%s413 + $0x8] sm:$0xff] %v7252
      %7257 = vst [vmem:[%s413 + $0x10] sm:$0xff] %v7253
      %7258 = vst [vmem:[%s413 + $0x18] sm:$0xff] %v7254
      %p7259 = scmp.lt.s32.totalorder %s23, 1
      %s7260 = scalar_select %p7259, %s23, 1
      %s7261 = smul.addr %s7260, 4
      %s7262 = smul.addr %s7261, 8
      %s7263 = scalar_lea.vmem %s12, %s7262
      // Predicated region
      $region69: #{decoder_forward.1} parent=67 // pred_check
        %p7264 = pneg %p298
      $region70: #{decoder_forward.1} parent=67 // pred_check_branch
        %7266 = sbr.rel (%p7264) target = $region72
      $region71: #{decoder_forward.1} parent=67 // pred_region
        _
      $region72: #{decoder_forward.1} parent=67 // pred_fallthru
        _
    $region68: #{decoder_forward.1} parent=5 // pred_fallthru
      _
    %p7267 = scmp.le.s32.totalorder 2, %s18
    // Predicated region
    $region73: #{decoder_forward.1} parent=5 // pred_check
      %p7268 = pneg %p7267
    $region74: #{decoder_forward.1} parent=5 // pred_check_branch
      %7270 = sbr.rel (%p7268) target = $region76
    $region75: #{decoder_forward.1} parent=5 // pred_region
      %s7271 = ssub.s32 %s18, 2
      // Predicated region
      $region77: #{decoder_forward.1} parent=75 // pred_check
        %p7272 = pneg %p304
      $region78: #{decoder_forward.1} parent=75 // pred_check_branch
        %7274 = sbr.rel (%p7272) target = $region80
      $region79: #{decoder_forward.1} parent=75 // pred_region
        %p7275 = scmp.lt.s32.totalorder %s24, 1
        %s7276 = scalar_select %p7275, %s24, 1
        %s7277 = smul.addr %s7276, 4
        %s7278 = smul.addr %s7277, 8
        %s7279 = scalar_lea.vmem %s12, %s7278
      $region80: #{decoder_forward.1} parent=75 // pred_fallthru
        _
    $region76: #{decoder_forward.1} parent=5 // pred_fallthru
      _
  $region6: #{decoder_forward.1} parent=0 // loop_footer
    %s22 = sadd.s32 1, %s18
  $region7: #{decoder_forward.1} parent=0 // loop_footer_branch
    %17 = sbr.rel target = $region3
  $region8: #{decoder_forward.1} parent=0 // loop_exit
    _

</llo_original>
